<compile_context>
chip_gen: v7x
topology: tpu7x:2x2x1
jax: 0.10.0
libtpu: 0.0.40
codegen_flags: <defaults>
</compile_context>

<pallas_src>
import functools

import jax
import jax.numpy as jnp
import numpy as np
from jax.experimental import pallas as pl
from jax.experimental.pallas import tpu as pltpu

LANES = 128


def _round_up(x, m):
    return (x + m - 1) // m * m


# ----------------------------------------------------------------------------
# The single fused Pallas kernel
# ----------------------------------------------------------------------------
def _dcgan_kernel(p1_ref, w1_ref, w2_ref, w3_ref, w4_ref, w5_ref,
                  aff_ref, linw_ref, out_ref,
                  act2, act3, act4p, act5, pbuf,
                  *, B, H1, W1, H4, W4, H5, W5, slope):
    f32 = jnp.float32
    bf16 = jnp.bfloat16
    Hp, Wp = H1 + 2, W1 + 2                       # padded spatial dims for 3x3/pad1
    Mb = _round_up((H1 - 1) * Wp + W1, 8)         # per-batch row pitch in pbuf
    span = (H1 - 1) * Wp + W1                     # contiguous rows copied per tap

    # ---- zero-init scratch: padding rings and padded channels must be 0 -----
    act2[...] = jnp.zeros_like(act2)
    act3[...] = jnp.zeros_like(act3)
    act4p[...] = jnp.zeros_like(act4p)
    pbuf[...] = jnp.zeros_like(pbuf)

    def lrelu(y):
        return jnp.where(y >= 0.0, y, slope * y)

    def affine(y, row):                           # folded BN / bias, f32 epilogue
        return y * aff_ref[row:row + 1, :] + aff_ref[row + 1:row + 2, :]

    # ------------------ conv1 (4x4, stride 2, pad 1) + LeakyReLU -------------
    # Patches were built wrapper-side (tiny); one bf16 MXU matmul here.
    y1 = jnp.dot(p1_ref[...], w1_ref[...], preferred_element_type=f32)
    y1 = lrelu(affine(y1, 0))
    for b in range(B):
        for ho in range(H1):
            d0 = b * Hp * Wp + (ho + 1) * Wp + 1
            s0 = b * H1 * W1 + ho * W1
            act2[d0:d0 + W1, :] = y1[s0:s0 + W1, :]

    # ---------- conv2 / conv3 (3x3, stride 1, pad 1) + BN + LeakyReLU --------
    def conv3x3_s1(src, dst, w_ref, aff_row):
        # In-kernel im2col: one contiguous row-block copy per (batch, tap).
        # pbuf rows b*Mb + ho*Wp + wo hold the patch for output (ho, wo); the
        # extra rows (wo >= W1) are junk and simply never scattered back.
        for b in range(B):
            for i in range(3):
                for j in range(3):
                    s0 = b * Hp * Wp + i * Wp + j
                    c0 = (i * 3 + j) * LANES
                    pbuf[b * Mb:b * Mb + span, c0:c0 + LANES] = (
                        src[s0:s0 + span, :].astype(bf16))
        y = jnp.dot(pbuf[...], w_ref[...], preferred_element_type=f32)
        y = lrelu(affine(y, aff_row))
        for b in range(B):
            for ho in range(H1):
                d0 = b * Hp * Wp + (ho + 1) * Wp + 1
                s0 = b * Mb + ho * Wp
                dst[d0:d0 + W1, :] = y[s0:s0 + W1, :]

    conv3x3_s1(act2, act3, w2_ref, 2)
    conv3x3_s1(act3, act4p, w3_ref, 4)

    # --------------- conv4 (3x3, stride 2, pad 1) + BN + LeakyReLU -----------
    M4 = B * H4 * W4
    for b in range(B):
        for ho in range(H4):
            for i in range(3):
                r0 = b * Hp * Wp + (2 * ho + i) * Wp
                blk = act4p[r0:r0 + 2 * (W4 - 1) + 3, :]        # rows w = 0..2*W4
                for j in range(3):
                    sub = jnp.concatenate(
                        [blk[j + 2 * wo:j + 2 * wo + 1, :] for wo in range(W4)],
                        axis=0)
                    d0 = b * H4 * W4 + ho * W4
                    c0 = (i * 3 + j) * LANES
                    pbuf[d0:d0 + W4, c0:c0 + LANES] = sub.astype(bf16)
    y4 = jnp.dot(pbuf[0:M4, :], w4_ref[...], preferred_element_type=f32)
    y4 = lrelu(affine(y4, 6))
    act5[...] = y4                       # conv4 output rows map 1:1 to act5 rows

    # ----------------- conv5 (3x3, stride 1, pad 0), no norm/act -------------
    M5 = B * H5 * W5
    for b in range(B):
        for ho in range(H5):
            for i in range(3):
                for j in range(3):
                    s0 = b * H4 * W4 + (ho + i) * W4 + j
                    d0 = b * H5 * W5 + ho * W5
                    c0 = (i * 3 + j) * LANES
                    pbuf[d0:d0 + W5, c0:c0 + LANES] = act5[s0:s0 + W5, :].astype(bf16)
    y5 = jnp.dot(pbuf[0:M5, :], w5_ref[...], preferred_element_type=f32)

    # ---------- classifier (Linear(num_features, 1) + Sigmoid) epilogue ------
    F = H5 * W5
    weighted = y5 * linw_ref[...]                 # only lane 0 of y5 is nonzero
    for b in range(B):
        srow = jnp.sum(weighted[b * F:(b + 1) * F, :], axis=0, keepdims=True)
        stot = jnp.sum(srow, axis=1, keepdims=True)              # (1, 1)
        out_ref[b:b + 1, :] = jax.nn.sigmoid(stot + aff_ref[10:11, :])


# ----------------------------------------------------------------------------
# Wrapper-side glue (tiny, one-time data prep; jitted end-to-end)
# ----------------------------------------------------------------------------
def im2col_nhwc(x, kh, kw, stride, pad):
    """x: (B, H, W, C) -> patches (B*Ho*Wo, kh*kw*C), Ho, Wo."""
    B, H, W, C = x.shape
    xp = jnp.pad(x, ((0, 0), (pad, pad), (pad, pad), (0, 0)))
    Ho = (H + 2 * pad - kh) // stride + 1
    Wo = (W + 2 * pad - kw) // stride + 1
    cols = []
    for i in range(kh):
        for j in range(kw):
            cols.append(xp[:, i:i + stride * Ho:stride, j:j + stride * Wo:stride, :])
    patches = jnp.concatenate(cols, axis=-1)
    return patches.reshape(B * Ho * Wo, kh * kw * C), Ho, Wo


def _bn_fold(bn, eps=1e-5):
    gamma, beta, mean, var = bn
    scale = gamma / jnp.sqrt(var + eps)
    shift = beta - mean * scale
    return scale, shift


def _pad_vec(v, n, fill):
    return jnp.pad(v, (0, n - v.shape[0]), constant_values=fill)


def _tap_weight_block(w_hwio):
    """(3,3,Cin,Cout) -> (9*128, 128) bf16 per-tap blocks (zero padded)."""
    kh, kw, cin, cout = w_hwio.shape
    wp = jnp.pad(w_hwio, ((0, 0), (0, 0), (0, LANES - cin), (0, LANES - cout)))
    return wp.reshape(kh * kw * LANES, LANES).astype(jnp.bfloat16)


def discriminator_forward(x_nchw, params, slope=0.2):
    x = jnp.transpose(x_nchw, (0, 2, 3, 1)).astype(jnp.float32)   # NCHW -> NHWC
    B, H0, W0, C0 = x.shape

    # conv1 patches wrapper-side: the raw input is a few KB, so the duplicated
    # patches are negligible HBM traffic; all other layers gather in-kernel.
    patches1, H1, W1 = im2col_nhwc(x, 4, 4, 2, 1)
    K1 = patches1.shape[1]
    K1p = _round_up(K1, LANES)
    patches1 = jnp.pad(patches1, ((0, 0), (0, K1p - K1))).astype(jnp.bfloat16)

    c1 = params["w1"].shape[-1]
    w1 = params["w1"].reshape(K1, c1)
    w1 = jnp.pad(w1, ((0, K1p - K1), (0, LANES - c1))).astype(jnp.bfloat16)

    w2 = _tap_weight_block(params["w2"])
    w3 = _tap_weight_block(params["w3"])
    w4 = _tap_weight_block(params["w4"])
    w5 = _tap_weight_block(params["w5"])

    # Folded BatchNorm (eval / running stats) -> per-channel affine, f32.
    s2, b2 = _bn_fold(params["bn2"])
    s3, b3 = _bn_fold(params["bn3"])
    s4, b4 = _bn_fold(params["bn4"])
    ones = jnp.ones((LANES,), jnp.float32)
    zeros = jnp.zeros((LANES,), jnp.float32)
    aff = jnp.stack([
        ones, zeros,                                      # conv1: no norm / bias
        _pad_vec(s2, LANES, 1.0), _pad_vec(b2, LANES, 0.0),
        _pad_vec(s3, LANES, 1.0), _pad_vec(b3, LANES, 0.0),
        _pad_vec(s4, LANES, 1.0), _pad_vec(b4, LANES, 0.0),
        ones, zeros,                                      # conv5: no norm / bias
        jnp.full((LANES,), params["bl"][0], jnp.float32), # classifier bias
        zeros,
    ], axis=0).astype(jnp.float32)

    H4 = (H1 + 2 - 3) // 2 + 1
    W4 = (W1 + 2 - 3) // 2 + 1
    H5, W5 = H4 - 2, W4 - 2
    F = H5 * W5

    # Linear weight laid out per output-feature row, replicated across lanes.
    linw = jnp.broadcast_to(jnp.tile(params["wl"][:, 0], B)[:, None],
                            (B * F, LANES)).astype(jnp.float32)

    Hp, Wp = H1 + 2, W1 + 2
    Mb = _round_up((H1 - 1) * Wp + W1, 8)

    kern = functools.partial(
        _dcgan_kernel, B=B, H1=H1, W1=W1, H4=H4, W4=W4, H5=H5, W5=W5,
        slope=float(slope))

    vmem = pl.BlockSpec(memory_space=pltpu.MemorySpace.VMEM)
    out = pl.pallas_call(
        kern,
        out_shape=jax.ShapeDtypeStruct((B, LANES), jnp.float32),
        in_specs=[vmem] * 8,
        out_specs=vmem,
        scratch_shapes=[
            pltpu.VMEM((B * Hp * Wp, LANES), jnp.float32),    # act2 (conv1 out, padded)
            pltpu.VMEM((B * Hp * Wp, LANES), jnp.float32),    # act3 (conv2 out, padded)
            pltpu.VMEM((B * Hp * Wp, LANES), jnp.float32),    # act4 (conv3 out, padded)
            pltpu.VMEM((B * H4 * W4, LANES), jnp.float32),    # act5 (conv4 out)
            pltpu.VMEM((B * Mb, 9 * LANES), jnp.bfloat16),    # shared patches buffer
        ],
    )(patches1, w1, w2, w3, w4, w5, aff, linw)
    return out[:, 0:1]


# ----------------------------------------------------------------------------
# Parameter construction (deterministic, in-script)
# ----------------------------------------------------------------------------
def make_params(key, num_input_channels, disc_init_channels, growth_rate):
    c0 = num_input_channels
    c1 = disc_init_channels
    c2 = c1 * growth_rate
    c3 = c1 * growth_rate ** 2
    c4 = c1 * growth_rate ** 3
    keys = jax.random.split(key, 12)

    def w(k, shape, scale=0.05):
        return jax.random.normal(k, shape, jnp.float32) * scale

    def bn(k, c):
        ks = jax.random.split(k, 4)
        gamma = 1.0 + 0.1 * jax.random.normal(ks[0], (c,), jnp.float32)
        beta = 0.05 * jax.random.normal(ks[1], (c,), jnp.float32)
        mean = 0.05 * jax.random.normal(ks[2], (c,), jnp.float32)
        var = 1.0 + 0.1 * jax.random.uniform(ks[3], (c,), jnp.float32)
        return gamma, beta, mean, var

    params = {
        "w1": w(keys[0], (4, 4, c0, c1)),
        "w2": w(keys[1], (3, 3, c1, c2)),
        "bn2": bn(keys[2], c2),
        "w3": w(keys[3], (3, 3, c2, c3)),
        "bn3": bn(keys[4], c3),
        "w4": w(keys[5], (3, 3, c3, c4)),
        "bn4": bn(keys[6], c4),
        "w5": w(keys[7], (3, 3, c4, 1)),
        "wl": None,
        "bl": 0.1 * jax.random.normal(keys[9], (1,), jnp.float32),
        "_lin_key": keys[8],
    }
    return params


# ----------------------------------------------------------------------------
# Pure-JAX reference for validation
# ----------------------------------------------------------------------------
def reference_forward(x_nchw, params, slope=0.2):
    x = jnp.transpose(x_nchw, (0, 2, 3, 1)).astype(jnp.float32)
    dn = ("NHWC", "HWIO", "NHWC")

    def conv(x, w, stride, pad):
        return jax.lax.conv_general_dilated(
            x, w, (stride, stride), [(pad, pad), (pad, pad)], dimension_numbers=dn)

    def lrelu(x):
        return jnp.where(x >= 0, x, slope * x)

    def bn(x, p, eps=1e-5):
        g, b, m, v = p
        return (x - m) / jnp.sqrt(v + eps) * g + b

    x = lrelu(conv(x, params["w1"], 2, 1))
    x = lrelu(bn(conv(x, params["w2"], 1, 1), params["bn2"]))
    x = lrelu(bn(conv(x, params["w3"], 1, 1), params["bn3"]))
    x = lrelu(bn(conv(x, params["w4"], 2, 1), params["bn4"]))
    x = conv(x, params["w5"], 1, 0)
    feats = jnp.transpose(x, (0, 3, 1, 2)).reshape(x.shape[0], -1)
    return jax.nn.sigmoid(feats @ params["wl"] + params["bl"])


# ----------------------------------------------------------------------------
if __name__ == "__main__":
    # Config consistent with the module: input_patch_size=(16,16), n_dimensions=2,
    # num_input_channels=4, growth_rate=2, disc_init_channels=8, slope=0.2.
    B, C, H, W = 2, 4, 16, 16
    growth_rate, disc_init_channels, slope = 2, 8, 0.2

    key = jax.random.PRNGKey(0)
    kx, kp = jax.random.split(key)
    x = jax.random.normal(kx, (B, C, H, W), jnp.float32)

    params = make_params(kp, C, disc_init_channels, growth_rate)

    # num_output_features: 16 -> conv1(s2) 8 -> conv2 8 -> conv3 8 -> conv4(s2) 4
    # -> conv5(k3,p0) 2  =>  1 * 2 * 2
    num_output_features = 1 * 2 * 2
    params["wl"] = 0.05 * jax.random.normal(
        params["_lin_key"], (num_output_features, 1), jnp.float32)

    fwd = jax.jit(functools.partial(discriminator_forward, slope=slope))
    out = jax.block_until_ready(fwd(x, params))

    ref = jax.block_until_ready(reference_forward(x, params, slope=slope))

    assert out.shape == (B, 1), out.shape
    # bf16 MXU operands (f32 accumulation) -> relaxed tolerances.
    np.testing.assert_allclose(np.asarray(out), np.asarray(ref), rtol=2e-2, atol=2e-2)
    print("KERNEL_OK")
</pallas_src>

<mosaic_0001>
module attributes {stable_mosaic.version = 11 : i64} {
  func.func @_dcgan_kernel(%arg0: memref<128x128xbf16, #tpu.memory_space<vmem>>, %arg1: memref<128x128xbf16, #tpu.memory_space<vmem>>, %arg2: memref<1152x128xbf16, #tpu.memory_space<vmem>>, %arg3: memref<1152x128xbf16, #tpu.memory_space<vmem>>, %arg4: memref<1152x128xbf16, #tpu.memory_space<vmem>>, %arg5: memref<1152x128xbf16, #tpu.memory_space<vmem>>, %arg6: memref<12x128xf32, #tpu.memory_space<vmem>>, %arg7: memref<8x128xf32, #tpu.memory_space<vmem>>, %arg8: memref<2x128xf32, #tpu.memory_space<vmem>>, %arg9: memref<200x128xf32, #tpu.memory_space<vmem>>, %arg10: memref<200x128xf32, #tpu.memory_space<vmem>>, %arg11: memref<200x128xf32, #tpu.memory_space<vmem>>, %arg12: memref<32x128xf32, #tpu.memory_space<vmem>>, %arg13: memref<160x1152xbf16, #tpu.memory_space<vmem>>) attributes {dimension_semantics = [], scalar_prefetch = 0 : i64, scratch_operands = 5 : i64, tpu.core_type = #tpu.core_type<tc>} {
    %cst = arith.constant 0.000000e+00 : f32
    %0 = vector.broadcast %cst : f32 to vector<200x128xf32>
    %c0 = arith.constant 0 : index
    %c0_0 = arith.constant 0 : index
    %1 = vector.load %arg9[%c0, %c0_0] : memref<200x128xf32, #tpu.memory_space<vmem>>, vector<200x128xf32>
    tpu.vector_store %arg9[%c0, %c0_0], %0 {strides = array<i32>} : memref<200x128xf32, #tpu.memory_space<vmem>>, vector<200x128xf32>,
    %cst_1 = arith.constant 0.000000e+00 : f32
    %2 = vector.broadcast %cst_1 : f32 to vector<200x128xf32>
    %c0_2 = arith.constant 0 : index
    %c0_3 = arith.constant 0 : index
    %3 = vector.load %arg10[%c0_2, %c0_3] : memref<200x128xf32, #tpu.memory_space<vmem>>, vector<200x128xf32>
    tpu.vector_store %arg10[%c0_2, %c0_3], %2 {strides = array<i32>} : memref<200x128xf32, #tpu.memory_space<vmem>>, vector<200x128xf32>,
    %cst_4 = arith.constant 0.000000e+00 : f32
    %4 = vector.broadcast %cst_4 : f32 to vector<200x128xf32>
    %c0_5 = arith.constant 0 : index
    %c0_6 = arith.constant 0 : index
    %5 = vector.load %arg11[%c0_5, %c0_6] : memref<200x128xf32, #tpu.memory_space<vmem>>, vector<200x128xf32>
    tpu.vector_store %arg11[%c0_5, %c0_6], %4 {strides = array<i32>} : memref<200x128xf32, #tpu.memory_space<vmem>>, vector<200x128xf32>,
    %cst_7 = arith.constant 0.000000e+00 : bf16
    %6 = vector.broadcast %cst_7 : bf16 to vector<160x1152xbf16>
    %c0_8 = arith.constant 0 : index
    %c0_9 = arith.constant 0 : index
    %7 = vector.load %arg13[%c0_8, %c0_9] : memref<160x1152xbf16, #tpu.memory_space<vmem>>, vector<160x1152xbf16>
    tpu.vector_store %arg13[%c0_8, %c0_9], %6 {strides = array<i32>} : memref<160x1152xbf16, #tpu.memory_space<vmem>>, vector<160x1152xbf16>,
    %c0_10 = arith.constant 0 : index
    %c0_11 = arith.constant 0 : index
    %8 = vector.load %arg0[%c0_10, %c0_11] : memref<128x128xbf16, #tpu.memory_space<vmem>>, vector<128x128xbf16>
    %c0_12 = arith.constant 0 : index
    %c0_13 = arith.constant 0 : index
    %9 = vector.load %arg1[%c0_12, %c0_13] : memref<128x128xbf16, #tpu.memory_space<vmem>>, vector<128x128xbf16>
    %cst_14 = arith.constant dense<0.000000e+00> : vector<128x128xf32>
    %10 = tpu.matmul %8, %9, %cst_14 {dimension_numbers = #tpu.dot_dimension_numbers<[1], [0], [0], [1], [0, 0, 1, 1], [], []>} : vector<128x128xbf16>, vector<128x128xbf16>, vector<128x128xf32> -> vector<128x128xf32>
    %c0_15 = arith.constant 0 : index
    %c0_16 = arith.constant 0 : index
    %11 = vector.load %arg6[%c0_15, %c0_16] : memref<12x128xf32, #tpu.memory_space<vmem>>, vector<1x128xf32>
    %12 = vector.broadcast %11 : vector<1x128xf32> to vector<128x128xf32>
    %13 = arith.mulf %10, %12 : vector<128x128xf32>
    %c1 = arith.constant 1 : index
    %c0_17 = arith.constant 0 : index
    %14 = vector.load %arg6[%c1, %c0_17] : memref<12x128xf32, #tpu.memory_space<vmem>>, vector<1x128xf32>
    %15 = vector.broadcast %14 : vector<1x128xf32> to vector<128x128xf32>
    %16 = arith.addf %13, %15 : vector<128x128xf32>
    %cst_18 = arith.constant 0.000000e+00 : f32
    %17 = vector.broadcast %cst_18 : f32 to vector<128x128xf32>
    %18 = arith.cmpf oge, %16, %17 : vector<128x128xf32>
    %cst_19 = arith.constant 2.000000e-01 : f32
    %19 = vector.broadcast %cst_19 : f32 to vector<128x128xf32>
    %20 = arith.mulf %19, %16 : vector<128x128xf32>
    %21 = arith.select %18, %16, %20 : vector<128x128xi1>, vector<128x128xf32>
    %22 = vector.extract_strided_slice %21 {offsets = [0, 0], sizes = [8, 128], strides = [1, 1]} : vector<128x128xf32> to vector<8x128xf32>
    %c11 = arith.constant 11 : index
    %c0_20 = arith.constant 0 : index
    %23 = vector.load %arg9[%c11, %c0_20] : memref<200x128xf32, #tpu.memory_space<vmem>>, vector<8x128xf32>
    tpu.vector_store %arg9[%c11, %c0_20], %22 {strides = array<i32>} : memref<200x128xf32, #tpu.memory_space<vmem>>, vector<8x128xf32>,
    %24 = vector.extract_strided_slice %21 {offsets = [8, 0], sizes = [8, 128], strides = [1, 1]} : vector<128x128xf32> to vector<8x128xf32>
    %c21 = arith.constant 21 : index
    %c0_21 = arith.constant 0 : index
    %25 = vector.load %arg9[%c21, %c0_21] : memref<200x128xf32, #tpu.memory_space<vmem>>, vector<8x128xf32>
    tpu.vector_store %arg9[%c21, %c0_21], %24 {strides = array<i32>} : memref<200x128xf32, #tpu.memory_space<vmem>>, vector<8x128xf32>,
    %26 = vector.extract_strided_slice %21 {offsets = [16, 0], sizes = [8, 128], strides = [1, 1]} : vector<128x128xf32> to vector<8x128xf32>
    %c31 = arith.constant 31 : index
    %c0_22 = arith.constant 0 : index
    %27 = vector.load %arg9[%c31, %c0_22] : memref<200x128xf32, #tpu.memory_space<vmem>>, vector<8x128xf32>
    tpu.vector_store %arg9[%c31, %c0_22], %26 {strides = array<i32>} : memref<200x128xf32, #tpu.memory_space<vmem>>, vector<8x128xf32>,
    %28 = vector.extract_strided_slice %21 {offsets = [24, 0], sizes = [8, 128], strides = [1, 1]} : vector<128x128xf32> to vector<8x128xf32>
    %c41 = arith.constant 41 : index
    %c0_23 = arith.constant 0 : index
    %29 = vector.load %arg9[%c41, %c0_23] : memref<200x128xf32, #tpu.memory_space<vmem>>, vector<8x128xf32>
    tpu.vector_store %arg9[%c41, %c0_23], %28 {strides = array<i32>} : memref<200x128xf32, #tpu.memory_space<vmem>>, vector<8x128xf32>,
    %30 = vector.extract_strided_slice %21 {offsets = [32, 0], sizes = [8, 128], strides = [1, 1]} : vector<128x128xf32> to vector<8x128xf32>
    %c51 = arith.constant 51 : index
    %c0_24 = arith.constant 0 : index
    %31 = vector.load %arg9[%c51, %c0_24] : memref<200x128xf32, #tpu.memory_space<vmem>>, vector<8x128xf32>
    tpu.vector_store %arg9[%c51, %c0_24], %30 {strides = array<i32>} : memref<200x128xf32, #tpu.memory_space<vmem>>, vector<8x128xf32>,
    %32 = vector.extract_strided_slice %21 {offsets = [40, 0], sizes = [8, 128], strides = [1, 1]} : vector<128x128xf32> to vector<8x128xf32>
    %c61 = arith.constant 61 : index
    %c0_25 = arith.constant 0 : index
    %33 = vector.load %arg9[%c61, %c0_25] : memref<200x128xf32, #tpu.memory_space<vmem>>, vector<8x128xf32>
    tpu.vector_store %arg9[%c61, %c0_25], %32 {strides = array<i32>} : memref<200x128xf32, #tpu.memory_space<vmem>>, vector<8x128xf32>,
    %34 = vector.extract_strided_slice %21 {offsets = [48, 0], sizes = [8, 128], strides = [1, 1]} : vector<128x128xf32> to vector<8x128xf32>
    %c71 = arith.constant 71 : index
    %c0_26 = arith.constant 0 : index
    %35 = vector.load %arg9[%c71, %c0_26] : memref<200x128xf32, #tpu.memory_space<vmem>>, vector<8x128xf32>
    tpu.vector_store %arg9[%c71, %c0_26], %34 {strides = array<i32>} : memref<200x128xf32, #tpu.memory_space<vmem>>, vector<8x128xf32>,
    %36 = vector.extract_strided_slice %21 {offsets = [56, 0], sizes = [8, 128], strides = [1, 1]} : vector<128x128xf32> to vector<8x128xf32>
    %c81 = arith.constant 81 : index
    %c0_27 = arith.constant 0 : index
    %37 = vector.load %arg9[%c81, %c0_27] : memref<200x128xf32, #tpu.memory_space<vmem>>, vector<8x128xf32>
    tpu.vector_store %arg9[%c81, %c0_27], %36 {strides = array<i32>} : memref<200x128xf32, #tpu.memory_space<vmem>>, vector<8x128xf32>,
    %38 = vector.extract_strided_slice %21 {offsets = [64, 0], sizes = [8, 128], strides = [1, 1]} : vector<128x128xf32> to vector<8x128xf32>
    %c111 = arith.constant 111 : index
    %c0_28 = arith.constant 0 : index
    %39 = vector.load %arg9[%c111, %c0_28] : memref<200x128xf32, #tpu.memory_space<vmem>>, vector<8x128xf32>
    tpu.vector_store %arg9[%c111, %c0_28], %38 {strides = array<i32>} : memref<200x128xf32, #tpu.memory_space<vmem>>, vector<8x128xf32>,
    %40 = vector.extract_strided_slice %21 {offsets = [72, 0], sizes = [8, 128], strides = [1, 1]} : vector<128x128xf32> to vector<8x128xf32>
    %c121 = arith.constant 121 : index
    %c0_29 = arith.constant 0 : index
    %41 = vector.load %arg9[%c121, %c0_29] : memref<200x128xf32, #tpu.memory_space<vmem>>, vector<8x128xf32>
    tpu.vector_store %arg9[%c121, %c0_29], %40 {strides = array<i32>} : memref<200x128xf32, #tpu.memory_space<vmem>>, vector<8x128xf32>,
    %42 = vector.extract_strided_slice %21 {offsets = [80, 0], sizes = [8, 128], strides = [1, 1]} : vector<128x128xf32> to vector<8x128xf32>
    %c131 = arith.constant 131 : index
    %c0_30 = arith.constant 0 : index
    %43 = vector.load %arg9[%c131, %c0_30] : memref<200x128xf32, #tpu.memory_space<vmem>>, vector<8x128xf32>
    tpu.vector_store %arg9[%c131, %c0_30], %42 {strides = array<i32>} : memref<200x128xf32, #tpu.memory_space<vmem>>, vector<8x128xf32>,
    %44 = vector.extract_strided_slice %21 {offsets = [88, 0], sizes = [8, 128], strides = [1, 1]} : vector<128x128xf32> to vector<8x128xf32>
    %c141 = arith.constant 141 : index
    %c0_31 = arith.constant 0 : index
    %45 = vector.load %arg9[%c141, %c0_31] : memref<200x128xf32, #tpu.memory_space<vmem>>, vector<8x128xf32>
    tpu.vector_store %arg9[%c141, %c0_31], %44 {strides = array<i32>} : memref<200x128xf32, #tpu.memory_space<vmem>>, vector<8x128xf32>,
    %46 = vector.extract_strided_slice %21 {offsets = [96, 0], sizes = [8, 128], strides = [1, 1]} : vector<128x128xf32> to vector<8x128xf32>
    %c151 = arith.constant 151 : index
    %c0_32 = arith.constant 0 : index
    %47 = vector.load %arg9[%c151, %c0_32] : memref<200x128xf32, #tpu.memory_space<vmem>>, vector<8x128xf32>
    tpu.vector_store %arg9[%c151, %c0_32], %46 {strides = array<i32>} : memref<200x128xf32, #tpu.memory_space<vmem>>, vector<8x128xf32>,
    %48 = vector.extract_strided_slice %21 {offsets = [104, 0], sizes = [8, 128], strides = [1, 1]} : vector<128x128xf32> to vector<8x128xf32>
    %c161 = arith.constant 161 : index
    %c0_33 = arith.constant 0 : index
    %49 = vector.load %arg9[%c161, %c0_33] : memref<200x128xf32, #tpu.memory_space<vmem>>, vector<8x128xf32>
    tpu.vector_store %arg9[%c161, %c0_33], %48 {strides = array<i32>} : memref<200x128xf32, #tpu.memory_space<vmem>>, vector<8x128xf32>,
    %50 = vector.extract_strided_slice %21 {offsets = [112, 0], sizes = [8, 128], strides = [1, 1]} : vector<128x128xf32> to vector<8x128xf32>
    %c171 = arith.constant 171 : index
    %c0_34 = arith.constant 0 : index
    %51 = vector.load %arg9[%c171, %c0_34] : memref<200x128xf32, #tpu.memory_space<vmem>>, vector<8x128xf32>
    tpu.vector_store %arg9[%c171, %c0_34], %50 {strides = array<i32>} : memref<200x128xf32, #tpu.memory_space<vmem>>, vector<8x128xf32>,
    %52 = vector.extract_strided_slice %21 {offsets = [120, 0], sizes = [8, 128], strides = [1, 1]} : vector<128x128xf32> to vector<8x128xf32>
    %c181 = arith.constant 181 : index
    %c0_35 = arith.constant 0 : index
    %53 = vector.load %arg9[%c181, %c0_35] : memref<200x128xf32, #tpu.memory_space<vmem>>, vector<8x128xf32>
    tpu.vector_store %arg9[%c181, %c0_35], %52 {strides = array<i32>} : memref<200x128xf32, #tpu.memory_space<vmem>>, vector<8x128xf32>,
    %c0_36 = arith.constant 0 : index
    %c0_37 = arith.constant 0 : index
    %54 = vector.load %arg9[%c0_36, %c0_37] : memref<200x128xf32, #tpu.memory_space<vmem>>, vector<78x128xf32>
    %55 = arith.truncf %54 : vector<78x128xf32> to vector<78x128xbf16>
    %c0_38 = arith.constant 0 : index
    %c0_39 = arith.constant 0 : index
    %56 = vector.load %arg13[%c0_38, %c0_39] : memref<160x1152xbf16, #tpu.memory_space<vmem>>, vector<78x128xbf16>
    tpu.vector_store %arg13[%c0_38, %c0_39], %55 {strides = array<i32>} : memref<160x1152xbf16, #tpu.memory_space<vmem>>, vector<78x128xbf16>,
    %c1_40 = arith.constant 1 : index
    %c0_41 = arith.constant 0 : index
    %57 = vector.load %arg9[%c1_40, %c0_41] : memref<200x128xf32, #tpu.memory_space<vmem>>, vector<78x128xf32>
    %58 = arith.truncf %57 : vector<78x128xf32> to vector<78x128xbf16>
    %c0_42 = arith.constant 0 : index
    %c128 = arith.constant 128 : index
    %59 = vector.load %arg13[%c0_42, %c128] : memref<160x1152xbf16, #tpu.memory_space<vmem>>, vector<78x128xbf16>
    tpu.vector_store %arg13[%c0_42, %c128], %58 {strides = array<i32>} : memref<160x1152xbf16, #tpu.memory_space<vmem>>, vector<78x128xbf16>,
    %c2 = arith.constant 2 : index
    %c0_43 = arith.constant 0 : index
    %60 = vector.load %arg9[%c2, %c0_43] : memref<200x128xf32, #tpu.memory_space<vmem>>, vector<78x128xf32>
    %61 = arith.truncf %60 : vector<78x128xf32> to vector<78x128xbf16>
    %c0_44 = arith.constant 0 : index
    %c256 = arith.constant 256 : index
    %62 = vector.load %arg13[%c0_44, %c256] : memref<160x1152xbf16, #tpu.memory_space<vmem>>, vector<78x128xbf16>
    tpu.vector_store %arg13[%c0_44, %c256], %61 {strides = array<i32>} : memref<160x1152xbf16, #tpu.memory_space<vmem>>, vector<78x128xbf16>,
    %c10 = arith.constant 10 : index
    %c0_45 = arith.constant 0 : index
    %63 = vector.load %arg9[%c10, %c0_45] : memref<200x128xf32, #tpu.memory_space<vmem>>, vector<78x128xf32>
    %64 = arith.truncf %63 : vector<78x128xf32> to vector<78x128xbf16>
    %c0_46 = arith.constant 0 : index
    %c384 = arith.constant 384 : index
    %65 = vector.load %arg13[%c0_46, %c384] : memref<160x1152xbf16, #tpu.memory_space<vmem>>, vector<78x128xbf16>
    tpu.vector_store %arg13[%c0_46, %c384], %64 {strides = array<i32>} : memref<160x1152xbf16, #tpu.memory_space<vmem>>, vector<78x128xbf16>,
    %c11_47 = arith.constant 11 : index
    %c0_48 = arith.constant 0 : index
    %66 = vector.load %arg9[%c11_47, %c0_48] : memref<200x128xf32, #tpu.memory_space<vmem>>, vector<78x128xf32>
    %67 = arith.truncf %66 : vector<78x128xf32> to vector<78x128xbf16>
    %c0_49 = arith.constant 0 : index
    %c512 = arith.constant 512 : index
    %68 = vector.load %arg13[%c0_49, %c512] : memref<160x1152xbf16, #tpu.memory_space<vmem>>, vector<78x128xbf16>
    tpu.vector_store %arg13[%c0_49, %c512], %67 {strides = array<i32>} : memref<160x1152xbf16, #tpu.memory_space<vmem>>, vector<78x128xbf16>,
    %c12 = arith.constant 12 : index
    %c0_50 = arith.constant 0 : index
    %69 = vector.load %arg9[%c12, %c0_50] : memref<200x128xf32, #tpu.memory_space<vmem>>, vector<78x128xf32>
    %70 = arith.truncf %69 : vector<78x128xf32> to vector<78x128xbf16>
    %c0_51 = arith.constant 0 : index
    %c640 = arith.constant 640 : index
    %71 = vector.load %arg13[%c0_51, %c640] : memref<160x1152xbf16, #tpu.memory_space<vmem>>, vector<78x128xbf16>
    tpu.vector_store %arg13[%c0_51, %c640], %70 {strides = array<i32>} : memref<160x1152xbf16, #tpu.memory_space<vmem>>, vector<78x128xbf16>,
    %c20 = arith.constant 20 : index
    %c0_52 = arith.constant 0 : index
    %72 = vector.load %arg9[%c20, %c0_52] : memref<200x128xf32, #tpu.memory_space<vmem>>, vector<78x128xf32>
    %73 = arith.truncf %72 : vector<78x128xf32> to vector<78x128xbf16>
    %c0_53 = arith.constant 0 : index
    %c768 = arith.constant 768 : index
    %74 = vector.load %arg13[%c0_53, %c768] : memref<160x1152xbf16, #tpu.memory_space<vmem>>, vector<78x128xbf16>
    tpu.vector_store %arg13[%c0_53, %c768], %73 {strides = array<i32>} : memref<160x1152xbf16, #tpu.memory_space<vmem>>, vector<78x128xbf16>,
    %c21_54 = arith.constant 21 : index
    %c0_55 = arith.constant 0 : index
    %75 = vector.load %arg9[%c21_54, %c0_55] : memref<200x128xf32, #tpu.memory_space<vmem>>, vector<78x128xf32>
    %76 = arith.truncf %75 : vector<78x128xf32> to vector<78x128xbf16>
    %c0_56 = arith.constant 0 : index
    %c896 = arith.constant 896 : index
    %77 = vector.load %arg13[%c0_56, %c896] : memref<160x1152xbf16, #tpu.memory_space<vmem>>, vector<78x128xbf16>
    tpu.vector_store %arg13[%c0_56, %c896], %76 {strides = array<i32>} : memref<160x1152xbf16, #tpu.memory_space<vmem>>, vector<78x128xbf16>,
    %c22 = arith.constant 22 : index
    %c0_57 = arith.constant 0 : index
    %78 = vector.load %arg9[%c22, %c0_57] : memref<200x128xf32, #tpu.memory_space<vmem>>, vector<78x128xf32>
    %79 = arith.truncf %78 : vector<78x128xf32> to vector<78x128xbf16>
    %c0_58 = arith.constant 0 : index
    %c1024 = arith.constant 1024 : index
    %80 = vector.load %arg13[%c0_58, %c1024] : memref<160x1152xbf16, #tpu.memory_space<vmem>>, vector<78x128xbf16>
    tpu.vector_store %arg13[%c0_58, %c1024], %79 {strides = array<i32>} : memref<160x1152xbf16, #tpu.memory_space<vmem>>, vector<78x128xbf16>,
    %c100 = arith.constant 100 : index
    %c0_59 = arith.constant 0 : index
    %81 = vector.load %arg9[%c100, %c0_59] : memref<200x128xf32, #tpu.memory_space<vmem>>, vector<78x128xf32>
    %82 = arith.truncf %81 : vector<78x128xf32> to vector<78x128xbf16>
    %c80 = arith.constant 80 : index
    %c0_60 = arith.constant 0 : index
    %83 = vector.load %arg13[%c80, %c0_60] : memref<160x1152xbf16, #tpu.memory_space<vmem>>, vector<78x128xbf16>
    tpu.vector_store %arg13[%c80, %c0_60], %82 {strides = array<i32>} : memref<160x1152xbf16, #tpu.memory_space<vmem>>, vector<78x128xbf16>,
    %c101 = arith.constant 101 : index
    %c0_61 = arith.constant 0 : index
    %84 = vector.load %arg9[%c101, %c0_61] : memref<200x128xf32, #tpu.memory_space<vmem>>, vector<78x128xf32>
    %85 = arith.truncf %84 : vector<78x128xf32> to vector<78x128xbf16>
    %c80_62 = arith.constant 80 : index
    %c128_63 = arith.constant 128 : index
    %86 = vector.load %arg13[%c80_62, %c128_63] : memref<160x1152xbf16, #tpu.memory_space<vmem>>, vector<78x128xbf16>
    tpu.vector_store %arg13[%c80_62, %c128_63], %85 {strides = array<i32>} : memref<160x1152xbf16, #tpu.memory_space<vmem>>, vector<78x128xbf16>,
    %c102 = arith.constant 102 : index
    %c0_64 = arith.constant 0 : index
    %87 = vector.load %arg9[%c102, %c0_64] : memref<200x128xf32, #tpu.memory_space<vmem>>, vector<78x128xf32>
    %88 = arith.truncf %87 : vector<78x128xf32> to vector<78x128xbf16>
    %c80_65 = arith.constant 80 : index
    %c256_66 = arith.constant 256 : index
    %89 = vector.load %arg13[%c80_65, %c256_66] : memref<160x1152xbf16, #tpu.memory_space<vmem>>, vector<78x128xbf16>
    tpu.vector_store %arg13[%c80_65, %c256_66], %88 {strides = array<i32>} : memref<160x1152xbf16, #tpu.memory_space<vmem>>, vector<78x128xbf16>,
    %c110 = arith.constant 110 : index
    %c0_67 = arith.constant 0 : index
    %90 = vector.load %arg9[%c110, %c0_67] : memref<200x128xf32, #tpu.memory_space<vmem>>, vector<78x128xf32>
    %91 = arith.truncf %90 : vector<78x128xf32> to vector<78x128xbf16>
    %c80_68 = arith.constant 80 : index
    %c384_69 = arith.constant 384 : index
    %92 = vector.load %arg13[%c80_68, %c384_69] : memref<160x1152xbf16, #tpu.memory_space<vmem>>, vector<78x128xbf16>
    tpu.vector_store %arg13[%c80_68, %c384_69], %91 {strides = array<i32>} : memref<160x1152xbf16, #tpu.memory_space<vmem>>, vector<78x128xbf16>,
    %c111_70 = arith.constant 111 : index
    %c0_71 = arith.constant 0 : index
    %93 = vector.load %arg9[%c111_70, %c0_71] : memref<200x128xf32, #tpu.memory_space<vmem>>, vector<78x128xf32>
    %94 = arith.truncf %93 : vector<78x128xf32> to vector<78x128xbf16>
    %c80_72 = arith.constant 80 : index
    %c512_73 = arith.constant 512 : index
    %95 = vector.load %arg13[%c80_72, %c512_73] : memref<160x1152xbf16, #tpu.memory_space<vmem>>, vector<78x128xbf16>
    tpu.vector_store %arg13[%c80_72, %c512_73], %94 {strides = array<i32>} : memref<160x1152xbf16, #tpu.memory_space<vmem>>, vector<78x128xbf16>,
    %c112 = arith.constant 112 : index
    %c0_74 = arith.constant 0 : index
    %96 = vector.load %arg9[%c112, %c0_74] : memref<200x128xf32, #tpu.memory_space<vmem>>, vector<78x128xf32>
    %97 = arith.truncf %96 : vector<78x128xf32> to vector<78x128xbf16>
    %c80_75 = arith.constant 80 : index
    %c640_76 = arith.constant 640 : index
    %98 = vector.load %arg13[%c80_75, %c640_76] : memref<160x1152xbf16, #tpu.memory_space<vmem>>, vector<78x128xbf16>
    tpu.vector_store %arg13[%c80_75, %c640_76], %97 {strides = array<i32>} : memref<160x1152xbf16, #tpu.memory_space<vmem>>, vector<78x128xbf16>,
    %c120 = arith.constant 120 : index
    %c0_77 = arith.constant 0 : index
    %99 = vector.load %arg9[%c120, %c0_77] : memref<200x128xf32, #tpu.memory_space<vmem>>, vector<78x128xf32>
    %100 = arith.truncf %99 : vector<78x128xf32> to vector<78x128xbf16>
    %c80_78 = arith.constant 80 : index
    %c768_79 = arith.constant 768 : index
    %101 = vector.load %arg13[%c80_78, %c768_79] : memref<160x1152xbf16, #tpu.memory_space<vmem>>, vector<78x128xbf16>
    tpu.vector_store %arg13[%c80_78, %c768_79], %100 {strides = array<i32>} : memref<160x1152xbf16, #tpu.memory_space<vmem>>, vector<78x128xbf16>,
    %c121_80 = arith.constant 121 : index
    %c0_81 = arith.constant 0 : index
    %102 = vector.load %arg9[%c121_80, %c0_81] : memref<200x128xf32, #tpu.memory_space<vmem>>, vector<78x128xf32>
    %103 = arith.truncf %102 : vector<78x128xf32> to vector<78x128xbf16>
    %c80_82 = arith.constant 80 : index
    %c896_83 = arith.constant 896 : index
    %104 = vector.load %arg13[%c80_82, %c896_83] : memref<160x1152xbf16, #tpu.memory_space<vmem>>, vector<78x128xbf16>
    tpu.vector_store %arg13[%c80_82, %c896_83], %103 {strides = array<i32>} : memref<160x1152xbf16, #tpu.memory_space<vmem>>, vector<78x128xbf16>,
    %c122 = arith.constant 122 : index
    %c0_84 = arith.constant 0 : index
    %105 = vector.load %arg9[%c122, %c0_84] : memref<200x128xf32, #tpu.memory_space<vmem>>, vector<78x128xf32>
    %106 = arith.truncf %105 : vector<78x128xf32> to vector<78x128xbf16>
    %c80_85 = arith.constant 80 : index
    %c1024_86 = arith.constant 1024 : index
    %107 = vector.load %arg13[%c80_85, %c1024_86] : memref<160x1152xbf16, #tpu.memory_space<vmem>>, vector<78x128xbf16>
    tpu.vector_store %arg13[%c80_85, %c1024_86], %106 {strides = array<i32>} : memref<160x1152xbf16, #tpu.memory_space<vmem>>, vector<78x128xbf16>,
    %c0_87 = arith.constant 0 : index
    %c0_88 = arith.constant 0 : index
    %108 = vector.load %arg13[%c0_87, %c0_88] : memref<160x1152xbf16, #tpu.memory_space<vmem>>, vector<160x1152xbf16>
    %c0_89 = arith.constant 0 : index
    %c0_90 = arith.constant 0 : index
    %109 = vector.load %arg2[%c0_89, %c0_90] : memref<1152x128xbf16, #tpu.memory_space<vmem>>, vector<1152x128xbf16>
    %cst_91 = arith.constant dense<0.000000e+00> : vector<160x128xf32>
    %110 = tpu.matmul %108, %109, %cst_91 {dimension_numbers = #tpu.dot_dimension_numbers<[1], [0], [0], [1], [0, 0, 1, 1], [], []>} : vector<160x1152xbf16>, vector<1152x128xbf16>, vector<160x128xf32> -> vector<160x128xf32>
    %c2_92 = arith.constant 2 : index
    %c0_93 = arith.constant 0 : index
    %111 = vector.load %arg6[%c2_92, %c0_93] : memref<12x128xf32, #tpu.memory_space<vmem>>, vector<1x128xf32>
    %112 = vector.broadcast %111 : vector<1x128xf32> to vector<160x128xf32>
    %113 = arith.mulf %110, %112 : vector<160x128xf32>
    %c3 = arith.constant 3 : index
    %c0_94 = arith.constant 0 : index
    %114 = vector.load %arg6[%c3, %c0_94] : memref<12x128xf32, #tpu.memory_space<vmem>>, vector<1x128xf32>
    %115 = vector.broadcast %114 : vector<1x128xf32> to vector<160x128xf32>
    %116 = arith.addf %113, %115 : vector<160x128xf32>
    %cst_95 = arith.constant 0.000000e+00 : f32
    %117 = vector.broadcast %cst_95 : f32 to vector<160x128xf32>
    %118 = arith.cmpf oge, %116, %117 : vector<160x128xf32>
    %cst_96 = arith.constant 2.000000e-01 : f32
    %119 = vector.broadcast %cst_96 : f32 to vector<160x128xf32>
    %120 = arith.mulf %119, %116 : vector<160x128xf32>
    %121 = arith.select %118, %116, %120 : vector<160x128xi1>, vector<160x128xf32>
    %122 = vector.extract_strided_slice %121 {offsets = [0, 0], sizes = [8, 128], strides = [1, 1]} : vector<160x128xf32> to vector<8x128xf32>
    %c11_97 = arith.constant 11 : index
    %c0_98 = arith.constant 0 : index
    %123 = vector.load %arg10[%c11_97, %c0_98] : memref<200x128xf32, #tpu.memory_space<vmem>>, vector<8x128xf32>
    tpu.vector_store %arg10[%c11_97, %c0_98], %122 {strides = array<i32>} : memref<200x128xf32, #tpu.memory_space<vmem>>, vector<8x128xf32>,
    %124 = vector.extract_strided_slice %121 {offsets = [10, 0], sizes = [8, 128], strides = [1, 1]} : vector<160x128xf32> to vector<8x128xf32>
    %c21_99 = arith.constant 21 : index
    %c0_100 = arith.constant 0 : index
    %125 = vector.load %arg10[%c21_99, %c0_100] : memref<200x128xf32, #tpu.memory_space<vmem>>, vector<8x128xf32>
    tpu.vector_store %arg10[%c21_99, %c0_100], %124 {strides = array<i32>} : memref<200x128xf32, #tpu.memory_space<vmem>>, vector<8x128xf32>,
    %126 = vector.extract_strided_slice %121 {offsets = [20, 0], sizes = [8, 128], strides = [1, 1]} : vector<160x128xf32> to vector<8x128xf32>
    %c31_101 = arith.constant 31 : index
    %c0_102 = arith.constant 0 : index
    %127 = vector.load %arg10[%c31_101, %c0_102] : memref<200x128xf32, #tpu.memory_space<vmem>>, vector<8x128xf32>
    tpu.vector_store %arg10[%c31_101, %c0_102], %126 {strides = array<i32>} : memref<200x128xf32, #tpu.memory_space<vmem>>, vector<8x128xf32>,
    %128 = vector.extract_strided_slice %121 {offsets = [30, 0], sizes = [8, 128], strides = [1, 1]} : vector<160x128xf32> to vector<8x128xf32>
    %c41_103 = arith.constant 41 : index
    %c0_104 = arith.constant 0 : index
    %129 = vector.load %arg10[%c41_103, %c0_104] : memref<200x128xf32, #tpu.memory_space<vmem>>, vector<8x128xf32>
    tpu.vector_store %arg10[%c41_103, %c0_104], %128 {strides = array<i32>} : memref<200x128xf32, #tpu.memory_space<vmem>>, vector<8x128xf32>,
    %130 = vector.extract_strided_slice %121 {offsets = [40, 0], sizes = [8, 128], strides = [1, 1]} : vector<160x128xf32> to vector<8x128xf32>
    %c51_105 = arith.constant 51 : index
    %c0_106 = arith.constant 0 : index
    %131 = vector.load %arg10[%c51_105, %c0_106] : memref<200x128xf32, #tpu.memory_space<vmem>>, vector<8x128xf32>
    tpu.vector_store %arg10[%c51_105, %c0_106], %130 {strides = array<i32>} : memref<200x128xf32, #tpu.memory_space<vmem>>, vector<8x128xf32>,
    %132 = vector.extract_strided_slice %121 {offsets = [50, 0], sizes = [8, 128], strides = [1, 1]} : vector<160x128xf32> to vector<8x128xf32>
    %c61_107 = arith.constant 61 : index
    %c0_108 = arith.constant 0 : index
    %133 = vector.load %arg10[%c61_107, %c0_108] : memref<200x128xf32, #tpu.memory_space<vmem>>, vector<8x128xf32>
    tpu.vector_store %arg10[%c61_107, %c0_108], %132 {strides = array<i32>} : memref<200x128xf32, #tpu.memory_space<vmem>>, vector<8x128xf32>,
    %134 = vector.extract_strided_slice %121 {offsets = [60, 0], sizes = [8, 128], strides = [1, 1]} : vector<160x128xf32> to vector<8x128xf32>
    %c71_109 = arith.constant 71 : index
    %c0_110 = arith.constant 0 : index
    %135 = vector.load %arg10[%c71_109, %c0_110] : memref<200x128xf32, #tpu.memory_space<vmem>>, vector<8x128xf32>
    tpu.vector_store %arg10[%c71_109, %c0_110], %134 {strides = array<i32>} : memref<200x128xf32, #tpu.memory_space<vmem>>, vector<8x128xf32>,
    %136 = vector.extract_strided_slice %121 {offsets = [70, 0], sizes = [8, 128], strides = [1, 1]} : vector<160x128xf32> to vector<8x128xf32>
    %c81_111 = arith.constant 81 : index
    %c0_112 = arith.constant 0 : index
    %137 = vector.load %arg10[%c81_111, %c0_112] : memref<200x128xf32, #tpu.memory_space<vmem>>, vector<8x128xf32>
    tpu.vector_store %arg10[%c81_111, %c0_112], %136 {strides = array<i32>} : memref<200x128xf32, #tpu.memory_space<vmem>>, vector<8x128xf32>,
    %138 = vector.extract_strided_slice %121 {offsets = [80, 0], sizes = [8, 128], strides = [1, 1]} : vector<160x128xf32> to vector<8x128xf32>
    %c111_113 = arith.constant 111 : index
    %c0_114 = arith.constant 0 : index
    %139 = vector.load %arg10[%c111_113, %c0_114] : memref<200x128xf32, #tpu.memory_space<vmem>>, vector<8x128xf32>
    tpu.vector_store %arg10[%c111_113, %c0_114], %138 {strides = array<i32>} : memref<200x128xf32, #tpu.memory_space<vmem>>, vector<8x128xf32>,
    %140 = vector.extract_strided_slice %121 {offsets = [90, 0], sizes = [8, 128], strides = [1, 1]} : vector<160x128xf32> to vector<8x128xf32>
    %c121_115 = arith.constant 121 : index
    %c0_116 = arith.constant 0 : index
    %141 = vector.load %arg10[%c121_115, %c0_116] : memref<200x128xf32, #tpu.memory_space<vmem>>, vector<8x128xf32>
    tpu.vector_store %arg10[%c121_115, %c0_116], %140 {strides = array<i32>} : memref<200x128xf32, #tpu.memory_space<vmem>>, vector<8x128xf32>,
    %142 = vector.extract_strided_slice %121 {offsets = [100, 0], sizes = [8, 128], strides = [1, 1]} : vector<160x128xf32> to vector<8x128xf32>
    %c131_117 = arith.constant 131 : index
    %c0_118 = arith.constant 0 : index
    %143 = vector.load %arg10[%c131_117, %c0_118] : memref<200x128xf32, #tpu.memory_space<vmem>>, vector<8x128xf32>
    tpu.vector_store %arg10[%c131_117, %c0_118], %142 {strides = array<i32>} : memref<200x128xf32, #tpu.memory_space<vmem>>, vector<8x128xf32>,
    %144 = vector.extract_strided_slice %121 {offsets = [110, 0], sizes = [8, 128], strides = [1, 1]} : vector<160x128xf32> to vector<8x128xf32>
    %c141_119 = arith.constant 141 : index
    %c0_120 = arith.constant 0 : index
    %145 = vector.load %arg10[%c141_119, %c0_120] : memref<200x128xf32, #tpu.memory_space<vmem>>, vector<8x128xf32>
    tpu.vector_store %arg10[%c141_119, %c0_120], %144 {strides = array<i32>} : memref<200x128xf32, #tpu.memory_space<vmem>>, vector<8x128xf32>,
    %146 = vector.extract_strided_slice %121 {offsets = [120, 0], sizes = [8, 128], strides = [1, 1]} : vector<160x128xf32> to vector<8x128xf32>
    %c151_121 = arith.constant 151 : index
    %c0_122 = arith.constant 0 : index
    %147 = vector.load %arg10[%c151_121, %c0_122] : memref<200x128xf32, #tpu.memory_space<vmem>>, vector<8x128xf32>
    tpu.vector_store %arg10[%c151_121, %c0_122], %146 {strides = array<i32>} : memref<200x128xf32, #tpu.memory_space<vmem>>, vector<8x128xf32>,
    %148 = vector.extract_strided_slice %121 {offsets = [130, 0], sizes = [8, 128], strides = [1, 1]} : vector<160x128xf32> to vector<8x128xf32>
    %c161_123 = arith.constant 161 : index
    %c0_124 = arith.constant 0 : index
    %149 = vector.load %arg10[%c161_123, %c0_124] : memref<200x128xf32, #tpu.memory_space<vmem>>, vector<8x128xf32>
    tpu.vector_store %arg10[%c161_123, %c0_124], %148 {strides = array<i32>} : memref<200x128xf32, #tpu.memory_space<vmem>>, vector<8x128xf32>,
    %150 = vector.extract_strided_slice %121 {offsets = [140, 0], sizes = [8, 128], strides = [1, 1]} : vector<160x128xf32> to vector<8x128xf32>
    %c171_125 = arith.constant 171 : index
    %c0_126 = arith.constant 0 : index
    %151 = vector.load %arg10[%c171_125, %c0_126] : memref<200x128xf32, #tpu.memory_space<vmem>>, vector<8x128xf32>
    tpu.vector_store %arg10[%c171_125, %c0_126], %150 {strides = array<i32>} : memref<200x128xf32, #tpu.memory_space<vmem>>, vector<8x128xf32>,
    %152 = vector.extract_strided_slice %121 {offsets = [150, 0], sizes = [8, 128], strides = [1, 1]} : vector<160x128xf32> to vector<8x128xf32>
    %c181_127 = arith.constant 181 : index
    %c0_128 = arith.constant 0 : index
    %153 = vector.load %arg10[%c181_127, %c0_128] : memref<200x128xf32, #tpu.memory_space<vmem>>, vector<8x128xf32>
    tpu.vector_store %arg10[%c181_127, %c0_128], %152 {strides = array<i32>} : memref<200x128xf32, #tpu.memory_space<vmem>>, vector<8x128xf32>,
    %c0_129 = arith.constant 0 : index
    %c0_130 = arith.constant 0 : index
    %154 = vector.load %arg10[%c0_129, %c0_130] : memref<200x128xf32, #tpu.memory_space<vmem>>, vector<78x128xf32>
    %155 = arith.truncf %154 : vector<78x128xf32> to vector<78x128xbf16>
    %c0_131 = arith.constant 0 : index
    %c0_132 = arith.constant 0 : index
    %156 = vector.load %arg13[%c0_131, %c0_132] : memref<160x1152xbf16, #tpu.memory_space<vmem>>, vector<78x128xbf16>
    tpu.vector_store %arg13[%c0_131, %c0_132], %155 {strides = array<i32>} : memref<160x1152xbf16, #tpu.memory_space<vmem>>, vector<78x128xbf16>,
    %c1_133 = arith.constant 1 : index
    %c0_134 = arith.constant 0 : index
    %157 = vector.load %arg10[%c1_133, %c0_134] : memref<200x128xf32, #tpu.memory_space<vmem>>, vector<78x128xf32>
    %158 = arith.truncf %157 : vector<78x128xf32> to vector<78x128xbf16>
    %c0_135 = arith.constant 0 : index
    %c128_136 = arith.constant 128 : index
    %159 = vector.load %arg13[%c0_135, %c128_136] : memref<160x1152xbf16, #tpu.memory_space<vmem>>, vector<78x128xbf16>
    tpu.vector_store %arg13[%c0_135, %c128_136], %158 {strides = array<i32>} : memref<160x1152xbf16, #tpu.memory_space<vmem>>, vector<78x128xbf16>,
    %c2_137 = arith.constant 2 : index
    %c0_138 = arith.constant 0 : index
    %160 = vector.load %arg10[%c2_137, %c0_138] : memref<200x128xf32, #tpu.memory_space<vmem>>, vector<78x128xf32>
    %161 = arith.truncf %160 : vector<78x128xf32> to vector<78x128xbf16>
    %c0_139 = arith.constant 0 : index
    %c256_140 = arith.constant 256 : index
    %162 = vector.load %arg13[%c0_139, %c256_140] : memref<160x1152xbf16, #tpu.memory_space<vmem>>, vector<78x128xbf16>
    tpu.vector_store %arg13[%c0_139, %c256_140], %161 {strides = array<i32>} : memref<160x1152xbf16, #tpu.memory_space<vmem>>, vector<78x128xbf16>,
    %c10_141 = arith.constant 10 : index
    %c0_142 = arith.constant 0 : index
    %163 = vector.load %arg10[%c10_141, %c0_142] : memref<200x128xf32, #tpu.memory_space<vmem>>, vector<78x128xf32>
    %164 = arith.truncf %163 : vector<78x128xf32> to vector<78x128xbf16>
    %c0_143 = arith.constant 0 : index
    %c384_144 = arith.constant 384 : index
    %165 = vector.load %arg13[%c0_143, %c384_144] : memref<160x1152xbf16, #tpu.memory_space<vmem>>, vector<78x128xbf16>
    tpu.vector_store %arg13[%c0_143, %c384_144], %164 {strides = array<i32>} : memref<160x1152xbf16, #tpu.memory_space<vmem>>, vector<78x128xbf16>,
    %c11_145 = arith.constant 11 : index
    %c0_146 = arith.constant 0 : index
    %166 = vector.load %arg10[%c11_145, %c0_146] : memref<200x128xf32, #tpu.memory_space<vmem>>, vector<78x128xf32>
    %167 = arith.truncf %166 : vector<78x128xf32> to vector<78x128xbf16>
    %c0_147 = arith.constant 0 : index
    %c512_148 = arith.constant 512 : index
    %168 = vector.load %arg13[%c0_147, %c512_148] : memref<160x1152xbf16, #tpu.memory_space<vmem>>, vector<78x128xbf16>
    tpu.vector_store %arg13[%c0_147, %c512_148], %167 {strides = array<i32>} : memref<160x1152xbf16, #tpu.memory_space<vmem>>, vector<78x128xbf16>,
    %c12_149 = arith.constant 12 : index
    %c0_150 = arith.constant 0 : index
    %169 = vector.load %arg10[%c12_149, %c0_150] : memref<200x128xf32, #tpu.memory_space<vmem>>, vector<78x128xf32>
    %170 = arith.truncf %169 : vector<78x128xf32> to vector<78x128xbf16>
    %c0_151 = arith.constant 0 : index
    %c640_152 = arith.constant 640 : index
    %171 = vector.load %arg13[%c0_151, %c640_152] : memref<160x1152xbf16, #tpu.memory_space<vmem>>, vector<78x128xbf16>
    tpu.vector_store %arg13[%c0_151, %c640_152], %170 {strides = array<i32>} : memref<160x1152xbf16, #tpu.memory_space<vmem>>, vector<78x128xbf16>,
    %c20_153 = arith.constant 20 : index
    %c0_154 = arith.constant 0 : index
    %172 = vector.load %arg10[%c20_153, %c0_154] : memref<200x128xf32, #tpu.memory_space<vmem>>, vector<78x128xf32>
    %173 = arith.truncf %172 : vector<78x128xf32> to vector<78x128xbf16>
    %c0_155 = arith.constant 0 : index
    %c768_156 = arith.constant 768 : index
    %174 = vector.load %arg13[%c0_155, %c768_156] : memref<160x1152xbf16, #tpu.memory_space<vmem>>, vector<78x128xbf16>
    tpu.vector_store %arg13[%c0_155, %c768_156], %173 {strides = array<i32>} : memref<160x1152xbf16, #tpu.memory_space<vmem>>, vector<78x128xbf16>,
    %c21_157 = arith.constant 21 : index
    %c0_158 = arith.constant 0 : index
    %175 = vector.load %arg10[%c21_157, %c0_158] : memref<200x128xf32, #tpu.memory_space<vmem>>, vector<78x128xf32>
    %176 = arith.truncf %175 : vector<78x128xf32> to vector<78x128xbf16>
    %c0_159 = arith.constant 0 : index
    %c896_160 = arith.constant 896 : index
    %177 = vector.load %arg13[%c0_159, %c896_160] : memref<160x1152xbf16, #tpu.memory_space<vmem>>, vector<78x128xbf16>
    tpu.vector_store %arg13[%c0_159, %c896_160], %176 {strides = array<i32>} : memref<160x1152xbf16, #tpu.memory_space<vmem>>, vector<78x128xbf16>,
    %c22_161 = arith.constant 22 : index
    %c0_162 = arith.constant 0 : index
    %178 = vector.load %arg10[%c22_161, %c0_162] : memref<200x128xf32, #tpu.memory_space<vmem>>, vector<78x128xf32>
    %179 = arith.truncf %178 : vector<78x128xf32> to vector<78x128xbf16>
    %c0_163 = arith.constant 0 : index
    %c1024_164 = arith.constant 1024 : index
    %180 = vector.load %arg13[%c0_163, %c1024_164] : memref<160x1152xbf16, #tpu.memory_space<vmem>>, vector<78x128xbf16>
    tpu.vector_store %arg13[%c0_163, %c1024_164], %179 {strides = array<i32>} : memref<160x1152xbf16, #tpu.memory_space<vmem>>, vector<78x128xbf16>,
    %c100_165 = arith.constant 100 : index
    %c0_166 = arith.constant 0 : index
    %181 = vector.load %arg10[%c100_165, %c0_166] : memref<200x128xf32, #tpu.memory_space<vmem>>, vector<78x128xf32>
    %182 = arith.truncf %181 : vector<78x128xf32> to vector<78x128xbf16>
    %c80_167 = arith.constant 80 : index
    %c0_168 = arith.constant 0 : index
    %183 = vector.load %arg13[%c80_167, %c0_168] : memref<160x1152xbf16, #tpu.memory_space<vmem>>, vector<78x128xbf16>
    tpu.vector_store %arg13[%c80_167, %c0_168], %182 {strides = array<i32>} : memref<160x1152xbf16, #tpu.memory_space<vmem>>, vector<78x128xbf16>,
    %c101_169 = arith.constant 101 : index
    %c0_170 = arith.constant 0 : index
    %184 = vector.load %arg10[%c101_169, %c0_170] : memref<200x128xf32, #tpu.memory_space<vmem>>, vector<78x128xf32>
    %185 = arith.truncf %184 : vector<78x128xf32> to vector<78x128xbf16>
    %c80_171 = arith.constant 80 : index
    %c128_172 = arith.constant 128 : index
    %186 = vector.load %arg13[%c80_171, %c128_172] : memref<160x1152xbf16, #tpu.memory_space<vmem>>, vector<78x128xbf16>
    tpu.vector_store %arg13[%c80_171, %c128_172], %185 {strides = array<i32>} : memref<160x1152xbf16, #tpu.memory_space<vmem>>, vector<78x128xbf16>,
    %c102_173 = arith.constant 102 : index
    %c0_174 = arith.constant 0 : index
    %187 = vector.load %arg10[%c102_173, %c0_174] : memref<200x128xf32, #tpu.memory_space<vmem>>, vector<78x128xf32>
    %188 = arith.truncf %187 : vector<78x128xf32> to vector<78x128xbf16>
    %c80_175 = arith.constant 80 : index
    %c256_176 = arith.constant 256 : index
    %189 = vector.load %arg13[%c80_175, %c256_176] : memref<160x1152xbf16, #tpu.memory_space<vmem>>, vector<78x128xbf16>
    tpu.vector_store %arg13[%c80_175, %c256_176], %188 {strides = array<i32>} : memref<160x1152xbf16, #tpu.memory_space<vmem>>, vector<78x128xbf16>,
    %c110_177 = arith.constant 110 : index
    %c0_178 = arith.constant 0 : index
    %190 = vector.load %arg10[%c110_177, %c0_178] : memref<200x128xf32, #tpu.memory_space<vmem>>, vector<78x128xf32>
    %191 = arith.truncf %190 : vector<78x128xf32> to vector<78x128xbf16>
    %c80_179 = arith.constant 80 : index
    %c384_180 = arith.constant 384 : index
    %192 = vector.load %arg13[%c80_179, %c384_180] : memref<160x1152xbf16, #tpu.memory_space<vmem>>, vector<78x128xbf16>
    tpu.vector_store %arg13[%c80_179, %c384_180], %191 {strides = array<i32>} : memref<160x1152xbf16, #tpu.memory_space<vmem>>, vector<78x128xbf16>,
    %c111_181 = arith.constant 111 : index
    %c0_182 = arith.constant 0 : index
    %193 = vector.load %arg10[%c111_181, %c0_182] : memref<200x128xf32, #tpu.memory_space<vmem>>, vector<78x128xf32>
    %194 = arith.truncf %193 : vector<78x128xf32> to vector<78x128xbf16>
    %c80_183 = arith.constant 80 : index
    %c512_184 = arith.constant 512 : index
    %195 = vector.load %arg13[%c80_183, %c512_184] : memref<160x1152xbf16, #tpu.memory_space<vmem>>, vector<78x128xbf16>
    tpu.vector_store %arg13[%c80_183, %c512_184], %194 {strides = array<i32>} : memref<160x1152xbf16, #tpu.memory_space<vmem>>, vector<78x128xbf16>,
    %c112_185 = arith.constant 112 : index
    %c0_186 = arith.constant 0 : index
    %196 = vector.load %arg10[%c112_185, %c0_186] : memref<200x128xf32, #tpu.memory_space<vmem>>, vector<78x128xf32>
    %197 = arith.truncf %196 : vector<78x128xf32> to vector<78x128xbf16>
    %c80_187 = arith.constant 80 : index
    %c640_188 = arith.constant 640 : index
    %198 = vector.load %arg13[%c80_187, %c640_188] : memref<160x1152xbf16, #tpu.memory_space<vmem>>, vector<78x128xbf16>
    tpu.vector_store %arg13[%c80_187, %c640_188], %197 {strides = array<i32>} : memref<160x1152xbf16, #tpu.memory_space<vmem>>, vector<78x128xbf16>,
    %c120_189 = arith.constant 120 : index
    %c0_190 = arith.constant 0 : index
    %199 = vector.load %arg10[%c120_189, %c0_190] : memref<200x128xf32, #tpu.memory_space<vmem>>, vector<78x128xf32>
    %200 = arith.truncf %199 : vector<78x128xf32> to vector<78x128xbf16>
    %c80_191 = arith.constant 80 : index
    %c768_192 = arith.constant 768 : index
    %201 = vector.load %arg13[%c80_191, %c768_192] : memref<160x1152xbf16, #tpu.memory_space<vmem>>, vector<78x128xbf16>
    tpu.vector_store %arg13[%c80_191, %c768_192], %200 {strides = array<i32>} : memref<160x1152xbf16, #tpu.memory_space<vmem>>, vector<78x128xbf16>,
    %c121_193 = arith.constant 121 : index
    %c0_194 = arith.constant 0 : index
    %202 = vector.load %arg10[%c121_193, %c0_194] : memref<200x128xf32, #tpu.memory_space<vmem>>, vector<78x128xf32>
    %203 = arith.truncf %202 : vector<78x128xf32> to vector<78x128xbf16>
    %c80_195 = arith.constant 80 : index
    %c896_196 = arith.constant 896 : index
    %204 = vector.load %arg13[%c80_195, %c896_196] : memref<160x1152xbf16, #tpu.memory_space<vmem>>, vector<78x128xbf16>
    tpu.vector_store %arg13[%c80_195, %c896_196], %203 {strides = array<i32>} : memref<160x1152xbf16, #tpu.memory_space<vmem>>, vector<78x128xbf16>,
    %c122_197 = arith.constant 122 : index
    %c0_198 = arith.constant 0 : index
    %205 = vector.load %arg10[%c122_197, %c0_198] : memref<200x128xf32, #tpu.memory_space<vmem>>, vector<78x128xf32>
    %206 = arith.truncf %205 : vector<78x128xf32> to vector<78x128xbf16>
    %c80_199 = arith.constant 80 : index
    %c1024_200 = arith.constant 1024 : index
    %207 = vector.load %arg13[%c80_199, %c1024_200] : memref<160x1152xbf16, #tpu.memory_space<vmem>>, vector<78x128xbf16>
    tpu.vector_store %arg13[%c80_199, %c1024_200], %206 {strides = array<i32>} : memref<160x1152xbf16, #tpu.memory_space<vmem>>, vector<78x128xbf16>,
    %c0_201 = arith.constant 0 : index
    %c0_202 = arith.constant 0 : index
    %208 = vector.load %arg13[%c0_201, %c0_202] : memref<160x1152xbf16, #tpu.memory_space<vmem>>, vector<160x1152xbf16>
    %c0_203 = arith.constant 0 : index
    %c0_204 = arith.constant 0 : index
    %209 = vector.load %arg3[%c0_203, %c0_204] : memref<1152x128xbf16, #tpu.memory_space<vmem>>, vector<1152x128xbf16>
    %cst_205 = arith.constant dense<0.000000e+00> : vector<160x128xf32>
    %210 = tpu.matmul %208, %209, %cst_205 {dimension_numbers = #tpu.dot_dimension_numbers<[1], [0], [0], [1], [0, 0, 1, 1], [], []>} : vector<160x1152xbf16>, vector<1152x128xbf16>, vector<160x128xf32> -> vector<160x128xf32>
    %c4 = arith.constant 4 : index
    %c0_206 = arith.constant 0 : index
    %211 = vector.load %arg6[%c4, %c0_206] : memref<12x128xf32, #tpu.memory_space<vmem>>, vector<1x128xf32>
    %212 = vector.broadcast %211 : vector<1x128xf32> to vector<160x128xf32>
    %213 = arith.mulf %210, %212 : vector<160x128xf32>
    %c5 = arith.constant 5 : index
    %c0_207 = arith.constant 0 : index
    %214 = vector.load %arg6[%c5, %c0_207] : memref<12x128xf32, #tpu.memory_space<vmem>>, vector<1x128xf32>
    %215 = vector.broadcast %214 : vector<1x128xf32> to vector<160x128xf32>
    %216 = arith.addf %213, %215 : vector<160x128xf32>
    %cst_208 = arith.constant 0.000000e+00 : f32
    %217 = vector.broadcast %cst_208 : f32 to vector<160x128xf32>
    %218 = arith.cmpf oge, %216, %217 : vector<160x128xf32>
    %cst_209 = arith.constant 2.000000e-01 : f32
    %219 = vector.broadcast %cst_209 : f32 to vector<160x128xf32>
    %220 = arith.mulf %219, %216 : vector<160x128xf32>
    %221 = arith.select %218, %216, %220 : vector<160x128xi1>, vector<160x128xf32>
    %222 = vector.extract_strided_slice %221 {offsets = [0, 0], sizes = [8, 128], strides = [1, 1]} : vector<160x128xf32> to vector<8x128xf32>
    %c11_210 = arith.constant 11 : index
    %c0_211 = arith.constant 0 : index
    %223 = vector.load %arg11[%c11_210, %c0_211] : memref<200x128xf32, #tpu.memory_space<vmem>>, vector<8x128xf32>
    tpu.vector_store %arg11[%c11_210, %c0_211], %222 {strides = array<i32>} : memref<200x128xf32, #tpu.memory_space<vmem>>, vector<8x128xf32>,
    %224 = vector.extract_strided_slice %221 {offsets = [10, 0], sizes = [8, 128], strides = [1, 1]} : vector<160x128xf32> to vector<8x128xf32>
    %c21_212 = arith.constant 21 : index
    %c0_213 = arith.constant 0 : index
    %225 = vector.load %arg11[%c21_212, %c0_213] : memref<200x128xf32, #tpu.memory_space<vmem>>, vector<8x128xf32>
    tpu.vector_store %arg11[%c21_212, %c0_213], %224 {strides = array<i32>} : memref<200x128xf32, #tpu.memory_space<vmem>>, vector<8x128xf32>,
    %226 = vector.extract_strided_slice %221 {offsets = [20, 0], sizes = [8, 128], strides = [1, 1]} : vector<160x128xf32> to vector<8x128xf32>
    %c31_214 = arith.constant 31 : index
    %c0_215 = arith.constant 0 : index
    %227 = vector.load %arg11[%c31_214, %c0_215] : memref<200x128xf32, #tpu.memory_space<vmem>>, vector<8x128xf32>
    tpu.vector_store %arg11[%c31_214, %c0_215], %226 {strides = array<i32>} : memref<200x128xf32, #tpu.memory_space<vmem>>, vector<8x128xf32>,
    %228 = vector.extract_strided_slice %221 {offsets = [30, 0], sizes = [8, 128], strides = [1, 1]} : vector<160x128xf32> to vector<8x128xf32>
    %c41_216 = arith.constant 41 : index
    %c0_217 = arith.constant 0 : index
    %229 = vector.load %arg11[%c41_216, %c0_217] : memref<200x128xf32, #tpu.memory_space<vmem>>, vector<8x128xf32>
    tpu.vector_store %arg11[%c41_216, %c0_217], %228 {strides = array<i32>} : memref<200x128xf32, #tpu.memory_space<vmem>>, vector<8x128xf32>,
    %230 = vector.extract_strided_slice %221 {offsets = [40, 0], sizes = [8, 128], strides = [1, 1]} : vector<160x128xf32> to vector<8x128xf32>
    %c51_218 = arith.constant 51 : index
    %c0_219 = arith.constant 0 : index
    %231 = vector.load %arg11[%c51_218, %c0_219] : memref<200x128xf32, #tpu.memory_space<vmem>>, vector<8x128xf32>
    tpu.vector_store %arg11[%c51_218, %c0_219], %230 {strides = array<i32>} : memref<200x128xf32, #tpu.memory_space<vmem>>, vector<8x128xf32>,
    %232 = vector.extract_strided_slice %221 {offsets = [50, 0], sizes = [8, 128], strides = [1, 1]} : vector<160x128xf32> to vector<8x128xf32>
    %c61_220 = arith.constant 61 : index
    %c0_221 = arith.constant 0 : index
    %233 = vector.load %arg11[%c61_220, %c0_221] : memref<200x128xf32, #tpu.memory_space<vmem>>, vector<8x128xf32>
    tpu.vector_store %arg11[%c61_220, %c0_221], %232 {strides = array<i32>} : memref<200x128xf32, #tpu.memory_space<vmem>>, vector<8x128xf32>,
    %234 = vector.extract_strided_slice %221 {offsets = [60, 0], sizes = [8, 128], strides = [1, 1]} : vector<160x128xf32> to vector<8x128xf32>
    %c71_222 = arith.constant 71 : index
    %c0_223 = arith.constant 0 : index
    %235 = vector.load %arg11[%c71_222, %c0_223] : memref<200x128xf32, #tpu.memory_space<vmem>>, vector<8x128xf32>
    tpu.vector_store %arg11[%c71_222, %c0_223], %234 {strides = array<i32>} : memref<200x128xf32, #tpu.memory_space<vmem>>, vector<8x128xf32>,
    %236 = vector.extract_strided_slice %221 {offsets = [70, 0], sizes = [8, 128], strides = [1, 1]} : vector<160x128xf32> to vector<8x128xf32>
    %c81_224 = arith.constant 81 : index
    %c0_225 = arith.constant 0 : index
    %237 = vector.load %arg11[%c81_224, %c0_225] : memref<200x128xf32, #tpu.memory_space<vmem>>, vector<8x128xf32>
    tpu.vector_store %arg11[%c81_224, %c0_225], %236 {strides = array<i32>} : memref<200x128xf32, #tpu.memory_space<vmem>>, vector<8x128xf32>,
    %238 = vector.extract_strided_slice %221 {offsets = [80, 0], sizes = [8, 128], strides = [1, 1]} : vector<160x128xf32> to vector<8x128xf32>
    %c111_226 = arith.constant 111 : index
    %c0_227 = arith.constant 0 : index
    %239 = vector.load %arg11[%c111_226, %c0_227] : memref<200x128xf32, #tpu.memory_space<vmem>>, vector<8x128xf32>
    tpu.vector_store %arg11[%c111_226, %c0_227], %238 {strides = array<i32>} : memref<200x128xf32, #tpu.memory_space<vmem>>, vector<8x128xf32>,
    %240 = vector.extract_strided_slice %221 {offsets = [90, 0], sizes = [8, 128], strides = [1, 1]} : vector<160x128xf32> to vector<8x128xf32>
    %c121_228 = arith.constant 121 : index
    %c0_229 = arith.constant 0 : index
    %241 = vector.load %arg11[%c121_228, %c0_229] : memref<200x128xf32, #tpu.memory_space<vmem>>, vector<8x128xf32>
    tpu.vector_store %arg11[%c121_228, %c0_229], %240 {strides = array<i32>} : memref<200x128xf32, #tpu.memory_space<vmem>>, vector<8x128xf32>,
    %242 = vector.extract_strided_slice %221 {offsets = [100, 0], sizes = [8, 128], strides = [1, 1]} : vector<160x128xf32> to vector<8x128xf32>
    %c131_230 = arith.constant 131 : index
    %c0_231 = arith.constant 0 : index
    %243 = vector.load %arg11[%c131_230, %c0_231] : memref<200x128xf32, #tpu.memory_space<vmem>>, vector<8x128xf32>
    tpu.vector_store %arg11[%c131_230, %c0_231], %242 {strides = array<i32>} : memref<200x128xf32, #tpu.memory_space<vmem>>, vector<8x128xf32>,
    %244 = vector.extract_strided_slice %221 {offsets = [110, 0], sizes = [8, 128], strides = [1, 1]} : vector<160x128xf32> to vector<8x128xf32>
    %c141_232 = arith.constant 141 : index
    %c0_233 = arith.constant 0 : index
    %245 = vector.load %arg11[%c141_232, %c0_233] : memref<200x128xf32, #tpu.memory_space<vmem>>, vector<8x128xf32>
    tpu.vector_store %arg11[%c141_232, %c0_233], %244 {strides = array<i32>} : memref<200x128xf32, #tpu.memory_space<vmem>>, vector<8x128xf32>,
    %246 = vector.extract_strided_slice %221 {offsets = [120, 0], sizes = [8, 128], strides = [1, 1]} : vector<160x128xf32> to vector<8x128xf32>
    %c151_234 = arith.constant 151 : index
    %c0_235 = arith.constant 0 : index
    %247 = vector.load %arg11[%c151_234, %c0_235] : memref<200x128xf32, #tpu.memory_space<vmem>>, vector<8x128xf32>
    tpu.vector_store %arg11[%c151_234, %c0_235], %246 {strides = array<i32>} : memref<200x128xf32, #tpu.memory_space<vmem>>, vector<8x128xf32>,
    %248 = vector.extract_strided_slice %221 {offsets = [130, 0], sizes = [8, 128], strides = [1, 1]} : vector<160x128xf32> to vector<8x128xf32>
    %c161_236 = arith.constant 161 : index
    %c0_237 = arith.constant 0 : index
    %249 = vector.load %arg11[%c161_236, %c0_237] : memref<200x128xf32, #tpu.memory_space<vmem>>, vector<8x128xf32>
    tpu.vector_store %arg11[%c161_236, %c0_237], %248 {strides = array<i32>} : memref<200x128xf32, #tpu.memory_space<vmem>>, vector<8x128xf32>,
    %250 = vector.extract_strided_slice %221 {offsets = [140, 0], sizes = [8, 128], strides = [1, 1]} : vector<160x128xf32> to vector<8x128xf32>
    %c171_238 = arith.constant 171 : index
    %c0_239 = arith.constant 0 : index
    %251 = vector.load %arg11[%c171_238, %c0_239] : memref<200x128xf32, #tpu.memory_space<vmem>>, vector<8x128xf32>
    tpu.vector_store %arg11[%c171_238, %c0_239], %250 {strides = array<i32>} : memref<200x128xf32, #tpu.memory_space<vmem>>, vector<8x128xf32>,
    %252 = vector.extract_strided_slice %221 {offsets = [150, 0], sizes = [8, 128], strides = [1, 1]} : vector<160x128xf32> to vector<8x128xf32>
    %c181_240 = arith.constant 181 : index
    %c0_241 = arith.constant 0 : index
    %253 = vector.load %arg11[%c181_240, %c0_241] : memref<200x128xf32, #tpu.memory_space<vmem>>, vector<8x128xf32>
    tpu.vector_store %arg11[%c181_240, %c0_241], %252 {strides = array<i32>} : memref<200x128xf32, #tpu.memory_space<vmem>>, vector<8x128xf32>,
    %c0_242 = arith.constant 0 : index
    %c0_243 = arith.constant 0 : index
    %254 = vector.load %arg11[%c0_242, %c0_243] : memref<200x128xf32, #tpu.memory_space<vmem>>, vector<9x128xf32>
    %255 = vector.extract_strided_slice %254 {offsets = [0, 0], sizes = [1, 128], strides = [1, 1]} : vector<9x128xf32> to vector<1x128xf32>
    %256 = vector.extract_strided_slice %254 {offsets = [2, 0], sizes = [1, 128], strides = [1, 1]} : vector<9x128xf32> to vector<1x128xf32>
    %257 = vector.extract_strided_slice %254 {offsets = [4, 0], sizes = [1, 128], strides = [1, 1]} : vector<9x128xf32> to vector<1x128xf32>
    %258 = vector.extract_strided_slice %254 {offsets = [6, 0], sizes = [1, 128], strides = [1, 1]} : vector<9x128xf32> to vector<1x128xf32>
    %259 = tpu.concatenate %255, %256, %257, %258 in 0 : vector<1x128xf32>, vector<1x128xf32>, vector<1x128xf32>, vector<1x128xf32> -> vector<4x128xf32>
    %260 = arith.truncf %259 : vector<4x128xf32> to vector<4x128xbf16>
    %c0_244 = arith.constant 0 : index
    %c0_245 = arith.constant 0 : index
    %261 = vector.load %arg13[%c0_244, %c0_245] : memref<160x1152xbf16, #tpu.memory_space<vmem>>, vector<4x128xbf16>
    tpu.vector_store %arg13[%c0_244, %c0_245], %260 {strides = array<i32>} : memref<160x1152xbf16, #tpu.memory_space<vmem>>, vector<4x128xbf16>,
    %262 = vector.extract_strided_slice %254 {offsets = [1, 0], sizes = [1, 128], strides = [1, 1]} : vector<9x128xf32> to vector<1x128xf32>
    %263 = vector.extract_strided_slice %254 {offsets = [3, 0], sizes = [1, 128], strides = [1, 1]} : vector<9x128xf32> to vector<1x128xf32>
    %264 = vector.extract_strided_slice %254 {offsets = [5, 0], sizes = [1, 128], strides = [1, 1]} : vector<9x128xf32> to vector<1x128xf32>
    %265 = vector.extract_strided_slice %254 {offsets = [7, 0], sizes = [1, 128], strides = [1, 1]} : vector<9x128xf32> to vector<1x128xf32>
    %266 = tpu.concatenate %262, %263, %264, %265 in 0 : vector<1x128xf32>, vector<1x128xf32>, vector<1x128xf32>, vector<1x128xf32> -> vector<4x128xf32>
    %267 = arith.truncf %266 : vector<4x128xf32> to vector<4x128xbf16>
    %c0_246 = arith.constant 0 : index
    %c128_247 = arith.constant 128 : index
    %268 = vector.load %arg13[%c0_246, %c128_247] : memref<160x1152xbf16, #tpu.memory_space<vmem>>, vector<4x128xbf16>
    tpu.vector_store %arg13[%c0_246, %c128_247], %267 {strides = array<i32>} : memref<160x1152xbf16, #tpu.memory_space<vmem>>, vector<4x128xbf16>,
    %269 = vector.extract_strided_slice %254 {offsets = [2, 0], sizes = [1, 128], strides = [1, 1]} : vector<9x128xf32> to vector<1x128xf32>
    %270 = vector.extract_strided_slice %254 {offsets = [4, 0], sizes = [1, 128], strides = [1, 1]} : vector<9x128xf32> to vector<1x128xf32>
    %271 = vector.extract_strided_slice %254 {offsets = [6, 0], sizes = [1, 128], strides = [1, 1]} : vector<9x128xf32> to vector<1x128xf32>
    %272 = vector.extract_strided_slice %254 {offsets = [8, 0], sizes = [1, 128], strides = [1, 1]} : vector<9x128xf32> to vector<1x128xf32>
    %273 = tpu.concatenate %269, %270, %271, %272 in 0 : vector<1x128xf32>, vector<1x128xf32>, vector<1x128xf32>, vector<1x128xf32> -> vector<4x128xf32>
    %274 = arith.truncf %273 : vector<4x128xf32> to vector<4x128xbf16>
    %c0_248 = arith.constant 0 : index
    %c256_249 = arith.constant 256 : index
    %275 = vector.load %arg13[%c0_248, %c256_249] : memref<160x1152xbf16, #tpu.memory_space<vmem>>, vector<4x128xbf16>
    tpu.vector_store %arg13[%c0_248, %c256_249], %274 {strides = array<i32>} : memref<160x1152xbf16, #tpu.memory_space<vmem>>, vector<4x128xbf16>,
    %c10_250 = arith.constant 10 : index
    %c0_251 = arith.constant 0 : index
    %276 = vector.load %arg11[%c10_250, %c0_251] : memref<200x128xf32, #tpu.memory_space<vmem>>, vector<9x128xf32>
    %277 = vector.extract_strided_slice %276 {offsets = [0, 0], sizes = [1, 128], strides = [1, 1]} : vector<9x128xf32> to vector<1x128xf32>
    %278 = vector.extract_strided_slice %276 {offsets = [2, 0], sizes = [1, 128], strides = [1, 1]} : vector<9x128xf32> to vector<1x128xf32>
    %279 = vector.extract_strided_slice %276 {offsets = [4, 0], sizes = [1, 128], strides = [1, 1]} : vector<9x128xf32> to vector<1x128xf32>
    %280 = vector.extract_strided_slice %276 {offsets = [6, 0], sizes = [1, 128], strides = [1, 1]} : vector<9x128xf32> to vector<1x128xf32>
    %281 = tpu.concatenate %277, %278, %279, %280 in 0 : vector<1x128xf32>, vector<1x128xf32>, vector<1x128xf32>, vector<1x128xf32> -> vector<4x128xf32>
    %282 = arith.truncf %281 : vector<4x128xf32> to vector<4x128xbf16>
    %c0_252 = arith.constant 0 : index
    %c384_253 = arith.constant 384 : index
    %283 = vector.load %arg13[%c0_252, %c384_253] : memref<160x1152xbf16, #tpu.memory_space<vmem>>, vector<4x128xbf16>
    tpu.vector_store %arg13[%c0_252, %c384_253], %282 {strides = array<i32>} : memref<160x1152xbf16, #tpu.memory_space<vmem>>, vector<4x128xbf16>,
    %284 = vector.extract_strided_slice %276 {offsets = [1, 0], sizes = [1, 128], strides = [1, 1]} : vector<9x128xf32> to vector<1x128xf32>
    %285 = vector.extract_strided_slice %276 {offsets = [3, 0], sizes = [1, 128], strides = [1, 1]} : vector<9x128xf32> to vector<1x128xf32>
    %286 = vector.extract_strided_slice %276 {offsets = [5, 0], sizes = [1, 128], strides = [1, 1]} : vector<9x128xf32> to vector<1x128xf32>
    %287 = vector.extract_strided_slice %276 {offsets = [7, 0], sizes = [1, 128], strides = [1, 1]} : vector<9x128xf32> to vector<1x128xf32>
    %288 = tpu.concatenate %284, %285, %286, %287 in 0 : vector<1x128xf32>, vector<1x128xf32>, vector<1x128xf32>, vector<1x128xf32> -> vector<4x128xf32>
    %289 = arith.truncf %288 : vector<4x128xf32> to vector<4x128xbf16>
    %c0_254 = arith.constant 0 : index
    %c512_255 = arith.constant 512 : index
    %290 = vector.load %arg13[%c0_254, %c512_255] : memref<160x1152xbf16, #tpu.memory_space<vmem>>, vector<4x128xbf16>
    tpu.vector_store %arg13[%c0_254, %c512_255], %289 {strides = array<i32>} : memref<160x1152xbf16, #tpu.memory_space<vmem>>, vector<4x128xbf16>,
    %291 = vector.extract_strided_slice %276 {offsets = [2, 0], sizes = [1, 128], strides = [1, 1]} : vector<9x128xf32> to vector<1x128xf32>
    %292 = vector.extract_strided_slice %276 {offsets = [4, 0], sizes = [1, 128], strides = [1, 1]} : vector<9x128xf32> to vector<1x128xf32>
    %293 = vector.extract_strided_slice %276 {offsets = [6, 0], sizes = [1, 128], strides = [1, 1]} : vector<9x128xf32> to vector<1x128xf32>
    %294 = vector.extract_strided_slice %276 {offsets = [8, 0], sizes = [1, 128], strides = [1, 1]} : vector<9x128xf32> to vector<1x128xf32>
    %295 = tpu.concatenate %291, %292, %293, %294 in 0 : vector<1x128xf32>, vector<1x128xf32>, vector<1x128xf32>, vector<1x128xf32> -> vector<4x128xf32>
    %296 = arith.truncf %295 : vector<4x128xf32> to vector<4x128xbf16>
    %c0_256 = arith.constant 0 : index
    %c640_257 = arith.constant 640 : index
    %297 = vector.load %arg13[%c0_256, %c640_257] : memref<160x1152xbf16, #tpu.memory_space<vmem>>, vector<4x128xbf16>
    tpu.vector_store %arg13[%c0_256, %c640_257], %296 {strides = array<i32>} : memref<160x1152xbf16, #tpu.memory_space<vmem>>, vector<4x128xbf16>,
    %c20_258 = arith.constant 20 : index
    %c0_259 = arith.constant 0 : index
    %298 = vector.load %arg11[%c20_258, %c0_259] : memref<200x128xf32, #tpu.memory_space<vmem>>, vector<9x128xf32>
    %299 = vector.extract_strided_slice %298 {offsets = [0, 0], sizes = [1, 128], strides = [1, 1]} : vector<9x128xf32> to vector<1x128xf32>
    %300 = vector.extract_strided_slice %298 {offsets = [2, 0], sizes = [1, 128], strides = [1, 1]} : vector<9x128xf32> to vector<1x128xf32>
    %301 = vector.extract_strided_slice %298 {offsets = [4, 0], sizes = [1, 128], strides = [1, 1]} : vector<9x128xf32> to vector<1x128xf32>
    %302 = vector.extract_strided_slice %298 {offsets = [6, 0], sizes = [1, 128], strides = [1, 1]} : vector<9x128xf32> to vector<1x128xf32>
    %303 = tpu.concatenate %299, %300, %301, %302 in 0 : vector<1x128xf32>, vector<1x128xf32>, vector<1x128xf32>, vector<1x128xf32> -> vector<4x128xf32>
    %304 = arith.truncf %303 : vector<4x128xf32> to vector<4x128xbf16>
    %c0_260 = arith.constant 0 : index
    %c768_261 = arith.constant 768 : index
    %305 = vector.load %arg13[%c0_260, %c768_261] : memref<160x1152xbf16, #tpu.memory_space<vmem>>, vector<4x128xbf16>
    tpu.vector_store %arg13[%c0_260, %c768_261], %304 {strides = array<i32>} : memref<160x1152xbf16, #tpu.memory_space<vmem>>, vector<4x128xbf16>,
    %306 = vector.extract_strided_slice %298 {offsets = [1, 0], sizes = [1, 128], strides = [1, 1]} : vector<9x128xf32> to vector<1x128xf32>
    %307 = vector.extract_strided_slice %298 {offsets = [3, 0], sizes = [1, 128], strides = [1, 1]} : vector<9x128xf32> to vector<1x128xf32>
    %308 = vector.extract_strided_slice %298 {offsets = [5, 0], sizes = [1, 128], strides = [1, 1]} : vector<9x128xf32> to vector<1x128xf32>
    %309 = vector.extract_strided_slice %298 {offsets = [7, 0], sizes = [1, 128], strides = [1, 1]} : vector<9x128xf32> to vector<1x128xf32>
    %310 = tpu.concatenate %306, %307, %308, %309 in 0 : vector<1x128xf32>, vector<1x128xf32>, vector<1x128xf32>, vector<1x128xf32> -> vector<4x128xf32>
    %311 = arith.truncf %310 : vector<4x128xf32> to vector<4x128xbf16>
    %c0_262 = arith.constant 0 : index
    %c896_263 = arith.constant 896 : index
    %312 = vector.load %arg13[%c0_262, %c896_263] : memref<160x1152xbf16, #tpu.memory_space<vmem>>, vector<4x128xbf16>
    tpu.vector_store %arg13[%c0_262, %c896_263], %311 {strides = array<i32>} : memref<160x1152xbf16, #tpu.memory_space<vmem>>, vector<4x128xbf16>,
    %313 = vector.extract_strided_slice %298 {offsets = [2, 0], sizes = [1, 128], strides = [1, 1]} : vector<9x128xf32> to vector<1x128xf32>
    %314 = vector.extract_strided_slice %298 {offsets = [4, 0], sizes = [1, 128], strides = [1, 1]} : vector<9x128xf32> to vector<1x128xf32>
    %315 = vector.extract_strided_slice %298 {offsets = [6, 0], sizes = [1, 128], strides = [1, 1]} : vector<9x128xf32> to vector<1x128xf32>
    %316 = vector.extract_strided_slice %298 {offsets = [8, 0], sizes = [1, 128], strides = [1, 1]} : vector<9x128xf32> to vector<1x128xf32>
    %317 = tpu.concatenate %313, %314, %315, %316 in 0 : vector<1x128xf32>, vector<1x128xf32>, vector<1x128xf32>, vector<1x128xf32> -> vector<4x128xf32>
    %318 = arith.truncf %317 : vector<4x128xf32> to vector<4x128xbf16>
    %c0_264 = arith.constant 0 : index
    %c1024_265 = arith.constant 1024 : index
    %319 = vector.load %arg13[%c0_264, %c1024_265] : memref<160x1152xbf16, #tpu.memory_space<vmem>>, vector<4x128xbf16>
    tpu.vector_store %arg13[%c0_264, %c1024_265], %318 {strides = array<i32>} : memref<160x1152xbf16, #tpu.memory_space<vmem>>, vector<4x128xbf16>,
    %c20_266 = arith.constant 20 : index
    %c0_267 = arith.constant 0 : index
    %320 = vector.load %arg11[%c20_266, %c0_267] : memref<200x128xf32, #tpu.memory_space<vmem>>, vector<9x128xf32>
    %321 = vector.extract_strided_slice %320 {offsets = [0, 0], sizes = [1, 128], strides = [1, 1]} : vector<9x128xf32> to vector<1x128xf32>
    %322 = vector.extract_strided_slice %320 {offsets = [2, 0], sizes = [1, 128], strides = [1, 1]} : vector<9x128xf32> to vector<1x128xf32>
    %323 = vector.extract_strided_slice %320 {offsets = [4, 0], sizes = [1, 128], strides = [1, 1]} : vector<9x128xf32> to vector<1x128xf32>
    %324 = vector.extract_strided_slice %320 {offsets = [6, 0], sizes = [1, 128], strides = [1, 1]} : vector<9x128xf32> to vector<1x128xf32>
    %325 = tpu.concatenate %321, %322, %323, %324 in 0 : vector<1x128xf32>, vector<1x128xf32>, vector<1x128xf32>, vector<1x128xf32> -> vector<4x128xf32>
    %326 = arith.truncf %325 : vector<4x128xf32> to vector<4x128xbf16>
    %c4_268 = arith.constant 4 : index
    %c0_269 = arith.constant 0 : index
    %327 = vector.load %arg13[%c4_268, %c0_269] : memref<160x1152xbf16, #tpu.memory_space<vmem>>, vector<4x128xbf16>
    tpu.vector_store %arg13[%c4_268, %c0_269], %326 {strides = array<i32>} : memref<160x1152xbf16, #tpu.memory_space<vmem>>, vector<4x128xbf16>,
    %328 = vector.extract_strided_slice %320 {offsets = [1, 0], sizes = [1, 128], strides = [1, 1]} : vector<9x128xf32> to vector<1x128xf32>
    %329 = vector.extract_strided_slice %320 {offsets = [3, 0], sizes = [1, 128], strides = [1, 1]} : vector<9x128xf32> to vector<1x128xf32>
    %330 = vector.extract_strided_slice %320 {offsets = [5, 0], sizes = [1, 128], strides = [1, 1]} : vector<9x128xf32> to vector<1x128xf32>
    %331 = vector.extract_strided_slice %320 {offsets = [7, 0], sizes = [1, 128], strides = [1, 1]} : vector<9x128xf32> to vector<1x128xf32>
    %332 = tpu.concatenate %328, %329, %330, %331 in 0 : vector<1x128xf32>, vector<1x128xf32>, vector<1x128xf32>, vector<1x128xf32> -> vector<4x128xf32>
    %333 = arith.truncf %332 : vector<4x128xf32> to vector<4x128xbf16>
    %c4_270 = arith.constant 4 : index
    %c128_271 = arith.constant 128 : index
    %334 = vector.load %arg13[%c4_270, %c128_271] : memref<160x1152xbf16, #tpu.memory_space<vmem>>, vector<4x128xbf16>
    tpu.vector_store %arg13[%c4_270, %c128_271], %333 {strides = array<i32>} : memref<160x1152xbf16, #tpu.memory_space<vmem>>, vector<4x128xbf16>,
    %335 = vector.extract_strided_slice %320 {offsets = [2, 0], sizes = [1, 128], strides = [1, 1]} : vector<9x128xf32> to vector<1x128xf32>
    %336 = vector.extract_strided_slice %320 {offsets = [4, 0], sizes = [1, 128], strides = [1, 1]} : vector<9x128xf32> to vector<1x128xf32>
    %337 = vector.extract_strided_slice %320 {offsets = [6, 0], sizes = [1, 128], strides = [1, 1]} : vector<9x128xf32> to vector<1x128xf32>
    %338 = vector.extract_strided_slice %320 {offsets = [8, 0], sizes = [1, 128], strides = [1, 1]} : vector<9x128xf32> to vector<1x128xf32>
    %339 = tpu.concatenate %335, %336, %337, %338 in 0 : vector<1x128xf32>, vector<1x128xf32>, vector<1x128xf32>, vector<1x128xf32> -> vector<4x128xf32>
    %340 = arith.truncf %339 : vector<4x128xf32> to vector<4x128xbf16>
    %c4_272 = arith.constant 4 : index
    %c256_273 = arith.constant 256 : index
    %341 = vector.load %arg13[%c4_272, %c256_273] : memref<160x1152xbf16, #tpu.memory_space<vmem>>, vector<4x128xbf16>
    tpu.vector_store %arg13[%c4_272, %c256_273], %340 {strides = array<i32>} : memref<160x1152xbf16, #tpu.memory_space<vmem>>, vector<4x128xbf16>,
    %c30 = arith.constant 30 : index
    %c0_274 = arith.constant 0 : index
    %342 = vector.load %arg11[%c30, %c0_274] : memref<200x128xf32, #tpu.memory_space<vmem>>, vector<9x128xf32>
    %343 = vector.extract_strided_slice %342 {offsets = [0, 0], sizes = [1, 128], strides = [1, 1]} : vector<9x128xf32> to vector<1x128xf32>
    %344 = vector.extract_strided_slice %342 {offsets = [2, 0], sizes = [1, 128], strides = [1, 1]} : vector<9x128xf32> to vector<1x128xf32>
    %345 = vector.extract_strided_slice %342 {offsets = [4, 0], sizes = [1, 128], strides = [1, 1]} : vector<9x128xf32> to vector<1x128xf32>
    %346 = vector.extract_strided_slice %342 {offsets = [6, 0], sizes = [1, 128], strides = [1, 1]} : vector<9x128xf32> to vector<1x128xf32>
    %347 = tpu.concatenate %343, %344, %345, %346 in 0 : vector<1x128xf32>, vector<1x128xf32>, vector<1x128xf32>, vector<1x128xf32> -> vector<4x128xf32>
    %348 = arith.truncf %347 : vector<4x128xf32> to vector<4x128xbf16>
    %c4_275 = arith.constant 4 : index
    %c384_276 = arith.constant 384 : index
    %349 = vector.load %arg13[%c4_275, %c384_276] : memref<160x1152xbf16, #tpu.memory_space<vmem>>, vector<4x128xbf16>
    tpu.vector_store %arg13[%c4_275, %c384_276], %348 {strides = array<i32>} : memref<160x1152xbf16, #tpu.memory_space<vmem>>, vector<4x128xbf16>,
    %350 = vector.extract_strided_slice %342 {offsets = [1, 0], sizes = [1, 128], strides = [1, 1]} : vector<9x128xf32> to vector<1x128xf32>
    %351 = vector.extract_strided_slice %342 {offsets = [3, 0], sizes = [1, 128], strides = [1, 1]} : vector<9x128xf32> to vector<1x128xf32>
    %352 = vector.extract_strided_slice %342 {offsets = [5, 0], sizes = [1, 128], strides = [1, 1]} : vector<9x128xf32> to vector<1x128xf32>
    %353 = vector.extract_strided_slice %342 {offsets = [7, 0], sizes = [1, 128], strides = [1, 1]} : vector<9x128xf32> to vector<1x128xf32>
    %354 = tpu.concatenate %350, %351, %352, %353 in 0 : vector<1x128xf32>, vector<1x128xf32>, vector<1x128xf32>, vector<1x128xf32> -> vector<4x128xf32>
    %355 = arith.truncf %354 : vector<4x128xf32> to vector<4x128xbf16>
    %c4_277 = arith.constant 4 : index
    %c512_278 = arith.constant 512 : index
    %356 = vector.load %arg13[%c4_277, %c512_278] : memref<160x1152xbf16, #tpu.memory_space<vmem>>, vector<4x128xbf16>
    tpu.vector_store %arg13[%c4_277, %c512_278], %355 {strides = array<i32>} : memref<160x1152xbf16, #tpu.memory_space<vmem>>, vector<4x128xbf16>,
    %357 = vector.extract_strided_slice %342 {offsets = [2, 0], sizes = [1, 128], strides = [1, 1]} : vector<9x128xf32> to vector<1x128xf32>
    %358 = vector.extract_strided_slice %342 {offsets = [4, 0], sizes = [1, 128], strides = [1, 1]} : vector<9x128xf32> to vector<1x128xf32>
    %359 = vector.extract_strided_slice %342 {offsets = [6, 0], sizes = [1, 128], strides = [1, 1]} : vector<9x128xf32> to vector<1x128xf32>
    %360 = vector.extract_strided_slice %342 {offsets = [8, 0], sizes = [1, 128], strides = [1, 1]} : vector<9x128xf32> to vector<1x128xf32>
    %361 = tpu.concatenate %357, %358, %359, %360 in 0 : vector<1x128xf32>, vector<1x128xf32>, vector<1x128xf32>, vector<1x128xf32> -> vector<4x128xf32>
    %362 = arith.truncf %361 : vector<4x128xf32> to vector<4x128xbf16>
    %c4_279 = arith.constant 4 : index
    %c640_280 = arith.constant 640 : index
    %363 = vector.load %arg13[%c4_279, %c640_280] : memref<160x1152xbf16, #tpu.memory_space<vmem>>, vector<4x128xbf16>
    tpu.vector_store %arg13[%c4_279, %c640_280], %362 {strides = array<i32>} : memref<160x1152xbf16, #tpu.memory_space<vmem>>, vector<4x128xbf16>,
    %c40 = arith.constant 40 : index
    %c0_281 = arith.constant 0 : index
    %364 = vector.load %arg11[%c40, %c0_281] : memref<200x128xf32, #tpu.memory_space<vmem>>, vector<9x128xf32>
    %365 = vector.extract_strided_slice %364 {offsets = [0, 0], sizes = [1, 128], strides = [1, 1]} : vector<9x128xf32> to vector<1x128xf32>
    %366 = vector.extract_strided_slice %364 {offsets = [2, 0], sizes = [1, 128], strides = [1, 1]} : vector<9x128xf32> to vector<1x128xf32>
    %367 = vector.extract_strided_slice %364 {offsets = [4, 0], sizes = [1, 128], strides = [1, 1]} : vector<9x128xf32> to vector<1x128xf32>
    %368 = vector.extract_strided_slice %364 {offsets = [6, 0], sizes = [1, 128], strides = [1, 1]} : vector<9x128xf32> to vector<1x128xf32>
    %369 = tpu.concatenate %365, %366, %367, %368 in 0 : vector<1x128xf32>, vector<1x128xf32>, vector<1x128xf32>, vector<1x128xf32> -> vector<4x128xf32>
    %370 = arith.truncf %369 : vector<4x128xf32> to vector<4x128xbf16>
    %c4_282 = arith.constant 4 : index
    %c768_283 = arith.constant 768 : index
    %371 = vector.load %arg13[%c4_282, %c768_283] : memref<160x1152xbf16, #tpu.memory_space<vmem>>, vector<4x128xbf16>
    tpu.vector_store %arg13[%c4_282, %c768_283], %370 {strides = array<i32>} : memref<160x1152xbf16, #tpu.memory_space<vmem>>, vector<4x128xbf16>,
    %372 = vector.extract_strided_slice %364 {offsets = [1, 0], sizes = [1, 128], strides = [1, 1]} : vector<9x128xf32> to vector<1x128xf32>
    %373 = vector.extract_strided_slice %364 {offsets = [3, 0], sizes = [1, 128], strides = [1, 1]} : vector<9x128xf32> to vector<1x128xf32>
    %374 = vector.extract_strided_slice %364 {offsets = [5, 0], sizes = [1, 128], strides = [1, 1]} : vector<9x128xf32> to vector<1x128xf32>
    %375 = vector.extract_strided_slice %364 {offsets = [7, 0], sizes = [1, 128], strides = [1, 1]} : vector<9x128xf32> to vector<1x128xf32>
    %376 = tpu.concatenate %372, %373, %374, %375 in 0 : vector<1x128xf32>, vector<1x128xf32>, vector<1x128xf32>, vector<1x128xf32> -> vector<4x128xf32>
    %377 = arith.truncf %376 : vector<4x128xf32> to vector<4x128xbf16>
    %c4_284 = arith.constant 4 : index
    %c896_285 = arith.constant 896 : index
    %378 = vector.load %arg13[%c4_284, %c896_285] : memref<160x1152xbf16, #tpu.memory_space<vmem>>, vector<4x128xbf16>
    tpu.vector_store %arg13[%c4_284, %c896_285], %377 {strides = array<i32>} : memref<160x1152xbf16, #tpu.memory_space<vmem>>, vector<4x128xbf16>,
    %379 = vector.extract_strided_slice %364 {offsets = [2, 0], sizes = [1, 128], strides = [1, 1]} : vector<9x128xf32> to vector<1x128xf32>
    %380 = vector.extract_strided_slice %364 {offsets = [4, 0], sizes = [1, 128], strides = [1, 1]} : vector<9x128xf32> to vector<1x128xf32>
    %381 = vector.extract_strided_slice %364 {offsets = [6, 0], sizes = [1, 128], strides = [1, 1]} : vector<9x128xf32> to vector<1x128xf32>
    %382 = vector.extract_strided_slice %364 {offsets = [8, 0], sizes = [1, 128], strides = [1, 1]} : vector<9x128xf32> to vector<1x128xf32>
    %383 = tpu.concatenate %379, %380, %381, %382 in 0 : vector<1x128xf32>, vector<1x128xf32>, vector<1x128xf32>, vector<1x128xf32> -> vector<4x128xf32>
    %384 = arith.truncf %383 : vector<4x128xf32> to vector<4x128xbf16>
    %c4_286 = arith.constant 4 : index
    %c1024_287 = arith.constant 1024 : index
    %385 = vector.load %arg13[%c4_286, %c1024_287] : memref<160x1152xbf16, #tpu.memory_space<vmem>>, vector<4x128xbf16>
    tpu.vector_store %arg13[%c4_286, %c1024_287], %384 {strides = array<i32>} : memref<160x1152xbf16, #tpu.memory_space<vmem>>, vector<4x128xbf16>,
    %c40_288 = arith.constant 40 : index
    %c0_289 = arith.constant 0 : index
    %386 = vector.load %arg11[%c40_288, %c0_289] : memref<200x128xf32, #tpu.memory_space<vmem>>, vector<9x128xf32>
    %387 = vector.extract_strided_slice %386 {offsets = [0, 0], sizes = [1, 128], strides = [1, 1]} : vector<9x128xf32> to vector<1x128xf32>
    %388 = vector.extract_strided_slice %386 {offsets = [2, 0], sizes = [1, 128], strides = [1, 1]} : vector<9x128xf32> to vector<1x128xf32>
    %389 = vector.extract_strided_slice %386 {offsets = [4, 0], sizes = [1, 128], strides = [1, 1]} : vector<9x128xf32> to vector<1x128xf32>
    %390 = vector.extract_strided_slice %386 {offsets = [6, 0], sizes = [1, 128], strides = [1, 1]} : vector<9x128xf32> to vector<1x128xf32>
    %391 = tpu.concatenate %387, %388, %389, %390 in 0 : vector<1x128xf32>, vector<1x128xf32>, vector<1x128xf32>, vector<1x128xf32> -> vector<4x128xf32>
    %392 = arith.truncf %391 : vector<4x128xf32> to vector<4x128xbf16>
    %c8 = arith.constant 8 : index
    %c0_290 = arith.constant 0 : index
    %393 = vector.load %arg13[%c8, %c0_290] : memref<160x1152xbf16, #tpu.memory_space<vmem>>, vector<4x128xbf16>
    tpu.vector_store %arg13[%c8, %c0_290], %392 {strides = array<i32>} : memref<160x1152xbf16, #tpu.memory_space<vmem>>, vector<4x128xbf16>,
    %394 = vector.extract_strided_slice %386 {offsets = [1, 0], sizes = [1, 128], strides = [1, 1]} : vector<9x128xf32> to vector<1x128xf32>
    %395 = vector.extract_strided_slice %386 {offsets = [3, 0], sizes = [1, 128], strides = [1, 1]} : vector<9x128xf32> to vector<1x128xf32>
    %396 = vector.extract_strided_slice %386 {offsets = [5, 0], sizes = [1, 128], strides = [1, 1]} : vector<9x128xf32> to vector<1x128xf32>
    %397 = vector.extract_strided_slice %386 {offsets = [7, 0], sizes = [1, 128], strides = [1, 1]} : vector<9x128xf32> to vector<1x128xf32>
    %398 = tpu.concatenate %394, %395, %396, %397 in 0 : vector<1x128xf32>, vector<1x128xf32>, vector<1x128xf32>, vector<1x128xf32> -> vector<4x128xf32>
    %399 = arith.truncf %398 : vector<4x128xf32> to vector<4x128xbf16>
    %c8_291 = arith.constant 8 : index
    %c128_292 = arith.constant 128 : index
    %400 = vector.load %arg13[%c8_291, %c128_292] : memref<160x1152xbf16, #tpu.memory_space<vmem>>, vector<4x128xbf16>
    tpu.vector_store %arg13[%c8_291, %c128_292], %399 {strides = array<i32>} : memref<160x1152xbf16, #tpu.memory_space<vmem>>, vector<4x128xbf16>,
    %401 = vector.extract_strided_slice %386 {offsets = [2, 0], sizes = [1, 128], strides = [1, 1]} : vector<9x128xf32> to vector<1x128xf32>
    %402 = vector.extract_strided_slice %386 {offsets = [4, 0], sizes = [1, 128], strides = [1, 1]} : vector<9x128xf32> to vector<1x128xf32>
    %403 = vector.extract_strided_slice %386 {offsets = [6, 0], sizes = [1, 128], strides = [1, 1]} : vector<9x128xf32> to vector<1x128xf32>
    %404 = vector.extract_strided_slice %386 {offsets = [8, 0], sizes = [1, 128], strides = [1, 1]} : vector<9x128xf32> to vector<1x128xf32>
    %405 = tpu.concatenate %401, %402, %403, %404 in 0 : vector<1x128xf32>, vector<1x128xf32>, vector<1x128xf32>, vector<1x128xf32> -> vector<4x128xf32>
    %406 = arith.truncf %405 : vector<4x128xf32> to vector<4x128xbf16>
    %c8_293 = arith.constant 8 : index
    %c256_294 = arith.constant 256 : index
    %407 = vector.load %arg13[%c8_293, %c256_294] : memref<160x1152xbf16, #tpu.memory_space<vmem>>, vector<4x128xbf16>
    tpu.vector_store %arg13[%c8_293, %c256_294], %406 {strides = array<i32>} : memref<160x1152xbf16, #tpu.memory_space<vmem>>, vector<4x128xbf16>,
    %c50 = arith.constant 50 : index
    %c0_295 = arith.constant 0 : index
    %408 = vector.load %arg11[%c50, %c0_295] : memref<200x128xf32, #tpu.memory_space<vmem>>, vector<9x128xf32>
    %409 = vector.extract_strided_slice %408 {offsets = [0, 0], sizes = [1, 128], strides = [1, 1]} : vector<9x128xf32> to vector<1x128xf32>
    %410 = vector.extract_strided_slice %408 {offsets = [2, 0], sizes = [1, 128], strides = [1, 1]} : vector<9x128xf32> to vector<1x128xf32>
    %411 = vector.extract_strided_slice %408 {offsets = [4, 0], sizes = [1, 128], strides = [1, 1]} : vector<9x128xf32> to vector<1x128xf32>
    %412 = vector.extract_strided_slice %408 {offsets = [6, 0], sizes = [1, 128], strides = [1, 1]} : vector<9x128xf32> to vector<1x128xf32>
    %413 = tpu.concatenate %409, %410, %411, %412 in 0 : vector<1x128xf32>, vector<1x128xf32>, vector<1x128xf32>, vector<1x128xf32> -> vector<4x128xf32>
    %414 = arith.truncf %413 : vector<4x128xf32> to vector<4x128xbf16>
    %c8_296 = arith.constant 8 : index
    %c384_297 = arith.constant 384 : index
    %415 = vector.load %arg13[%c8_296, %c384_297] : memref<160x1152xbf16, #tpu.memory_space<vmem>>, vector<4x128xbf16>
    tpu.vector_store %arg13[%c8_296, %c384_297], %414 {strides = array<i32>} : memref<160x1152xbf16, #tpu.memory_space<vmem>>, vector<4x128xbf16>,
    %416 = vector.extract_strided_slice %408 {offsets = [1, 0], sizes = [1, 128], strides = [1, 1]} : vector<9x128xf32> to vector<1x128xf32>
    %417 = vector.extract_strided_slice %408 {offsets = [3, 0], sizes = [1, 128], strides = [1, 1]} : vector<9x128xf32> to vector<1x128xf32>
    %418 = vector.extract_strided_slice %408 {offsets = [5, 0], sizes = [1, 128], strides = [1, 1]} : vector<9x128xf32> to vector<1x128xf32>
    %419 = vector.extract_strided_slice %408 {offsets = [7, 0], sizes = [1, 128], strides = [1, 1]} : vector<9x128xf32> to vector<1x128xf32>
    %420 = tpu.concatenate %416, %417, %418, %419 in 0 : vector<1x128xf32>, vector<1x128xf32>, vector<1x128xf32>, vector<1x128xf32> -> vector<4x128xf32>
    %421 = arith.truncf %420 : vector<4x128xf32> to vector<4x128xbf16>
    %c8_298 = arith.constant 8 : index
    %c512_299 = arith.constant 512 : index
    %422 = vector.load %arg13[%c8_298, %c512_299] : memref<160x1152xbf16, #tpu.memory_space<vmem>>, vector<4x128xbf16>
    tpu.vector_store %arg13[%c8_298, %c512_299], %421 {strides = array<i32>} : memref<160x1152xbf16, #tpu.memory_space<vmem>>, vector<4x128xbf16>,
    %423 = vector.extract_strided_slice %408 {offsets = [2, 0], sizes = [1, 128], strides = [1, 1]} : vector<9x128xf32> to vector<1x128xf32>
    %424 = vector.extract_strided_slice %408 {offsets = [4, 0], sizes = [1, 128], strides = [1, 1]} : vector<9x128xf32> to vector<1x128xf32>
    %425 = vector.extract_strided_slice %408 {offsets = [6, 0], sizes = [1, 128], strides = [1, 1]} : vector<9x128xf32> to vector<1x128xf32>
    %426 = vector.extract_strided_slice %408 {offsets = [8, 0], sizes = [1, 128], strides = [1, 1]} : vector<9x128xf32> to vector<1x128xf32>
    %427 = tpu.concatenate %423, %424, %425, %426 in 0 : vector<1x128xf32>, vector<1x128xf32>, vector<1x128xf32>, vector<1x128xf32> -> vector<4x128xf32>
    %428 = arith.truncf %427 : vector<4x128xf32> to vector<4x128xbf16>
    %c8_300 = arith.constant 8 : index
    %c640_301 = arith.constant 640 : index
    %429 = vector.load %arg13[%c8_300, %c640_301] : memref<160x1152xbf16, #tpu.memory_space<vmem>>, vector<4x128xbf16>
    tpu.vector_store %arg13[%c8_300, %c640_301], %428 {strides = array<i32>} : memref<160x1152xbf16, #tpu.memory_space<vmem>>, vector<4x128xbf16>,
    %c60 = arith.constant 60 : index
    %c0_302 = arith.constant 0 : index
    %430 = vector.load %arg11[%c60, %c0_302] : memref<200x128xf32, #tpu.memory_space<vmem>>, vector<9x128xf32>
    %431 = vector.extract_strided_slice %430 {offsets = [0, 0], sizes = [1, 128], strides = [1, 1]} : vector<9x128xf32> to vector<1x128xf32>
    %432 = vector.extract_strided_slice %430 {offsets = [2, 0], sizes = [1, 128], strides = [1, 1]} : vector<9x128xf32> to vector<1x128xf32>
    %433 = vector.extract_strided_slice %430 {offsets = [4, 0], sizes = [1, 128], strides = [1, 1]} : vector<9x128xf32> to vector<1x128xf32>
    %434 = vector.extract_strided_slice %430 {offsets = [6, 0], sizes = [1, 128], strides = [1, 1]} : vector<9x128xf32> to vector<1x128xf32>
    %435 = tpu.concatenate %431, %432, %433, %434 in 0 : vector<1x128xf32>, vector<1x128xf32>, vector<1x128xf32>, vector<1x128xf32> -> vector<4x128xf32>
    %436 = arith.truncf %435 : vector<4x128xf32> to vector<4x128xbf16>
    %c8_303 = arith.constant 8 : index
    %c768_304 = arith.constant 768 : index
    %437 = vector.load %arg13[%c8_303, %c768_304] : memref<160x1152xbf16, #tpu.memory_space<vmem>>, vector<4x128xbf16>
    tpu.vector_store %arg13[%c8_303, %c768_304], %436 {strides = array<i32>} : memref<160x1152xbf16, #tpu.memory_space<vmem>>, vector<4x128xbf16>,
    %438 = vector.extract_strided_slice %430 {offsets = [1, 0], sizes = [1, 128], strides = [1, 1]} : vector<9x128xf32> to vector<1x128xf32>
    %439 = vector.extract_strided_slice %430 {offsets = [3, 0], sizes = [1, 128], strides = [1, 1]} : vector<9x128xf32> to vector<1x128xf32>
    %440 = vector.extract_strided_slice %430 {offsets = [5, 0], sizes = [1, 128], strides = [1, 1]} : vector<9x128xf32> to vector<1x128xf32>
    %441 = vector.extract_strided_slice %430 {offsets = [7, 0], sizes = [1, 128], strides = [1, 1]} : vector<9x128xf32> to vector<1x128xf32>
    %442 = tpu.concatenate %438, %439, %440, %441 in 0 : vector<1x128xf32>, vector<1x128xf32>, vector<1x128xf32>, vector<1x128xf32> -> vector<4x128xf32>
    %443 = arith.truncf %442 : vector<4x128xf32> to vector<4x128xbf16>
    %c8_305 = arith.constant 8 : index
    %c896_306 = arith.constant 896 : index
    %444 = vector.load %arg13[%c8_305, %c896_306] : memref<160x1152xbf16, #tpu.memory_space<vmem>>, vector<4x128xbf16>
    tpu.vector_store %arg13[%c8_305, %c896_306], %443 {strides = array<i32>} : memref<160x1152xbf16, #tpu.memory_space<vmem>>, vector<4x128xbf16>,
    %445 = vector.extract_strided_slice %430 {offsets = [2, 0], sizes = [1, 128], strides = [1, 1]} : vector<9x128xf32> to vector<1x128xf32>
    %446 = vector.extract_strided_slice %430 {offsets = [4, 0], sizes = [1, 128], strides = [1, 1]} : vector<9x128xf32> to vector<1x128xf32>
    %447 = vector.extract_strided_slice %430 {offsets = [6, 0], sizes = [1, 128], strides = [1, 1]} : vector<9x128xf32> to vector<1x128xf32>
    %448 = vector.extract_strided_slice %430 {offsets = [8, 0], sizes = [1, 128], strides = [1, 1]} : vector<9x128xf32> to vector<1x128xf32>
    %449 = tpu.concatenate %445, %446, %447, %448 in 0 : vector<1x128xf32>, vector<1x128xf32>, vector<1x128xf32>, vector<1x128xf32> -> vector<4x128xf32>
    %450 = arith.truncf %449 : vector<4x128xf32> to vector<4x128xbf16>
    %c8_307 = arith.constant 8 : index
    %c1024_308 = arith.constant 1024 : index
    %451 = vector.load %arg13[%c8_307, %c1024_308] : memref<160x1152xbf16, #tpu.memory_space<vmem>>, vector<4x128xbf16>
    tpu.vector_store %arg13[%c8_307, %c1024_308], %450 {strides = array<i32>} : memref<160x1152xbf16, #tpu.memory_space<vmem>>, vector<4x128xbf16>,
    %c60_309 = arith.constant 60 : index
    %c0_310 = arith.constant 0 : index
    %452 = vector.load %arg11[%c60_309, %c0_310] : memref<200x128xf32, #tpu.memory_space<vmem>>, vector<9x128xf32>
    %453 = vector.extract_strided_slice %452 {offsets = [0, 0], sizes = [1, 128], strides = [1, 1]} : vector<9x128xf32> to vector<1x128xf32>
    %454 = vector.extract_strided_slice %452 {offsets = [2, 0], sizes = [1, 128], strides = [1, 1]} : vector<9x128xf32> to vector<1x128xf32>
    %455 = vector.extract_strided_slice %452 {offsets = [4, 0], sizes = [1, 128], strides = [1, 1]} : vector<9x128xf32> to vector<1x128xf32>
    %456 = vector.extract_strided_slice %452 {offsets = [6, 0], sizes = [1, 128], strides = [1, 1]} : vector<9x128xf32> to vector<1x128xf32>
    %457 = tpu.concatenate %453, %454, %455, %456 in 0 : vector<1x128xf32>, vector<1x128xf32>, vector<1x128xf32>, vector<1x128xf32> -> vector<4x128xf32>
    %458 = arith.truncf %457 : vector<4x128xf32> to vector<4x128xbf16>
    %c12_311 = arith.constant 12 : index
    %c0_312 = arith.constant 0 : index
    %459 = vector.load %arg13[%c12_311, %c0_312] : memref<160x1152xbf16, #tpu.memory_space<vmem>>, vector<4x128xbf16>
    tpu.vector_store %arg13[%c12_311, %c0_312], %458 {strides = array<i32>} : memref<160x1152xbf16, #tpu.memory_space<vmem>>, vector<4x128xbf16>,
    %460 = vector.extract_strided_slice %452 {offsets = [1, 0], sizes = [1, 128], strides = [1, 1]} : vector<9x128xf32> to vector<1x128xf32>
    %461 = vector.extract_strided_slice %452 {offsets = [3, 0], sizes = [1, 128], strides = [1, 1]} : vector<9x128xf32> to vector<1x128xf32>
    %462 = vector.extract_strided_slice %452 {offsets = [5, 0], sizes = [1, 128], strides = [1, 1]} : vector<9x128xf32> to vector<1x128xf32>
    %463 = vector.extract_strided_slice %452 {offsets = [7, 0], sizes = [1, 128], strides = [1, 1]} : vector<9x128xf32> to vector<1x128xf32>
    %464 = tpu.concatenate %460, %461, %462, %463 in 0 : vector<1x128xf32>, vector<1x128xf32>, vector<1x128xf32>, vector<1x128xf32> -> vector<4x128xf32>
    %465 = arith.truncf %464 : vector<4x128xf32> to vector<4x128xbf16>
    %c12_313 = arith.constant 12 : index
    %c128_314 = arith.constant 128 : index
    %466 = vector.load %arg13[%c12_313, %c128_314] : memref<160x1152xbf16, #tpu.memory_space<vmem>>, vector<4x128xbf16>
    tpu.vector_store %arg13[%c12_313, %c128_314], %465 {strides = array<i32>} : memref<160x1152xbf16, #tpu.memory_space<vmem>>, vector<4x128xbf16>,
    %467 = vector.extract_strided_slice %452 {offsets = [2, 0], sizes = [1, 128], strides = [1, 1]} : vector<9x128xf32> to vector<1x128xf32>
    %468 = vector.extract_strided_slice %452 {offsets = [4, 0], sizes = [1, 128], strides = [1, 1]} : vector<9x128xf32> to vector<1x128xf32>
    %469 = vector.extract_strided_slice %452 {offsets = [6, 0], sizes = [1, 128], strides = [1, 1]} : vector<9x128xf32> to vector<1x128xf32>
    %470 = vector.extract_strided_slice %452 {offsets = [8, 0], sizes = [1, 128], strides = [1, 1]} : vector<9x128xf32> to vector<1x128xf32>
    %471 = tpu.concatenate %467, %468, %469, %470 in 0 : vector<1x128xf32>, vector<1x128xf32>, vector<1x128xf32>, vector<1x128xf32> -> vector<4x128xf32>
    %472 = arith.truncf %471 : vector<4x128xf32> to vector<4x128xbf16>
    %c12_315 = arith.constant 12 : index
    %c256_316 = arith.constant 256 : index
    %473 = vector.load %arg13[%c12_315, %c256_316] : memref<160x1152xbf16, #tpu.memory_space<vmem>>, vector<4x128xbf16>
    tpu.vector_store %arg13[%c12_315, %c256_316], %472 {strides = array<i32>} : memref<160x1152xbf16, #tpu.memory_space<vmem>>, vector<4x128xbf16>,
    %c70 = arith.constant 70 : index
    %c0_317 = arith.constant 0 : index
    %474 = vector.load %arg11[%c70, %c0_317] : memref<200x128xf32, #tpu.memory_space<vmem>>, vector<9x128xf32>
    %475 = vector.extract_strided_slice %474 {offsets = [0, 0], sizes = [1, 128], strides = [1, 1]} : vector<9x128xf32> to vector<1x128xf32>
    %476 = vector.extract_strided_slice %474 {offsets = [2, 0], sizes = [1, 128], strides = [1, 1]} : vector<9x128xf32> to vector<1x128xf32>
    %477 = vector.extract_strided_slice %474 {offsets = [4, 0], sizes = [1, 128], strides = [1, 1]} : vector<9x128xf32> to vector<1x128xf32>
    %478 = vector.extract_strided_slice %474 {offsets = [6, 0], sizes = [1, 128], strides = [1, 1]} : vector<9x128xf32> to vector<1x128xf32>
    %479 = tpu.concatenate %475, %476, %477, %478 in 0 : vector<1x128xf32>, vector<1x128xf32>, vector<1x128xf32>, vector<1x128xf32> -> vector<4x128xf32>
    %480 = arith.truncf %479 : vector<4x128xf32> to vector<4x128xbf16>
    %c12_318 = arith.constant 12 : index
    %c384_319 = arith.constant 384 : index
    %481 = vector.load %arg13[%c12_318, %c384_319] : memref<160x1152xbf16, #tpu.memory_space<vmem>>, vector<4x128xbf16>
    tpu.vector_store %arg13[%c12_318, %c384_319], %480 {strides = array<i32>} : memref<160x1152xbf16, #tpu.memory_space<vmem>>, vector<4x128xbf16>,
    %482 = vector.extract_strided_slice %474 {offsets = [1, 0], sizes = [1, 128], strides = [1, 1]} : vector<9x128xf32> to vector<1x128xf32>
    %483 = vector.extract_strided_slice %474 {offsets = [3, 0], sizes = [1, 128], strides = [1, 1]} : vector<9x128xf32> to vector<1x128xf32>
    %484 = vector.extract_strided_slice %474 {offsets = [5, 0], sizes = [1, 128], strides = [1, 1]} : vector<9x128xf32> to vector<1x128xf32>
    %485 = vector.extract_strided_slice %474 {offsets = [7, 0], sizes = [1, 128], strides = [1, 1]} : vector<9x128xf32> to vector<1x128xf32>
    %486 = tpu.concatenate %482, %483, %484, %485 in 0 : vector<1x128xf32>, vector<1x128xf32>, vector<1x128xf32>, vector<1x128xf32> -> vector<4x128xf32>
    %487 = arith.truncf %486 : vector<4x128xf32> to vector<4x128xbf16>
    %c12_320 = arith.constant 12 : index
    %c512_321 = arith.constant 512 : index
    %488 = vector.load %arg13[%c12_320, %c512_321] : memref<160x1152xbf16, #tpu.memory_space<vmem>>, vector<4x128xbf16>
    tpu.vector_store %arg13[%c12_320, %c512_321], %487 {strides = array<i32>} : memref<160x1152xbf16, #tpu.memory_space<vmem>>, vector<4x128xbf16>,
    %489 = vector.extract_strided_slice %474 {offsets = [2, 0], sizes = [1, 128], strides = [1, 1]} : vector<9x128xf32> to vector<1x128xf32>
    %490 = vector.extract_strided_slice %474 {offsets = [4, 0], sizes = [1, 128], strides = [1, 1]} : vector<9x128xf32> to vector<1x128xf32>
    %491 = vector.extract_strided_slice %474 {offsets = [6, 0], sizes = [1, 128], strides = [1, 1]} : vector<9x128xf32> to vector<1x128xf32>
    %492 = vector.extract_strided_slice %474 {offsets = [8, 0], sizes = [1, 128], strides = [1, 1]} : vector<9x128xf32> to vector<1x128xf32>
    %493 = tpu.concatenate %489, %490, %491, %492 in 0 : vector<1x128xf32>, vector<1x128xf32>, vector<1x128xf32>, vector<1x128xf32> -> vector<4x128xf32>
    %494 = arith.truncf %493 : vector<4x128xf32> to vector<4x128xbf16>
    %c12_322 = arith.constant 12 : index
    %c640_323 = arith.constant 640 : index
    %495 = vector.load %arg13[%c12_322, %c640_323] : memref<160x1152xbf16, #tpu.memory_space<vmem>>, vector<4x128xbf16>
    tpu.vector_store %arg13[%c12_322, %c640_323], %494 {strides = array<i32>} : memref<160x1152xbf16, #tpu.memory_space<vmem>>, vector<4x128xbf16>,
    %c80_324 = arith.constant 80 : index
    %c0_325 = arith.constant 0 : index
    %496 = vector.load %arg11[%c80_324, %c0_325] : memref<200x128xf32, #tpu.memory_space<vmem>>, vector<9x128xf32>
    %497 = vector.extract_strided_slice %496 {offsets = [0, 0], sizes = [1, 128], strides = [1, 1]} : vector<9x128xf32> to vector<1x128xf32>
    %498 = vector.extract_strided_slice %496 {offsets = [2, 0], sizes = [1, 128], strides = [1, 1]} : vector<9x128xf32> to vector<1x128xf32>
    %499 = vector.extract_strided_slice %496 {offsets = [4, 0], sizes = [1, 128], strides = [1, 1]} : vector<9x128xf32> to vector<1x128xf32>
    %500 = vector.extract_strided_slice %496 {offsets = [6, 0], sizes = [1, 128], strides = [1, 1]} : vector<9x128xf32> to vector<1x128xf32>
    %501 = tpu.concatenate %497, %498, %499, %500 in 0 : vector<1x128xf32>, vector<1x128xf32>, vector<1x128xf32>, vector<1x128xf32> -> vector<4x128xf32>
    %502 = arith.truncf %501 : vector<4x128xf32> to vector<4x128xbf16>
    %c12_326 = arith.constant 12 : index
    %c768_327 = arith.constant 768 : index
    %503 = vector.load %arg13[%c12_326, %c768_327] : memref<160x1152xbf16, #tpu.memory_space<vmem>>, vector<4x128xbf16>
    tpu.vector_store %arg13[%c12_326, %c768_327], %502 {strides = array<i32>} : memref<160x1152xbf16, #tpu.memory_space<vmem>>, vector<4x128xbf16>,
    %504 = vector.extract_strided_slice %496 {offsets = [1, 0], sizes = [1, 128], strides = [1, 1]} : vector<9x128xf32> to vector<1x128xf32>
    %505 = vector.extract_strided_slice %496 {offsets = [3, 0], sizes = [1, 128], strides = [1, 1]} : vector<9x128xf32> to vector<1x128xf32>
    %506 = vector.extract_strided_slice %496 {offsets = [5, 0], sizes = [1, 128], strides = [1, 1]} : vector<9x128xf32> to vector<1x128xf32>
    %507 = vector.extract_strided_slice %496 {offsets = [7, 0], sizes = [1, 128], strides = [1, 1]} : vector<9x128xf32> to vector<1x128xf32>
    %508 = tpu.concatenate %504, %505, %506, %507 in 0 : vector<1x128xf32>, vector<1x128xf32>, vector<1x128xf32>, vector<1x128xf32> -> vector<4x128xf32>
    %509 = arith.truncf %508 : vector<4x128xf32> to vector<4x128xbf16>
    %c12_328 = arith.constant 12 : index
    %c896_329 = arith.constant 896 : index
    %510 = vector.load %arg13[%c12_328, %c896_329] : memref<160x1152xbf16, #tpu.memory_space<vmem>>, vector<4x128xbf16>
    tpu.vector_store %arg13[%c12_328, %c896_329], %509 {strides = array<i32>} : memref<160x1152xbf16, #tpu.memory_space<vmem>>, vector<4x128xbf16>,
    %511 = vector.extract_strided_slice %496 {offsets = [2, 0], sizes = [1, 128], strides = [1, 1]} : vector<9x128xf32> to vector<1x128xf32>
    %512 = vector.extract_strided_slice %496 {offsets = [4, 0], sizes = [1, 128], strides = [1, 1]} : vector<9x128xf32> to vector<1x128xf32>
    %513 = vector.extract_strided_slice %496 {offsets = [6, 0], sizes = [1, 128], strides = [1, 1]} : vector<9x128xf32> to vector<1x128xf32>
    %514 = vector.extract_strided_slice %496 {offsets = [8, 0], sizes = [1, 128], strides = [1, 1]} : vector<9x128xf32> to vector<1x128xf32>
    %515 = tpu.concatenate %511, %512, %513, %514 in 0 : vector<1x128xf32>, vector<1x128xf32>, vector<1x128xf32>, vector<1x128xf32> -> vector<4x128xf32>
    %516 = arith.truncf %515 : vector<4x128xf32> to vector<4x128xbf16>
    %c12_330 = arith.constant 12 : index
    %c1024_331 = arith.constant 1024 : index
    %517 = vector.load %arg13[%c12_330, %c1024_331] : memref<160x1152xbf16, #tpu.memory_space<vmem>>, vector<4x128xbf16>
    tpu.vector_store %arg13[%c12_330, %c1024_331], %516 {strides = array<i32>} : memref<160x1152xbf16, #tpu.memory_space<vmem>>, vector<4x128xbf16>,
    %c100_332 = arith.constant 100 : index
    %c0_333 = arith.constant 0 : index
    %518 = vector.load %arg11[%c100_332, %c0_333] : memref<200x128xf32, #tpu.memory_space<vmem>>, vector<9x128xf32>
    %519 = vector.extract_strided_slice %518 {offsets = [0, 0], sizes = [1, 128], strides = [1, 1]} : vector<9x128xf32> to vector<1x128xf32>
    %520 = vector.extract_strided_slice %518 {offsets = [2, 0], sizes = [1, 128], strides = [1, 1]} : vector<9x128xf32> to vector<1x128xf32>
    %521 = vector.extract_strided_slice %518 {offsets = [4, 0], sizes = [1, 128], strides = [1, 1]} : vector<9x128xf32> to vector<1x128xf32>
    %522 = vector.extract_strided_slice %518 {offsets = [6, 0], sizes = [1, 128], strides = [1, 1]} : vector<9x128xf32> to vector<1x128xf32>
    %523 = tpu.concatenate %519, %520, %521, %522 in 0 : vector<1x128xf32>, vector<1x128xf32>, vector<1x128xf32>, vector<1x128xf32> -> vector<4x128xf32>
    %524 = arith.truncf %523 : vector<4x128xf32> to vector<4x128xbf16>
    %c16 = arith.constant 16 : index
    %c0_334 = arith.constant 0 : index
    %525 = vector.load %arg13[%c16, %c0_334] : memref<160x1152xbf16, #tpu.memory_space<vmem>>, vector<4x128xbf16>
    tpu.vector_store %arg13[%c16, %c0_334], %524 {strides = array<i32>} : memref<160x1152xbf16, #tpu.memory_space<vmem>>, vector<4x128xbf16>,
    %526 = vector.extract_strided_slice %518 {offsets = [1, 0], sizes = [1, 128], strides = [1, 1]} : vector<9x128xf32> to vector<1x128xf32>
    %527 = vector.extract_strided_slice %518 {offsets = [3, 0], sizes = [1, 128], strides = [1, 1]} : vector<9x128xf32> to vector<1x128xf32>
    %528 = vector.extract_strided_slice %518 {offsets = [5, 0], sizes = [1, 128], strides = [1, 1]} : vector<9x128xf32> to vector<1x128xf32>
    %529 = vector.extract_strided_slice %518 {offsets = [7, 0], sizes = [1, 128], strides = [1, 1]} : vector<9x128xf32> to vector<1x128xf32>
    %530 = tpu.concatenate %526, %527, %528, %529 in 0 : vector<1x128xf32>, vector<1x128xf32>, vector<1x128xf32>, vector<1x128xf32> -> vector<4x128xf32>
    %531 = arith.truncf %530 : vector<4x128xf32> to vector<4x128xbf16>
    %c16_335 = arith.constant 16 : index
    %c128_336 = arith.constant 128 : index
    %532 = vector.load %arg13[%c16_335, %c128_336] : memref<160x1152xbf16, #tpu.memory_space<vmem>>, vector<4x128xbf16>
    tpu.vector_store %arg13[%c16_335, %c128_336], %531 {strides = array<i32>} : memref<160x1152xbf16, #tpu.memory_space<vmem>>, vector<4x128xbf16>,
    %533 = vector.extract_strided_slice %518 {offsets = [2, 0], sizes = [1, 128], strides = [1, 1]} : vector<9x128xf32> to vector<1x128xf32>
    %534 = vector.extract_strided_slice %518 {offsets = [4, 0], sizes = [1, 128], strides = [1, 1]} : vector<9x128xf32> to vector<1x128xf32>
    %535 = vector.extract_strided_slice %518 {offsets = [6, 0], sizes = [1, 128], strides = [1, 1]} : vector<9x128xf32> to vector<1x128xf32>
    %536 = vector.extract_strided_slice %518 {offsets = [8, 0], sizes = [1, 128], strides = [1, 1]} : vector<9x128xf32> to vector<1x128xf32>
    %537 = tpu.concatenate %533, %534, %535, %536 in 0 : vector<1x128xf32>, vector<1x128xf32>, vector<1x128xf32>, vector<1x128xf32> -> vector<4x128xf32>
    %538 = arith.truncf %537 : vector<4x128xf32> to vector<4x128xbf16>
    %c16_337 = arith.constant 16 : index
    %c256_338 = arith.constant 256 : index
    %539 = vector.load %arg13[%c16_337, %c256_338] : memref<160x1152xbf16, #tpu.memory_space<vmem>>, vector<4x128xbf16>
    tpu.vector_store %arg13[%c16_337, %c256_338], %538 {strides = array<i32>} : memref<160x1152xbf16, #tpu.memory_space<vmem>>, vector<4x128xbf16>,
    %c110_339 = arith.constant 110 : index
    %c0_340 = arith.constant 0 : index
    %540 = vector.load %arg11[%c110_339, %c0_340] : memref<200x128xf32, #tpu.memory_space<vmem>>, vector<9x128xf32>
    %541 = vector.extract_strided_slice %540 {offsets = [0, 0], sizes = [1, 128], strides = [1, 1]} : vector<9x128xf32> to vector<1x128xf32>
    %542 = vector.extract_strided_slice %540 {offsets = [2, 0], sizes = [1, 128], strides = [1, 1]} : vector<9x128xf32> to vector<1x128xf32>
    %543 = vector.extract_strided_slice %540 {offsets = [4, 0], sizes = [1, 128], strides = [1, 1]} : vector<9x128xf32> to vector<1x128xf32>
    %544 = vector.extract_strided_slice %540 {offsets = [6, 0], sizes = [1, 128], strides = [1, 1]} : vector<9x128xf32> to vector<1x128xf32>
    %545 = tpu.concatenate %541, %542, %543, %544 in 0 : vector<1x128xf32>, vector<1x128xf32>, vector<1x128xf32>, vector<1x128xf32> -> vector<4x128xf32>
    %546 = arith.truncf %545 : vector<4x128xf32> to vector<4x128xbf16>
    %c16_341 = arith.constant 16 : index
    %c384_342 = arith.constant 384 : index
    %547 = vector.load %arg13[%c16_341, %c384_342] : memref<160x1152xbf16, #tpu.memory_space<vmem>>, vector<4x128xbf16>
    tpu.vector_store %arg13[%c16_341, %c384_342], %546 {strides = array<i32>} : memref<160x1152xbf16, #tpu.memory_space<vmem>>, vector<4x128xbf16>,
    %548 = vector.extract_strided_slice %540 {offsets = [1, 0], sizes = [1, 128], strides = [1, 1]} : vector<9x128xf32> to vector<1x128xf32>
    %549 = vector.extract_strided_slice %540 {offsets = [3, 0], sizes = [1, 128], strides = [1, 1]} : vector<9x128xf32> to vector<1x128xf32>
    %550 = vector.extract_strided_slice %540 {offsets = [5, 0], sizes = [1, 128], strides = [1, 1]} : vector<9x128xf32> to vector<1x128xf32>
    %551 = vector.extract_strided_slice %540 {offsets = [7, 0], sizes = [1, 128], strides = [1, 1]} : vector<9x128xf32> to vector<1x128xf32>
    %552 = tpu.concatenate %548, %549, %550, %551 in 0 : vector<1x128xf32>, vector<1x128xf32>, vector<1x128xf32>, vector<1x128xf32> -> vector<4x128xf32>
    %553 = arith.truncf %552 : vector<4x128xf32> to vector<4x128xbf16>
    %c16_343 = arith.constant 16 : index
    %c512_344 = arith.constant 512 : index
    %554 = vector.load %arg13[%c16_343, %c512_344] : memref<160x1152xbf16, #tpu.memory_space<vmem>>, vector<4x128xbf16>
    tpu.vector_store %arg13[%c16_343, %c512_344], %553 {strides = array<i32>} : memref<160x1152xbf16, #tpu.memory_space<vmem>>, vector<4x128xbf16>,
    %555 = vector.extract_strided_slice %540 {offsets = [2, 0], sizes = [1, 128], strides = [1, 1]} : vector<9x128xf32> to vector<1x128xf32>
    %556 = vector.extract_strided_slice %540 {offsets = [4, 0], sizes = [1, 128], strides = [1, 1]} : vector<9x128xf32> to vector<1x128xf32>
    %557 = vector.extract_strided_slice %540 {offsets = [6, 0], sizes = [1, 128], strides = [1, 1]} : vector<9x128xf32> to vector<1x128xf32>
    %558 = vector.extract_strided_slice %540 {offsets = [8, 0], sizes = [1, 128], strides = [1, 1]} : vector<9x128xf32> to vector<1x128xf32>
    %559 = tpu.concatenate %555, %556, %557, %558 in 0 : vector<1x128xf32>, vector<1x128xf32>, vector<1x128xf32>, vector<1x128xf32> -> vector<4x128xf32>
    %560 = arith.truncf %559 : vector<4x128xf32> to vector<4x128xbf16>
    %c16_345 = arith.constant 16 : index
    %c640_346 = arith.constant 640 : index
    %561 = vector.load %arg13[%c16_345, %c640_346] : memref<160x1152xbf16, #tpu.memory_space<vmem>>, vector<4x128xbf16>
    tpu.vector_store %arg13[%c16_345, %c640_346], %560 {strides = array<i32>} : memref<160x1152xbf16, #tpu.memory_space<vmem>>, vector<4x128xbf16>,
    %c120_347 = arith.constant 120 : index
    %c0_348 = arith.constant 0 : index
    %562 = vector.load %arg11[%c120_347, %c0_348] : memref<200x128xf32, #tpu.memory_space<vmem>>, vector<9x128xf32>
    %563 = vector.extract_strided_slice %562 {offsets = [0, 0], sizes = [1, 128], strides = [1, 1]} : vector<9x128xf32> to vector<1x128xf32>
    %564 = vector.extract_strided_slice %562 {offsets = [2, 0], sizes = [1, 128], strides = [1, 1]} : vector<9x128xf32> to vector<1x128xf32>
    %565 = vector.extract_strided_slice %562 {offsets = [4, 0], sizes = [1, 128], strides = [1, 1]} : vector<9x128xf32> to vector<1x128xf32>
    %566 = vector.extract_strided_slice %562 {offsets = [6, 0], sizes = [1, 128], strides = [1, 1]} : vector<9x128xf32> to vector<1x128xf32>
    %567 = tpu.concatenate %563, %564, %565, %566 in 0 : vector<1x128xf32>, vector<1x128xf32>, vector<1x128xf32>, vector<1x128xf32> -> vector<4x128xf32>
    %568 = arith.truncf %567 : vector<4x128xf32> to vector<4x128xbf16>
    %c16_349 = arith.constant 16 : index
    %c768_350 = arith.constant 768 : index
    %569 = vector.load %arg13[%c16_349, %c768_350] : memref<160x1152xbf16, #tpu.memory_space<vmem>>, vector<4x128xbf16>
    tpu.vector_store %arg13[%c16_349, %c768_350], %568 {strides = array<i32>} : memref<160x1152xbf16, #tpu.memory_space<vmem>>, vector<4x128xbf16>,
    %570 = vector.extract_strided_slice %562 {offsets = [1, 0], sizes = [1, 128], strides = [1, 1]} : vector<9x128xf32> to vector<1x128xf32>
    %571 = vector.extract_strided_slice %562 {offsets = [3, 0], sizes = [1, 128], strides = [1, 1]} : vector<9x128xf32> to vector<1x128xf32>
    %572 = vector.extract_strided_slice %562 {offsets = [5, 0], sizes = [1, 128], strides = [1, 1]} : vector<9x128xf32> to vector<1x128xf32>
    %573 = vector.extract_strided_slice %562 {offsets = [7, 0], sizes = [1, 128], strides = [1, 1]} : vector<9x128xf32> to vector<1x128xf32>
    %574 = tpu.concatenate %570, %571, %572, %573 in 0 : vector<1x128xf32>, vector<1x128xf32>, vector<1x128xf32>, vector<1x128xf32> -> vector<4x128xf32>
    %575 = arith.truncf %574 : vector<4x128xf32> to vector<4x128xbf16>
    %c16_351 = arith.constant 16 : index
    %c896_352 = arith.constant 896 : index
    %576 = vector.load %arg13[%c16_351, %c896_352] : memref<160x1152xbf16, #tpu.memory_space<vmem>>, vector<4x128xbf16>
    tpu.vector_store %arg13[%c16_351, %c896_352], %575 {strides = array<i32>} : memref<160x1152xbf16, #tpu.memory_space<vmem>>, vector<4x128xbf16>,
    %577 = vector.extract_strided_slice %562 {offsets = [2, 0], sizes = [1, 128], strides = [1, 1]} : vector<9x128xf32> to vector<1x128xf32>
    %578 = vector.extract_strided_slice %562 {offsets = [4, 0], sizes = [1, 128], strides = [1, 1]} : vector<9x128xf32> to vector<1x128xf32>
    %579 = vector.extract_strided_slice %562 {offsets = [6, 0], sizes = [1, 128], strides = [1, 1]} : vector<9x128xf32> to vector<1x128xf32>
    %580 = vector.extract_strided_slice %562 {offsets = [8, 0], sizes = [1, 128], strides = [1, 1]} : vector<9x128xf32> to vector<1x128xf32>
    %581 = tpu.concatenate %577, %578, %579, %580 in 0 : vector<1x128xf32>, vector<1x128xf32>, vector<1x128xf32>, vector<1x128xf32> -> vector<4x128xf32>
    %582 = arith.truncf %581 : vector<4x128xf32> to vector<4x128xbf16>
    %c16_353 = arith.constant 16 : index
    %c1024_354 = arith.constant 1024 : index
    %583 = vector.load %arg13[%c16_353, %c1024_354] : memref<160x1152xbf16, #tpu.memory_space<vmem>>, vector<4x128xbf16>
    tpu.vector_store %arg13[%c16_353, %c1024_354], %582 {strides = array<i32>} : memref<160x1152xbf16, #tpu.memory_space<vmem>>, vector<4x128xbf16>,
    %c120_355 = arith.constant 120 : index
    %c0_356 = arith.constant 0 : index
    %584 = vector.load %arg11[%c120_355, %c0_356] : memref<200x128xf32, #tpu.memory_space<vmem>>, vector<9x128xf32>
    %585 = vector.extract_strided_slice %584 {offsets = [0, 0], sizes = [1, 128], strides = [1, 1]} : vector<9x128xf32> to vector<1x128xf32>
    %586 = vector.extract_strided_slice %584 {offsets = [2, 0], sizes = [1, 128], strides = [1, 1]} : vector<9x128xf32> to vector<1x128xf32>
    %587 = vector.extract_strided_slice %584 {offsets = [4, 0], sizes = [1, 128], strides = [1, 1]} : vector<9x128xf32> to vector<1x128xf32>
    %588 = vector.extract_strided_slice %584 {offsets = [6, 0], sizes = [1, 128], strides = [1, 1]} : vector<9x128xf32> to vector<1x128xf32>
    %589 = tpu.concatenate %585, %586, %587, %588 in 0 : vector<1x128xf32>, vector<1x128xf32>, vector<1x128xf32>, vector<1x128xf32> -> vector<4x128xf32>
    %590 = arith.truncf %589 : vector<4x128xf32> to vector<4x128xbf16>
    %c20_357 = arith.constant 20 : index
    %c0_358 = arith.constant 0 : index
    %591 = vector.load %arg13[%c20_357, %c0_358] : memref<160x1152xbf16, #tpu.memory_space<vmem>>, vector<4x128xbf16>
    tpu.vector_store %arg13[%c20_357, %c0_358], %590 {strides = array<i32>} : memref<160x1152xbf16, #tpu.memory_space<vmem>>, vector<4x128xbf16>,
    %592 = vector.extract_strided_slice %584 {offsets = [1, 0], sizes = [1, 128], strides = [1, 1]} : vector<9x128xf32> to vector<1x128xf32>
    %593 = vector.extract_strided_slice %584 {offsets = [3, 0], sizes = [1, 128], strides = [1, 1]} : vector<9x128xf32> to vector<1x128xf32>
    %594 = vector.extract_strided_slice %584 {offsets = [5, 0], sizes = [1, 128], strides = [1, 1]} : vector<9x128xf32> to vector<1x128xf32>
    %595 = vector.extract_strided_slice %584 {offsets = [7, 0], sizes = [1, 128], strides = [1, 1]} : vector<9x128xf32> to vector<1x128xf32>
    %596 = tpu.concatenate %592, %593, %594, %595 in 0 : vector<1x128xf32>, vector<1x128xf32>, vector<1x128xf32>, vector<1x128xf32> -> vector<4x128xf32>
    %597 = arith.truncf %596 : vector<4x128xf32> to vector<4x128xbf16>
    %c20_359 = arith.constant 20 : index
    %c128_360 = arith.constant 128 : index
    %598 = vector.load %arg13[%c20_359, %c128_360] : memref<160x1152xbf16, #tpu.memory_space<vmem>>, vector<4x128xbf16>
    tpu.vector_store %arg13[%c20_359, %c128_360], %597 {strides = array<i32>} : memref<160x1152xbf16, #tpu.memory_space<vmem>>, vector<4x128xbf16>,
    %599 = vector.extract_strided_slice %584 {offsets = [2, 0], sizes = [1, 128], strides = [1, 1]} : vector<9x128xf32> to vector<1x128xf32>
    %600 = vector.extract_strided_slice %584 {offsets = [4, 0], sizes = [1, 128], strides = [1, 1]} : vector<9x128xf32> to vector<1x128xf32>
    %601 = vector.extract_strided_slice %584 {offsets = [6, 0], sizes = [1, 128], strides = [1, 1]} : vector<9x128xf32> to vector<1x128xf32>
    %602 = vector.extract_strided_slice %584 {offsets = [8, 0], sizes = [1, 128], strides = [1, 1]} : vector<9x128xf32> to vector<1x128xf32>
    %603 = tpu.concatenate %599, %600, %601, %602 in 0 : vector<1x128xf32>, vector<1x128xf32>, vector<1x128xf32>, vector<1x128xf32> -> vector<4x128xf32>
    %604 = arith.truncf %603 : vector<4x128xf32> to vector<4x128xbf16>
    %c20_361 = arith.constant 20 : index
    %c256_362 = arith.constant 256 : index
    %605 = vector.load %arg13[%c20_361, %c256_362] : memref<160x1152xbf16, #tpu.memory_space<vmem>>, vector<4x128xbf16>
    tpu.vector_store %arg13[%c20_361, %c256_362], %604 {strides = array<i32>} : memref<160x1152xbf16, #tpu.memory_space<vmem>>, vector<4x128xbf16>,
    %c130 = arith.constant 130 : index
    %c0_363 = arith.constant 0 : index
    %606 = vector.load %arg11[%c130, %c0_363] : memref<200x128xf32, #tpu.memory_space<vmem>>, vector<9x128xf32>
    %607 = vector.extract_strided_slice %606 {offsets = [0, 0], sizes = [1, 128], strides = [1, 1]} : vector<9x128xf32> to vector<1x128xf32>
    %608 = vector.extract_strided_slice %606 {offsets = [2, 0], sizes = [1, 128], strides = [1, 1]} : vector<9x128xf32> to vector<1x128xf32>
    %609 = vector.extract_strided_slice %606 {offsets = [4, 0], sizes = [1, 128], strides = [1, 1]} : vector<9x128xf32> to vector<1x128xf32>
    %610 = vector.extract_strided_slice %606 {offsets = [6, 0], sizes = [1, 128], strides = [1, 1]} : vector<9x128xf32> to vector<1x128xf32>
    %611 = tpu.concatenate %607, %608, %609, %610 in 0 : vector<1x128xf32>, vector<1x128xf32>, vector<1x128xf32>, vector<1x128xf32> -> vector<4x128xf32>
    %612 = arith.truncf %611 : vector<4x128xf32> to vector<4x128xbf16>
    %c20_364 = arith.constant 20 : index
    %c384_365 = arith.constant 384 : index
    %613 = vector.load %arg13[%c20_364, %c384_365] : memref<160x1152xbf16, #tpu.memory_space<vmem>>, vector<4x128xbf16>
    tpu.vector_store %arg13[%c20_364, %c384_365], %612 {strides = array<i32>} : memref<160x1152xbf16, #tpu.memory_space<vmem>>, vector<4x128xbf16>,
    %614 = vector.extract_strided_slice %606 {offsets = [1, 0], sizes = [1, 128], strides = [1, 1]} : vector<9x128xf32> to vector<1x128xf32>
    %615 = vector.extract_strided_slice %606 {offsets = [3, 0], sizes = [1, 128], strides = [1, 1]} : vector<9x128xf32> to vector<1x128xf32>
    %616 = vector.extract_strided_slice %606 {offsets = [5, 0], sizes = [1, 128], strides = [1, 1]} : vector<9x128xf32> to vector<1x128xf32>
    %617 = vector.extract_strided_slice %606 {offsets = [7, 0], sizes = [1, 128], strides = [1, 1]} : vector<9x128xf32> to vector<1x128xf32>
    %618 = tpu.concatenate %614, %615, %616, %617 in 0 : vector<1x128xf32>, vector<1x128xf32>, vector<1x128xf32>, vector<1x128xf32> -> vector<4x128xf32>
    %619 = arith.truncf %618 : vector<4x128xf32> to vector<4x128xbf16>
    %c20_366 = arith.constant 20 : index
    %c512_367 = arith.constant 512 : index
    %620 = vector.load %arg13[%c20_366, %c512_367] : memref<160x1152xbf16, #tpu.memory_space<vmem>>, vector<4x128xbf16>
    tpu.vector_store %arg13[%c20_366, %c512_367], %619 {strides = array<i32>} : memref<160x1152xbf16, #tpu.memory_space<vmem>>, vector<4x128xbf16>,
    %621 = vector.extract_strided_slice %606 {offsets = [2, 0], sizes = [1, 128], strides = [1, 1]} : vector<9x128xf32> to vector<1x128xf32>
    %622 = vector.extract_strided_slice %606 {offsets = [4, 0], sizes = [1, 128], strides = [1, 1]} : vector<9x128xf32> to vector<1x128xf32>
    %623 = vector.extract_strided_slice %606 {offsets = [6, 0], sizes = [1, 128], strides = [1, 1]} : vector<9x128xf32> to vector<1x128xf32>
    %624 = vector.extract_strided_slice %606 {offsets = [8, 0], sizes = [1, 128], strides = [1, 1]} : vector<9x128xf32> to vector<1x128xf32>
    %625 = tpu.concatenate %621, %622, %623, %624 in 0 : vector<1x128xf32>, vector<1x128xf32>, vector<1x128xf32>, vector<1x128xf32> -> vector<4x128xf32>
    %626 = arith.truncf %625 : vector<4x128xf32> to vector<4x128xbf16>
    %c20_368 = arith.constant 20 : index
    %c640_369 = arith.constant 640 : index
    %627 = vector.load %arg13[%c20_368, %c640_369] : memref<160x1152xbf16, #tpu.memory_space<vmem>>, vector<4x128xbf16>
    tpu.vector_store %arg13[%c20_368, %c640_369], %626 {strides = array<i32>} : memref<160x1152xbf16, #tpu.memory_space<vmem>>, vector<4x128xbf16>,
    %c140 = arith.constant 140 : index
    %c0_370 = arith.constant 0 : index
    %628 = vector.load %arg11[%c140, %c0_370] : memref<200x128xf32, #tpu.memory_space<vmem>>, vector<9x128xf32>
    %629 = vector.extract_strided_slice %628 {offsets = [0, 0], sizes = [1, 128], strides = [1, 1]} : vector<9x128xf32> to vector<1x128xf32>
    %630 = vector.extract_strided_slice %628 {offsets = [2, 0], sizes = [1, 128], strides = [1, 1]} : vector<9x128xf32> to vector<1x128xf32>
    %631 = vector.extract_strided_slice %628 {offsets = [4, 0], sizes = [1, 128], strides = [1, 1]} : vector<9x128xf32> to vector<1x128xf32>
    %632 = vector.extract_strided_slice %628 {offsets = [6, 0], sizes = [1, 128], strides = [1, 1]} : vector<9x128xf32> to vector<1x128xf32>
    %633 = tpu.concatenate %629, %630, %631, %632 in 0 : vector<1x128xf32>, vector<1x128xf32>, vector<1x128xf32>, vector<1x128xf32> -> vector<4x128xf32>
    %634 = arith.truncf %633 : vector<4x128xf32> to vector<4x128xbf16>
    %c20_371 = arith.constant 20 : index
    %c768_372 = arith.constant 768 : index
    %635 = vector.load %arg13[%c20_371, %c768_372] : memref<160x1152xbf16, #tpu.memory_space<vmem>>, vector<4x128xbf16>
    tpu.vector_store %arg13[%c20_371, %c768_372], %634 {strides = array<i32>} : memref<160x1152xbf16, #tpu.memory_space<vmem>>, vector<4x128xbf16>,
    %636 = vector.extract_strided_slice %628 {offsets = [1, 0], sizes = [1, 128], strides = [1, 1]} : vector<9x128xf32> to vector<1x128xf32>
    %637 = vector.extract_strided_slice %628 {offsets = [3, 0], sizes = [1, 128], strides = [1, 1]} : vector<9x128xf32> to vector<1x128xf32>
    %638 = vector.extract_strided_slice %628 {offsets = [5, 0], sizes = [1, 128], strides = [1, 1]} : vector<9x128xf32> to vector<1x128xf32>
    %639 = vector.extract_strided_slice %628 {offsets = [7, 0], sizes = [1, 128], strides = [1, 1]} : vector<9x128xf32> to vector<1x128xf32>
    %640 = tpu.concatenate %636, %637, %638, %639 in 0 : vector<1x128xf32>, vector<1x128xf32>, vector<1x128xf32>, vector<1x128xf32> -> vector<4x128xf32>
    %641 = arith.truncf %640 : vector<4x128xf32> to vector<4x128xbf16>
    %c20_373 = arith.constant 20 : index
    %c896_374 = arith.constant 896 : index
    %642 = vector.load %arg13[%c20_373, %c896_374] : memref<160x1152xbf16, #tpu.memory_space<vmem>>, vector<4x128xbf16>
    tpu.vector_store %arg13[%c20_373, %c896_374], %641 {strides = array<i32>} : memref<160x1152xbf16, #tpu.memory_space<vmem>>, vector<4x128xbf16>,
    %643 = vector.extract_strided_slice %628 {offsets = [2, 0], sizes = [1, 128], strides = [1, 1]} : vector<9x128xf32> to vector<1x128xf32>
    %644 = vector.extract_strided_slice %628 {offsets = [4, 0], sizes = [1, 128], strides = [1, 1]} : vector<9x128xf32> to vector<1x128xf32>
    %645 = vector.extract_strided_slice %628 {offsets = [6, 0], sizes = [1, 128], strides = [1, 1]} : vector<9x128xf32> to vector<1x128xf32>
    %646 = vector.extract_strided_slice %628 {offsets = [8, 0], sizes = [1, 128], strides = [1, 1]} : vector<9x128xf32> to vector<1x128xf32>
    %647 = tpu.concatenate %643, %644, %645, %646 in 0 : vector<1x128xf32>, vector<1x128xf32>, vector<1x128xf32>, vector<1x128xf32> -> vector<4x128xf32>
    %648 = arith.truncf %647 : vector<4x128xf32> to vector<4x128xbf16>
    %c20_375 = arith.constant 20 : index
    %c1024_376 = arith.constant 1024 : index
    %649 = vector.load %arg13[%c20_375, %c1024_376] : memref<160x1152xbf16, #tpu.memory_space<vmem>>, vector<4x128xbf16>
    tpu.vector_store %arg13[%c20_375, %c1024_376], %648 {strides = array<i32>} : memref<160x1152xbf16, #tpu.memory_space<vmem>>, vector<4x128xbf16>,
    %c140_377 = arith.constant 140 : index
    %c0_378 = arith.constant 0 : index
    %650 = vector.load %arg11[%c140_377, %c0_378] : memref<200x128xf32, #tpu.memory_space<vmem>>, vector<9x128xf32>
    %651 = vector.extract_strided_slice %650 {offsets = [0, 0], sizes = [1, 128], strides = [1, 1]} : vector<9x128xf32> to vector<1x128xf32>
    %652 = vector.extract_strided_slice %650 {offsets = [2, 0], sizes = [1, 128], strides = [1, 1]} : vector<9x128xf32> to vector<1x128xf32>
    %653 = vector.extract_strided_slice %650 {offsets = [4, 0], sizes = [1, 128], strides = [1, 1]} : vector<9x128xf32> to vector<1x128xf32>
    %654 = vector.extract_strided_slice %650 {offsets = [6, 0], sizes = [1, 128], strides = [1, 1]} : vector<9x128xf32> to vector<1x128xf32>
    %655 = tpu.concatenate %651, %652, %653, %654 in 0 : vector<1x128xf32>, vector<1x128xf32>, vector<1x128xf32>, vector<1x128xf32> -> vector<4x128xf32>
    %656 = arith.truncf %655 : vector<4x128xf32> to vector<4x128xbf16>
    %c24 = arith.constant 24 : index
    %c0_379 = arith.constant 0 : index
    %657 = vector.load %arg13[%c24, %c0_379] : memref<160x1152xbf16, #tpu.memory_space<vmem>>, vector<4x128xbf16>
    tpu.vector_store %arg13[%c24, %c0_379], %656 {strides = array<i32>} : memref<160x1152xbf16, #tpu.memory_space<vmem>>, vector<4x128xbf16>,
    %658 = vector.extract_strided_slice %650 {offsets = [1, 0], sizes = [1, 128], strides = [1, 1]} : vector<9x128xf32> to vector<1x128xf32>
    %659 = vector.extract_strided_slice %650 {offsets = [3, 0], sizes = [1, 128], strides = [1, 1]} : vector<9x128xf32> to vector<1x128xf32>
    %660 = vector.extract_strided_slice %650 {offsets = [5, 0], sizes = [1, 128], strides = [1, 1]} : vector<9x128xf32> to vector<1x128xf32>
    %661 = vector.extract_strided_slice %650 {offsets = [7, 0], sizes = [1, 128], strides = [1, 1]} : vector<9x128xf32> to vector<1x128xf32>
    %662 = tpu.concatenate %658, %659, %660, %661 in 0 : vector<1x128xf32>, vector<1x128xf32>, vector<1x128xf32>, vector<1x128xf32> -> vector<4x128xf32>
    %663 = arith.truncf %662 : vector<4x128xf32> to vector<4x128xbf16>
    %c24_380 = arith.constant 24 : index
    %c128_381 = arith.constant 128 : index
    %664 = vector.load %arg13[%c24_380, %c128_381] : memref<160x1152xbf16, #tpu.memory_space<vmem>>, vector<4x128xbf16>
    tpu.vector_store %arg13[%c24_380, %c128_381], %663 {strides = array<i32>} : memref<160x1152xbf16, #tpu.memory_space<vmem>>, vector<4x128xbf16>,
    %665 = vector.extract_strided_slice %650 {offsets = [2, 0], sizes = [1, 128], strides = [1, 1]} : vector<9x128xf32> to vector<1x128xf32>
    %666 = vector.extract_strided_slice %650 {offsets = [4, 0], sizes = [1, 128], strides = [1, 1]} : vector<9x128xf32> to vector<1x128xf32>
    %667 = vector.extract_strided_slice %650 {offsets = [6, 0], sizes = [1, 128], strides = [1, 1]} : vector<9x128xf32> to vector<1x128xf32>
    %668 = vector.extract_strided_slice %650 {offsets = [8, 0], sizes = [1, 128], strides = [1, 1]} : vector<9x128xf32> to vector<1x128xf32>
    %669 = tpu.concatenate %665, %666, %667, %668 in 0 : vector<1x128xf32>, vector<1x128xf32>, vector<1x128xf32>, vector<1x128xf32> -> vector<4x128xf32>
    %670 = arith.truncf %669 : vector<4x128xf32> to vector<4x128xbf16>
    %c24_382 = arith.constant 24 : index
    %c256_383 = arith.constant 256 : index
    %671 = vector.load %arg13[%c24_382, %c256_383] : memref<160x1152xbf16, #tpu.memory_space<vmem>>, vector<4x128xbf16>
    tpu.vector_store %arg13[%c24_382, %c256_383], %670 {strides = array<i32>} : memref<160x1152xbf16, #tpu.memory_space<vmem>>, vector<4x128xbf16>,
    %c150 = arith.constant 150 : index
    %c0_384 = arith.constant 0 : index
    %672 = vector.load %arg11[%c150, %c0_384] : memref<200x128xf32, #tpu.memory_space<vmem>>, vector<9x128xf32>
    %673 = vector.extract_strided_slice %672 {offsets = [0, 0], sizes = [1, 128], strides = [1, 1]} : vector<9x128xf32> to vector<1x128xf32>
    %674 = vector.extract_strided_slice %672 {offsets = [2, 0], sizes = [1, 128], strides = [1, 1]} : vector<9x128xf32> to vector<1x128xf32>
    %675 = vector.extract_strided_slice %672 {offsets = [4, 0], sizes = [1, 128], strides = [1, 1]} : vector<9x128xf32> to vector<1x128xf32>
    %676 = vector.extract_strided_slice %672 {offsets = [6, 0], sizes = [1, 128], strides = [1, 1]} : vector<9x128xf32> to vector<1x128xf32>
    %677 = tpu.concatenate %673, %674, %675, %676 in 0 : vector<1x128xf32>, vector<1x128xf32>, vector<1x128xf32>, vector<1x128xf32> -> vector<4x128xf32>
    %678 = arith.truncf %677 : vector<4x128xf32> to vector<4x128xbf16>
    %c24_385 = arith.constant 24 : index
    %c384_386 = arith.constant 384 : index
    %679 = vector.load %arg13[%c24_385, %c384_386] : memref<160x1152xbf16, #tpu.memory_space<vmem>>, vector<4x128xbf16>
    tpu.vector_store %arg13[%c24_385, %c384_386], %678 {strides = array<i32>} : memref<160x1152xbf16, #tpu.memory_space<vmem>>, vector<4x128xbf16>,
    %680 = vector.extract_strided_slice %672 {offsets = [1, 0], sizes = [1, 128], strides = [1, 1]} : vector<9x128xf32> to vector<1x128xf32>
    %681 = vector.extract_strided_slice %672 {offsets = [3, 0], sizes = [1, 128], strides = [1, 1]} : vector<9x128xf32> to vector<1x128xf32>
    %682 = vector.extract_strided_slice %672 {offsets = [5, 0], sizes = [1, 128], strides = [1, 1]} : vector<9x128xf32> to vector<1x128xf32>
    %683 = vector.extract_strided_slice %672 {offsets = [7, 0], sizes = [1, 128], strides = [1, 1]} : vector<9x128xf32> to vector<1x128xf32>
    %684 = tpu.concatenate %680, %681, %682, %683 in 0 : vector<1x128xf32>, vector<1x128xf32>, vector<1x128xf32>, vector<1x128xf32> -> vector<4x128xf32>
    %685 = arith.truncf %684 : vector<4x128xf32> to vector<4x128xbf16>
    %c24_387 = arith.constant 24 : index
    %c512_388 = arith.constant 512 : index
    %686 = vector.load %arg13[%c24_387, %c512_388] : memref<160x1152xbf16, #tpu.memory_space<vmem>>, vector<4x128xbf16>
    tpu.vector_store %arg13[%c24_387, %c512_388], %685 {strides = array<i32>} : memref<160x1152xbf16, #tpu.memory_space<vmem>>, vector<4x128xbf16>,
    %687 = vector.extract_strided_slice %672 {offsets = [2, 0], sizes = [1, 128], strides = [1, 1]} : vector<9x128xf32> to vector<1x128xf32>
    %688 = vector.extract_strided_slice %672 {offsets = [4, 0], sizes = [1, 128], strides = [1, 1]} : vector<9x128xf32> to vector<1x128xf32>
    %689 = vector.extract_strided_slice %672 {offsets = [6, 0], sizes = [1, 128], strides = [1, 1]} : vector<9x128xf32> to vector<1x128xf32>
    %690 = vector.extract_strided_slice %672 {offsets = [8, 0], sizes = [1, 128], strides = [1, 1]} : vector<9x128xf32> to vector<1x128xf32>
    %691 = tpu.concatenate %687, %688, %689, %690 in 0 : vector<1x128xf32>, vector<1x128xf32>, vector<1x128xf32>, vector<1x128xf32> -> vector<4x128xf32>
    %692 = arith.truncf %691 : vector<4x128xf32> to vector<4x128xbf16>
    %c24_389 = arith.constant 24 : index
    %c640_390 = arith.constant 640 : index
    %693 = vector.load %arg13[%c24_389, %c640_390] : memref<160x1152xbf16, #tpu.memory_space<vmem>>, vector<4x128xbf16>
    tpu.vector_store %arg13[%c24_389, %c640_390], %692 {strides = array<i32>} : memref<160x1152xbf16, #tpu.memory_space<vmem>>, vector<4x128xbf16>,
    %c160 = arith.constant 160 : index
    %c0_391 = arith.constant 0 : index
    %694 = vector.load %arg11[%c160, %c0_391] : memref<200x128xf32, #tpu.memory_space<vmem>>, vector<9x128xf32>
    %695 = vector.extract_strided_slice %694 {offsets = [0, 0], sizes = [1, 128], strides = [1, 1]} : vector<9x128xf32> to vector<1x128xf32>
    %696 = vector.extract_strided_slice %694 {offsets = [2, 0], sizes = [1, 128], strides = [1, 1]} : vector<9x128xf32> to vector<1x128xf32>
    %697 = vector.extract_strided_slice %694 {offsets = [4, 0], sizes = [1, 128], strides = [1, 1]} : vector<9x128xf32> to vector<1x128xf32>
    %698 = vector.extract_strided_slice %694 {offsets = [6, 0], sizes = [1, 128], strides = [1, 1]} : vector<9x128xf32> to vector<1x128xf32>
    %699 = tpu.concatenate %695, %696, %697, %698 in 0 : vector<1x128xf32>, vector<1x128xf32>, vector<1x128xf32>, vector<1x128xf32> -> vector<4x128xf32>
    %700 = arith.truncf %699 : vector<4x128xf32> to vector<4x128xbf16>
    %c24_392 = arith.constant 24 : index
    %c768_393 = arith.constant 768 : index
    %701 = vector.load %arg13[%c24_392, %c768_393] : memref<160x1152xbf16, #tpu.memory_space<vmem>>, vector<4x128xbf16>
    tpu.vector_store %arg13[%c24_392, %c768_393], %700 {strides = array<i32>} : memref<160x1152xbf16, #tpu.memory_space<vmem>>, vector<4x128xbf16>,
    %702 = vector.extract_strided_slice %694 {offsets = [1, 0], sizes = [1, 128], strides = [1, 1]} : vector<9x128xf32> to vector<1x128xf32>
    %703 = vector.extract_strided_slice %694 {offsets = [3, 0], sizes = [1, 128], strides = [1, 1]} : vector<9x128xf32> to vector<1x128xf32>
    %704 = vector.extract_strided_slice %694 {offsets = [5, 0], sizes = [1, 128], strides = [1, 1]} : vector<9x128xf32> to vector<1x128xf32>
    %705 = vector.extract_strided_slice %694 {offsets = [7, 0], sizes = [1, 128], strides = [1, 1]} : vector<9x128xf32> to vector<1x128xf32>
    %706 = tpu.concatenate %702, %703, %704, %705 in 0 : vector<1x128xf32>, vector<1x128xf32>, vector<1x128xf32>, vector<1x128xf32> -> vector<4x128xf32>
    %707 = arith.truncf %706 : vector<4x128xf32> to vector<4x128xbf16>
    %c24_394 = arith.constant 24 : index
    %c896_395 = arith.constant 896 : index
    %708 = vector.load %arg13[%c24_394, %c896_395] : memref<160x1152xbf16, #tpu.memory_space<vmem>>, vector<4x128xbf16>
    tpu.vector_store %arg13[%c24_394, %c896_395], %707 {strides = array<i32>} : memref<160x1152xbf16, #tpu.memory_space<vmem>>, vector<4x128xbf16>,
    %709 = vector.extract_strided_slice %694 {offsets = [2, 0], sizes = [1, 128], strides = [1, 1]} : vector<9x128xf32> to vector<1x128xf32>
    %710 = vector.extract_strided_slice %694 {offsets = [4, 0], sizes = [1, 128], strides = [1, 1]} : vector<9x128xf32> to vector<1x128xf32>
    %711 = vector.extract_strided_slice %694 {offsets = [6, 0], sizes = [1, 128], strides = [1, 1]} : vector<9x128xf32> to vector<1x128xf32>
    %712 = vector.extract_strided_slice %694 {offsets = [8, 0], sizes = [1, 128], strides = [1, 1]} : vector<9x128xf32> to vector<1x128xf32>
    %713 = tpu.concatenate %709, %710, %711, %712 in 0 : vector<1x128xf32>, vector<1x128xf32>, vector<1x128xf32>, vector<1x128xf32> -> vector<4x128xf32>
    %714 = arith.truncf %713 : vector<4x128xf32> to vector<4x128xbf16>
    %c24_396 = arith.constant 24 : index
    %c1024_397 = arith.constant 1024 : index
    %715 = vector.load %arg13[%c24_396, %c1024_397] : memref<160x1152xbf16, #tpu.memory_space<vmem>>, vector<4x128xbf16>
    tpu.vector_store %arg13[%c24_396, %c1024_397], %714 {strides = array<i32>} : memref<160x1152xbf16, #tpu.memory_space<vmem>>, vector<4x128xbf16>,
    %c160_398 = arith.constant 160 : index
    %c0_399 = arith.constant 0 : index
    %716 = vector.load %arg11[%c160_398, %c0_399] : memref<200x128xf32, #tpu.memory_space<vmem>>, vector<9x128xf32>
    %717 = vector.extract_strided_slice %716 {offsets = [0, 0], sizes = [1, 128], strides = [1, 1]} : vector<9x128xf32> to vector<1x128xf32>
    %718 = vector.extract_strided_slice %716 {offsets = [2, 0], sizes = [1, 128], strides = [1, 1]} : vector<9x128xf32> to vector<1x128xf32>
    %719 = vector.extract_strided_slice %716 {offsets = [4, 0], sizes = [1, 128], strides = [1, 1]} : vector<9x128xf32> to vector<1x128xf32>
    %720 = vector.extract_strided_slice %716 {offsets = [6, 0], sizes = [1, 128], strides = [1, 1]} : vector<9x128xf32> to vector<1x128xf32>
    %721 = tpu.concatenate %717, %718, %719, %720 in 0 : vector<1x128xf32>, vector<1x128xf32>, vector<1x128xf32>, vector<1x128xf32> -> vector<4x128xf32>
    %722 = arith.truncf %721 : vector<4x128xf32> to vector<4x128xbf16>
    %c28 = arith.constant 28 : index
    %c0_400 = arith.constant 0 : index
    %723 = vector.load %arg13[%c28, %c0_400] : memref<160x1152xbf16, #tpu.memory_space<vmem>>, vector<4x128xbf16>
    tpu.vector_store %arg13[%c28, %c0_400], %722 {strides = array<i32>} : memref<160x1152xbf16, #tpu.memory_space<vmem>>, vector<4x128xbf16>,
    %724 = vector.extract_strided_slice %716 {offsets = [1, 0], sizes = [1, 128], strides = [1, 1]} : vector<9x128xf32> to vector<1x128xf32>
    %725 = vector.extract_strided_slice %716 {offsets = [3, 0], sizes = [1, 128], strides = [1, 1]} : vector<9x128xf32> to vector<1x128xf32>
    %726 = vector.extract_strided_slice %716 {offsets = [5, 0], sizes = [1, 128], strides = [1, 1]} : vector<9x128xf32> to vector<1x128xf32>
    %727 = vector.extract_strided_slice %716 {offsets = [7, 0], sizes = [1, 128], strides = [1, 1]} : vector<9x128xf32> to vector<1x128xf32>
    %728 = tpu.concatenate %724, %725, %726, %727 in 0 : vector<1x128xf32>, vector<1x128xf32>, vector<1x128xf32>, vector<1x128xf32> -> vector<4x128xf32>
    %729 = arith.truncf %728 : vector<4x128xf32> to vector<4x128xbf16>
    %c28_401 = arith.constant 28 : index
    %c128_402 = arith.constant 128 : index
    %730 = vector.load %arg13[%c28_401, %c128_402] : memref<160x1152xbf16, #tpu.memory_space<vmem>>, vector<4x128xbf16>
    tpu.vector_store %arg13[%c28_401, %c128_402], %729 {strides = array<i32>} : memref<160x1152xbf16, #tpu.memory_space<vmem>>, vector<4x128xbf16>,
    %731 = vector.extract_strided_slice %716 {offsets = [2, 0], sizes = [1, 128], strides = [1, 1]} : vector<9x128xf32> to vector<1x128xf32>
    %732 = vector.extract_strided_slice %716 {offsets = [4, 0], sizes = [1, 128], strides = [1, 1]} : vector<9x128xf32> to vector<1x128xf32>
    %733 = vector.extract_strided_slice %716 {offsets = [6, 0], sizes = [1, 128], strides = [1, 1]} : vector<9x128xf32> to vector<1x128xf32>
    %734 = vector.extract_strided_slice %716 {offsets = [8, 0], sizes = [1, 128], strides = [1, 1]} : vector<9x128xf32> to vector<1x128xf32>
    %735 = tpu.concatenate %731, %732, %733, %734 in 0 : vector<1x128xf32>, vector<1x128xf32>, vector<1x128xf32>, vector<1x128xf32> -> vector<4x128xf32>
    %736 = arith.truncf %735 : vector<4x128xf32> to vector<4x128xbf16>
    %c28_403 = arith.constant 28 : index
    %c256_404 = arith.constant 256 : index
    %737 = vector.load %arg13[%c28_403, %c256_404] : memref<160x1152xbf16, #tpu.memory_space<vmem>>, vector<4x128xbf16>
    tpu.vector_store %arg13[%c28_403, %c256_404], %736 {strides = array<i32>} : memref<160x1152xbf16, #tpu.memory_space<vmem>>, vector<4x128xbf16>,
    %c170 = arith.constant 170 : index
    %c0_405 = arith.constant 0 : index
    %738 = vector.load %arg11[%c170, %c0_405] : memref<200x128xf32, #tpu.memory_space<vmem>>, vector<9x128xf32>
    %739 = vector.extract_strided_slice %738 {offsets = [0, 0], sizes = [1, 128], strides = [1, 1]} : vector<9x128xf32> to vector<1x128xf32>
    %740 = vector.extract_strided_slice %738 {offsets = [2, 0], sizes = [1, 128], strides = [1, 1]} : vector<9x128xf32> to vector<1x128xf32>
    %741 = vector.extract_strided_slice %738 {offsets = [4, 0], sizes = [1, 128], strides = [1, 1]} : vector<9x128xf32> to vector<1x128xf32>
    %742 = vector.extract_strided_slice %738 {offsets = [6, 0], sizes = [1, 128], strides = [1, 1]} : vector<9x128xf32> to vector<1x128xf32>
    %743 = tpu.concatenate %739, %740, %741, %742 in 0 : vector<1x128xf32>, vector<1x128xf32>, vector<1x128xf32>, vector<1x128xf32> -> vector<4x128xf32>
    %744 = arith.truncf %743 : vector<4x128xf32> to vector<4x128xbf16>
    %c28_406 = arith.constant 28 : index
    %c384_407 = arith.constant 384 : index
    %745 = vector.load %arg13[%c28_406, %c384_407] : memref<160x1152xbf16, #tpu.memory_space<vmem>>, vector<4x128xbf16>
    tpu.vector_store %arg13[%c28_406, %c384_407], %744 {strides = array<i32>} : memref<160x1152xbf16, #tpu.memory_space<vmem>>, vector<4x128xbf16>,
    %746 = vector.extract_strided_slice %738 {offsets = [1, 0], sizes = [1, 128], strides = [1, 1]} : vector<9x128xf32> to vector<1x128xf32>
    %747 = vector.extract_strided_slice %738 {offsets = [3, 0], sizes = [1, 128], strides = [1, 1]} : vector<9x128xf32> to vector<1x128xf32>
    %748 = vector.extract_strided_slice %738 {offsets = [5, 0], sizes = [1, 128], strides = [1, 1]} : vector<9x128xf32> to vector<1x128xf32>
    %749 = vector.extract_strided_slice %738 {offsets = [7, 0], sizes = [1, 128], strides = [1, 1]} : vector<9x128xf32> to vector<1x128xf32>
    %750 = tpu.concatenate %746, %747, %748, %749 in 0 : vector<1x128xf32>, vector<1x128xf32>, vector<1x128xf32>, vector<1x128xf32> -> vector<4x128xf32>
    %751 = arith.truncf %750 : vector<4x128xf32> to vector<4x128xbf16>
    %c28_408 = arith.constant 28 : index
    %c512_409 = arith.constant 512 : index
    %752 = vector.load %arg13[%c28_408, %c512_409] : memref<160x1152xbf16, #tpu.memory_space<vmem>>, vector<4x128xbf16>
    tpu.vector_store %arg13[%c28_408, %c512_409], %751 {strides = array<i32>} : memref<160x1152xbf16, #tpu.memory_space<vmem>>, vector<4x128xbf16>,
    %753 = vector.extract_strided_slice %738 {offsets = [2, 0], sizes = [1, 128], strides = [1, 1]} : vector<9x128xf32> to vector<1x128xf32>
    %754 = vector.extract_strided_slice %738 {offsets = [4, 0], sizes = [1, 128], strides = [1, 1]} : vector<9x128xf32> to vector<1x128xf32>
    %755 = vector.extract_strided_slice %738 {offsets = [6, 0], sizes = [1, 128], strides = [1, 1]} : vector<9x128xf32> to vector<1x128xf32>
    %756 = vector.extract_strided_slice %738 {offsets = [8, 0], sizes = [1, 128], strides = [1, 1]} : vector<9x128xf32> to vector<1x128xf32>
    %757 = tpu.concatenate %753, %754, %755, %756 in 0 : vector<1x128xf32>, vector<1x128xf32>, vector<1x128xf32>, vector<1x128xf32> -> vector<4x128xf32>
    %758 = arith.truncf %757 : vector<4x128xf32> to vector<4x128xbf16>
    %c28_410 = arith.constant 28 : index
    %c640_411 = arith.constant 640 : index
    %759 = vector.load %arg13[%c28_410, %c640_411] : memref<160x1152xbf16, #tpu.memory_space<vmem>>, vector<4x128xbf16>
    tpu.vector_store %arg13[%c28_410, %c640_411], %758 {strides = array<i32>} : memref<160x1152xbf16, #tpu.memory_space<vmem>>, vector<4x128xbf16>,
    %c180 = arith.constant 180 : index
    %c0_412 = arith.constant 0 : index
    %760 = vector.load %arg11[%c180, %c0_412] : memref<200x128xf32, #tpu.memory_space<vmem>>, vector<9x128xf32>
    %761 = vector.extract_strided_slice %760 {offsets = [0, 0], sizes = [1, 128], strides = [1, 1]} : vector<9x128xf32> to vector<1x128xf32>
    %762 = vector.extract_strided_slice %760 {offsets = [2, 0], sizes = [1, 128], strides = [1, 1]} : vector<9x128xf32> to vector<1x128xf32>
    %763 = vector.extract_strided_slice %760 {offsets = [4, 0], sizes = [1, 128], strides = [1, 1]} : vector<9x128xf32> to vector<1x128xf32>
    %764 = vector.extract_strided_slice %760 {offsets = [6, 0], sizes = [1, 128], strides = [1, 1]} : vector<9x128xf32> to vector<1x128xf32>
    %765 = tpu.concatenate %761, %762, %763, %764 in 0 : vector<1x128xf32>, vector<1x128xf32>, vector<1x128xf32>, vector<1x128xf32> -> vector<4x128xf32>
    %766 = arith.truncf %765 : vector<4x128xf32> to vector<4x128xbf16>
    %c28_413 = arith.constant 28 : index
    %c768_414 = arith.constant 768 : index
    %767 = vector.load %arg13[%c28_413, %c768_414] : memref<160x1152xbf16, #tpu.memory_space<vmem>>, vector<4x128xbf16>
    tpu.vector_store %arg13[%c28_413, %c768_414], %766 {strides = array<i32>} : memref<160x1152xbf16, #tpu.memory_space<vmem>>, vector<4x128xbf16>,
    %768 = vector.extract_strided_slice %760 {offsets = [1, 0], sizes = [1, 128], strides = [1, 1]} : vector<9x128xf32> to vector<1x128xf32>
    %769 = vector.extract_strided_slice %760 {offsets = [3, 0], sizes = [1, 128], strides = [1, 1]} : vector<9x128xf32> to vector<1x128xf32>
    %770 = vector.extract_strided_slice %760 {offsets = [5, 0], sizes = [1, 128], strides = [1, 1]} : vector<9x128xf32> to vector<1x128xf32>
    %771 = vector.extract_strided_slice %760 {offsets = [7, 0], sizes = [1, 128], strides = [1, 1]} : vector<9x128xf32> to vector<1x128xf32>
    %772 = tpu.concatenate %768, %769, %770, %771 in 0 : vector<1x128xf32>, vector<1x128xf32>, vector<1x128xf32>, vector<1x128xf32> -> vector<4x128xf32>
    %773 = arith.truncf %772 : vector<4x128xf32> to vector<4x128xbf16>
    %c28_415 = arith.constant 28 : index
    %c896_416 = arith.constant 896 : index
    %774 = vector.load %arg13[%c28_415, %c896_416] : memref<160x1152xbf16, #tpu.memory_space<vmem>>, vector<4x128xbf16>
    tpu.vector_store %arg13[%c28_415, %c896_416], %773 {strides = array<i32>} : memref<160x1152xbf16, #tpu.memory_space<vmem>>, vector<4x128xbf16>,
    %775 = vector.extract_strided_slice %760 {offsets = [2, 0], sizes = [1, 128], strides = [1, 1]} : vector<9x128xf32> to vector<1x128xf32>
    %776 = vector.extract_strided_slice %760 {offsets = [4, 0], sizes = [1, 128], strides = [1, 1]} : vector<9x128xf32> to vector<1x128xf32>
    %777 = vector.extract_strided_slice %760 {offsets = [6, 0], sizes = [1, 128], strides = [1, 1]} : vector<9x128xf32> to vector<1x128xf32>
    %778 = vector.extract_strided_slice %760 {offsets = [8, 0], sizes = [1, 128], strides = [1, 1]} : vector<9x128xf32> to vector<1x128xf32>
    %779 = tpu.concatenate %775, %776, %777, %778 in 0 : vector<1x128xf32>, vector<1x128xf32>, vector<1x128xf32>, vector<1x128xf32> -> vector<4x128xf32>
    %780 = arith.truncf %779 : vector<4x128xf32> to vector<4x128xbf16>
    %c28_417 = arith.constant 28 : index
    %c1024_418 = arith.constant 1024 : index
    %781 = vector.load %arg13[%c28_417, %c1024_418] : memref<160x1152xbf16, #tpu.memory_space<vmem>>, vector<4x128xbf16>
    tpu.vector_store %arg13[%c28_417, %c1024_418], %780 {strides = array<i32>} : memref<160x1152xbf16, #tpu.memory_space<vmem>>, vector<4x128xbf16>,
    %c0_419 = arith.constant 0 : index
    %c0_420 = arith.constant 0 : index
    %782 = vector.load %arg13[%c0_419, %c0_420] : memref<160x1152xbf16, #tpu.memory_space<vmem>>, vector<32x1152xbf16>
    %c0_421 = arith.constant 0 : index
    %c0_422 = arith.constant 0 : index
    %783 = vector.load %arg4[%c0_421, %c0_422] : memref<1152x128xbf16, #tpu.memory_space<vmem>>, vector<1152x128xbf16>
    %cst_423 = arith.constant dense<0.000000e+00> : vector<32x128xf32>
    %784 = tpu.matmul %782, %783, %cst_423 {dimension_numbers = #tpu.dot_dimension_numbers<[1], [0], [0], [1], [0, 0, 1, 1], [], []>} : vector<32x1152xbf16>, vector<1152x128xbf16>, vector<32x128xf32> -> vector<32x128xf32>
    %c6 = arith.constant 6 : index
    %c0_424 = arith.constant 0 : index
    %785 = vector.load %arg6[%c6, %c0_424] : memref<12x128xf32, #tpu.memory_space<vmem>>, vector<1x128xf32>
    %786 = vector.broadcast %785 : vector<1x128xf32> to vector<32x128xf32>
    %787 = arith.mulf %784, %786 : vector<32x128xf32>
    %c7 = arith.constant 7 : index
    %c0_425 = arith.constant 0 : index
    %788 = vector.load %arg6[%c7, %c0_425] : memref<12x128xf32, #tpu.memory_space<vmem>>, vector<1x128xf32>
    %789 = vector.broadcast %788 : vector<1x128xf32> to vector<32x128xf32>
    %790 = arith.addf %787, %789 : vector<32x128xf32>
    %cst_426 = arith.constant 0.000000e+00 : f32
    %791 = vector.broadcast %cst_426 : f32 to vector<32x128xf32>
    %792 = arith.cmpf oge, %790, %791 : vector<32x128xf32>
    %cst_427 = arith.constant 2.000000e-01 : f32
    %793 = vector.broadcast %cst_427 : f32 to vector<32x128xf32>
    %794 = arith.mulf %793, %790 : vector<32x128xf32>
    %795 = arith.select %792, %790, %794 : vector<32x128xi1>, vector<32x128xf32>
    %c0_428 = arith.constant 0 : index
    %c0_429 = arith.constant 0 : index
    %796 = vector.load %arg12[%c0_428, %c0_429] : memref<32x128xf32, #tpu.memory_space<vmem>>, vector<32x128xf32>
    tpu.vector_store %arg12[%c0_428, %c0_429], %795 {strides = array<i32>} : memref<32x128xf32, #tpu.memory_space<vmem>>, vector<32x128xf32>,
    %c0_430 = arith.constant 0 : index
    %c0_431 = arith.constant 0 : index
    %797 = vector.load %arg12[%c0_430, %c0_431] : memref<32x128xf32, #tpu.memory_space<vmem>>, vector<2x128xf32>
    %798 = arith.truncf %797 : vector<2x128xf32> to vector<2x128xbf16>
    %c0_432 = arith.constant 0 : index
    %c0_433 = arith.constant 0 : index
    %799 = vector.load %arg13[%c0_432, %c0_433] : memref<160x1152xbf16, #tpu.memory_space<vmem>>, vector<2x128xbf16>
    tpu.vector_store %arg13[%c0_432, %c0_433], %798 {strides = array<i32>} : memref<160x1152xbf16, #tpu.memory_space<vmem>>, vector<2x128xbf16>,
    %c1_434 = arith.constant 1 : index
    %c0_435 = arith.constant 0 : index
    %800 = vector.load %arg12[%c1_434, %c0_435] : memref<32x128xf32, #tpu.memory_space<vmem>>, vector<2x128xf32>
    %801 = arith.truncf %800 : vector<2x128xf32> to vector<2x128xbf16>
    %c0_436 = arith.constant 0 : index
    %c128_437 = arith.constant 128 : index
    %802 = vector.load %arg13[%c0_436, %c128_437] : memref<160x1152xbf16, #tpu.memory_space<vmem>>, vector<2x128xbf16>
    tpu.vector_store %arg13[%c0_436, %c128_437], %801 {strides = array<i32>} : memref<160x1152xbf16, #tpu.memory_space<vmem>>, vector<2x128xbf16>,
    %c2_438 = arith.constant 2 : index
    %c0_439 = arith.constant 0 : index
    %803 = vector.load %arg12[%c2_438, %c0_439] : memref<32x128xf32, #tpu.memory_space<vmem>>, vector<2x128xf32>
    %804 = arith.truncf %803 : vector<2x128xf32> to vector<2x128xbf16>
    %c0_440 = arith.constant 0 : index
    %c256_441 = arith.constant 256 : index
    %805 = vector.load %arg13[%c0_440, %c256_441] : memref<160x1152xbf16, #tpu.memory_space<vmem>>, vector<2x128xbf16>
    tpu.vector_store %arg13[%c0_440, %c256_441], %804 {strides = array<i32>} : memref<160x1152xbf16, #tpu.memory_space<vmem>>, vector<2x128xbf16>,
    %c4_442 = arith.constant 4 : index
    %c0_443 = arith.constant 0 : index
    %806 = vector.load %arg12[%c4_442, %c0_443] : memref<32x128xf32, #tpu.memory_space<vmem>>, vector<2x128xf32>
    %807 = arith.truncf %806 : vector<2x128xf32> to vector<2x128xbf16>
    %c0_444 = arith.constant 0 : index
    %c384_445 = arith.constant 384 : index
    %808 = vector.load %arg13[%c0_444, %c384_445] : memref<160x1152xbf16, #tpu.memory_space<vmem>>, vector<2x128xbf16>
    tpu.vector_store %arg13[%c0_444, %c384_445], %807 {strides = array<i32>} : memref<160x1152xbf16, #tpu.memory_space<vmem>>, vector<2x128xbf16>,
    %c5_446 = arith.constant 5 : index
    %c0_447 = arith.constant 0 : index
    %809 = vector.load %arg12[%c5_446, %c0_447] : memref<32x128xf32, #tpu.memory_space<vmem>>, vector<2x128xf32>
    %810 = arith.truncf %809 : vector<2x128xf32> to vector<2x128xbf16>
    %c0_448 = arith.constant 0 : index
    %c512_449 = arith.constant 512 : index
    %811 = vector.load %arg13[%c0_448, %c512_449] : memref<160x1152xbf16, #tpu.memory_space<vmem>>, vector<2x128xbf16>
    tpu.vector_store %arg13[%c0_448, %c512_449], %810 {strides = array<i32>} : memref<160x1152xbf16, #tpu.memory_space<vmem>>, vector<2x128xbf16>,
    %c6_450 = arith.constant 6 : index
    %c0_451 = arith.constant 0 : index
    %812 = vector.load %arg12[%c6_450, %c0_451] : memref<32x128xf32, #tpu.memory_space<vmem>>, vector<2x128xf32>
    %813 = arith.truncf %812 : vector<2x128xf32> to vector<2x128xbf16>
    %c0_452 = arith.constant 0 : index
    %c640_453 = arith.constant 640 : index
    %814 = vector.load %arg13[%c0_452, %c640_453] : memref<160x1152xbf16, #tpu.memory_space<vmem>>, vector<2x128xbf16>
    tpu.vector_store %arg13[%c0_452, %c640_453], %813 {strides = array<i32>} : memref<160x1152xbf16, #tpu.memory_space<vmem>>, vector<2x128xbf16>,
    %c8_454 = arith.constant 8 : index
    %c0_455 = arith.constant 0 : index
    %815 = vector.load %arg12[%c8_454, %c0_455] : memref<32x128xf32, #tpu.memory_space<vmem>>, vector<2x128xf32>
    %816 = arith.truncf %815 : vector<2x128xf32> to vector<2x128xbf16>
    %c0_456 = arith.constant 0 : index
    %c768_457 = arith.constant 768 : index
    %817 = vector.load %arg13[%c0_456, %c768_457] : memref<160x1152xbf16, #tpu.memory_space<vmem>>, vector<2x128xbf16>
    tpu.vector_store %arg13[%c0_456, %c768_457], %816 {strides = array<i32>} : memref<160x1152xbf16, #tpu.memory_space<vmem>>, vector<2x128xbf16>,
    %c9 = arith.constant 9 : index
    %c0_458 = arith.constant 0 : index
    %818 = vector.load %arg12[%c9, %c0_458] : memref<32x128xf32, #tpu.memory_space<vmem>>, vector<2x128xf32>
    %819 = arith.truncf %818 : vector<2x128xf32> to vector<2x128xbf16>
    %c0_459 = arith.constant 0 : index
    %c896_460 = arith.constant 896 : index
    %820 = vector.load %arg13[%c0_459, %c896_460] : memref<160x1152xbf16, #tpu.memory_space<vmem>>, vector<2x128xbf16>
    tpu.vector_store %arg13[%c0_459, %c896_460], %819 {strides = array<i32>} : memref<160x1152xbf16, #tpu.memory_space<vmem>>, vector<2x128xbf16>,
    %c10_461 = arith.constant 10 : index
    %c0_462 = arith.constant 0 : index
    %821 = vector.load %arg12[%c10_461, %c0_462] : memref<32x128xf32, #tpu.memory_space<vmem>>, vector<2x128xf32>
    %822 = arith.truncf %821 : vector<2x128xf32> to vector<2x128xbf16>
    %c0_463 = arith.constant 0 : index
    %c1024_464 = arith.constant 1024 : index
    %823 = vector.load %arg13[%c0_463, %c1024_464] : memref<160x1152xbf16, #tpu.memory_space<vmem>>, vector<2x128xbf16>
    tpu.vector_store %arg13[%c0_463, %c1024_464], %822 {strides = array<i32>} : memref<160x1152xbf16, #tpu.memory_space<vmem>>, vector<2x128xbf16>,
    %c4_465 = arith.constant 4 : index
    %c0_466 = arith.constant 0 : index
    %824 = vector.load %arg12[%c4_465, %c0_466] : memref<32x128xf32, #tpu.memory_space<vmem>>, vector<2x128xf32>
    %825 = arith.truncf %824 : vector<2x128xf32> to vector<2x128xbf16>
    %c2_467 = arith.constant 2 : index
    %c0_468 = arith.constant 0 : index
    %826 = vector.load %arg13[%c2_467, %c0_468] : memref<160x1152xbf16, #tpu.memory_space<vmem>>, vector<2x128xbf16>
    tpu.vector_store %arg13[%c2_467, %c0_468], %825 {strides = array<i32>} : memref<160x1152xbf16, #tpu.memory_space<vmem>>, vector<2x128xbf16>,
    %c5_469 = arith.constant 5 : index
    %c0_470 = arith.constant 0 : index
    %827 = vector.load %arg12[%c5_469, %c0_470] : memref<32x128xf32, #tpu.memory_space<vmem>>, vector<2x128xf32>
    %828 = arith.truncf %827 : vector<2x128xf32> to vector<2x128xbf16>
    %c2_471 = arith.constant 2 : index
    %c128_472 = arith.constant 128 : index
    %829 = vector.load %arg13[%c2_471, %c128_472] : memref<160x1152xbf16, #tpu.memory_space<vmem>>, vector<2x128xbf16>
    tpu.vector_store %arg13[%c2_471, %c128_472], %828 {strides = array<i32>} : memref<160x1152xbf16, #tpu.memory_space<vmem>>, vector<2x128xbf16>,
    %c6_473 = arith.constant 6 : index
    %c0_474 = arith.constant 0 : index
    %830 = vector.load %arg12[%c6_473, %c0_474] : memref<32x128xf32, #tpu.memory_space<vmem>>, vector<2x128xf32>
    %831 = arith.truncf %830 : vector<2x128xf32> to vector<2x128xbf16>
    %c2_475 = arith.constant 2 : index
    %c256_476 = arith.constant 256 : index
    %832 = vector.load %arg13[%c2_475, %c256_476] : memref<160x1152xbf16, #tpu.memory_space<vmem>>, vector<2x128xbf16>
    tpu.vector_store %arg13[%c2_475, %c256_476], %831 {strides = array<i32>} : memref<160x1152xbf16, #tpu.memory_space<vmem>>, vector<2x128xbf16>,
    %c8_477 = arith.constant 8 : index
    %c0_478 = arith.constant 0 : index
    %833 = vector.load %arg12[%c8_477, %c0_478] : memref<32x128xf32, #tpu.memory_space<vmem>>, vector<2x128xf32>
    %834 = arith.truncf %833 : vector<2x128xf32> to vector<2x128xbf16>
    %c2_479 = arith.constant 2 : index
    %c384_480 = arith.constant 384 : index
    %835 = vector.load %arg13[%c2_479, %c384_480] : memref<160x1152xbf16, #tpu.memory_space<vmem>>, vector<2x128xbf16>
    tpu.vector_store %arg13[%c2_479, %c384_480], %834 {strides = array<i32>} : memref<160x1152xbf16, #tpu.memory_space<vmem>>, vector<2x128xbf16>,
    %c9_481 = arith.constant 9 : index
    %c0_482 = arith.constant 0 : index
    %836 = vector.load %arg12[%c9_481, %c0_482] : memref<32x128xf32, #tpu.memory_space<vmem>>, vector<2x128xf32>
    %837 = arith.truncf %836 : vector<2x128xf32> to vector<2x128xbf16>
    %c2_483 = arith.constant 2 : index
    %c512_484 = arith.constant 512 : index
    %838 = vector.load %arg13[%c2_483, %c512_484] : memref<160x1152xbf16, #tpu.memory_space<vmem>>, vector<2x128xbf16>
    tpu.vector_store %arg13[%c2_483, %c512_484], %837 {strides = array<i32>} : memref<160x1152xbf16, #tpu.memory_space<vmem>>, vector<2x128xbf16>,
    %c10_485 = arith.constant 10 : index
    %c0_486 = arith.constant 0 : index
    %839 = vector.load %arg12[%c10_485, %c0_486] : memref<32x128xf32, #tpu.memory_space<vmem>>, vector<2x128xf32>
    %840 = arith.truncf %839 : vector<2x128xf32> to vector<2x128xbf16>
    %c2_487 = arith.constant 2 : index
    %c640_488 = arith.constant 640 : index
    %841 = vector.load %arg13[%c2_487, %c640_488] : memref<160x1152xbf16, #tpu.memory_space<vmem>>, vector<2x128xbf16>
    tpu.vector_store %arg13[%c2_487, %c640_488], %840 {strides = array<i32>} : memref<160x1152xbf16, #tpu.memory_space<vmem>>, vector<2x128xbf16>,
    %c12_489 = arith.constant 12 : index
    %c0_490 = arith.constant 0 : index
    %842 = vector.load %arg12[%c12_489, %c0_490] : memref<32x128xf32, #tpu.memory_space<vmem>>, vector<2x128xf32>
    %843 = arith.truncf %842 : vector<2x128xf32> to vector<2x128xbf16>
    %c2_491 = arith.constant 2 : index
    %c768_492 = arith.constant 768 : index
    %844 = vector.load %arg13[%c2_491, %c768_492] : memref<160x1152xbf16, #tpu.memory_space<vmem>>, vector<2x128xbf16>
    tpu.vector_store %arg13[%c2_491, %c768_492], %843 {strides = array<i32>} : memref<160x1152xbf16, #tpu.memory_space<vmem>>, vector<2x128xbf16>,
    %c13 = arith.constant 13 : index
    %c0_493 = arith.constant 0 : index
    %845 = vector.load %arg12[%c13, %c0_493] : memref<32x128xf32, #tpu.memory_space<vmem>>, vector<2x128xf32>
    %846 = arith.truncf %845 : vector<2x128xf32> to vector<2x128xbf16>
    %c2_494 = arith.constant 2 : index
    %c896_495 = arith.constant 896 : index
    %847 = vector.load %arg13[%c2_494, %c896_495] : memref<160x1152xbf16, #tpu.memory_space<vmem>>, vector<2x128xbf16>
    tpu.vector_store %arg13[%c2_494, %c896_495], %846 {strides = array<i32>} : memref<160x1152xbf16, #tpu.memory_space<vmem>>, vector<2x128xbf16>,
    %c14 = arith.constant 14 : index
    %c0_496 = arith.constant 0 : index
    %848 = vector.load %arg12[%c14, %c0_496] : memref<32x128xf32, #tpu.memory_space<vmem>>, vector<2x128xf32>
    %849 = arith.truncf %848 : vector<2x128xf32> to vector<2x128xbf16>
    %c2_497 = arith.constant 2 : index
    %c1024_498 = arith.constant 1024 : index
    %850 = vector.load %arg13[%c2_497, %c1024_498] : memref<160x1152xbf16, #tpu.memory_space<vmem>>, vector<2x128xbf16>
    tpu.vector_store %arg13[%c2_497, %c1024_498], %849 {strides = array<i32>} : memref<160x1152xbf16, #tpu.memory_space<vmem>>, vector<2x128xbf16>,
    %c16_499 = arith.constant 16 : index
    %c0_500 = arith.constant 0 : index
    %851 = vector.load %arg12[%c16_499, %c0_500] : memref<32x128xf32, #tpu.memory_space<vmem>>, vector<2x128xf32>
    %852 = arith.truncf %851 : vector<2x128xf32> to vector<2x128xbf16>
    %c4_501 = arith.constant 4 : index
    %c0_502 = arith.constant 0 : index
    %853 = vector.load %arg13[%c4_501, %c0_502] : memref<160x1152xbf16, #tpu.memory_space<vmem>>, vector<2x128xbf16>
    tpu.vector_store %arg13[%c4_501, %c0_502], %852 {strides = array<i32>} : memref<160x1152xbf16, #tpu.memory_space<vmem>>, vector<2x128xbf16>,
    %c17 = arith.constant 17 : index
    %c0_503 = arith.constant 0 : index
    %854 = vector.load %arg12[%c17, %c0_503] : memref<32x128xf32, #tpu.memory_space<vmem>>, vector<2x128xf32>
    %855 = arith.truncf %854 : vector<2x128xf32> to vector<2x128xbf16>
    %c4_504 = arith.constant 4 : index
    %c128_505 = arith.constant 128 : index
    %856 = vector.load %arg13[%c4_504, %c128_505] : memref<160x1152xbf16, #tpu.memory_space<vmem>>, vector<2x128xbf16>
    tpu.vector_store %arg13[%c4_504, %c128_505], %855 {strides = array<i32>} : memref<160x1152xbf16, #tpu.memory_space<vmem>>, vector<2x128xbf16>,
    %c18 = arith.constant 18 : index
    %c0_506 = arith.constant 0 : index
    %857 = vector.load %arg12[%c18, %c0_506] : memref<32x128xf32, #tpu.memory_space<vmem>>, vector<2x128xf32>
    %858 = arith.truncf %857 : vector<2x128xf32> to vector<2x128xbf16>
    %c4_507 = arith.constant 4 : index
    %c256_508 = arith.constant 256 : index
    %859 = vector.load %arg13[%c4_507, %c256_508] : memref<160x1152xbf16, #tpu.memory_space<vmem>>, vector<2x128xbf16>
    tpu.vector_store %arg13[%c4_507, %c256_508], %858 {strides = array<i32>} : memref<160x1152xbf16, #tpu.memory_space<vmem>>, vector<2x128xbf16>,
    %c20_509 = arith.constant 20 : index
    %c0_510 = arith.constant 0 : index
    %860 = vector.load %arg12[%c20_509, %c0_510] : memref<32x128xf32, #tpu.memory_space<vmem>>, vector<2x128xf32>
    %861 = arith.truncf %860 : vector<2x128xf32> to vector<2x128xbf16>
    %c4_511 = arith.constant 4 : index
    %c384_512 = arith.constant 384 : index
    %862 = vector.load %arg13[%c4_511, %c384_512] : memref<160x1152xbf16, #tpu.memory_space<vmem>>, vector<2x128xbf16>
    tpu.vector_store %arg13[%c4_511, %c384_512], %861 {strides = array<i32>} : memref<160x1152xbf16, #tpu.memory_space<vmem>>, vector<2x128xbf16>,
    %c21_513 = arith.constant 21 : index
    %c0_514 = arith.constant 0 : index
    %863 = vector.load %arg12[%c21_513, %c0_514] : memref<32x128xf32, #tpu.memory_space<vmem>>, vector<2x128xf32>
    %864 = arith.truncf %863 : vector<2x128xf32> to vector<2x128xbf16>
    %c4_515 = arith.constant 4 : index
    %c512_516 = arith.constant 512 : index
    %865 = vector.load %arg13[%c4_515, %c512_516] : memref<160x1152xbf16, #tpu.memory_space<vmem>>, vector<2x128xbf16>
    tpu.vector_store %arg13[%c4_515, %c512_516], %864 {strides = array<i32>} : memref<160x1152xbf16, #tpu.memory_space<vmem>>, vector<2x128xbf16>,
    %c22_517 = arith.constant 22 : index
    %c0_518 = arith.constant 0 : index
    %866 = vector.load %arg12[%c22_517, %c0_518] : memref<32x128xf32, #tpu.memory_space<vmem>>, vector<2x128xf32>
    %867 = arith.truncf %866 : vector<2x128xf32> to vector<2x128xbf16>
    %c4_519 = arith.constant 4 : index
    %c640_520 = arith.constant 640 : index
    %868 = vector.load %arg13[%c4_519, %c640_520] : memref<160x1152xbf16, #tpu.memory_space<vmem>>, vector<2x128xbf16>
    tpu.vector_store %arg13[%c4_519, %c640_520], %867 {strides = array<i32>} : memref<160x1152xbf16, #tpu.memory_space<vmem>>, vector<2x128xbf16>,
    %c24_521 = arith.constant 24 : index
    %c0_522 = arith.constant 0 : index
    %869 = vector.load %arg12[%c24_521, %c0_522] : memref<32x128xf32, #tpu.memory_space<vmem>>, vector<2x128xf32>
    %870 = arith.truncf %869 : vector<2x128xf32> to vector<2x128xbf16>
    %c4_523 = arith.constant 4 : index
    %c768_524 = arith.constant 768 : index
    %871 = vector.load %arg13[%c4_523, %c768_524] : memref<160x1152xbf16, #tpu.memory_space<vmem>>, vector<2x128xbf16>
    tpu.vector_store %arg13[%c4_523, %c768_524], %870 {strides = array<i32>} : memref<160x1152xbf16, #tpu.memory_space<vmem>>, vector<2x128xbf16>,
    %c25 = arith.constant 25 : index
    %c0_525 = arith.constant 0 : index
    %872 = vector.load %arg12[%c25, %c0_525] : memref<32x128xf32, #tpu.memory_space<vmem>>, vector<2x128xf32>
    %873 = arith.truncf %872 : vector<2x128xf32> to vector<2x128xbf16>
    %c4_526 = arith.constant 4 : index
    %c896_527 = arith.constant 896 : index
    %874 = vector.load %arg13[%c4_526, %c896_527] : memref<160x1152xbf16, #tpu.memory_space<vmem>>, vector<2x128xbf16>
    tpu.vector_store %arg13[%c4_526, %c896_527], %873 {strides = array<i32>} : memref<160x1152xbf16, #tpu.memory_space<vmem>>, vector<2x128xbf16>,
    %c26 = arith.constant 26 : index
    %c0_528 = arith.constant 0 : index
    %875 = vector.load %arg12[%c26, %c0_528] : memref<32x128xf32, #tpu.memory_space<vmem>>, vector<2x128xf32>
    %876 = arith.truncf %875 : vector<2x128xf32> to vector<2x128xbf16>
    %c4_529 = arith.constant 4 : index
    %c1024_530 = arith.constant 1024 : index
    %877 = vector.load %arg13[%c4_529, %c1024_530] : memref<160x1152xbf16, #tpu.memory_space<vmem>>, vector<2x128xbf16>
    tpu.vector_store %arg13[%c4_529, %c1024_530], %876 {strides = array<i32>} : memref<160x1152xbf16, #tpu.memory_space<vmem>>, vector<2x128xbf16>,
    %c20_531 = arith.constant 20 : index
    %c0_532 = arith.constant 0 : index
    %878 = vector.load %arg12[%c20_531, %c0_532] : memref<32x128xf32, #tpu.memory_space<vmem>>, vector<2x128xf32>
    %879 = arith.truncf %878 : vector<2x128xf32> to vector<2x128xbf16>
    %c6_533 = arith.constant 6 : index
    %c0_534 = arith.constant 0 : index
    %880 = vector.load %arg13[%c6_533, %c0_534] : memref<160x1152xbf16, #tpu.memory_space<vmem>>, vector<2x128xbf16>
    tpu.vector_store %arg13[%c6_533, %c0_534], %879 {strides = array<i32>} : memref<160x1152xbf16, #tpu.memory_space<vmem>>, vector<2x128xbf16>,
    %c21_535 = arith.constant 21 : index
    %c0_536 = arith.constant 0 : index
    %881 = vector.load %arg12[%c21_535, %c0_536] : memref<32x128xf32, #tpu.memory_space<vmem>>, vector<2x128xf32>
    %882 = arith.truncf %881 : vector<2x128xf32> to vector<2x128xbf16>
    %c6_537 = arith.constant 6 : index
    %c128_538 = arith.constant 128 : index
    %883 = vector.load %arg13[%c6_537, %c128_538] : memref<160x1152xbf16, #tpu.memory_space<vmem>>, vector<2x128xbf16>
    tpu.vector_store %arg13[%c6_537, %c128_538], %882 {strides = array<i32>} : memref<160x1152xbf16, #tpu.memory_space<vmem>>, vector<2x128xbf16>,
    %c22_539 = arith.constant 22 : index
    %c0_540 = arith.constant 0 : index
    %884 = vector.load %arg12[%c22_539, %c0_540] : memref<32x128xf32, #tpu.memory_space<vmem>>, vector<2x128xf32>
    %885 = arith.truncf %884 : vector<2x128xf32> to vector<2x128xbf16>
    %c6_541 = arith.constant 6 : index
    %c256_542 = arith.constant 256 : index
    %886 = vector.load %arg13[%c6_541, %c256_542] : memref<160x1152xbf16, #tpu.memory_space<vmem>>, vector<2x128xbf16>
    tpu.vector_store %arg13[%c6_541, %c256_542], %885 {strides = array<i32>} : memref<160x1152xbf16, #tpu.memory_space<vmem>>, vector<2x128xbf16>,
    %c24_543 = arith.constant 24 : index
    %c0_544 = arith.constant 0 : index
    %887 = vector.load %arg12[%c24_543, %c0_544] : memref<32x128xf32, #tpu.memory_space<vmem>>, vector<2x128xf32>
    %888 = arith.truncf %887 : vector<2x128xf32> to vector<2x128xbf16>
    %c6_545 = arith.constant 6 : index
    %c384_546 = arith.constant 384 : index
    %889 = vector.load %arg13[%c6_545, %c384_546] : memref<160x1152xbf16, #tpu.memory_space<vmem>>, vector<2x128xbf16>
    tpu.vector_store %arg13[%c6_545, %c384_546], %888 {strides = array<i32>} : memref<160x1152xbf16, #tpu.memory_space<vmem>>, vector<2x128xbf16>,
    %c25_547 = arith.constant 25 : index
    %c0_548 = arith.constant 0 : index
    %890 = vector.load %arg12[%c25_547, %c0_548] : memref<32x128xf32, #tpu.memory_space<vmem>>, vector<2x128xf32>
    %891 = arith.truncf %890 : vector<2x128xf32> to vector<2x128xbf16>
    %c6_549 = arith.constant 6 : index
    %c512_550 = arith.constant 512 : index
    %892 = vector.load %arg13[%c6_549, %c512_550] : memref<160x1152xbf16, #tpu.memory_space<vmem>>, vector<2x128xbf16>
    tpu.vector_store %arg13[%c6_549, %c512_550], %891 {strides = array<i32>} : memref<160x1152xbf16, #tpu.memory_space<vmem>>, vector<2x128xbf16>,
    %c26_551 = arith.constant 26 : index
    %c0_552 = arith.constant 0 : index
    %893 = vector.load %arg12[%c26_551, %c0_552] : memref<32x128xf32, #tpu.memory_space<vmem>>, vector<2x128xf32>
    %894 = arith.truncf %893 : vector<2x128xf32> to vector<2x128xbf16>
    %c6_553 = arith.constant 6 : index
    %c640_554 = arith.constant 640 : index
    %895 = vector.load %arg13[%c6_553, %c640_554] : memref<160x1152xbf16, #tpu.memory_space<vmem>>, vector<2x128xbf16>
    tpu.vector_store %arg13[%c6_553, %c640_554], %894 {strides = array<i32>} : memref<160x1152xbf16, #tpu.memory_space<vmem>>, vector<2x128xbf16>,
    %c28_555 = arith.constant 28 : index
    %c0_556 = arith.constant 0 : index
    %896 = vector.load %arg12[%c28_555, %c0_556] : memref<32x128xf32, #tpu.memory_space<vmem>>, vector<2x128xf32>
    %897 = arith.truncf %896 : vector<2x128xf32> to vector<2x128xbf16>
    %c6_557 = arith.constant 6 : index
    %c768_558 = arith.constant 768 : index
    %898 = vector.load %arg13[%c6_557, %c768_558] : memref<160x1152xbf16, #tpu.memory_space<vmem>>, vector<2x128xbf16>
    tpu.vector_store %arg13[%c6_557, %c768_558], %897 {strides = array<i32>} : memref<160x1152xbf16, #tpu.memory_space<vmem>>, vector<2x128xbf16>,
    %c29 = arith.constant 29 : index
    %c0_559 = arith.constant 0 : index
    %899 = vector.load %arg12[%c29, %c0_559] : memref<32x128xf32, #tpu.memory_space<vmem>>, vector<2x128xf32>
    %900 = arith.truncf %899 : vector<2x128xf32> to vector<2x128xbf16>
    %c6_560 = arith.constant 6 : index
    %c896_561 = arith.constant 896 : index
    %901 = vector.load %arg13[%c6_560, %c896_561] : memref<160x1152xbf16, #tpu.memory_space<vmem>>, vector<2x128xbf16>
    tpu.vector_store %arg13[%c6_560, %c896_561], %900 {strides = array<i32>} : memref<160x1152xbf16, #tpu.memory_space<vmem>>, vector<2x128xbf16>,
    %c30_562 = arith.constant 30 : index
    %c0_563 = arith.constant 0 : index
    %902 = vector.load %arg12[%c30_562, %c0_563] : memref<32x128xf32, #tpu.memory_space<vmem>>, vector<2x128xf32>
    %903 = arith.truncf %902 : vector<2x128xf32> to vector<2x128xbf16>
    %c6_564 = arith.constant 6 : index
    %c1024_565 = arith.constant 1024 : index
    %904 = vector.load %arg13[%c6_564, %c1024_565] : memref<160x1152xbf16, #tpu.memory_space<vmem>>, vector<2x128xbf16>
    tpu.vector_store %arg13[%c6_564, %c1024_565], %903 {strides = array<i32>} : memref<160x1152xbf16, #tpu.memory_space<vmem>>, vector<2x128xbf16>,
    %c0_566 = arith.constant 0 : index
    %c0_567 = arith.constant 0 : index
    %905 = vector.load %arg13[%c0_566, %c0_567] : memref<160x1152xbf16, #tpu.memory_space<vmem>>, vector<8x1152xbf16>
    %c0_568 = arith.constant 0 : index
    %c0_569 = arith.constant 0 : index
    %906 = vector.load %arg5[%c0_568, %c0_569] : memref<1152x128xbf16, #tpu.memory_space<vmem>>, vector<1152x128xbf16>
    %cst_570 = arith.constant dense<0.000000e+00> : vector<8x128xf32>
    %907 = tpu.matmul %905, %906, %cst_570 {dimension_numbers = #tpu.dot_dimension_numbers<[1], [0], [0], [1], [0, 0, 1, 1], [], []>} : vector<8x1152xbf16>, vector<1152x128xbf16>, vector<8x128xf32> -> vector<8x128xf32>
    %c0_571 = arith.constant 0 : index
    %c0_572 = arith.constant 0 : index
    %908 = vector.load %arg7[%c0_571, %c0_572] : memref<8x128xf32, #tpu.memory_space<vmem>>, vector<8x128xf32>
    %909 = arith.mulf %907, %908 : vector<8x128xf32>
    %910 = vector.extract_strided_slice %909 {offsets = [0, 0], sizes = [4, 128], strides = [1, 1]} : vector<8x128xf32> to vector<4x128xf32>
    %cst_573 = arith.constant dense<0.000000e+00> : vector<128xf32>
    %911 = vector.multi_reduction <add>, %910, %cst_573 [0] : vector<4x128xf32> to vector<128xf32>
    %912 = vector.shape_cast %911 : vector<128xf32> to vector<1x128xf32>
    %cst_574 = arith.constant dense<0.000000e+00> : vector<1xf32>
    %913 = vector.multi_reduction <add>, %912, %cst_574 [1] : vector<1x128xf32> to vector<1xf32>
    %914 = vector.shape_cast %913 : vector<1xf32> to vector<1x1xf32>
    %c10_575 = arith.constant 10 : index
    %c0_576 = arith.constant 0 : index
    %915 = vector.load %arg6[%c10_575, %c0_576] : memref<12x128xf32, #tpu.memory_space<vmem>>, vector<1x128xf32>
    %916 = vector.broadcast %914 : vector<1x1xf32> to vector<1x128xf32>
    %917 = arith.addf %916, %915 : vector<1x128xf32>
    %918 = arith.negf %917 : vector<1x128xf32>
    %919 = math.exp %918 : vector<1x128xf32>
    %cst_577 = arith.constant 1.000000e+00 : f32
    %920 = vector.broadcast %cst_577 : f32 to vector<1x128xf32>
    %921 = arith.addf %920, %919 : vector<1x128xf32>
    %922 = arith.divf %920, %921 : vector<1x128xf32>
    %c0_578 = arith.constant 0 : index
    %c0_579 = arith.constant 0 : index
    %923 = vector.load %arg8[%c0_578, %c0_579] : memref<2x128xf32, #tpu.memory_space<vmem>>, vector<1x128xf32>
    tpu.vector_store %arg8[%c0_578, %c0_579], %922 {strides = array<i32>} : memref<2x128xf32, #tpu.memory_space<vmem>>, vector<1x128xf32>,
    %924 = vector.extract_strided_slice %909 {offsets = [4, 0], sizes = [4, 128], strides = [1, 1]} : vector<8x128xf32> to vector<4x128xf32>
    %cst_580 = arith.constant dense<0.000000e+00> : vector<128xf32>
    %925 = vector.multi_reduction <add>, %924, %cst_580 [0] : vector<4x128xf32> to vector<128xf32>
    %926 = vector.shape_cast %925 : vector<128xf32> to vector<1x128xf32>
    %cst_581 = arith.constant dense<0.000000e+00> : vector<1xf32>
    %927 = vector.multi_reduction <add>, %926, %cst_581 [1] : vector<1x128xf32> to vector<1xf32>
    %928 = vector.shape_cast %927 : vector<1xf32> to vector<1x1xf32>
    %c10_582 = arith.constant 10 : index
    %c0_583 = arith.constant 0 : index
    %929 = vector.load %arg6[%c10_582, %c0_583] : memref<12x128xf32, #tpu.memory_space<vmem>>, vector<1x128xf32>
    %930 = vector.broadcast %928 : vector<1x1xf32> to vector<1x128xf32>
    %931 = arith.addf %930, %929 : vector<1x128xf32>
    %932 = arith.negf %931 : vector<1x128xf32>
    %933 = math.exp %932 : vector<1x128xf32>
    %cst_584 = arith.constant 1.000000e+00 : f32
    %934 = vector.broadcast %cst_584 : f32 to vector<1x128xf32>
    %935 = arith.addf %934, %933 : vector<1x128xf32>
    %936 = arith.divf %934, %935 : vector<1x128xf32>
    %c1_585 = arith.constant 1 : index
    %c0_586 = arith.constant 0 : index
    %937 = vector.load %arg8[%c1_585, %c0_586] : memref<2x128xf32, #tpu.memory_space<vmem>>, vector<1x128xf32>
    tpu.vector_store %arg8[%c1_585, %c0_586], %936 {strides = array<i32>} : memref<2x128xf32, #tpu.memory_space<vmem>>, vector<1x128xf32>,
    return
  }
}

</mosaic_0001>

<llo_original>
// kernel: tile.6
$region0: #{tile.6}
  #allocation0 [shape = 's32[1]{0}', space=sflag, size = 0x4, scoped, tag = 'scoped memory for tile.6']
  %s0 = inlined_call_operand.vmem [shape: f32[4], index: 0, kind: input, shape index: {}]
  %s1 = inlined_call_operand.vmem [shape: f32[2,4], index: 1, kind: output, shape index: {}]
  // Predicated region
  $region2: #{tile.6} parent=0 // pred_check
    _
  $region3: #{tile.6} parent=0 // pred_check_branch
    %3 = sbr.rel (0) target = $region5
  $region4: #{tile.6} parent=0 // pred_region
    _
  $region5: #{tile.6} parent=0 // pred_fallthru
    _
  %v4 = vld [vmem:[%s0] ss:$0 sm:$0xff]
  %5 = vst [vmem:[%s1] sm:$0x3] %v4

// kernel: discriminator_forward.1
$region0: #{discriminator_forward.1}
  #allocation0 [shape = 'u32[]', space=smem, size = 0x4, offset = 0x4, fixed_abs, tag = 'smem constant byte address 0x4 - core index']
  #allocation1 [shape = 'u32[144,128]{1,0:T(1,128)}', space=vmem, size = 0x12000, scoped, tag = 'internal scratch']
  #allocation2 [shape = 'f32[200,128]{1,0:T(8,128)}', space=vmem, size = 0x19000, scoped, tag = 'scratch operand']
  #allocation3 [shape = 'f32[200,128]{1,0:T(8,128)}', space=vmem, size = 0x19000, scoped, tag = 'scratch operand']
  #allocation4 [shape = 'f32[200,128]{1,0:T(8,128)}', space=vmem, size = 0x19000, scoped, tag = 'scratch operand']
  #allocation5 [shape = 'f32[32,128]{1,0:T(8,128)}', space=vmem, size = 0x4000, scoped, tag = 'scratch operand']
  #allocation6 [shape = 'bf16[160,1152]{1,0:T(16,128)(2,1)}', space=vmem, size = 0x5a000, scoped, tag = 'scratch operand']
  %s0 = inlined_call_operand.vmem [shape: bf16[128,128], index: 0, kind: input, shape index: {}]
  %s1 = inlined_call_operand.vmem [shape: bf16[128,128], index: 1, kind: input, shape index: {}]
  %s2 = inlined_call_operand.vmem [shape: bf16[1152,128], index: 2, kind: input, shape index: {}]
  %s3 = inlined_call_operand.vmem [shape: bf16[1152,128], index: 3, kind: input, shape index: {}]
  %s4 = inlined_call_operand.vmem [shape: bf16[1152,128], index: 4, kind: input, shape index: {}]
  %s5 = inlined_call_operand.vmem [shape: bf16[1152,128], index: 5, kind: input, shape index: {}]
  %s6 = inlined_call_operand.vmem [shape: f32[12,128], index: 6, kind: input, shape index: {}]
  %s7 = inlined_call_operand.vmem [shape: f32[8,128], index: 7, kind: input, shape index: {}]
  %s8 = inlined_call_operand.vmem [shape: f32[2,128], index: 8, kind: output, shape index: {}]
  %s9 = sld [smem:[#allocation0]]
  $region42: #{discriminator_forward.1} parent=0
    _
  %s11 = ssub.s32 1, %s9
  %s12 = scalar_select 0, %s11, %s9
  // Predicated region
  $region2: #{discriminator_forward.1} parent=0 // pred_check
    _
  $region3: #{discriminator_forward.1} parent=0 // pred_check_branch
    %14 = sbr.rel (0) target = $region5
  $region4: #{discriminator_forward.1} parent=0 // pred_region
    _
  $region5: #{discriminator_forward.1} parent=0 // pred_fallthru
    _
  // Predicated region
  $region6: #{discriminator_forward.1} parent=0 // pred_check
    _
  $region7: #{discriminator_forward.1} parent=0 // pred_check_branch
    %16 = sbr.rel (0) target = $region9
  $region8: #{discriminator_forward.1} parent=0 // pred_region
    _
  $region9: #{discriminator_forward.1} parent=0 // pred_fallthru
    _
  // Predicated region
  $region10: #{discriminator_forward.1} parent=0 // pred_check
    _
  $region11: #{discriminator_forward.1} parent=0 // pred_check_branch
    %18 = sbr.rel (0) target = $region13
  $region12: #{discriminator_forward.1} parent=0 // pred_region
    _
  $region13: #{discriminator_forward.1} parent=0 // pred_fallthru
    _
  // Predicated region
  $region14: #{discriminator_forward.1} parent=0 // pred_check
    _
  $region15: #{discriminator_forward.1} parent=0 // pred_check_branch
    %20 = sbr.rel (0) target = $region17
  $region16: #{discriminator_forward.1} parent=0 // pred_region
    _
  $region17: #{discriminator_forward.1} parent=0 // pred_fallthru
    _
  // Predicated region
  $region18: #{discriminator_forward.1} parent=0 // pred_check
    _
  $region19: #{discriminator_forward.1} parent=0 // pred_check_branch
    %22 = sbr.rel (0) target = $region21
  $region20: #{discriminator_forward.1} parent=0 // pred_region
    _
  $region21: #{discriminator_forward.1} parent=0 // pred_fallthru
    _
  // Predicated region
  $region22: #{discriminator_forward.1} parent=0 // pred_check
    _
  $region23: #{discriminator_forward.1} parent=0 // pred_check_branch
    %24 = sbr.rel (0) target = $region25
  $region24: #{discriminator_forward.1} parent=0 // pred_region
    _
  $region25: #{discriminator_forward.1} parent=0 // pred_fallthru
    _
  // Predicated region
  $region26: #{discriminator_forward.1} parent=0 // pred_check
    _
  $region27: #{discriminator_forward.1} parent=0 // pred_check_branch
    %26 = sbr.rel (0) target = $region29
  $region28: #{discriminator_forward.1} parent=0 // pred_region
    _
  $region29: #{discriminator_forward.1} parent=0 // pred_fallthru
    _
  // Predicated region
  $region30: #{discriminator_forward.1} parent=0 // pred_check
    _
  $region31: #{discriminator_forward.1} parent=0 // pred_check_branch
    %28 = sbr.rel (0) target = $region33
  $region32: #{discriminator_forward.1} parent=0 // pred_region
    _
  $region33: #{discriminator_forward.1} parent=0 // pred_fallthru
    _
  %30 = vst [vmem:[#allocation2] sm:$0xff] 0.0
  %31 = vst [vmem:[#allocation2 + $0x8] sm:$0xff] 0.0
  %32 = vst [vmem:[#allocation2 + $0x10] sm:$0xff] 0.0
  %33 = vst [vmem:[#allocation2 + $0x18] sm:$0xff] 0.0
  %34 = vst [vmem:[#allocation2 + $0x20] sm:$0xff] 0.0
  %35 = vst [vmem:[#allocation2 + $0x28] sm:$0xff] 0.0
  %36 = vst [vmem:[#allocation2 + $0x30] sm:$0xff] 0.0
  %37 = vst [vmem:[#allocation2 + $0x38] sm:$0xff] 0.0
  %38 = vst [vmem:[#allocation2 + $0x40] sm:$0xff] 0.0
  %39 = vst [vmem:[#allocation2 + $0x48] sm:$0xff] 0.0
  %40 = vst [vmem:[#allocation2 + $0x50] sm:$0xff] 0.0
  %41 = vst [vmem:[#allocation2 + $0x58] sm:$0xff] 0.0
  %42 = vst [vmem:[#allocation2 + $0x60] sm:$0xff] 0.0
  %43 = vst [vmem:[#allocation2 + $0x68] sm:$0xff] 0.0
  %44 = vst [vmem:[#allocation2 + $0x70] sm:$0xff] 0.0
  %45 = vst [vmem:[#allocation2 + $0x78] sm:$0xff] 0.0
  %46 = vst [vmem:[#allocation2 + $0x80] sm:$0xff] 0.0
  %47 = vst [vmem:[#allocation2 + $0x88] sm:$0xff] 0.0
  %48 = vst [vmem:[#allocation2 + $0x90] sm:$0xff] 0.0
  %49 = vst [vmem:[#allocation2 + $0x98] sm:$0xff] 0.0
  %50 = vst [vmem:[#allocation2 + $0xa0] sm:$0xff] 0.0
  %51 = vst [vmem:[#allocation2 + $0xa8] sm:$0xff] 0.0
  %52 = vst [vmem:[#allocation2 + $0xb0] sm:$0xff] 0.0
  %53 = vst [vmem:[#allocation2 + $0xb8] sm:$0xff] 0.0
  %54 = vst [vmem:[#allocation2 + $0xc0] sm:$0xff] 0.0
  %55 = vst [vmem:[#allocation3] sm:$0xff] 0.0
  %56 = vst [vmem:[#allocation3 + $0x8] sm:$0xff] 0.0
  %57 = vst [vmem:[#allocation3 + $0x10] sm:$0xff] 0.0
  %58 = vst [vmem:[#allocation3 + $0x18] sm:$0xff] 0.0
  %59 = vst [vmem:[#allocation3 + $0x20] sm:$0xff] 0.0
  %60 = vst [vmem:[#allocation3 + $0x28] sm:$0xff] 0.0
  %61 = vst [vmem:[#allocation3 + $0x30] sm:$0xff] 0.0
  %62 = vst [vmem:[#allocation3 + $0x38] sm:$0xff] 0.0
  %63 = vst [vmem:[#allocation3 + $0x40] sm:$0xff] 0.0
  %64 = vst [vmem:[#allocation3 + $0x48] sm:$0xff] 0.0
  %65 = vst [vmem:[#allocation3 + $0x50] sm:$0xff] 0.0
  %66 = vst [vmem:[#allocation3 + $0x58] sm:$0xff] 0.0
  %67 = vst [vmem:[#allocation3 + $0x60] sm:$0xff] 0.0
  %68 = vst [vmem:[#allocation3 + $0x68] sm:$0xff] 0.0
  %69 = vst [vmem:[#allocation3 + $0x70] sm:$0xff] 0.0
  %70 = vst [vmem:[#allocation3 + $0x78] sm:$0xff] 0.0
  %71 = vst [vmem:[#allocation3 + $0x80] sm:$0xff] 0.0
  %72 = vst [vmem:[#allocation3 + $0x88] sm:$0xff] 0.0
  %73 = vst [vmem:[#allocation3 + $0x90] sm:$0xff] 0.0
  %74 = vst [vmem:[#allocation3 + $0x98] sm:$0xff] 0.0
  %75 = vst [vmem:[#allocation3 + $0xa0] sm:$0xff] 0.0
  %76 = vst [vmem:[#allocation3 + $0xa8] sm:$0xff] 0.0
  %77 = vst [vmem:[#allocation3 + $0xb0] sm:$0xff] 0.0
  %78 = vst [vmem:[#allocation3 + $0xb8] sm:$0xff] 0.0
  %79 = vst [vmem:[#allocation3 + $0xc0] sm:$0xff] 0.0
  %80 = vst [vmem:[#allocation4] sm:$0xff] 0.0
  %81 = vst [vmem:[#allocation4 + $0x8] sm:$0xff] 0.0
  %82 = vst [vmem:[#allocation4 + $0x10] sm:$0xff] 0.0
  %83 = vst [vmem:[#allocation4 + $0x18] sm:$0xff] 0.0
  %84 = vst [vmem:[#allocation4 + $0x20] sm:$0xff] 0.0
  %85 = vst [vmem:[#allocation4 + $0x28] sm:$0xff] 0.0
  %86 = vst [vmem:[#allocation4 + $0x30] sm:$0xff] 0.0
  %87 = vst [vmem:[#allocation4 + $0x38] sm:$0xff] 0.0
  %88 = vst [vmem:[#allocation4 + $0x40] sm:$0xff] 0.0
  %89 = vst [vmem:[#allocation4 + $0x48] sm:$0xff] 0.0
  %90 = vst [vmem:[#allocation4 + $0x50] sm:$0xff] 0.0
  %91 = vst [vmem:[#allocation4 + $0x58] sm:$0xff] 0.0
  %92 = vst [vmem:[#allocation4 + $0x60] sm:$0xff] 0.0
  %93 = vst [vmem:[#allocation4 + $0x68] sm:$0xff] 0.0
  %94 = vst [vmem:[#allocation4 + $0x70] sm:$0xff] 0.0
  %95 = vst [vmem:[#allocation4 + $0x78] sm:$0xff] 0.0
  %96 = vst [vmem:[#allocation4 + $0x80] sm:$0xff] 0.0
  %97 = vst [vmem:[#allocation4 + $0x88] sm:$0xff] 0.0
  %98 = vst [vmem:[#allocation4 + $0x90] sm:$0xff] 0.0
  %99 = vst [vmem:[#allocation4 + $0x98] sm:$0xff] 0.0
  %100 = vst [vmem:[#allocation4 + $0xa0] sm:$0xff] 0.0
  %101 = vst [vmem:[#allocation4 + $0xa8] sm:$0xff] 0.0
  %102 = vst [vmem:[#allocation4 + $0xb0] sm:$0xff] 0.0
  %103 = vst [vmem:[#allocation4 + $0xb8] sm:$0xff] 0.0
  %104 = vst [vmem:[#allocation4 + $0xc0] sm:$0xff] 0.0
  %105 = vst [vmem:[#allocation6] sm:$0xff] 0
  %106 = vst [vmem:[#allocation6 + $0x8] sm:$0xff] 0
  %107 = vst [vmem:[#allocation6 + $0x10] sm:$0xff] 0
  %108 = vst [vmem:[#allocation6 + $0x18] sm:$0xff] 0
  %109 = vst [vmem:[#allocation6 + $0x20] sm:$0xff] 0
  %110 = vst [vmem:[#allocation6 + $0x28] sm:$0xff] 0
  %111 = vst [vmem:[#allocation6 + $0x30] sm:$0xff] 0
  %112 = vst [vmem:[#allocation6 + $0x38] sm:$0xff] 0
  %113 = vst [vmem:[#allocation6 + $0x40] sm:$0xff] 0
  %114 = vst [vmem:[#allocation6 + $0x48] sm:$0xff] 0
  %115 = vst [vmem:[#allocation6 + $0x50] sm:$0xff] 0
  %116 = vst [vmem:[#allocation6 + $0x58] sm:$0xff] 0
  %117 = vst [vmem:[#allocation6 + $0x60] sm:$0xff] 0
  %118 = vst [vmem:[#allocation6 + $0x68] sm:$0xff] 0
  %119 = vst [vmem:[#allocation6 + $0x70] sm:$0xff] 0
  %120 = vst [vmem:[#allocation6 + $0x78] sm:$0xff] 0
  %121 = vst [vmem:[#allocation6 + $0x80] sm:$0xff] 0
  %122 = vst [vmem:[#allocation6 + $0x88] sm:$0xff] 0
  %123 = vst [vmem:[#allocation6 + $0x90] sm:$0xff] 0
  %124 = vst [vmem:[#allocation6 + $0x98] sm:$0xff] 0
  %125 = vst [vmem:[#allocation6 + $0xa0] sm:$0xff] 0
  %126 = vst [vmem:[#allocation6 + $0xa8] sm:$0xff] 0
  %127 = vst [vmem:[#allocation6 + $0xb0] sm:$0xff] 0
  %128 = vst [vmem:[#allocation6 + $0xb8] sm:$0xff] 0
  %129 = vst [vmem:[#allocation6 + $0xc0] sm:$0xff] 0
  %130 = vst [vmem:[#allocation6 + $0xc8] sm:$0xff] 0
  %131 = vst [vmem:[#allocation6 + $0xd0] sm:$0xff] 0
  %132 = vst [vmem:[#allocation6 + $0xd8] sm:$0xff] 0
  %133 = vst [vmem:[#allocation6 + $0xe0] sm:$0xff] 0
  %134 = vst [vmem:[#allocation6 + $0xe8] sm:$0xff] 0
  %135 = vst [vmem:[#allocation6 + $0xf0] sm:$0xff] 0
  %136 = vst [vmem:[#allocation6 + $0xf8] sm:$0xff] 0
  %137 = vst [vmem:[#allocation6 + $0x100] sm:$0xff] 0
  %138 = vst [vmem:[#allocation6 + $0x108] sm:$0xff] 0
  %139 = vst [vmem:[#allocation6 + $0x110] sm:$0xff] 0
  %140 = vst [vmem:[#allocation6 + $0x118] sm:$0xff] 0
  %141 = vst [vmem:[#allocation6 + $0x120] sm:$0xff] 0
  %142 = vst [vmem:[#allocation6 + $0x128] sm:$0xff] 0
  %143 = vst [vmem:[#allocation6 + $0x130] sm:$0xff] 0
  %144 = vst [vmem:[#allocation6 + $0x138] sm:$0xff] 0
  %145 = vst [vmem:[#allocation6 + $0x140] sm:$0xff] 0
  %146 = vst [vmem:[#allocation6 + $0x148] sm:$0xff] 0
  %147 = vst [vmem:[#allocation6 + $0x150] sm:$0xff] 0
  %148 = vst [vmem:[#allocation6 + $0x158] sm:$0xff] 0
  %149 = vst [vmem:[#allocation6 + $0x160] sm:$0xff] 0
  %150 = vst [vmem:[#allocation6 + $0x168] sm:$0xff] 0
  %151 = vst [vmem:[#allocation6 + $0x170] sm:$0xff] 0
  %152 = vst [vmem:[#allocation6 + $0x178] sm:$0xff] 0
  %153 = vst [vmem:[#allocation6 + $0x180] sm:$0xff] 0
  %154 = vst [vmem:[#allocation6 + $0x188] sm:$0xff] 0
  %155 = vst [vmem:[#allocation6 + $0x190] sm:$0xff] 0
  %156 = vst [vmem:[#allocation6 + $0x198] sm:$0xff] 0
  %157 = vst [vmem:[#allocation6 + $0x1a0] sm:$0xff] 0
  %158 = vst [vmem:[#allocation6 + $0x1a8] sm:$0xff] 0
  %159 = vst [vmem:[#allocation6 + $0x1b0] sm:$0xff] 0
  %160 = vst [vmem:[#allocation6 + $0x1b8] sm:$0xff] 0
  %161 = vst [vmem:[#allocation6 + $0x1c0] sm:$0xff] 0
  %162 = vst [vmem:[#allocation6 + $0x1c8] sm:$0xff] 0
  %163 = vst [vmem:[#allocation6 + $0x1d0] sm:$0xff] 0
  %164 = vst [vmem:[#allocation6 + $0x1d8] sm:$0xff] 0
  %165 = vst [vmem:[#allocation6 + $0x1e0] sm:$0xff] 0
  %166 = vst [vmem:[#allocation6 + $0x1e8] sm:$0xff] 0
  %167 = vst [vmem:[#allocation6 + $0x1f0] sm:$0xff] 0
  %168 = vst [vmem:[#allocation6 + $0x1f8] sm:$0xff] 0
  %169 = vst [vmem:[#allocation6 + $0x200] sm:$0xff] 0
  %170 = vst [vmem:[#allocation6 + $0x208] sm:$0xff] 0
  %171 = vst [vmem:[#allocation6 + $0x210] sm:$0xff] 0
  %172 = vst [vmem:[#allocation6 + $0x218] sm:$0xff] 0
  %173 = vst [vmem:[#allocation6 + $0x220] sm:$0xff] 0
  %174 = vst [vmem:[#allocation6 + $0x228] sm:$0xff] 0
  %175 = vst [vmem:[#allocation6 + $0x230] sm:$0xff] 0
  %176 = vst [vmem:[#allocation6 + $0x238] sm:$0xff] 0
  %177 = vst [vmem:[#allocation6 + $0x240] sm:$0xff] 0
  %178 = vst [vmem:[#allocation6 + $0x248] sm:$0xff] 0
  %179 = vst [vmem:[#allocation6 + $0x250] sm:$0xff] 0
  %180 = vst [vmem:[#allocation6 + $0x258] sm:$0xff] 0
  %181 = vst [vmem:[#allocation6 + $0x260] sm:$0xff] 0
  %182 = vst [vmem:[#allocation6 + $0x268] sm:$0xff] 0
  %183 = vst [vmem:[#allocation6 + $0x270] sm:$0xff] 0
  %184 = vst [vmem:[#allocation6 + $0x278] sm:$0xff] 0
  %185 = vst [vmem:[#allocation6 + $0x280] sm:$0xff] 0
  %186 = vst [vmem:[#allocation6 + $0x288] sm:$0xff] 0
  %187 = vst [vmem:[#allocation6 + $0x290] sm:$0xff] 0
  %188 = vst [vmem:[#allocation6 + $0x298] sm:$0xff] 0
  %189 = vst [vmem:[#allocation6 + $0x2a0] sm:$0xff] 0
  %190 = vst [vmem:[#allocation6 + $0x2a8] sm:$0xff] 0
  %191 = vst [vmem:[#allocation6 + $0x2b0] sm:$0xff] 0
  %192 = vst [vmem:[#allocation6 + $0x2b8] sm:$0xff] 0
  %193 = vst [vmem:[#allocation6 + $0x2c0] sm:$0xff] 0
  %194 = vst [vmem:[#allocation6 + $0x2c8] sm:$0xff] 0
  %v195 = vld [vmem:[%s0] sm:$0xf]
  %v196 = vld [vmem:[%s0 + $0x4] sm:$0xf]
  %v197 = vld [vmem:[%s0 + $0x8] sm:$0xf]
  %v198 = vld [vmem:[%s0 + $0xc] sm:$0xf]
  %v199 = vld [vmem:[%s0 + $0x10] sm:$0xf]
  %v200 = vld [vmem:[%s0 + $0x14] sm:$0xf]
  %v201 = vld [vmem:[%s0 + $0x18] sm:$0xf]
  %v202 = vld [vmem:[%s0 + $0x1c] sm:$0xf]
  %v203 = vld [vmem:[%s0 + $0x20] sm:$0xf]
  %v204 = vld [vmem:[%s0 + $0x24] sm:$0xf]
  %v205 = vld [vmem:[%s0 + $0x28] sm:$0xf]
  %v206 = vld [vmem:[%s0 + $0x2c] sm:$0xf]
  %v207 = vld [vmem:[%s0 + $0x30] sm:$0xf]
  %v208 = vld [vmem:[%s0 + $0x34] sm:$0xf]
  %v209 = vld [vmem:[%s0 + $0x38] sm:$0xf]
  %v210 = vld [vmem:[%s0 + $0x3c] sm:$0xf]
  %v211 = vld [vmem:[%s1] sm:$0xf]
  %v212 = vld [vmem:[%s1 + $0x4] sm:$0xf]
  %v213 = vld [vmem:[%s1 + $0x8] sm:$0xf]
  %v214 = vld [vmem:[%s1 + $0xc] sm:$0xf]
  %v215 = vld [vmem:[%s1 + $0x10] sm:$0xf]
  %v216 = vld [vmem:[%s1 + $0x14] sm:$0xf]
  %v217 = vld [vmem:[%s1 + $0x18] sm:$0xf]
  %v218 = vld [vmem:[%s1 + $0x1c] sm:$0xf]
  %v219 = vld [vmem:[%s1 + $0x20] sm:$0xf]
  %v220 = vld [vmem:[%s1 + $0x24] sm:$0xf]
  %v221 = vld [vmem:[%s1 + $0x28] sm:$0xf]
  %v222 = vld [vmem:[%s1 + $0x2c] sm:$0xf]
  %v223 = vld [vmem:[%s1 + $0x30] sm:$0xf]
  %v224 = vld [vmem:[%s1 + $0x34] sm:$0xf]
  %v225 = vld [vmem:[%s1 + $0x38] sm:$0xf]
  %v226 = vld [vmem:[%s1 + $0x3c] sm:$0xf]
  %v243 = vunpack.c.l.b16 %v195
  %v244 = vunpack.c.l.b16 %v196
  %v245 = vunpack.c.l.b16 %v197
  %v246 = vunpack.c.l.b16 %v198
  %v247 = vunpack.c.l.b16 %v199
  %v248 = vunpack.c.l.b16 %v200
  %v249 = vunpack.c.l.b16 %v201
  %v250 = vunpack.c.l.b16 %v202
  %v251 = vunpack.c.l.b16 %v203
  %v252 = vunpack.c.l.b16 %v204
  %v253 = vunpack.c.l.b16 %v205
  %v254 = vunpack.c.l.b16 %v206
  %v255 = vunpack.c.l.b16 %v207
  %v256 = vunpack.c.l.b16 %v208
  %v257 = vunpack.c.l.b16 %v209
  %v258 = vunpack.c.l.b16 %v210
  %v259 = vpack.c.b16 %v244, %v243
  %v260 = vpack.c.b16 %v246, %v245
  %v261 = vpack.c.b16 %v248, %v247
  %v262 = vpack.c.b16 %v250, %v249
  %v263 = vpack.c.b16 %v252, %v251
  %v264 = vpack.c.b16 %v254, %v253
  %v265 = vpack.c.b16 %v256, %v255
  %v266 = vpack.c.b16 %v258, %v257
  %v291 = vunpack.c.l.b16 %v211
  %v292 = vunpack.c.l.b16 %v212
  %v293 = vunpack.c.l.b16 %v213
  %v294 = vunpack.c.l.b16 %v214
  %v295 = vunpack.c.l.b16 %v215
  %v296 = vunpack.c.l.b16 %v216
  %v297 = vunpack.c.l.b16 %v217
  %v298 = vunpack.c.l.b16 %v218
  %v299 = vunpack.c.l.b16 %v219
  %v300 = vunpack.c.l.b16 %v220
  %v301 = vunpack.c.l.b16 %v221
  %v302 = vunpack.c.l.b16 %v222
  %v303 = vunpack.c.l.b16 %v223
  %v304 = vunpack.c.l.b16 %v224
  %v305 = vunpack.c.l.b16 %v225
  %v306 = vunpack.c.l.b16 %v226
  %v307 = vpack.c.b16 %v292, %v291
  %v308 = vpack.c.b16 %v294, %v293
  %v309 = vpack.c.b16 %v296, %v295
  %v310 = vpack.c.b16 %v298, %v297
  %v311 = vpack.c.b16 %v300, %v299
  %v312 = vpack.c.b16 %v302, %v301
  %v313 = vpack.c.b16 %v304, %v303
  %v314 = vpack.c.b16 %v306, %v305
  %323 = vmatprep.subr.bf16.mxu0 0
  %324 = vmatpush1.bf16.msra.mxu0 %v307
  %325 = vmatprep.subr.bf16.mxu0 0
  %326 = vmatpush1.bf16.msra.mxu0 %v308
  %327 = vmatprep.subr.bf16.mxu0 0
  %328 = vmatpush1.bf16.msra.mxu0 %v309
  %329 = vmatprep.subr.bf16.mxu0 0
  %330 = vmatpush1.bf16.msra.mxu0 %v310
  %331 = vmatprep.subr.bf16.mxu0 0
  %332 = vmatpush1.bf16.msra.mxu0 %v311
  %333 = vmatprep.subr.bf16.mxu0 0
  %334 = vmatpush1.bf16.msra.mxu0 %v312
  %335 = vmatprep.subr.bf16.mxu0 0
  %336 = vmatpush1.bf16.msra.mxu0 %v313
  %337 = vmatprep.subr.bf16.mxu0 0
  %338 = vmatpush1.bf16.msra.mxu0 %v314
  %339 = vmatprep.subr.bf16.mxu0 0
  %340 = vmatpush1.bf16.msra.mxu0 0
  %341 = vmatprep.subr.bf16.mxu0 0
  %342 = vmatpush1.bf16.msra.mxu0 0
  %343 = vmatprep.subr.bf16.mxu0 0
  %344 = vmatpush1.bf16.msra.mxu0 0
  %345 = vmatprep.subr.bf16.mxu0 0
  %346 = vmatpush1.bf16.msra.mxu0 0
  %347 = vmatprep.subr.bf16.mxu0 0
  %348 = vmatpush1.bf16.msra.mxu0 0
  %349 = vmatprep.subr.bf16.mxu0 0
  %350 = vmatpush1.bf16.msra.mxu0 0
  %351 = vmatprep.subr.bf16.mxu0 0
  %352 = vmatpush1.bf16.msra.mxu0 0
  %353 = vmatprep.subr.bf16.mxu0 0
  %354 = vmatpush1.bf16.msra.mxu0 0
  %355 = vmatprep.mubr.bf16.mxu0 0
  %356 = vmatmul.mubr.bf16.gmra.mrb[0].mxu0 %v259
  %v357 = vpop.f32.mrb[0].mxu0
  %v358 = vadd.f32 0.0, %v357
  %v359 = vpop.f32.mrb[0].mxu0
  %v360 = vpop.f32.mrb[0].mxu0
  %v361 = vadd.f32 0.0, %v360
  %v362 = vpop.f32.mrb[0].mxu0
  %363 = vmatprep.mubr.bf16.mxu0 0
  %364 = vmatmul.mubr.bf16.gmra.mrb[0].mxu0 %v260
  %v365 = vpop.f32.mrb[0].mxu0
  %v366 = vadd.f32 0.0, %v365
  %v367 = vpop.f32.mrb[0].mxu0
  %v368 = vpop.f32.mrb[0].mxu0
  %v369 = vadd.f32 0.0, %v368
  %v370 = vpop.f32.mrb[0].mxu0
  %371 = vmatprep.mubr.bf16.mxu0 0
  %372 = vmatmul.mubr.bf16.gmra.mrb[0].mxu0 %v261
  %v373 = vpop.f32.mrb[0].mxu0
  %v374 = vadd.f32 0.0, %v373
  %v375 = vpop.f32.mrb[0].mxu0
  %v376 = vpop.f32.mrb[0].mxu0
  %v377 = vadd.f32 0.0, %v376
  %v378 = vpop.f32.mrb[0].mxu0
  %379 = vmatprep.mubr.bf16.mxu0 0
  %380 = vmatmul.mubr.bf16.gmra.mrb[0].mxu0 %v262
  %v381 = vpop.f32.mrb[0].mxu0
  %v382 = vadd.f32 0.0, %v381
  %v383 = vpop.f32.mrb[0].mxu0
  %v384 = vpop.f32.mrb[0].mxu0
  %v385 = vadd.f32 0.0, %v384
  %v386 = vpop.f32.mrb[0].mxu0
  %387 = vmatprep.mubr.bf16.mxu0 0
  %388 = vmatmul.mubr.bf16.gmra.mrb[0].mxu0 %v263
  %v389 = vpop.f32.mrb[0].mxu0
  %v390 = vadd.f32 0.0, %v389
  %v391 = vpop.f32.mrb[0].mxu0
  %v392 = vpop.f32.mrb[0].mxu0
  %v393 = vadd.f32 0.0, %v392
  %v394 = vpop.f32.mrb[0].mxu0
  %395 = vmatprep.mubr.bf16.mxu0 0
  %396 = vmatmul.mubr.bf16.gmra.mrb[0].mxu0 %v264
  %v397 = vpop.f32.mrb[0].mxu0
  %v398 = vadd.f32 0.0, %v397
  %v399 = vpop.f32.mrb[0].mxu0
  %v400 = vpop.f32.mrb[0].mxu0
  %v401 = vadd.f32 0.0, %v400
  %v402 = vpop.f32.mrb[0].mxu0
  %403 = vmatprep.mubr.bf16.mxu0 0
  %404 = vmatmul.mubr.bf16.gmra.mrb[0].mxu0 %v265
  %v405 = vpop.f32.mrb[0].mxu0
  %v406 = vadd.f32 0.0, %v405
  %v407 = vpop.f32.mrb[0].mxu0
  %v408 = vpop.f32.mrb[0].mxu0
  %v409 = vadd.f32 0.0, %v408
  %v410 = vpop.f32.mrb[0].mxu0
  %411 = vmatprep.mubr.bf16.mxu0 0
  %412 = vmatmul.mubr.bf16.gmra.mrb[0].mxu0 %v266
  %v413 = vpop.f32.mrb[0].mxu0
  %v414 = vadd.f32 0.0, %v413
  %v415 = vpop.f32.mrb[0].mxu0
  %v416 = vpop.f32.mrb[0].mxu0
  %v417 = vadd.f32 0.0, %v416
  %v418 = vpop.f32.mrb[0].mxu0
  %419 = vdwg.mxu0
  %v420 = vld [vmem:[%s6] sm:$0x1]
  %v421 = vlaneseq
  %v422 = vshrl.u32 %v421, 7
  %v423 = vsub.s32 0, %v422
  %v424 = vrot.slane %v420, %v423
  %v425 = vmul.f32 %v358, %v424
  %v426 = vmul.f32 %v361, %v424
  %v427 = vmul.f32 %v366, %v424
  %v428 = vmul.f32 %v369, %v424
  %v429 = vmul.f32 %v374, %v424
  %v430 = vmul.f32 %v377, %v424
  %v431 = vmul.f32 %v382, %v424
  %v432 = vmul.f32 %v385, %v424
  %v433 = vmul.f32 %v390, %v424
  %v434 = vmul.f32 %v393, %v424
  %v435 = vmul.f32 %v398, %v424
  %v436 = vmul.f32 %v401, %v424
  %v437 = vmul.f32 %v406, %v424
  %v438 = vmul.f32 %v409, %v424
  %v439 = vmul.f32 %v414, %v424
  %v440 = vmul.f32 %v417, %v424
  %v441 = vld [vmem:[%s6 + $0x1] sm:$0x1]
  %v442 = vlaneseq
  %v443 = vshrl.u32 %v442, 7
  %v444 = vsub.s32 0, %v443
  %v445 = vrot.slane %v441, %v444
  %v446 = vadd.f32 %v425, %v445
  %v447 = vadd.f32 %v426, %v445
  %v448 = vadd.f32 %v427, %v445
  %v449 = vadd.f32 %v428, %v445
  %v450 = vadd.f32 %v429, %v445
  %v451 = vadd.f32 %v430, %v445
  %v452 = vadd.f32 %v431, %v445
  %v453 = vadd.f32 %v432, %v445
  %v454 = vadd.f32 %v433, %v445
  %v455 = vadd.f32 %v434, %v445
  %v456 = vadd.f32 %v435, %v445
  %v457 = vadd.f32 %v436, %v445
  %v458 = vadd.f32 %v437, %v445
  %v459 = vadd.f32 %v438, %v445
  %v460 = vadd.f32 %v439, %v445
  %v461 = vadd.f32 %v440, %v445
  %vm462 = vcmp.ge.f32.partialorder %v446, 0.0
  %vm463 = vcmp.ge.f32.partialorder %v447, 0.0
  %vm464 = vcmp.ge.f32.partialorder %v448, 0.0
  %vm465 = vcmp.ge.f32.partialorder %v449, 0.0
  %vm466 = vcmp.ge.f32.partialorder %v450, 0.0
  %vm467 = vcmp.ge.f32.partialorder %v451, 0.0
  %vm468 = vcmp.ge.f32.partialorder %v452, 0.0
  %vm469 = vcmp.ge.f32.partialorder %v453, 0.0
  %vm470 = vcmp.ge.f32.partialorder %v454, 0.0
  %vm471 = vcmp.ge.f32.partialorder %v455, 0.0
  %vm472 = vcmp.ge.f32.partialorder %v456, 0.0
  %vm473 = vcmp.ge.f32.partialorder %v457, 0.0
  %vm474 = vcmp.ge.f32.partialorder %v458, 0.0
  %vm475 = vcmp.ge.f32.partialorder %v459, 0.0
  %vm476 = vcmp.ge.f32.partialorder %v460, 0.0
  %vm477 = vcmp.ge.f32.partialorder %v461, 0.0
  %v478 = vmul.f32 %v446, 0.2
  %v479 = vmul.f32 %v447, 0.2
  %v480 = vmul.f32 %v448, 0.2
  %v481 = vmul.f32 %v449, 0.2
  %v482 = vmul.f32 %v450, 0.2
  %v483 = vmul.f32 %v451, 0.2
  %v484 = vmul.f32 %v452, 0.2
  %v485 = vmul.f32 %v453, 0.2
  %v486 = vmul.f32 %v454, 0.2
  %v487 = vmul.f32 %v455, 0.2
  %v488 = vmul.f32 %v456, 0.2
  %v489 = vmul.f32 %v457, 0.2
  %v490 = vmul.f32 %v458, 0.2
  %v491 = vmul.f32 %v459, 0.2
  %v492 = vmul.f32 %v460, 0.2
  %v493 = vmul.f32 %v461, 0.2
  %v494 = vsel %vm462, %v446, %v478
  %v495 = vsel %vm463, %v447, %v479
  %v496 = vsel %vm464, %v448, %v480
  %v497 = vsel %vm465, %v449, %v481
  %v498 = vsel %vm466, %v450, %v482
  %v499 = vsel %vm467, %v451, %v483
  %v500 = vsel %vm468, %v452, %v484
  %v501 = vsel %vm469, %v453, %v485
  %v502 = vsel %vm470, %v454, %v486
  %v503 = vsel %vm471, %v455, %v487
  %v504 = vsel %vm472, %v456, %v488
  %v505 = vsel %vm473, %v457, %v489
  %v506 = vsel %vm474, %v458, %v490
  %v507 = vsel %vm475, %v459, %v491
  %v508 = vsel %vm476, %v460, %v492
  %v509 = vsel %vm477, %v461, %v493
  %510 = vst [vmem:[#allocation2 + $0xb] sm:$0xff] %v494
  %511 = vst [vmem:[#allocation2 + $0x15] sm:$0xff] %v495
  %512 = vst [vmem:[#allocation2 + $0x1f] sm:$0xff] %v496
  %513 = vst [vmem:[#allocation2 + $0x29] sm:$0xff] %v497
  %514 = vst [vmem:[#allocation2 + $0x33] sm:$0xff] %v498
  %515 = vst [vmem:[#allocation2 + $0x3d] sm:$0xff] %v499
  %516 = vst [vmem:[#allocation2 + $0x47] sm:$0xff] %v500
  %517 = vst [vmem:[#allocation2 + $0x51] sm:$0xff] %v501
  %518 = vst [vmem:[#allocation2 + $0x6f] sm:$0xff] %v502
  %519 = vst [vmem:[#allocation2 + $0x79] sm:$0xff] %v503
  %520 = vst [vmem:[#allocation2 + $0x83] sm:$0xff] %v504
  %521 = vst [vmem:[#allocation2 + $0x8d] sm:$0xff] %v505
  %522 = vst [vmem:[#allocation2 + $0x97] sm:$0xff] %v506
  %523 = vst [vmem:[#allocation2 + $0xa1] sm:$0xff] %v507
  %524 = vst [vmem:[#allocation2 + $0xab] sm:$0xff] %v508
  %525 = vst [vmem:[#allocation2 + $0xb5] sm:$0xff] %v509
  %v526 = vld [vmem:[#allocation2] sm:$0xff]
  %v527 = vld [vmem:[#allocation2 + $0x8] sm:$0xff]
  %v528 = vld [vmem:[#allocation2 + $0x10] sm:$0xff]
  %v529 = vld [vmem:[#allocation2 + $0x18] sm:$0xff]
  %v530 = vld [vmem:[#allocation2 + $0x20] sm:$0xff]
  %v531 = vld [vmem:[#allocation2 + $0x28] sm:$0xff]
  %v532 = vld [vmem:[#allocation2 + $0x30] sm:$0xff]
  %v533 = vld [vmem:[#allocation2 + $0x38] sm:$0xff]
  %v534 = vld [vmem:[#allocation2 + $0x40] sm:$0xff]
  %v535 = vld [vmem:[#allocation2 + $0x48] sm:$0x3f]
  %v536 = vpack.c.bf16 %v527, %v526
  %v537 = vpack.c.bf16 %v529, %v528
  %v538 = vpack.c.bf16 %v531, %v530
  %v539 = vpack.c.bf16 %v533, %v532
  %v540 = vpack.c.bf16 %v535, %v534
  %541 = vst [vmem:[#allocation6] sm:$0xff] %v536
  %542 = vst [vmem:[#allocation6 + $0x48] sm:$0xff] %v537
  %543 = vst [vmem:[#allocation6 + $0x90] sm:$0xff] %v538
  %544 = vst [vmem:[#allocation6 + $0xd8] sm:$0xff] %v539
  %545 = vst [vmem:[#allocation6 + $0x120] sm:$0x7f] %v540
  %v546 = vld [vmem:[#allocation2 + $0x1] sm:$0xff]
  %v547 = vld [vmem:[#allocation2 + $0x9] sm:$0xff]
  %v548 = vld [vmem:[#allocation2 + $0x11] sm:$0xff]
  %v549 = vld [vmem:[#allocation2 + $0x19] sm:$0xff]
  %v550 = vld [vmem:[#allocation2 + $0x21] sm:$0xff]
  %v551 = vld [vmem:[#allocation2 + $0x29] sm:$0xff]
  %v552 = vld [vmem:[#allocation2 + $0x31] sm:$0xff]
  %v553 = vld [vmem:[#allocation2 + $0x39] sm:$0xff]
  %v554 = vld [vmem:[#allocation2 + $0x41] sm:$0xff]
  %v555 = vld [vmem:[#allocation2 + $0x49] sm:$0x3f]
  %v556 = vpack.c.bf16 %v547, %v546
  %v557 = vpack.c.bf16 %v549, %v548
  %v558 = vpack.c.bf16 %v551, %v550
  %v559 = vpack.c.bf16 %v553, %v552
  %v560 = vpack.c.bf16 %v555, %v554
  %561 = vst [vmem:[#allocation6 + $0x8] sm:$0xff] %v556
  %562 = vst [vmem:[#allocation6 + $0x50] sm:$0xff] %v557
  %563 = vst [vmem:[#allocation6 + $0x98] sm:$0xff] %v558
  %564 = vst [vmem:[#allocation6 + $0xe0] sm:$0xff] %v559
  %565 = vst [vmem:[#allocation6 + $0x128] sm:$0x7f] %v560
  %v566 = vld [vmem:[#allocation2 + $0x2] sm:$0xff]
  %v567 = vld [vmem:[#allocation2 + $0xa] sm:$0xff]
  %v568 = vld [vmem:[#allocation2 + $0x12] sm:$0xff]
  %v569 = vld [vmem:[#allocation2 + $0x1a] sm:$0xff]
  %v570 = vld [vmem:[#allocation2 + $0x22] sm:$0xff]
  %v571 = vld [vmem:[#allocation2 + $0x2a] sm:$0xff]
  %v572 = vld [vmem:[#allocation2 + $0x32] sm:$0xff]
  %v573 = vld [vmem:[#allocation2 + $0x3a] sm:$0xff]
  %v574 = vld [vmem:[#allocation2 + $0x42] sm:$0xff]
  %v575 = vld [vmem:[#allocation2 + $0x4a] sm:$0x3f]
  %v576 = vpack.c.bf16 %v567, %v566
  %v577 = vpack.c.bf16 %v569, %v568
  %v578 = vpack.c.bf16 %v571, %v570
  %v579 = vpack.c.bf16 %v573, %v572
  %v580 = vpack.c.bf16 %v575, %v574
  %581 = vst [vmem:[#allocation6 + $0x10] sm:$0xff] %v576
  %582 = vst [vmem:[#allocation6 + $0x58] sm:$0xff] %v577
  %583 = vst [vmem:[#allocation6 + $0xa0] sm:$0xff] %v578
  %584 = vst [vmem:[#allocation6 + $0xe8] sm:$0xff] %v579
  %585 = vst [vmem:[#allocation6 + $0x130] sm:$0x7f] %v580
  %v586 = vld [vmem:[#allocation2 + $0xa] sm:$0xff]
  %v587 = vld [vmem:[#allocation2 + $0x12] sm:$0xff]
  %v588 = vld [vmem:[#allocation2 + $0x1a] sm:$0xff]
  %v589 = vld [vmem:[#allocation2 + $0x22] sm:$0xff]
  %v590 = vld [vmem:[#allocation2 + $0x2a] sm:$0xff]
  %v591 = vld [vmem:[#allocation2 + $0x32] sm:$0xff]
  %v592 = vld [vmem:[#allocation2 + $0x3a] sm:$0xff]
  %v593 = vld [vmem:[#allocation2 + $0x42] sm:$0xff]
  %v594 = vld [vmem:[#allocation2 + $0x4a] sm:$0xff]
  %v595 = vld [vmem:[#allocation2 + $0x52] sm:$0x3f]
  %v596 = vpack.c.bf16 %v587, %v586
  %v597 = vpack.c.bf16 %v589, %v588
  %v598 = vpack.c.bf16 %v591, %v590
  %v599 = vpack.c.bf16 %v593, %v592
  %v600 = vpack.c.bf16 %v595, %v594
  %601 = vst [vmem:[#allocation6 + $0x18] sm:$0xff] %v596
  %602 = vst [vmem:[#allocation6 + $0x60] sm:$0xff] %v597
  %603 = vst [vmem:[#allocation6 + $0xa8] sm:$0xff] %v598
  %604 = vst [vmem:[#allocation6 + $0xf0] sm:$0xff] %v599
  %605 = vst [vmem:[#allocation6 + $0x138] sm:$0x7f] %v600
  %v606 = vld [vmem:[#allocation2 + $0xb] sm:$0xff]
  %v607 = vld [vmem:[#allocation2 + $0x13] sm:$0xff]
  %v608 = vld [vmem:[#allocation2 + $0x1b] sm:$0xff]
  %v609 = vld [vmem:[#allocation2 + $0x23] sm:$0xff]
  %v610 = vld [vmem:[#allocation2 + $0x2b] sm:$0xff]
  %v611 = vld [vmem:[#allocation2 + $0x33] sm:$0xff]
  %v612 = vld [vmem:[#allocation2 + $0x3b] sm:$0xff]
  %v613 = vld [vmem:[#allocation2 + $0x43] sm:$0xff]
  %v614 = vld [vmem:[#allocation2 + $0x4b] sm:$0xff]
  %v615 = vld [vmem:[#allocation2 + $0x53] sm:$0x3f]
  %v616 = vpack.c.bf16 %v607, %v606
  %v617 = vpack.c.bf16 %v609, %v608
  %v618 = vpack.c.bf16 %v611, %v610
  %v619 = vpack.c.bf16 %v613, %v612
  %v620 = vpack.c.bf16 %v615, %v614
  %621 = vst [vmem:[#allocation6 + $0x20] sm:$0xff] %v616
  %622 = vst [vmem:[#allocation6 + $0x68] sm:$0xff] %v617
  %623 = vst [vmem:[#allocation6 + $0xb0] sm:$0xff] %v618
  %624 = vst [vmem:[#allocation6 + $0xf8] sm:$0xff] %v619
  %625 = vst [vmem:[#allocation6 + $0x140] sm:$0x7f] %v620
  %v626 = vld [vmem:[#allocation2 + $0xc] sm:$0xff]
  %v627 = vld [vmem:[#allocation2 + $0x14] sm:$0xff]
  %v628 = vld [vmem:[#allocation2 + $0x1c] sm:$0xff]
  %v629 = vld [vmem:[#allocation2 + $0x24] sm:$0xff]
  %v630 = vld [vmem:[#allocation2 + $0x2c] sm:$0xff]
  %v631 = vld [vmem:[#allocation2 + $0x34] sm:$0xff]
  %v632 = vld [vmem:[#allocation2 + $0x3c] sm:$0xff]
  %v633 = vld [vmem:[#allocation2 + $0x44] sm:$0xff]
  %v634 = vld [vmem:[#allocation2 + $0x4c] sm:$0xff]
  %v635 = vld [vmem:[#allocation2 + $0x54] sm:$0x3f]
  %v636 = vpack.c.bf16 %v627, %v626
  %v637 = vpack.c.bf16 %v629, %v628
  %v638 = vpack.c.bf16 %v631, %v630
  %v639 = vpack.c.bf16 %v633, %v632
  %v640 = vpack.c.bf16 %v635, %v634
  %641 = vst [vmem:[#allocation6 + $0x28] sm:$0xff] %v636
  %642 = vst [vmem:[#allocation6 + $0x70] sm:$0xff] %v637
  %643 = vst [vmem:[#allocation6 + $0xb8] sm:$0xff] %v638
  %644 = vst [vmem:[#allocation6 + $0x100] sm:$0xff] %v639
  %645 = vst [vmem:[#allocation6 + $0x148] sm:$0x7f] %v640
  %v646 = vld [vmem:[#allocation2 + $0x14] sm:$0xff]
  %v647 = vld [vmem:[#allocation2 + $0x1c] sm:$0xff]
  %v648 = vld [vmem:[#allocation2 + $0x24] sm:$0xff]
  %v649 = vld [vmem:[#allocation2 + $0x2c] sm:$0xff]
  %v650 = vld [vmem:[#allocation2 + $0x34] sm:$0xff]
  %v651 = vld [vmem:[#allocation2 + $0x3c] sm:$0xff]
  %v652 = vld [vmem:[#allocation2 + $0x44] sm:$0xff]
  %v653 = vld [vmem:[#allocation2 + $0x4c] sm:$0xff]
  %v654 = vld [vmem:[#allocation2 + $0x54] sm:$0xff]
  %v655 = vld [vmem:[#allocation2 + $0x5c] sm:$0x3f]
  %v656 = vpack.c.bf16 %v647, %v646
  %v657 = vpack.c.bf16 %v649, %v648
  %v658 = vpack.c.bf16 %v651, %v650
  %v659 = vpack.c.bf16 %v653, %v652
  %v660 = vpack.c.bf16 %v655, %v654
  %661 = vst [vmem:[#allocation6 + $0x30] sm:$0xff] %v656
  %662 = vst [vmem:[#allocation6 + $0x78] sm:$0xff] %v657
  %663 = vst [vmem:[#allocation6 + $0xc0] sm:$0xff] %v658
  %664 = vst [vmem:[#allocation6 + $0x108] sm:$0xff] %v659
  %665 = vst [vmem:[#allocation6 + $0x150] sm:$0x7f] %v660
  %v666 = vld [vmem:[#allocation2 + $0x15] sm:$0xff]
  %v667 = vld [vmem:[#allocation2 + $0x1d] sm:$0xff]
  %v668 = vld [vmem:[#allocation2 + $0x25] sm:$0xff]
  %v669 = vld [vmem:[#allocation2 + $0x2d] sm:$0xff]
  %v670 = vld [vmem:[#allocation2 + $0x35] sm:$0xff]
  %v671 = vld [vmem:[#allocation2 + $0x3d] sm:$0xff]
  %v672 = vld [vmem:[#allocation2 + $0x45] sm:$0xff]
  %v673 = vld [vmem:[#allocation2 + $0x4d] sm:$0xff]
  %v674 = vld [vmem:[#allocation2 + $0x55] sm:$0xff]
  %v675 = vld [vmem:[#allocation2 + $0x5d] sm:$0x3f]
  %v676 = vpack.c.bf16 %v667, %v666
  %v677 = vpack.c.bf16 %v669, %v668
  %v678 = vpack.c.bf16 %v671, %v670
  %v679 = vpack.c.bf16 %v673, %v672
  %v680 = vpack.c.bf16 %v675, %v674
  %681 = vst [vmem:[#allocation6 + $0x38] sm:$0xff] %v676
  %682 = vst [vmem:[#allocation6 + $0x80] sm:$0xff] %v677
  %683 = vst [vmem:[#allocation6 + $0xc8] sm:$0xff] %v678
  %684 = vst [vmem:[#allocation6 + $0x110] sm:$0xff] %v679
  %685 = vst [vmem:[#allocation6 + $0x158] sm:$0x7f] %v680
  %v686 = vld [vmem:[#allocation2 + $0x16] sm:$0xff]
  %v687 = vld [vmem:[#allocation2 + $0x1e] sm:$0xff]
  %v688 = vld [vmem:[#allocation2 + $0x26] sm:$0xff]
  %v689 = vld [vmem:[#allocation2 + $0x2e] sm:$0xff]
  %v690 = vld [vmem:[#allocation2 + $0x36] sm:$0xff]
  %v691 = vld [vmem:[#allocation2 + $0x3e] sm:$0xff]
  %v692 = vld [vmem:[#allocation2 + $0x46] sm:$0xff]
  %v693 = vld [vmem:[#allocation2 + $0x4e] sm:$0xff]
  %v694 = vld [vmem:[#allocation2 + $0x56] sm:$0xff]
  %v695 = vld [vmem:[#allocation2 + $0x5e] sm:$0x3f]
  %v696 = vpack.c.bf16 %v687, %v686
  %v697 = vpack.c.bf16 %v689, %v688
  %v698 = vpack.c.bf16 %v691, %v690
  %v699 = vpack.c.bf16 %v693, %v692
  %v700 = vpack.c.bf16 %v695, %v694
  %701 = vst [vmem:[#allocation6 + $0x40] sm:$0xff] %v696
  %702 = vst [vmem:[#allocation6 + $0x88] sm:$0xff] %v697
  %703 = vst [vmem:[#allocation6 + $0xd0] sm:$0xff] %v698
  %704 = vst [vmem:[#allocation6 + $0x118] sm:$0xff] %v699
  %705 = vst [vmem:[#allocation6 + $0x160] sm:$0x7f] %v700
  %v706 = vld [vmem:[#allocation2 + $0x64] sm:$0xff]
  %v707 = vld [vmem:[#allocation2 + $0x6c] sm:$0xff]
  %v708 = vld [vmem:[#allocation2 + $0x74] sm:$0xff]
  %v709 = vld [vmem:[#allocation2 + $0x7c] sm:$0xff]
  %v710 = vld [vmem:[#allocation2 + $0x84] sm:$0xff]
  %v711 = vld [vmem:[#allocation2 + $0x8c] sm:$0xff]
  %v712 = vld [vmem:[#allocation2 + $0x94] sm:$0xff]
  %v713 = vld [vmem:[#allocation2 + $0x9c] sm:$0xff]
  %v714 = vld [vmem:[#allocation2 + $0xa4] sm:$0xff]
  %v715 = vld [vmem:[#allocation2 + $0xac] sm:$0x3f]
  %v716 = vpack.c.bf16 %v707, %v706
  %v717 = vpack.c.bf16 %v709, %v708
  %v718 = vpack.c.bf16 %v711, %v710
  %v719 = vpack.c.bf16 %v713, %v712
  %v720 = vpack.c.bf16 %v715, %v714
  %721 = vst [vmem:[#allocation6 + $0x168] sm:$0xff] %v716
  %722 = vst [vmem:[#allocation6 + $0x1b0] sm:$0xff] %v717
  %723 = vst [vmem:[#allocation6 + $0x1f8] sm:$0xff] %v718
  %724 = vst [vmem:[#allocation6 + $0x240] sm:$0xff] %v719
  %725 = vst [vmem:[#allocation6 + $0x288] sm:$0x7f] %v720
  %v726 = vld [vmem:[#allocation2 + $0x65] sm:$0xff]
  %v727 = vld [vmem:[#allocation2 + $0x6d] sm:$0xff]
  %v728 = vld [vmem:[#allocation2 + $0x75] sm:$0xff]
  %v729 = vld [vmem:[#allocation2 + $0x7d] sm:$0xff]
  %v730 = vld [vmem:[#allocation2 + $0x85] sm:$0xff]
  %v731 = vld [vmem:[#allocation2 + $0x8d] sm:$0xff]
  %v732 = vld [vmem:[#allocation2 + $0x95] sm:$0xff]
  %v733 = vld [vmem:[#allocation2 + $0x9d] sm:$0xff]
  %v734 = vld [vmem:[#allocation2 + $0xa5] sm:$0xff]
  %v735 = vld [vmem:[#allocation2 + $0xad] sm:$0x3f]
  %v736 = vpack.c.bf16 %v727, %v726
  %v737 = vpack.c.bf16 %v729, %v728
  %v738 = vpack.c.bf16 %v731, %v730
  %v739 = vpack.c.bf16 %v733, %v732
  %v740 = vpack.c.bf16 %v735, %v734
  %741 = vst [vmem:[#allocation6 + $0x170] sm:$0xff] %v736
  %742 = vst [vmem:[#allocation6 + $0x1b8] sm:$0xff] %v737
  %743 = vst [vmem:[#allocation6 + $0x200] sm:$0xff] %v738
  %744 = vst [vmem:[#allocation6 + $0x248] sm:$0xff] %v739
  %745 = vst [vmem:[#allocation6 + $0x290] sm:$0x7f] %v740
  %v746 = vld [vmem:[#allocation2 + $0x66] sm:$0xff]
  %v747 = vld [vmem:[#allocation2 + $0x6e] sm:$0xff]
  %v748 = vld [vmem:[#allocation2 + $0x76] sm:$0xff]
  %v749 = vld [vmem:[#allocation2 + $0x7e] sm:$0xff]
  %v750 = vld [vmem:[#allocation2 + $0x86] sm:$0xff]
  %v751 = vld [vmem:[#allocation2 + $0x8e] sm:$0xff]
  %v752 = vld [vmem:[#allocation2 + $0x96] sm:$0xff]
  %v753 = vld [vmem:[#allocation2 + $0x9e] sm:$0xff]
  %v754 = vld [vmem:[#allocation2 + $0xa6] sm:$0xff]
  %v755 = vld [vmem:[#allocation2 + $0xae] sm:$0x3f]
  %v756 = vpack.c.bf16 %v747, %v746
  %v757 = vpack.c.bf16 %v749, %v748
  %v758 = vpack.c.bf16 %v751, %v750
  %v759 = vpack.c.bf16 %v753, %v752
  %v760 = vpack.c.bf16 %v755, %v754
  %761 = vst [vmem:[#allocation6 + $0x178] sm:$0xff] %v756
  %762 = vst [vmem:[#allocation6 + $0x1c0] sm:$0xff] %v757
  %763 = vst [vmem:[#allocation6 + $0x208] sm:$0xff] %v758
  %764 = vst [vmem:[#allocation6 + $0x250] sm:$0xff] %v759
  %765 = vst [vmem:[#allocation6 + $0x298] sm:$0x7f] %v760
  %v766 = vld [vmem:[#allocation2 + $0x6e] sm:$0xff]
  %v767 = vld [vmem:[#allocation2 + $0x76] sm:$0xff]
  %v768 = vld [vmem:[#allocation2 + $0x7e] sm:$0xff]
  %v769 = vld [vmem:[#allocation2 + $0x86] sm:$0xff]
  %v770 = vld [vmem:[#allocation2 + $0x8e] sm:$0xff]
  %v771 = vld [vmem:[#allocation2 + $0x96] sm:$0xff]
  %v772 = vld [vmem:[#allocation2 + $0x9e] sm:$0xff]
  %v773 = vld [vmem:[#allocation2 + $0xa6] sm:$0xff]
  %v774 = vld [vmem:[#allocation2 + $0xae] sm:$0xff]
  %v775 = vld [vmem:[#allocation2 + $0xb6] sm:$0x3f]
  %v776 = vpack.c.bf16 %v767, %v766
  %v777 = vpack.c.bf16 %v769, %v768
  %v778 = vpack.c.bf16 %v771, %v770
  %v779 = vpack.c.bf16 %v773, %v772
  %v780 = vpack.c.bf16 %v775, %v774
  %781 = vst [vmem:[#allocation6 + $0x180] sm:$0xff] %v776
  %782 = vst [vmem:[#allocation6 + $0x1c8] sm:$0xff] %v777
  %783 = vst [vmem:[#allocation6 + $0x210] sm:$0xff] %v778
  %784 = vst [vmem:[#allocation6 + $0x258] sm:$0xff] %v779
  %785 = vst [vmem:[#allocation6 + $0x2a0] sm:$0x7f] %v780
  %v786 = vld [vmem:[#allocation2 + $0x6f] sm:$0xff]
  %v787 = vld [vmem:[#allocation2 + $0x77] sm:$0xff]
  %v788 = vld [vmem:[#allocation2 + $0x7f] sm:$0xff]
  %v789 = vld [vmem:[#allocation2 + $0x87] sm:$0xff]
  %v790 = vld [vmem:[#allocation2 + $0x8f] sm:$0xff]
  %v791 = vld [vmem:[#allocation2 + $0x97] sm:$0xff]
  %v792 = vld [vmem:[#allocation2 + $0x9f] sm:$0xff]
  %v793 = vld [vmem:[#allocation2 + $0xa7] sm:$0xff]
  %v794 = vld [vmem:[#allocation2 + $0xaf] sm:$0xff]
  %v795 = vld [vmem:[#allocation2 + $0xb7] sm:$0x3f]
  %v796 = vpack.c.bf16 %v787, %v786
  %v797 = vpack.c.bf16 %v789, %v788
  %v798 = vpack.c.bf16 %v791, %v790
  %v799 = vpack.c.bf16 %v793, %v792
  %v800 = vpack.c.bf16 %v795, %v794
  %801 = vst [vmem:[#allocation6 + $0x188] sm:$0xff] %v796
  %802 = vst [vmem:[#allocation6 + $0x1d0] sm:$0xff] %v797
  %803 = vst [vmem:[#allocation6 + $0x218] sm:$0xff] %v798
  %804 = vst [vmem:[#allocation6 + $0x260] sm:$0xff] %v799
  %805 = vst [vmem:[#allocation6 + $0x2a8] sm:$0x7f] %v800
  %v806 = vld [vmem:[#allocation2 + $0x70] sm:$0xff]
  %v807 = vld [vmem:[#allocation2 + $0x78] sm:$0xff]
  %v808 = vld [vmem:[#allocation2 + $0x80] sm:$0xff]
  %v809 = vld [vmem:[#allocation2 + $0x88] sm:$0xff]
  %v810 = vld [vmem:[#allocation2 + $0x90] sm:$0xff]
  %v811 = vld [vmem:[#allocation2 + $0x98] sm:$0xff]
  %v812 = vld [vmem:[#allocation2 + $0xa0] sm:$0xff]
  %v813 = vld [vmem:[#allocation2 + $0xa8] sm:$0xff]
  %v814 = vld [vmem:[#allocation2 + $0xb0] sm:$0xff]
  %v815 = vld [vmem:[#allocation2 + $0xb8] sm:$0x3f]
  %v816 = vpack.c.bf16 %v807, %v806
  %v817 = vpack.c.bf16 %v809, %v808
  %v818 = vpack.c.bf16 %v811, %v810
  %v819 = vpack.c.bf16 %v813, %v812
  %v820 = vpack.c.bf16 %v815, %v814
  %821 = vst [vmem:[#allocation6 + $0x190] sm:$0xff] %v816
  %822 = vst [vmem:[#allocation6 + $0x1d8] sm:$0xff] %v817
  %823 = vst [vmem:[#allocation6 + $0x220] sm:$0xff] %v818
  %824 = vst [vmem:[#allocation6 + $0x268] sm:$0xff] %v819
  %825 = vst [vmem:[#allocation6 + $0x2b0] sm:$0x7f] %v820
  %v826 = vld [vmem:[#allocation2 + $0x78] sm:$0xff]
  %v827 = vld [vmem:[#allocation2 + $0x80] sm:$0xff]
  %v828 = vld [vmem:[#allocation2 + $0x88] sm:$0xff]
  %v829 = vld [vmem:[#allocation2 + $0x90] sm:$0xff]
  %v830 = vld [vmem:[#allocation2 + $0x98] sm:$0xff]
  %v831 = vld [vmem:[#allocation2 + $0xa0] sm:$0xff]
  %v832 = vld [vmem:[#allocation2 + $0xa8] sm:$0xff]
  %v833 = vld [vmem:[#allocation2 + $0xb0] sm:$0xff]
  %v834 = vld [vmem:[#allocation2 + $0xb8] sm:$0xff]
  %v835 = vld [vmem:[#allocation2 + $0xc0] sm:$0x3f]
  %v836 = vpack.c.bf16 %v827, %v826
  %v837 = vpack.c.bf16 %v829, %v828
  %v838 = vpack.c.bf16 %v831, %v830
  %v839 = vpack.c.bf16 %v833, %v832
  %v840 = vpack.c.bf16 %v835, %v834
  %841 = vst [vmem:[#allocation6 + $0x198] sm:$0xff] %v836
  %842 = vst [vmem:[#allocation6 + $0x1e0] sm:$0xff] %v837
  %843 = vst [vmem:[#allocation6 + $0x228] sm:$0xff] %v838
  %844 = vst [vmem:[#allocation6 + $0x270] sm:$0xff] %v839
  %845 = vst [vmem:[#allocation6 + $0x2b8] sm:$0x7f] %v840
  %v846 = vld [vmem:[#allocation2 + $0x79] sm:$0xff]
  %v847 = vld [vmem:[#allocation2 + $0x81] sm:$0xff]
  %v848 = vld [vmem:[#allocation2 + $0x89] sm:$0xff]
  %v849 = vld [vmem:[#allocation2 + $0x91] sm:$0xff]
  %v850 = vld [vmem:[#allocation2 + $0x99] sm:$0xff]
  %v851 = vld [vmem:[#allocation2 + $0xa1] sm:$0xff]
  %v852 = vld [vmem:[#allocation2 + $0xa9] sm:$0xff]
  %v853 = vld [vmem:[#allocation2 + $0xb1] sm:$0xff]
  %v854 = vld [vmem:[#allocation2 + $0xb9] sm:$0xff]
  %v855 = vld [vmem:[#allocation2 + $0xc1] sm:$0x3f]
  %v856 = vpack.c.bf16 %v847, %v846
  %v857 = vpack.c.bf16 %v849, %v848
  %v858 = vpack.c.bf16 %v851, %v850
  %v859 = vpack.c.bf16 %v853, %v852
  %v860 = vpack.c.bf16 %v855, %v854
  %861 = vst [vmem:[#allocation6 + $0x1a0] sm:$0xff] %v856
  %862 = vst [vmem:[#allocation6 + $0x1e8] sm:$0xff] %v857
  %863 = vst [vmem:[#allocation6 + $0x230] sm:$0xff] %v858
  %864 = vst [vmem:[#allocation6 + $0x278] sm:$0xff] %v859
  %865 = vst [vmem:[#allocation6 + $0x2c0] sm:$0x7f] %v860
  %v866 = vld [vmem:[#allocation2 + $0x7a] sm:$0xff]
  %v867 = vld [vmem:[#allocation2 + $0x82] sm:$0xff]
  %v868 = vld [vmem:[#allocation2 + $0x8a] sm:$0xff]
  %v869 = vld [vmem:[#allocation2 + $0x92] sm:$0xff]
  %v870 = vld [vmem:[#allocation2 + $0x9a] sm:$0xff]
  %v871 = vld [vmem:[#allocation2 + $0xa2] sm:$0xff]
  %v872 = vld [vmem:[#allocation2 + $0xaa] sm:$0xff]
  %v873 = vld [vmem:[#allocation2 + $0xb2] sm:$0xff]
  %v874 = vld [vmem:[#allocation2 + $0xba] sm:$0xff]
  %v875 = vld [vmem:[#allocation2 + $0xc2] sm:$0x3f]
  %v876 = vpack.c.bf16 %v867, %v866
  %v877 = vpack.c.bf16 %v869, %v868
  %v878 = vpack.c.bf16 %v871, %v870
  %v879 = vpack.c.bf16 %v873, %v872
  %v880 = vpack.c.bf16 %v875, %v874
  %881 = vst [vmem:[#allocation6 + $0x1a8] sm:$0xff] %v876
  %882 = vst [vmem:[#allocation6 + $0x1f0] sm:$0xff] %v877
  %883 = vst [vmem:[#allocation6 + $0x238] sm:$0xff] %v878
  %884 = vst [vmem:[#allocation6 + $0x280] sm:$0xff] %v879
  %885 = vst [vmem:[#allocation6 + $0x2c8] sm:$0x7f] %v880
  %v886 = vld [vmem:[#allocation6] sm:$0xff]
  %v887 = vld [vmem:[#allocation6 + $0x8] sm:$0xff]
  %v888 = vld [vmem:[#allocation6 + $0x10] sm:$0xff]
  %v889 = vld [vmem:[#allocation6 + $0x18] sm:$0xff]
  %v890 = vld [vmem:[#allocation6 + $0x20] sm:$0xff]
  %v891 = vld [vmem:[#allocation6 + $0x28] sm:$0xff]
  %v892 = vld [vmem:[#allocation6 + $0x30] sm:$0xff]
  %v893 = vld [vmem:[#allocation6 + $0x38] sm:$0xff]
  %v894 = vld [vmem:[#allocation6 + $0x40] sm:$0xff]
  %v895 = vld [vmem:[#allocation6 + $0x48] sm:$0xff]
  %v896 = vld [vmem:[#allocation6 + $0x50] sm:$0xff]
  %v897 = vld [vmem:[#allocation6 + $0x58] sm:$0xff]
  %v898 = vld [vmem:[#allocation6 + $0x60] sm:$0xff]
  %v899 = vld [vmem:[#allocation6 + $0x68] sm:$0xff]
  %v900 = vld [vmem:[#allocation6 + $0x70] sm:$0xff]
  %v901 = vld [vmem:[#allocation6 + $0x78] sm:$0xff]
  %v902 = vld [vmem:[#allocation6 + $0x80] sm:$0xff]
  %v903 = vld [vmem:[#allocation6 + $0x88] sm:$0xff]
  %v904 = vld [vmem:[#allocation6 + $0x90] sm:$0xff]
  %v905 = vld [vmem:[#allocation6 + $0x98] sm:$0xff]
  %v906 = vld [vmem:[#allocation6 + $0xa0] sm:$0xff]
  %v907 = vld [vmem:[#allocation6 + $0xa8] sm:$0xff]
  %v908 = vld [vmem:[#allocation6 + $0xb0] sm:$0xff]
  %v909 = vld [vmem:[#allocation6 + $0xb8] sm:$0xff]
  %v910 = vld [vmem:[#allocation6 + $0xc0] sm:$0xff]
  %v911 = vld [vmem:[#allocation6 + $0xc8] sm:$0xff]
  %v912 = vld [vmem:[#allocation6 + $0xd0] sm:$0xff]
  %v913 = vld [vmem:[#allocation6 + $0xd8] sm:$0xff]
  %v914 = vld [vmem:[#allocation6 + $0xe0] sm:$0xff]
  %v915 = vld [vmem:[#allocation6 + $0xe8] sm:$0xff]
  %v916 = vld [vmem:[#allocation6 + $0xf0] sm:$0xff]
  %v917 = vld [vmem:[#allocation6 + $0xf8] sm:$0xff]
  %v918 = vld [vmem:[#allocation6 + $0x100] sm:$0xff]
  %v919 = vld [vmem:[#allocation6 + $0x108] sm:$0xff]
  %v920 = vld [vmem:[#allocation6 + $0x110] sm:$0xff]
  %v921 = vld [vmem:[#allocation6 + $0x118] sm:$0xff]
  %v922 = vld [vmem:[#allocation6 + $0x120] sm:$0xff]
  %v923 = vld [vmem:[#allocation6 + $0x128] sm:$0xff]
  %v924 = vld [vmem:[#allocation6 + $0x130] sm:$0xff]
  %v925 = vld [vmem:[#allocation6 + $0x138] sm:$0xff]
  %v926 = vld [vmem:[#allocation6 + $0x140] sm:$0xff]
  %v927 = vld [vmem:[#allocation6 + $0x148] sm:$0xff]
  %v928 = vld [vmem:[#allocation6 + $0x150] sm:$0xff]
  %v929 = vld [vmem:[#allocation6 + $0x158] sm:$0xff]
  %v930 = vld [vmem:[#allocation6 + $0x160] sm:$0xff]
  %v931 = vld [vmem:[#allocation6 + $0x168] sm:$0xff]
  %v932 = vld [vmem:[#allocation6 + $0x170] sm:$0xff]
  %v933 = vld [vmem:[#allocation6 + $0x178] sm:$0xff]
  %v934 = vld [vmem:[#allocation6 + $0x180] sm:$0xff]
  %v935 = vld [vmem:[#allocation6 + $0x188] sm:$0xff]
  %v936 = vld [vmem:[#allocation6 + $0x190] sm:$0xff]
  %v937 = vld [vmem:[#allocation6 + $0x198] sm:$0xff]
  %v938 = vld [vmem:[#allocation6 + $0x1a0] sm:$0xff]
  %v939 = vld [vmem:[#allocation6 + $0x1a8] sm:$0xff]
  %v940 = vld [vmem:[#allocation6 + $0x1b0] sm:$0xff]
  %v941 = vld [vmem:[#allocation6 + $0x1b8] sm:$0xff]
  %v942 = vld [vmem:[#allocation6 + $0x1c0] sm:$0xff]
  %v943 = vld [vmem:[#allocation6 + $0x1c8] sm:$0xff]
  %v944 = vld [vmem:[#allocation6 + $0x1d0] sm:$0xff]
  %v945 = vld [vmem:[#allocation6 + $0x1d8] sm:$0xff]
  %v946 = vld [vmem:[#allocation6 + $0x1e0] sm:$0xff]
  %v947 = vld [vmem:[#allocation6 + $0x1e8] sm:$0xff]
  %v948 = vld [vmem:[#allocation6 + $0x1f0] sm:$0xff]
  %v949 = vld [vmem:[#allocation6 + $0x1f8] sm:$0xff]
  %v950 = vld [vmem:[#allocation6 + $0x200] sm:$0xff]
  %v951 = vld [vmem:[#allocation6 + $0x208] sm:$0xff]
  %v952 = vld [vmem:[#allocation6 + $0x210] sm:$0xff]
  %v953 = vld [vmem:[#allocation6 + $0x218] sm:$0xff]
  %v954 = vld [vmem:[#allocation6 + $0x220] sm:$0xff]
  %v955 = vld [vmem:[#allocation6 + $0x228] sm:$0xff]
  %v956 = vld [vmem:[#allocation6 + $0x230] sm:$0xff]
  %v957 = vld [vmem:[#allocation6 + $0x238] sm:$0xff]
  %v958 = vld [vmem:[#allocation6 + $0x240] sm:$0xff]
  %v959 = vld [vmem:[#allocation6 + $0x248] sm:$0xff]
  %v960 = vld [vmem:[#allocation6 + $0x250] sm:$0xff]
  %v961 = vld [vmem:[#allocation6 + $0x258] sm:$0xff]
  %v962 = vld [vmem:[#allocation6 + $0x260] sm:$0xff]
  %v963 = vld [vmem:[#allocation6 + $0x268] sm:$0xff]
  %v964 = vld [vmem:[#allocation6 + $0x270] sm:$0xff]
  %v965 = vld [vmem:[#allocation6 + $0x278] sm:$0xff]
  %v966 = vld [vmem:[#allocation6 + $0x280] sm:$0xff]
  %v967 = vld [vmem:[#allocation6 + $0x288] sm:$0xff]
  %v968 = vld [vmem:[#allocation6 + $0x290] sm:$0xff]
  %v969 = vld [vmem:[#allocation6 + $0x298] sm:$0xff]
  %v970 = vld [vmem:[#allocation6 + $0x2a0] sm:$0xff]
  %v971 = vld [vmem:[#allocation6 + $0x2a8] sm:$0xff]
  %v972 = vld [vmem:[#allocation6 + $0x2b0] sm:$0xff]
  %v973 = vld [vmem:[#allocation6 + $0x2b8] sm:$0xff]
  %v974 = vld [vmem:[#allocation6 + $0x2c0] sm:$0xff]
  %v975 = vld [vmem:[#allocation6 + $0x2c8] sm:$0xff]
  %v976 = vld [vmem:[%s2] sm:$0xf]
  %v977 = vld [vmem:[%s2 + $0x4] sm:$0xf]
  %v978 = vld [vmem:[%s2 + $0x8] sm:$0xf]
  %v979 = vld [vmem:[%s2 + $0xc] sm:$0xf]
  %v980 = vld [vmem:[%s2 + $0x10] sm:$0xf]
  %v981 = vld [vmem:[%s2 + $0x14] sm:$0xf]
  %v982 = vld [vmem:[%s2 + $0x18] sm:$0xf]
  %v983 = vld [vmem:[%s2 + $0x1c] sm:$0xf]
  %v984 = vld [vmem:[%s2 + $0x20] sm:$0xf]
  %v985 = vld [vmem:[%s2 + $0x24] sm:$0xf]
  %v986 = vld [vmem:[%s2 + $0x28] sm:$0xf]
  %v987 = vld [vmem:[%s2 + $0x2c] sm:$0xf]
  %v988 = vld [vmem:[%s2 + $0x30] sm:$0xf]
  %v989 = vld [vmem:[%s2 + $0x34] sm:$0xf]
  %v990 = vld [vmem:[%s2 + $0x38] sm:$0xf]
  %v991 = vld [vmem:[%s2 + $0x3c] sm:$0xf]
  %v992 = vld [vmem:[%s2 + $0x40] sm:$0xf]
  %v993 = vld [vmem:[%s2 + $0x44] sm:$0xf]
  %v994 = vld [vmem:[%s2 + $0x48] sm:$0xf]
  %v995 = vld [vmem:[%s2 + $0x4c] sm:$0xf]
  %v996 = vld [vmem:[%s2 + $0x50] sm:$0xf]
  %v997 = vld [vmem:[%s2 + $0x54] sm:$0xf]
  %v998 = vld [vmem:[%s2 + $0x58] sm:$0xf]
  %v999 = vld [vmem:[%s2 + $0x5c] sm:$0xf]
  %v1000 = vld [vmem:[%s2 + $0x60] sm:$0xf]
  %v1001 = vld [vmem:[%s2 + $0x64] sm:$0xf]
  %v1002 = vld [vmem:[%s2 + $0x68] sm:$0xf]
  %v1003 = vld [vmem:[%s2 + $0x6c] sm:$0xf]
  %v1004 = vld [vmem:[%s2 + $0x70] sm:$0xf]
  %v1005 = vld [vmem:[%s2 + $0x74] sm:$0xf]
  %v1006 = vld [vmem:[%s2 + $0x78] sm:$0xf]
  %v1007 = vld [vmem:[%s2 + $0x7c] sm:$0xf]
  %v1008 = vld [vmem:[%s2 + $0x80] sm:$0xf]
  %v1009 = vld [vmem:[%s2 + $0x84] sm:$0xf]
  %v1010 = vld [vmem:[%s2 + $0x88] sm:$0xf]
  %v1011 = vld [vmem:[%s2 + $0x8c] sm:$0xf]
  %v1012 = vld [vmem:[%s2 + $0x90] sm:$0xf]
  %v1013 = vld [vmem:[%s2 + $0x94] sm:$0xf]
  %v1014 = vld [vmem:[%s2 + $0x98] sm:$0xf]
  %v1015 = vld [vmem:[%s2 + $0x9c] sm:$0xf]
  %v1016 = vld [vmem:[%s2 + $0xa0] sm:$0xf]
  %v1017 = vld [vmem:[%s2 + $0xa4] sm:$0xf]
  %v1018 = vld [vmem:[%s2 + $0xa8] sm:$0xf]
  %v1019 = vld [vmem:[%s2 + $0xac] sm:$0xf]
  %v1020 = vld [vmem:[%s2 + $0xb0] sm:$0xf]
  %v1021 = vld [vmem:[%s2 + $0xb4] sm:$0xf]
  %v1022 = vld [vmem:[%s2 + $0xb8] sm:$0xf]
  %v1023 = vld [vmem:[%s2 + $0xbc] sm:$0xf]
  %v1024 = vld [vmem:[%s2 + $0xc0] sm:$0xf]
  %v1025 = vld [vmem:[%s2 + $0xc4] sm:$0xf]
  %v1026 = vld [vmem:[%s2 + $0xc8] sm:$0xf]
  %v1027 = vld [vmem:[%s2 + $0xcc] sm:$0xf]
  %v1028 = vld [vmem:[%s2 + $0xd0] sm:$0xf]
  %v1029 = vld [vmem:[%s2 + $0xd4] sm:$0xf]
  %v1030 = vld [vmem:[%s2 + $0xd8] sm:$0xf]
  %v1031 = vld [vmem:[%s2 + $0xdc] sm:$0xf]
  %v1032 = vld [vmem:[%s2 + $0xe0] sm:$0xf]
  %v1033 = vld [vmem:[%s2 + $0xe4] sm:$0xf]
  %v1034 = vld [vmem:[%s2 + $0xe8] sm:$0xf]
  %v1035 = vld [vmem:[%s2 + $0xec] sm:$0xf]
  %v1036 = vld [vmem:[%s2 + $0xf0] sm:$0xf]
  %v1037 = vld [vmem:[%s2 + $0xf4] sm:$0xf]
  %v1038 = vld [vmem:[%s2 + $0xf8] sm:$0xf]
  %v1039 = vld [vmem:[%s2 + $0xfc] sm:$0xf]
  %v1040 = vld [vmem:[%s2 + $0x100] sm:$0xf]
  %v1041 = vld [vmem:[%s2 + $0x104] sm:$0xf]
  %v1042 = vld [vmem:[%s2 + $0x108] sm:$0xf]
  %v1043 = vld [vmem:[%s2 + $0x10c] sm:$0xf]
  %v1044 = vld [vmem:[%s2 + $0x110] sm:$0xf]
  %v1045 = vld [vmem:[%s2 + $0x114] sm:$0xf]
  %v1046 = vld [vmem:[%s2 + $0x118] sm:$0xf]
  %v1047 = vld [vmem:[%s2 + $0x11c] sm:$0xf]
  %v1048 = vld [vmem:[%s2 + $0x120] sm:$0xf]
  %v1049 = vld [vmem:[%s2 + $0x124] sm:$0xf]
  %v1050 = vld [vmem:[%s2 + $0x128] sm:$0xf]
  %v1051 = vld [vmem:[%s2 + $0x12c] sm:$0xf]
  %v1052 = vld [vmem:[%s2 + $0x130] sm:$0xf]
  %v1053 = vld [vmem:[%s2 + $0x134] sm:$0xf]
  %v1054 = vld [vmem:[%s2 + $0x138] sm:$0xf]
  %v1055 = vld [vmem:[%s2 + $0x13c] sm:$0xf]
  %v1056 = vld [vmem:[%s2 + $0x140] sm:$0xf]
  %v1057 = vld [vmem:[%s2 + $0x144] sm:$0xf]
  %v1058 = vld [vmem:[%s2 + $0x148] sm:$0xf]
  %v1059 = vld [vmem:[%s2 + $0x14c] sm:$0xf]
  %v1060 = vld [vmem:[%s2 + $0x150] sm:$0xf]
  %v1061 = vld [vmem:[%s2 + $0x154] sm:$0xf]
  %v1062 = vld [vmem:[%s2 + $0x158] sm:$0xf]
  %v1063 = vld [vmem:[%s2 + $0x15c] sm:$0xf]
  %v1064 = vld [vmem:[%s2 + $0x160] sm:$0xf]
  %v1065 = vld [vmem:[%s2 + $0x164] sm:$0xf]
  %v1066 = vld [vmem:[%s2 + $0x168] sm:$0xf]
  %v1067 = vld [vmem:[%s2 + $0x16c] sm:$0xf]
  %v1068 = vld [vmem:[%s2 + $0x170] sm:$0xf]
  %v1069 = vld [vmem:[%s2 + $0x174] sm:$0xf]
  %v1070 = vld [vmem:[%s2 + $0x178] sm:$0xf]
  %v1071 = vld [vmem:[%s2 + $0x17c] sm:$0xf]
  %v1072 = vld [vmem:[%s2 + $0x180] sm:$0xf]
  %v1073 = vld [vmem:[%s2 + $0x184] sm:$0xf]
  %v1074 = vld [vmem:[%s2 + $0x188] sm:$0xf]
  %v1075 = vld [vmem:[%s2 + $0x18c] sm:$0xf]
  %v1076 = vld [vmem:[%s2 + $0x190] sm:$0xf]
  %v1077 = vld [vmem:[%s2 + $0x194] sm:$0xf]
  %v1078 = vld [vmem:[%s2 + $0x198] sm:$0xf]
  %v1079 = vld [vmem:[%s2 + $0x19c] sm:$0xf]
  %v1080 = vld [vmem:[%s2 + $0x1a0] sm:$0xf]
  %v1081 = vld [vmem:[%s2 + $0x1a4] sm:$0xf]
  %v1082 = vld [vmem:[%s2 + $0x1a8] sm:$0xf]
  %v1083 = vld [vmem:[%s2 + $0x1ac] sm:$0xf]
  %v1084 = vld [vmem:[%s2 + $0x1b0] sm:$0xf]
  %v1085 = vld [vmem:[%s2 + $0x1b4] sm:$0xf]
  %v1086 = vld [vmem:[%s2 + $0x1b8] sm:$0xf]
  %v1087 = vld [vmem:[%s2 + $0x1bc] sm:$0xf]
  %v1088 = vld [vmem:[%s2 + $0x1c0] sm:$0xf]
  %v1089 = vld [vmem:[%s2 + $0x1c4] sm:$0xf]
  %v1090 = vld [vmem:[%s2 + $0x1c8] sm:$0xf]
  %v1091 = vld [vmem:[%s2 + $0x1cc] sm:$0xf]
  %v1092 = vld [vmem:[%s2 + $0x1d0] sm:$0xf]
  %v1093 = vld [vmem:[%s2 + $0x1d4] sm:$0xf]
  %v1094 = vld [vmem:[%s2 + $0x1d8] sm:$0xf]
  %v1095 = vld [vmem:[%s2 + $0x1dc] sm:$0xf]
  %v1096 = vld [vmem:[%s2 + $0x1e0] sm:$0xf]
  %v1097 = vld [vmem:[%s2 + $0x1e4] sm:$0xf]
  %v1098 = vld [vmem:[%s2 + $0x1e8] sm:$0xf]
  %v1099 = vld [vmem:[%s2 + $0x1ec] sm:$0xf]
  %v1100 = vld [vmem:[%s2 + $0x1f0] sm:$0xf]
  %v1101 = vld [vmem:[%s2 + $0x1f4] sm:$0xf]
  %v1102 = vld [vmem:[%s2 + $0x1f8] sm:$0xf]
  %v1103 = vld [vmem:[%s2 + $0x1fc] sm:$0xf]
  %v1104 = vld [vmem:[%s2 + $0x200] sm:$0xf]
  %v1105 = vld [vmem:[%s2 + $0x204] sm:$0xf]
  %v1106 = vld [vmem:[%s2 + $0x208] sm:$0xf]
  %v1107 = vld [vmem:[%s2 + $0x20c] sm:$0xf]
  %v1108 = vld [vmem:[%s2 + $0x210] sm:$0xf]
  %v1109 = vld [vmem:[%s2 + $0x214] sm:$0xf]
  %v1110 = vld [vmem:[%s2 + $0x218] sm:$0xf]
  %v1111 = vld [vmem:[%s2 + $0x21c] sm:$0xf]
  %v1112 = vld [vmem:[%s2 + $0x220] sm:$0xf]
  %v1113 = vld [vmem:[%s2 + $0x224] sm:$0xf]
  %v1114 = vld [vmem:[%s2 + $0x228] sm:$0xf]
  %v1115 = vld [vmem:[%s2 + $0x22c] sm:$0xf]
  %v1116 = vld [vmem:[%s2 + $0x230] sm:$0xf]
  %v1117 = vld [vmem:[%s2 + $0x234] sm:$0xf]
  %v1118 = vld [vmem:[%s2 + $0x238] sm:$0xf]
  %v1119 = vld [vmem:[%s2 + $0x23c] sm:$0xf]
  %v1264 = vunpack.c.l.b16 %v976
  %v1265 = vunpack.c.l.b16 %v977
  %v1266 = vunpack.c.l.b16 %v978
  %v1267 = vunpack.c.l.b16 %v979
  %v1268 = vunpack.c.l.b16 %v980
  %v1269 = vunpack.c.l.b16 %v981
  %v1270 = vunpack.c.l.b16 %v982
  %v1271 = vunpack.c.l.b16 %v983
  %v1272 = vunpack.c.l.b16 %v984
  %v1273 = vunpack.c.l.b16 %v985
  %v1274 = vunpack.c.l.b16 %v986
  %v1275 = vunpack.c.l.b16 %v987
  %v1276 = vunpack.c.l.b16 %v988
  %v1277 = vunpack.c.l.b16 %v989
  %v1278 = vunpack.c.l.b16 %v990
  %v1279 = vunpack.c.l.b16 %v991
  %v1280 = vunpack.c.l.b16 %v992
  %v1281 = vunpack.c.l.b16 %v993
  %v1282 = vunpack.c.l.b16 %v994
  %v1283 = vunpack.c.l.b16 %v995
  %v1284 = vunpack.c.l.b16 %v996
  %v1285 = vunpack.c.l.b16 %v997
  %v1286 = vunpack.c.l.b16 %v998
  %v1287 = vunpack.c.l.b16 %v999
  %v1288 = vunpack.c.l.b16 %v1000
  %v1289 = vunpack.c.l.b16 %v1001
  %v1290 = vunpack.c.l.b16 %v1002
  %v1291 = vunpack.c.l.b16 %v1003
  %v1292 = vunpack.c.l.b16 %v1004
  %v1293 = vunpack.c.l.b16 %v1005
  %v1294 = vunpack.c.l.b16 %v1006
  %v1295 = vunpack.c.l.b16 %v1007
  %v1296 = vunpack.c.l.b16 %v1008
  %v1297 = vunpack.c.l.b16 %v1009
  %v1298 = vunpack.c.l.b16 %v1010
  %v1299 = vunpack.c.l.b16 %v1011
  %v1300 = vunpack.c.l.b16 %v1012
  %v1301 = vunpack.c.l.b16 %v1013
  %v1302 = vunpack.c.l.b16 %v1014
  %v1303 = vunpack.c.l.b16 %v1015
  %v1304 = vunpack.c.l.b16 %v1016
  %v1305 = vunpack.c.l.b16 %v1017
  %v1306 = vunpack.c.l.b16 %v1018
  %v1307 = vunpack.c.l.b16 %v1019
  %v1308 = vunpack.c.l.b16 %v1020
  %v1309 = vunpack.c.l.b16 %v1021
  %v1310 = vunpack.c.l.b16 %v1022
  %v1311 = vunpack.c.l.b16 %v1023
  %v1312 = vunpack.c.l.b16 %v1024
  %v1313 = vunpack.c.l.b16 %v1025
  %v1314 = vunpack.c.l.b16 %v1026
  %v1315 = vunpack.c.l.b16 %v1027
  %v1316 = vunpack.c.l.b16 %v1028
  %v1317 = vunpack.c.l.b16 %v1029
  %v1318 = vunpack.c.l.b16 %v1030
  %v1319 = vunpack.c.l.b16 %v1031
  %v1320 = vunpack.c.l.b16 %v1032
  %v1321 = vunpack.c.l.b16 %v1033
  %v1322 = vunpack.c.l.b16 %v1034
  %v1323 = vunpack.c.l.b16 %v1035
  %v1324 = vunpack.c.l.b16 %v1036
  %v1325 = vunpack.c.l.b16 %v1037
  %v1326 = vunpack.c.l.b16 %v1038
  %v1327 = vunpack.c.l.b16 %v1039
  %v1328 = vunpack.c.l.b16 %v1040
  %v1329 = vunpack.c.l.b16 %v1041
  %v1330 = vunpack.c.l.b16 %v1042
  %v1331 = vunpack.c.l.b16 %v1043
  %v1332 = vunpack.c.l.b16 %v1044
  %v1333 = vunpack.c.l.b16 %v1045
  %v1334 = vunpack.c.l.b16 %v1046
  %v1335 = vunpack.c.l.b16 %v1047
  %v1336 = vunpack.c.l.b16 %v1048
  %v1337 = vunpack.c.l.b16 %v1049
  %v1338 = vunpack.c.l.b16 %v1050
  %v1339 = vunpack.c.l.b16 %v1051
  %v1340 = vunpack.c.l.b16 %v1052
  %v1341 = vunpack.c.l.b16 %v1053
  %v1342 = vunpack.c.l.b16 %v1054
  %v1343 = vunpack.c.l.b16 %v1055
  %v1344 = vunpack.c.l.b16 %v1056
  %v1345 = vunpack.c.l.b16 %v1057
  %v1346 = vunpack.c.l.b16 %v1058
  %v1347 = vunpack.c.l.b16 %v1059
  %v1348 = vunpack.c.l.b16 %v1060
  %v1349 = vunpack.c.l.b16 %v1061
  %v1350 = vunpack.c.l.b16 %v1062
  %v1351 = vunpack.c.l.b16 %v1063
  %v1352 = vunpack.c.l.b16 %v1064
  %v1353 = vunpack.c.l.b16 %v1065
  %v1354 = vunpack.c.l.b16 %v1066
  %v1355 = vunpack.c.l.b16 %v1067
  %v1356 = vunpack.c.l.b16 %v1068
  %v1357 = vunpack.c.l.b16 %v1069
  %v1358 = vunpack.c.l.b16 %v1070
  %v1359 = vunpack.c.l.b16 %v1071
  %v1360 = vunpack.c.l.b16 %v1072
  %v1361 = vunpack.c.l.b16 %v1073
  %v1362 = vunpack.c.l.b16 %v1074
  %v1363 = vunpack.c.l.b16 %v1075
  %v1364 = vunpack.c.l.b16 %v1076
  %v1365 = vunpack.c.l.b16 %v1077
  %v1366 = vunpack.c.l.b16 %v1078
  %v1367 = vunpack.c.l.b16 %v1079
  %v1368 = vunpack.c.l.b16 %v1080
  %v1369 = vunpack.c.l.b16 %v1081
  %v1370 = vunpack.c.l.b16 %v1082
  %v1371 = vunpack.c.l.b16 %v1083
  %v1372 = vunpack.c.l.b16 %v1084
  %v1373 = vunpack.c.l.b16 %v1085
  %v1374 = vunpack.c.l.b16 %v1086
  %v1375 = vunpack.c.l.b16 %v1087
  %v1376 = vunpack.c.l.b16 %v1088
  %v1377 = vunpack.c.l.b16 %v1089
  %v1378 = vunpack.c.l.b16 %v1090
  %v1379 = vunpack.c.l.b16 %v1091
  %v1380 = vunpack.c.l.b16 %v1092
  %v1381 = vunpack.c.l.b16 %v1093
  %v1382 = vunpack.c.l.b16 %v1094
  %v1383 = vunpack.c.l.b16 %v1095
  %v1384 = vunpack.c.l.b16 %v1096
  %v1385 = vunpack.c.l.b16 %v1097
  %v1386 = vunpack.c.l.b16 %v1098
  %v1387 = vunpack.c.l.b16 %v1099
  %v1388 = vunpack.c.l.b16 %v1100
  %v1389 = vunpack.c.l.b16 %v1101
  %v1390 = vunpack.c.l.b16 %v1102
  %v1391 = vunpack.c.l.b16 %v1103
  %v1392 = vunpack.c.l.b16 %v1104
  %v1393 = vunpack.c.l.b16 %v1105
  %v1394 = vunpack.c.l.b16 %v1106
  %v1395 = vunpack.c.l.b16 %v1107
  %v1396 = vunpack.c.l.b16 %v1108
  %v1397 = vunpack.c.l.b16 %v1109
  %v1398 = vunpack.c.l.b16 %v1110
  %v1399 = vunpack.c.l.b16 %v1111
  %v1400 = vunpack.c.l.b16 %v1112
  %v1401 = vunpack.c.l.b16 %v1113
  %v1402 = vunpack.c.l.b16 %v1114
  %v1403 = vunpack.c.l.b16 %v1115
  %v1404 = vunpack.c.l.b16 %v1116
  %v1405 = vunpack.c.l.b16 %v1117
  %v1406 = vunpack.c.l.b16 %v1118
  %v1407 = vunpack.c.l.b16 %v1119
  %v1408 = vpack.c.b16 %v1265, %v1264
  %v1409 = vpack.c.b16 %v1267, %v1266
  %v1410 = vpack.c.b16 %v1269, %v1268
  %v1411 = vpack.c.b16 %v1271, %v1270
  %v1412 = vpack.c.b16 %v1273, %v1272
  %v1413 = vpack.c.b16 %v1275, %v1274
  %v1414 = vpack.c.b16 %v1277, %v1276
  %v1415 = vpack.c.b16 %v1279, %v1278
  %v1416 = vpack.c.b16 %v1281, %v1280
  %v1417 = vpack.c.b16 %v1283, %v1282
  %v1418 = vpack.c.b16 %v1285, %v1284
  %v1419 = vpack.c.b16 %v1287, %v1286
  %v1420 = vpack.c.b16 %v1289, %v1288
  %v1421 = vpack.c.b16 %v1291, %v1290
  %v1422 = vpack.c.b16 %v1293, %v1292
  %v1423 = vpack.c.b16 %v1295, %v1294
  %v1424 = vpack.c.b16 %v1297, %v1296
  %v1425 = vpack.c.b16 %v1299, %v1298
  %v1426 = vpack.c.b16 %v1301, %v1300
  %v1427 = vpack.c.b16 %v1303, %v1302
  %v1428 = vpack.c.b16 %v1305, %v1304
  %v1429 = vpack.c.b16 %v1307, %v1306
  %v1430 = vpack.c.b16 %v1309, %v1308
  %v1431 = vpack.c.b16 %v1311, %v1310
  %v1432 = vpack.c.b16 %v1313, %v1312
  %v1433 = vpack.c.b16 %v1315, %v1314
  %v1434 = vpack.c.b16 %v1317, %v1316
  %v1435 = vpack.c.b16 %v1319, %v1318
  %v1436 = vpack.c.b16 %v1321, %v1320
  %v1437 = vpack.c.b16 %v1323, %v1322
  %v1438 = vpack.c.b16 %v1325, %v1324
  %v1439 = vpack.c.b16 %v1327, %v1326
  %v1440 = vpack.c.b16 %v1329, %v1328
  %v1441 = vpack.c.b16 %v1331, %v1330
  %v1442 = vpack.c.b16 %v1333, %v1332
  %v1443 = vpack.c.b16 %v1335, %v1334
  %v1444 = vpack.c.b16 %v1337, %v1336
  %v1445 = vpack.c.b16 %v1339, %v1338
  %v1446 = vpack.c.b16 %v1341, %v1340
  %v1447 = vpack.c.b16 %v1343, %v1342
  %v1448 = vpack.c.b16 %v1345, %v1344
  %v1449 = vpack.c.b16 %v1347, %v1346
  %v1450 = vpack.c.b16 %v1349, %v1348
  %v1451 = vpack.c.b16 %v1351, %v1350
  %v1452 = vpack.c.b16 %v1353, %v1352
  %v1453 = vpack.c.b16 %v1355, %v1354
  %v1454 = vpack.c.b16 %v1357, %v1356
  %v1455 = vpack.c.b16 %v1359, %v1358
  %v1456 = vpack.c.b16 %v1361, %v1360
  %v1457 = vpack.c.b16 %v1363, %v1362
  %v1458 = vpack.c.b16 %v1365, %v1364
  %v1459 = vpack.c.b16 %v1367, %v1366
  %v1460 = vpack.c.b16 %v1369, %v1368
  %v1461 = vpack.c.b16 %v1371, %v1370
  %v1462 = vpack.c.b16 %v1373, %v1372
  %v1463 = vpack.c.b16 %v1375, %v1374
  %v1464 = vpack.c.b16 %v1377, %v1376
  %v1465 = vpack.c.b16 %v1379, %v1378
  %v1466 = vpack.c.b16 %v1381, %v1380
  %v1467 = vpack.c.b16 %v1383, %v1382
  %v1468 = vpack.c.b16 %v1385, %v1384
  %v1469 = vpack.c.b16 %v1387, %v1386
  %v1470 = vpack.c.b16 %v1389, %v1388
  %v1471 = vpack.c.b16 %v1391, %v1390
  %v1472 = vpack.c.b16 %v1393, %v1392
  %v1473 = vpack.c.b16 %v1395, %v1394
  %v1474 = vpack.c.b16 %v1397, %v1396
  %v1475 = vpack.c.b16 %v1399, %v1398
  %v1476 = vpack.c.b16 %v1401, %v1400
  %v1477 = vpack.c.b16 %v1403, %v1402
  %v1478 = vpack.c.b16 %v1405, %v1404
  %v1479 = vpack.c.b16 %v1407, %v1406
  %1552 = vmatprep.subr.bf16.mxu0 0
  %1553 = vmatpush1.bf16.msra.mxu0 %v1408
  %1554 = vmatprep.subr.bf16.mxu0 0
  %1555 = vmatpush1.bf16.msra.mxu0 %v1409
  %1556 = vmatprep.subr.bf16.mxu0 0
  %1557 = vmatpush1.bf16.msra.mxu0 %v1410
  %1558 = vmatprep.subr.bf16.mxu0 0
  %1559 = vmatpush1.bf16.msra.mxu0 %v1411
  %1560 = vmatprep.subr.bf16.mxu0 0
  %1561 = vmatpush1.bf16.msra.mxu0 %v1412
  %1562 = vmatprep.subr.bf16.mxu0 0
  %1563 = vmatpush1.bf16.msra.mxu0 %v1413
  %1564 = vmatprep.subr.bf16.mxu0 0
  %1565 = vmatpush1.bf16.msra.mxu0 %v1414
  %1566 = vmatprep.subr.bf16.mxu0 0
  %1567 = vmatpush1.bf16.msra.mxu0 %v1415
  %1568 = vmatprep.subr.bf16.mxu0 0
  %1569 = vmatpush1.bf16.msra.mxu0 %v1416
  %1570 = vmatprep.subr.bf16.mxu0 0
  %1571 = vmatpush1.bf16.msra.mxu0 %v1417
  %1572 = vmatprep.subr.bf16.mxu0 0
  %1573 = vmatpush1.bf16.msra.mxu0 %v1418
  %1574 = vmatprep.subr.bf16.mxu0 0
  %1575 = vmatpush1.bf16.msra.mxu0 %v1419
  %1576 = vmatprep.subr.bf16.mxu0 0
  %1577 = vmatpush1.bf16.msra.mxu0 %v1420
  %1578 = vmatprep.subr.bf16.mxu0 0
  %1579 = vmatpush1.bf16.msra.mxu0 %v1421
  %1580 = vmatprep.subr.bf16.mxu0 0
  %1581 = vmatpush1.bf16.msra.mxu0 %v1422
  %1582 = vmatprep.subr.bf16.mxu0 0
  %1583 = vmatpush1.bf16.msra.mxu0 %v1423
  %1584 = vmatprep.mubr.bf16.mxu0 %v887
  %1585 = vmatmul.mubr.bf16.gmra.mrb[0].mxu0 %v886
  %v1586 = vpop.f32.mrb[0].mxu0
  %v1587 = vadd.f32 0.0, %v1586
  %v1588 = vpop.f32.mrb[0].mxu0
  %v1589 = vpop.f32.mrb[0].mxu0
  %v1590 = vadd.f32 0.0, %v1589
  %v1591 = vpop.f32.mrb[0].mxu0
  %1592 = vmatprep.mubr.bf16.mxu0 %v896
  %1593 = vmatmul.mubr.bf16.gmra.mrb[0].mxu0 %v895
  %v1594 = vpop.f32.mrb[0].mxu0
  %v1595 = vadd.f32 0.0, %v1594
  %v1596 = vpop.f32.mrb[0].mxu0
  %v1597 = vpop.f32.mrb[0].mxu0
  %v1598 = vadd.f32 0.0, %v1597
  %v1599 = vpop.f32.mrb[0].mxu0
  %1600 = vmatprep.mubr.bf16.mxu0 %v905
  %1601 = vmatmul.mubr.bf16.gmra.mrb[0].mxu0 %v904
  %v1602 = vpop.f32.mrb[0].mxu0
  %v1603 = vadd.f32 0.0, %v1602
  %v1604 = vpop.f32.mrb[0].mxu0
  %v1605 = vpop.f32.mrb[0].mxu0
  %v1606 = vadd.f32 0.0, %v1605
  %v1607 = vpop.f32.mrb[0].mxu0
  %1608 = vmatprep.mubr.bf16.mxu0 %v914
  %1609 = vmatmul.mubr.bf16.gmra.mrb[0].mxu0 %v913
  %v1610 = vpop.f32.mrb[0].mxu0
  %v1611 = vadd.f32 0.0, %v1610
  %v1612 = vpop.f32.mrb[0].mxu0
  %v1613 = vpop.f32.mrb[0].mxu0
  %v1614 = vadd.f32 0.0, %v1613
  %v1615 = vpop.f32.mrb[0].mxu0
  %1616 = vmatprep.mubr.bf16.mxu0 %v923
  %1617 = vmatmul.mubr.bf16.gmra.mrb[0].mxu0 %v922
  %v1618 = vpop.f32.mrb[0].mxu0
  %v1619 = vadd.f32 0.0, %v1618
  %v1620 = vpop.f32.mrb[0].mxu0
  %v1621 = vpop.f32.mrb[0].mxu0
  %v1622 = vadd.f32 0.0, %v1621
  %v1623 = vpop.f32.mrb[0].mxu0
  %1624 = vmatprep.mubr.bf16.mxu0 %v932
  %1625 = vmatmul.mubr.bf16.gmra.mrb[0].mxu0 %v931
  %v1626 = vpop.f32.mrb[0].mxu0
  %v1627 = vadd.f32 0.0, %v1626
  %v1628 = vpop.f32.mrb[0].mxu0
  %v1629 = vpop.f32.mrb[0].mxu0
  %v1630 = vadd.f32 0.0, %v1629
  %v1631 = vpop.f32.mrb[0].mxu0
  %1632 = vmatprep.mubr.bf16.mxu0 %v941
  %1633 = vmatmul.mubr.bf16.gmra.mrb[0].mxu0 %v940
  %v1634 = vpop.f32.mrb[0].mxu0
  %v1635 = vadd.f32 0.0, %v1634
  %v1636 = vpop.f32.mrb[0].mxu0
  %v1637 = vpop.f32.mrb[0].mxu0
  %v1638 = vadd.f32 0.0, %v1637
  %v1639 = vpop.f32.mrb[0].mxu0
  %1640 = vmatprep.mubr.bf16.mxu0 %v950
  %1641 = vmatmul.mubr.bf16.gmra.mrb[0].mxu0 %v949
  %v1642 = vpop.f32.mrb[0].mxu0
  %v1643 = vadd.f32 0.0, %v1642
  %v1644 = vpop.f32.mrb[0].mxu0
  %v1645 = vpop.f32.mrb[0].mxu0
  %v1646 = vadd.f32 0.0, %v1645
  %v1647 = vpop.f32.mrb[0].mxu0
  %1648 = vmatprep.mubr.bf16.mxu0 %v959
  %1649 = vmatmul.mubr.bf16.gmra.mrb[0].mxu0 %v958
  %v1650 = vpop.f32.mrb[0].mxu0
  %v1651 = vadd.f32 0.0, %v1650
  %v1652 = vpop.f32.mrb[0].mxu0
  %v1653 = vpop.f32.mrb[0].mxu0
  %v1654 = vadd.f32 0.0, %v1653
  %v1655 = vpop.f32.mrb[0].mxu0
  %1656 = vmatprep.mubr.bf16.mxu0 %v968
  %1657 = vmatmul.mubr.bf16.gmra.mrb[0].mxu0 %v967
  %v1658 = vpop.f32.mrb[0].mxu0
  %v1659 = vadd.f32 0.0, %v1658
  %v1660 = vpop.f32.mrb[0].mxu0
  %v1661 = vpop.f32.mrb[0].mxu0
  %v1662 = vadd.f32 0.0, %v1661
  %v1663 = vpop.f32.mrb[0].mxu0
  %1664 = vdwg.mxu0
  %1665 = vmatprep.subr.bf16.mxu0 0
  %1666 = vmatpush1.bf16.msra.mxu0 %v1424
  %1667 = vmatprep.subr.bf16.mxu0 0
  %1668 = vmatpush1.bf16.msra.mxu0 %v1425
  %1669 = vmatprep.subr.bf16.mxu0 0
  %1670 = vmatpush1.bf16.msra.mxu0 %v1426
  %1671 = vmatprep.subr.bf16.mxu0 0
  %1672 = vmatpush1.bf16.msra.mxu0 %v1427
  %1673 = vmatprep.subr.bf16.mxu0 0
  %1674 = vmatpush1.bf16.msra.mxu0 %v1428
  %1675 = vmatprep.subr.bf16.mxu0 0
  %1676 = vmatpush1.bf16.msra.mxu0 %v1429
  %1677 = vmatprep.subr.bf16.mxu0 0
  %1678 = vmatpush1.bf16.msra.mxu0 %v1430
  %1679 = vmatprep.subr.bf16.mxu0 0
  %1680 = vmatpush1.bf16.msra.mxu0 %v1431
  %1681 = vmatprep.subr.bf16.mxu0 0
  %1682 = vmatpush1.bf16.msra.mxu0 %v1432
  %1683 = vmatprep.subr.bf16.mxu0 0
  %1684 = vmatpush1.bf16.msra.mxu0 %v1433
  %1685 = vmatprep.subr.bf16.mxu0 0
  %1686 = vmatpush1.bf16.msra.mxu0 %v1434
  %1687 = vmatprep.subr.bf16.mxu0 0
  %1688 = vmatpush1.bf16.msra.mxu0 %v1435
  %1689 = vmatprep.subr.bf16.mxu0 0
  %1690 = vmatpush1.bf16.msra.mxu0 %v1436
  %1691 = vmatprep.subr.bf16.mxu0 0
  %1692 = vmatpush1.bf16.msra.mxu0 %v1437
  %1693 = vmatprep.subr.bf16.mxu0 0
  %1694 = vmatpush1.bf16.msra.mxu0 %v1438
  %1695 = vmatprep.subr.bf16.mxu0 0
  %1696 = vmatpush1.bf16.msra.mxu0 %v1439
  %1697 = vmatprep.mubr.bf16.mxu0 %v889
  %1698 = vmatmul.mubr.bf16.gmra.mrb[0].mxu0 %v888
  %v1699 = vpop.f32.mrb[0].mxu0
  %v1700 = vadd.f32 %v1587, %v1699
  %v1701 = vpop.f32.mrb[0].mxu0
  %v1702 = vpop.f32.mrb[0].mxu0
  %v1703 = vadd.f32 %v1590, %v1702
  %v1704 = vpop.f32.mrb[0].mxu0
  %1705 = vmatprep.mubr.bf16.mxu0 %v898
  %1706 = vmatmul.mubr.bf16.gmra.mrb[0].mxu0 %v897
  %v1707 = vpop.f32.mrb[0].mxu0
  %v1708 = vadd.f32 %v1595, %v1707
  %v1709 = vpop.f32.mrb[0].mxu0
  %v1710 = vpop.f32.mrb[0].mxu0
  %v1711 = vadd.f32 %v1598, %v1710
  %v1712 = vpop.f32.mrb[0].mxu0
  %1713 = vmatprep.mubr.bf16.mxu0 %v907
  %1714 = vmatmul.mubr.bf16.gmra.mrb[0].mxu0 %v906
  %v1715 = vpop.f32.mrb[0].mxu0
  %v1716 = vadd.f32 %v1603, %v1715
  %v1717 = vpop.f32.mrb[0].mxu0
  %v1718 = vpop.f32.mrb[0].mxu0
  %v1719 = vadd.f32 %v1606, %v1718
  %v1720 = vpop.f32.mrb[0].mxu0
  %1721 = vmatprep.mubr.bf16.mxu0 %v916
  %1722 = vmatmul.mubr.bf16.gmra.mrb[0].mxu0 %v915
  %v1723 = vpop.f32.mrb[0].mxu0
  %v1724 = vadd.f32 %v1611, %v1723
  %v1725 = vpop.f32.mrb[0].mxu0
  %v1726 = vpop.f32.mrb[0].mxu0
  %v1727 = vadd.f32 %v1614, %v1726
  %v1728 = vpop.f32.mrb[0].mxu0
  %1729 = vmatprep.mubr.bf16.mxu0 %v925
  %1730 = vmatmul.mubr.bf16.gmra.mrb[0].mxu0 %v924
  %v1731 = vpop.f32.mrb[0].mxu0
  %v1732 = vadd.f32 %v1619, %v1731
  %v1733 = vpop.f32.mrb[0].mxu0
  %v1734 = vpop.f32.mrb[0].mxu0
  %v1735 = vadd.f32 %v1622, %v1734
  %v1736 = vpop.f32.mrb[0].mxu0
  %1737 = vmatprep.mubr.bf16.mxu0 %v934
  %1738 = vmatmul.mubr.bf16.gmra.mrb[0].mxu0 %v933
  %v1739 = vpop.f32.mrb[0].mxu0
  %v1740 = vadd.f32 %v1627, %v1739
  %v1741 = vpop.f32.mrb[0].mxu0
  %v1742 = vpop.f32.mrb[0].mxu0
  %v1743 = vadd.f32 %v1630, %v1742
  %v1744 = vpop.f32.mrb[0].mxu0
  %1745 = vmatprep.mubr.bf16.mxu0 %v943
  %1746 = vmatmul.mubr.bf16.gmra.mrb[0].mxu0 %v942
  %v1747 = vpop.f32.mrb[0].mxu0
  %v1748 = vadd.f32 %v1635, %v1747
  %v1749 = vpop.f32.mrb[0].mxu0
  %v1750 = vpop.f32.mrb[0].mxu0
  %v1751 = vadd.f32 %v1638, %v1750
  %v1752 = vpop.f32.mrb[0].mxu0
  %1753 = vmatprep.mubr.bf16.mxu0 %v952
  %1754 = vmatmul.mubr.bf16.gmra.mrb[0].mxu0 %v951
  %v1755 = vpop.f32.mrb[0].mxu0
  %v1756 = vadd.f32 %v1643, %v1755
  %v1757 = vpop.f32.mrb[0].mxu0
  %v1758 = vpop.f32.mrb[0].mxu0
  %v1759 = vadd.f32 %v1646, %v1758
  %v1760 = vpop.f32.mrb[0].mxu0
  %1761 = vmatprep.mubr.bf16.mxu0 %v961
  %1762 = vmatmul.mubr.bf16.gmra.mrb[0].mxu0 %v960
  %v1763 = vpop.f32.mrb[0].mxu0
  %v1764 = vadd.f32 %v1651, %v1763
  %v1765 = vpop.f32.mrb[0].mxu0
  %v1766 = vpop.f32.mrb[0].mxu0
  %v1767 = vadd.f32 %v1654, %v1766
  %v1768 = vpop.f32.mrb[0].mxu0
  %1769 = vmatprep.mubr.bf16.mxu0 %v970
  %1770 = vmatmul.mubr.bf16.gmra.mrb[0].mxu0 %v969
  %v1771 = vpop.f32.mrb[0].mxu0
  %v1772 = vadd.f32 %v1659, %v1771
  %v1773 = vpop.f32.mrb[0].mxu0
  %v1774 = vpop.f32.mrb[0].mxu0
  %v1775 = vadd.f32 %v1662, %v1774
  %v1776 = vpop.f32.mrb[0].mxu0
  %1777 = vdwg.mxu0
  %1778 = vmatprep.subr.bf16.mxu0 0
  %1779 = vmatpush1.bf16.msra.mxu0 %v1440
  %1780 = vmatprep.subr.bf16.mxu0 0
  %1781 = vmatpush1.bf16.msra.mxu0 %v1441
  %1782 = vmatprep.subr.bf16.mxu0 0
  %1783 = vmatpush1.bf16.msra.mxu0 %v1442
  %1784 = vmatprep.subr.bf16.mxu0 0
  %1785 = vmatpush1.bf16.msra.mxu0 %v1443
  %1786 = vmatprep.subr.bf16.mxu0 0
  %1787 = vmatpush1.bf16.msra.mxu0 %v1444
  %1788 = vmatprep.subr.bf16.mxu0 0
  %1789 = vmatpush1.bf16.msra.mxu0 %v1445
  %1790 = vmatprep.subr.bf16.mxu0 0
  %1791 = vmatpush1.bf16.msra.mxu0 %v1446
  %1792 = vmatprep.subr.bf16.mxu0 0
  %1793 = vmatpush1.bf16.msra.mxu0 %v1447
  %1794 = vmatprep.subr.bf16.mxu0 0
  %1795 = vmatpush1.bf16.msra.mxu0 %v1448
  %1796 = vmatprep.subr.bf16.mxu0 0
  %1797 = vmatpush1.bf16.msra.mxu0 %v1449
  %1798 = vmatprep.subr.bf16.mxu0 0
  %1799 = vmatpush1.bf16.msra.mxu0 %v1450
  %1800 = vmatprep.subr.bf16.mxu0 0
  %1801 = vmatpush1.bf16.msra.mxu0 %v1451
  %1802 = vmatprep.subr.bf16.mxu0 0
  %1803 = vmatpush1.bf16.msra.mxu0 %v1452
  %1804 = vmatprep.subr.bf16.mxu0 0
  %1805 = vmatpush1.bf16.msra.mxu0 %v1453
  %1806 = vmatprep.subr.bf16.mxu0 0
  %1807 = vmatpush1.bf16.msra.mxu0 %v1454
  %1808 = vmatprep.subr.bf16.mxu0 0
  %1809 = vmatpush1.bf16.msra.mxu0 %v1455
  %1810 = vmatprep.mubr.bf16.mxu0 %v891
  %1811 = vmatmul.mubr.bf16.gmra.mrb[0].mxu0 %v890
  %v1812 = vpop.f32.mrb[0].mxu0
  %v1813 = vadd.f32 %v1700, %v1812
  %v1814 = vpop.f32.mrb[0].mxu0
  %v1815 = vpop.f32.mrb[0].mxu0
  %v1816 = vadd.f32 %v1703, %v1815
  %v1817 = vpop.f32.mrb[0].mxu0
  %1818 = vmatprep.mubr.bf16.mxu0 %v900
  %1819 = vmatmul.mubr.bf16.gmra.mrb[0].mxu0 %v899
  %v1820 = vpop.f32.mrb[0].mxu0
  %v1821 = vadd.f32 %v1708, %v1820
  %v1822 = vpop.f32.mrb[0].mxu0
  %v1823 = vpop.f32.mrb[0].mxu0
  %v1824 = vadd.f32 %v1711, %v1823
  %v1825 = vpop.f32.mrb[0].mxu0
  %1826 = vmatprep.mubr.bf16.mxu0 %v909
  %1827 = vmatmul.mubr.bf16.gmra.mrb[0].mxu0 %v908
  %v1828 = vpop.f32.mrb[0].mxu0
  %v1829 = vadd.f32 %v1716, %v1828
  %v1830 = vpop.f32.mrb[0].mxu0
  %v1831 = vpop.f32.mrb[0].mxu0
  %v1832 = vadd.f32 %v1719, %v1831
  %v1833 = vpop.f32.mrb[0].mxu0
  %1834 = vmatprep.mubr.bf16.mxu0 %v918
  %1835 = vmatmul.mubr.bf16.gmra.mrb[0].mxu0 %v917
  %v1836 = vpop.f32.mrb[0].mxu0
  %v1837 = vadd.f32 %v1724, %v1836
  %v1838 = vpop.f32.mrb[0].mxu0
  %v1839 = vpop.f32.mrb[0].mxu0
  %v1840 = vadd.f32 %v1727, %v1839
  %v1841 = vpop.f32.mrb[0].mxu0
  %1842 = vmatprep.mubr.bf16.mxu0 %v927
  %1843 = vmatmul.mubr.bf16.gmra.mrb[0].mxu0 %v926
  %v1844 = vpop.f32.mrb[0].mxu0
  %v1845 = vadd.f32 %v1732, %v1844
  %v1846 = vpop.f32.mrb[0].mxu0
  %v1847 = vpop.f32.mrb[0].mxu0
  %v1848 = vadd.f32 %v1735, %v1847
  %v1849 = vpop.f32.mrb[0].mxu0
  %1850 = vmatprep.mubr.bf16.mxu0 %v936
  %1851 = vmatmul.mubr.bf16.gmra.mrb[0].mxu0 %v935
  %v1852 = vpop.f32.mrb[0].mxu0
  %v1853 = vadd.f32 %v1740, %v1852
  %v1854 = vpop.f32.mrb[0].mxu0
  %v1855 = vpop.f32.mrb[0].mxu0
  %v1856 = vadd.f32 %v1743, %v1855
  %v1857 = vpop.f32.mrb[0].mxu0
  %1858 = vmatprep.mubr.bf16.mxu0 %v945
  %1859 = vmatmul.mubr.bf16.gmra.mrb[0].mxu0 %v944
  %v1860 = vpop.f32.mrb[0].mxu0
  %v1861 = vadd.f32 %v1748, %v1860
  %v1862 = vpop.f32.mrb[0].mxu0
  %v1863 = vpop.f32.mrb[0].mxu0
  %v1864 = vadd.f32 %v1751, %v1863
  %v1865 = vpop.f32.mrb[0].mxu0
  %1866 = vmatprep.mubr.bf16.mxu0 %v954
  %1867 = vmatmul.mubr.bf16.gmra.mrb[0].mxu0 %v953
  %v1868 = vpop.f32.mrb[0].mxu0
  %v1869 = vadd.f32 %v1756, %v1868
  %v1870 = vpop.f32.mrb[0].mxu0
  %v1871 = vpop.f32.mrb[0].mxu0
  %v1872 = vadd.f32 %v1759, %v1871
  %v1873 = vpop.f32.mrb[0].mxu0
  %1874 = vmatprep.mubr.bf16.mxu0 %v963
  %1875 = vmatmul.mubr.bf16.gmra.mrb[0].mxu0 %v962
  %v1876 = vpop.f32.mrb[0].mxu0
  %v1877 = vadd.f32 %v1764, %v1876
  %v1878 = vpop.f32.mrb[0].mxu0
  %v1879 = vpop.f32.mrb[0].mxu0
  %v1880 = vadd.f32 %v1767, %v1879
  %v1881 = vpop.f32.mrb[0].mxu0
  %1882 = vmatprep.mubr.bf16.mxu0 %v972
  %1883 = vmatmul.mubr.bf16.gmra.mrb[0].mxu0 %v971
  %v1884 = vpop.f32.mrb[0].mxu0
  %v1885 = vadd.f32 %v1772, %v1884
  %v1886 = vpop.f32.mrb[0].mxu0
  %v1887 = vpop.f32.mrb[0].mxu0
  %v1888 = vadd.f32 %v1775, %v1887
  %v1889 = vpop.f32.mrb[0].mxu0
  %1890 = vdwg.mxu0
  %1891 = vmatprep.subr.bf16.mxu0 0
  %1892 = vmatpush1.bf16.msra.mxu0 %v1456
  %1893 = vmatprep.subr.bf16.mxu0 0
  %1894 = vmatpush1.bf16.msra.mxu0 %v1457
  %1895 = vmatprep.subr.bf16.mxu0 0
  %1896 = vmatpush1.bf16.msra.mxu0 %v1458
  %1897 = vmatprep.subr.bf16.mxu0 0
  %1898 = vmatpush1.bf16.msra.mxu0 %v1459
  %1899 = vmatprep.subr.bf16.mxu0 0
  %1900 = vmatpush1.bf16.msra.mxu0 %v1460
  %1901 = vmatprep.subr.bf16.mxu0 0
  %1902 = vmatpush1.bf16.msra.mxu0 %v1461
  %1903 = vmatprep.subr.bf16.mxu0 0
  %1904 = vmatpush1.bf16.msra.mxu0 %v1462
  %1905 = vmatprep.subr.bf16.mxu0 0
  %1906 = vmatpush1.bf16.msra.mxu0 %v1463
  %1907 = vmatprep.subr.bf16.mxu0 0
  %1908 = vmatpush1.bf16.msra.mxu0 %v1464
  %1909 = vmatprep.subr.bf16.mxu0 0
  %1910 = vmatpush1.bf16.msra.mxu0 %v1465
  %1911 = vmatprep.subr.bf16.mxu0 0
  %1912 = vmatpush1.bf16.msra.mxu0 %v1466
  %1913 = vmatprep.subr.bf16.mxu0 0
  %1914 = vmatpush1.bf16.msra.mxu0 %v1467
  %1915 = vmatprep.subr.bf16.mxu0 0
  %1916 = vmatpush1.bf16.msra.mxu0 %v1468
  %1917 = vmatprep.subr.bf16.mxu0 0
  %1918 = vmatpush1.bf16.msra.mxu0 %v1469
  %1919 = vmatprep.subr.bf16.mxu0 0
  %1920 = vmatpush1.bf16.msra.mxu0 %v1470
  %1921 = vmatprep.subr.bf16.mxu0 0
  %1922 = vmatpush1.bf16.msra.mxu0 %v1471
  %1923 = vmatprep.mubr.bf16.mxu0 %v893
  %1924 = vmatmul.mubr.bf16.gmra.mrb[0].mxu0 %v892
  %v1925 = vpop.f32.mrb[0].mxu0
  %v1926 = vadd.f32 %v1813, %v1925
  %v1927 = vpop.f32.mrb[0].mxu0
  %v1928 = vpop.f32.mrb[0].mxu0
  %v1929 = vadd.f32 %v1816, %v1928
  %v1930 = vpop.f32.mrb[0].mxu0
  %1931 = vmatprep.mubr.bf16.mxu0 %v902
  %1932 = vmatmul.mubr.bf16.gmra.mrb[0].mxu0 %v901
  %v1933 = vpop.f32.mrb[0].mxu0
  %v1934 = vadd.f32 %v1821, %v1933
  %v1935 = vpop.f32.mrb[0].mxu0
  %v1936 = vpop.f32.mrb[0].mxu0
  %v1937 = vadd.f32 %v1824, %v1936
  %v1938 = vpop.f32.mrb[0].mxu0
  %1939 = vmatprep.mubr.bf16.mxu0 %v911
  %1940 = vmatmul.mubr.bf16.gmra.mrb[0].mxu0 %v910
  %v1941 = vpop.f32.mrb[0].mxu0
  %v1942 = vadd.f32 %v1829, %v1941
  %v1943 = vpop.f32.mrb[0].mxu0
  %v1944 = vpop.f32.mrb[0].mxu0
  %v1945 = vadd.f32 %v1832, %v1944
  %v1946 = vpop.f32.mrb[0].mxu0
  %1947 = vmatprep.mubr.bf16.mxu0 %v920
  %1948 = vmatmul.mubr.bf16.gmra.mrb[0].mxu0 %v919
  %v1949 = vpop.f32.mrb[0].mxu0
  %v1950 = vadd.f32 %v1837, %v1949
  %v1951 = vpop.f32.mrb[0].mxu0
  %v1952 = vpop.f32.mrb[0].mxu0
  %v1953 = vadd.f32 %v1840, %v1952
  %v1954 = vpop.f32.mrb[0].mxu0
  %1955 = vmatprep.mubr.bf16.mxu0 %v929
  %1956 = vmatmul.mubr.bf16.gmra.mrb[0].mxu0 %v928
  %v1957 = vpop.f32.mrb[0].mxu0
  %v1958 = vadd.f32 %v1845, %v1957
  %v1959 = vpop.f32.mrb[0].mxu0
  %v1960 = vpop.f32.mrb[0].mxu0
  %v1961 = vadd.f32 %v1848, %v1960
  %v1962 = vpop.f32.mrb[0].mxu0
  %1963 = vmatprep.mubr.bf16.mxu0 %v938
  %1964 = vmatmul.mubr.bf16.gmra.mrb[0].mxu0 %v937
  %v1965 = vpop.f32.mrb[0].mxu0
  %v1966 = vadd.f32 %v1853, %v1965
  %v1967 = vpop.f32.mrb[0].mxu0
  %v1968 = vpop.f32.mrb[0].mxu0
  %v1969 = vadd.f32 %v1856, %v1968
  %v1970 = vpop.f32.mrb[0].mxu0
  %1971 = vmatprep.mubr.bf16.mxu0 %v947
  %1972 = vmatmul.mubr.bf16.gmra.mrb[0].mxu0 %v946
  %v1973 = vpop.f32.mrb[0].mxu0
  %v1974 = vadd.f32 %v1861, %v1973
  %v1975 = vpop.f32.mrb[0].mxu0
  %v1976 = vpop.f32.mrb[0].mxu0
  %v1977 = vadd.f32 %v1864, %v1976
  %v1978 = vpop.f32.mrb[0].mxu0
  %1979 = vmatprep.mubr.bf16.mxu0 %v956
  %1980 = vmatmul.mubr.bf16.gmra.mrb[0].mxu0 %v955
  %v1981 = vpop.f32.mrb[0].mxu0
  %v1982 = vadd.f32 %v1869, %v1981
  %v1983 = vpop.f32.mrb[0].mxu0
  %v1984 = vpop.f32.mrb[0].mxu0
  %v1985 = vadd.f32 %v1872, %v1984
  %v1986 = vpop.f32.mrb[0].mxu0
  %1987 = vmatprep.mubr.bf16.mxu0 %v965
  %1988 = vmatmul.mubr.bf16.gmra.mrb[0].mxu0 %v964
  %v1989 = vpop.f32.mrb[0].mxu0
  %v1990 = vadd.f32 %v1877, %v1989
  %v1991 = vpop.f32.mrb[0].mxu0
  %v1992 = vpop.f32.mrb[0].mxu0
  %v1993 = vadd.f32 %v1880, %v1992
  %v1994 = vpop.f32.mrb[0].mxu0
  %1995 = vmatprep.mubr.bf16.mxu0 %v974
  %1996 = vmatmul.mubr.bf16.gmra.mrb[0].mxu0 %v973
  %v1997 = vpop.f32.mrb[0].mxu0
  %v1998 = vadd.f32 %v1885, %v1997
  %v1999 = vpop.f32.mrb[0].mxu0
  %v2000 = vpop.f32.mrb[0].mxu0
  %v2001 = vadd.f32 %v1888, %v2000
  %v2002 = vpop.f32.mrb[0].mxu0
  %2003 = vdwg.mxu0
  %2004 = vmatprep.subr.bf16.mxu0 0
  %2005 = vmatpush1.bf16.msra.mxu0 %v1472
  %2006 = vmatprep.subr.bf16.mxu0 0
  %2007 = vmatpush1.bf16.msra.mxu0 %v1473
  %2008 = vmatprep.subr.bf16.mxu0 0
  %2009 = vmatpush1.bf16.msra.mxu0 %v1474
  %2010 = vmatprep.subr.bf16.mxu0 0
  %2011 = vmatpush1.bf16.msra.mxu0 %v1475
  %2012 = vmatprep.subr.bf16.mxu0 0
  %2013 = vmatpush1.bf16.msra.mxu0 %v1476
  %2014 = vmatprep.subr.bf16.mxu0 0
  %2015 = vmatpush1.bf16.msra.mxu0 %v1477
  %2016 = vmatprep.subr.bf16.mxu0 0
  %2017 = vmatpush1.bf16.msra.mxu0 %v1478
  %2018 = vmatprep.subr.bf16.mxu0 0
  %2019 = vmatpush1.bf16.msra.mxu0 %v1479
  %2020 = vmatprep.subr.bf16.mxu0 0
  %2021 = vmatpush1.bf16.msra.mxu0 0
  %2022 = vmatprep.subr.bf16.mxu0 0
  %2023 = vmatpush1.bf16.msra.mxu0 0
  %2024 = vmatprep.subr.bf16.mxu0 0
  %2025 = vmatpush1.bf16.msra.mxu0 0
  %2026 = vmatprep.subr.bf16.mxu0 0
  %2027 = vmatpush1.bf16.msra.mxu0 0
  %2028 = vmatprep.subr.bf16.mxu0 0
  %2029 = vmatpush1.bf16.msra.mxu0 0
  %2030 = vmatprep.subr.bf16.mxu0 0
  %2031 = vmatpush1.bf16.msra.mxu0 0
  %2032 = vmatprep.subr.bf16.mxu0 0
  %2033 = vmatpush1.bf16.msra.mxu0 0
  %2034 = vmatprep.subr.bf16.mxu0 0
  %2035 = vmatpush1.bf16.msra.mxu0 0
  %2036 = vmatprep.mubr.bf16.mxu0 0
  %2037 = vmatmul.mubr.bf16.gmra.mrb[0].mxu0 %v894
  %v2038 = vpop.f32.mrb[0].mxu0
  %v2039 = vadd.f32 %v1926, %v2038
  %v2040 = vpop.f32.mrb[0].mxu0
  %v2041 = vpop.f32.mrb[0].mxu0
  %v2042 = vadd.f32 %v1929, %v2041
  %v2043 = vpop.f32.mrb[0].mxu0
  %2044 = vmatprep.mubr.bf16.mxu0 0
  %2045 = vmatmul.mubr.bf16.gmra.mrb[0].mxu0 %v903
  %v2046 = vpop.f32.mrb[0].mxu0
  %v2047 = vadd.f32 %v1934, %v2046
  %v2048 = vpop.f32.mrb[0].mxu0
  %v2049 = vpop.f32.mrb[0].mxu0
  %v2050 = vadd.f32 %v1937, %v2049
  %v2051 = vpop.f32.mrb[0].mxu0
  %2052 = vmatprep.mubr.bf16.mxu0 0
  %2053 = vmatmul.mubr.bf16.gmra.mrb[0].mxu0 %v912
  %v2054 = vpop.f32.mrb[0].mxu0
  %v2055 = vadd.f32 %v1942, %v2054
  %v2056 = vpop.f32.mrb[0].mxu0
  %v2057 = vpop.f32.mrb[0].mxu0
  %v2058 = vadd.f32 %v1945, %v2057
  %v2059 = vpop.f32.mrb[0].mxu0
  %2060 = vmatprep.mubr.bf16.mxu0 0
  %2061 = vmatmul.mubr.bf16.gmra.mrb[0].mxu0 %v921
  %v2062 = vpop.f32.mrb[0].mxu0
  %v2063 = vadd.f32 %v1950, %v2062
  %v2064 = vpop.f32.mrb[0].mxu0
  %v2065 = vpop.f32.mrb[0].mxu0
  %v2066 = vadd.f32 %v1953, %v2065
  %v2067 = vpop.f32.mrb[0].mxu0
  %2068 = vmatprep.mubr.bf16.mxu0 0
  %2069 = vmatmul.mubr.bf16.gmra.mrb[0].mxu0 %v930
  %v2070 = vpop.f32.mrb[0].mxu0
  %v2071 = vadd.f32 %v1958, %v2070
  %v2072 = vpop.f32.mrb[0].mxu0
  %v2073 = vpop.f32.mrb[0].mxu0
  %v2074 = vadd.f32 %v1961, %v2073
  %v2075 = vpop.f32.mrb[0].mxu0
  %2076 = vmatprep.mubr.bf16.mxu0 0
  %2077 = vmatmul.mubr.bf16.gmra.mrb[0].mxu0 %v939
  %v2078 = vpop.f32.mrb[0].mxu0
  %v2079 = vadd.f32 %v1966, %v2078
  %v2080 = vpop.f32.mrb[0].mxu0
  %v2081 = vpop.f32.mrb[0].mxu0
  %v2082 = vadd.f32 %v1969, %v2081
  %v2083 = vpop.f32.mrb[0].mxu0
  %2084 = vmatprep.mubr.bf16.mxu0 0
  %2085 = vmatmul.mubr.bf16.gmra.mrb[0].mxu0 %v948
  %v2086 = vpop.f32.mrb[0].mxu0
  %v2087 = vadd.f32 %v1974, %v2086
  %v2088 = vpop.f32.mrb[0].mxu0
  %v2089 = vpop.f32.mrb[0].mxu0
  %v2090 = vadd.f32 %v1977, %v2089
  %v2091 = vpop.f32.mrb[0].mxu0
  %2092 = vmatprep.mubr.bf16.mxu0 0
  %2093 = vmatmul.mubr.bf16.gmra.mrb[0].mxu0 %v957
  %v2094 = vpop.f32.mrb[0].mxu0
  %v2095 = vadd.f32 %v1982, %v2094
  %v2096 = vpop.f32.mrb[0].mxu0
  %v2097 = vpop.f32.mrb[0].mxu0
  %v2098 = vadd.f32 %v1985, %v2097
  %v2099 = vpop.f32.mrb[0].mxu0
  %2100 = vmatprep.mubr.bf16.mxu0 0
  %2101 = vmatmul.mubr.bf16.gmra.mrb[0].mxu0 %v966
  %v2102 = vpop.f32.mrb[0].mxu0
  %v2103 = vadd.f32 %v1990, %v2102
  %v2104 = vpop.f32.mrb[0].mxu0
  %v2105 = vpop.f32.mrb[0].mxu0
  %v2106 = vadd.f32 %v1993, %v2105
  %v2107 = vpop.f32.mrb[0].mxu0
  %2108 = vmatprep.mubr.bf16.mxu0 0
  %2109 = vmatmul.mubr.bf16.gmra.mrb[0].mxu0 %v975
  %v2110 = vpop.f32.mrb[0].mxu0
  %v2111 = vadd.f32 %v1998, %v2110
  %v2112 = vpop.f32.mrb[0].mxu0
  %v2113 = vpop.f32.mrb[0].mxu0
  %v2114 = vadd.f32 %v2001, %v2113
  %v2115 = vpop.f32.mrb[0].mxu0
  %2116 = vdwg.mxu0
  %v2117 = vld [vmem:[%s6 + $0x2] sm:$0x1]
  %v2118 = vlaneseq
  %v2119 = vshrl.u32 %v2118, 7
  %v2120 = vsub.s32 0, %v2119
  %v2121 = vrot.slane %v2117, %v2120
  %v2122 = vmul.f32 %v2039, %v2121
  %v2123 = vmul.f32 %v2042, %v2121
  %v2124 = vmul.f32 %v2047, %v2121
  %v2125 = vmul.f32 %v2050, %v2121
  %v2126 = vmul.f32 %v2055, %v2121
  %v2127 = vmul.f32 %v2058, %v2121
  %v2128 = vmul.f32 %v2063, %v2121
  %v2129 = vmul.f32 %v2066, %v2121
  %v2130 = vmul.f32 %v2071, %v2121
  %v2131 = vmul.f32 %v2074, %v2121
  %v2132 = vmul.f32 %v2079, %v2121
  %v2133 = vmul.f32 %v2082, %v2121
  %v2134 = vmul.f32 %v2087, %v2121
  %v2135 = vmul.f32 %v2090, %v2121
  %v2136 = vmul.f32 %v2095, %v2121
  %v2137 = vmul.f32 %v2098, %v2121
  %v2138 = vmul.f32 %v2103, %v2121
  %v2139 = vmul.f32 %v2106, %v2121
  %v2140 = vmul.f32 %v2111, %v2121
  %v2141 = vmul.f32 %v2114, %v2121
  %v2142 = vld [vmem:[%s6 + $0x3] sm:$0x1]
  %v2143 = vlaneseq
  %v2144 = vshrl.u32 %v2143, 7
  %v2145 = vsub.s32 0, %v2144
  %v2146 = vrot.slane %v2142, %v2145
  %v2147 = vadd.f32 %v2122, %v2146
  %v2148 = vadd.f32 %v2123, %v2146
  %v2149 = vadd.f32 %v2124, %v2146
  %v2150 = vadd.f32 %v2125, %v2146
  %v2151 = vadd.f32 %v2126, %v2146
  %v2152 = vadd.f32 %v2127, %v2146
  %v2153 = vadd.f32 %v2128, %v2146
  %v2154 = vadd.f32 %v2129, %v2146
  %v2155 = vadd.f32 %v2130, %v2146
  %v2156 = vadd.f32 %v2131, %v2146
  %v2157 = vadd.f32 %v2132, %v2146
  %v2158 = vadd.f32 %v2133, %v2146
  %v2159 = vadd.f32 %v2134, %v2146
  %v2160 = vadd.f32 %v2135, %v2146
  %v2161 = vadd.f32 %v2136, %v2146
  %v2162 = vadd.f32 %v2137, %v2146
  %v2163 = vadd.f32 %v2138, %v2146
  %v2164 = vadd.f32 %v2139, %v2146
  %v2165 = vadd.f32 %v2140, %v2146
  %v2166 = vadd.f32 %v2141, %v2146
  %vm2167 = vcmp.ge.f32.partialorder %v2147, 0.0
  %vm2168 = vcmp.ge.f32.partialorder %v2148, 0.0
  %vm2169 = vcmp.ge.f32.partialorder %v2149, 0.0
  %vm2170 = vcmp.ge.f32.partialorder %v2150, 0.0
  %vm2171 = vcmp.ge.f32.partialorder %v2151, 0.0
  %vm2172 = vcmp.ge.f32.partialorder %v2152, 0.0
  %vm2173 = vcmp.ge.f32.partialorder %v2153, 0.0
  %vm2174 = vcmp.ge.f32.partialorder %v2154, 0.0
  %vm2175 = vcmp.ge.f32.partialorder %v2155, 0.0
  %vm2176 = vcmp.ge.f32.partialorder %v2156, 0.0
  %vm2177 = vcmp.ge.f32.partialorder %v2157, 0.0
  %vm2178 = vcmp.ge.f32.partialorder %v2158, 0.0
  %vm2179 = vcmp.ge.f32.partialorder %v2159, 0.0
  %vm2180 = vcmp.ge.f32.partialorder %v2160, 0.0
  %vm2181 = vcmp.ge.f32.partialorder %v2161, 0.0
  %vm2182 = vcmp.ge.f32.partialorder %v2162, 0.0
  %vm2183 = vcmp.ge.f32.partialorder %v2163, 0.0
  %vm2184 = vcmp.ge.f32.partialorder %v2164, 0.0
  %vm2185 = vcmp.ge.f32.partialorder %v2165, 0.0
  %vm2186 = vcmp.ge.f32.partialorder %v2166, 0.0
  %v2187 = vmul.f32 %v2147, 0.2
  %v2188 = vmul.f32 %v2148, 0.2
  %v2189 = vmul.f32 %v2149, 0.2
  %v2190 = vmul.f32 %v2150, 0.2
  %v2191 = vmul.f32 %v2151, 0.2
  %v2192 = vmul.f32 %v2152, 0.2
  %v2193 = vmul.f32 %v2153, 0.2
  %v2194 = vmul.f32 %v2154, 0.2
  %v2195 = vmul.f32 %v2155, 0.2
  %v2196 = vmul.f32 %v2156, 0.2
  %v2197 = vmul.f32 %v2157, 0.2
  %v2198 = vmul.f32 %v2158, 0.2
  %v2199 = vmul.f32 %v2159, 0.2
  %v2200 = vmul.f32 %v2160, 0.2
  %v2201 = vmul.f32 %v2161, 0.2
  %v2202 = vmul.f32 %v2162, 0.2
  %v2203 = vmul.f32 %v2163, 0.2
  %v2204 = vmul.f32 %v2164, 0.2
  %v2205 = vmul.f32 %v2165, 0.2
  %v2206 = vmul.f32 %v2166, 0.2
  %v2207 = vsel %vm2167, %v2147, %v2187
  %v2208 = vsel %vm2168, %v2148, %v2188
  %v2209 = vsel %vm2169, %v2149, %v2189
  %v2210 = vsel %vm2170, %v2150, %v2190
  %v2211 = vsel %vm2171, %v2151, %v2191
  %v2212 = vsel %vm2172, %v2152, %v2192
  %v2213 = vsel %vm2173, %v2153, %v2193
  %v2214 = vsel %vm2174, %v2154, %v2194
  %v2215 = vsel %vm2175, %v2155, %v2195
  %v2216 = vsel %vm2176, %v2156, %v2196
  %v2217 = vsel %vm2177, %v2157, %v2197
  %v2218 = vsel %vm2178, %v2158, %v2198
  %v2219 = vsel %vm2179, %v2159, %v2199
  %v2220 = vsel %vm2180, %v2160, %v2200
  %v2221 = vsel %vm2181, %v2161, %v2201
  %v2222 = vsel %vm2182, %v2162, %v2202
  %v2223 = vsel %vm2183, %v2163, %v2203
  %v2224 = vsel %vm2184, %v2164, %v2204
  %v2225 = vsel %vm2185, %v2165, %v2205
  %v2226 = vsel %vm2186, %v2166, %v2206
  %2227 = vst [vmem:[#allocation3 + $0xb] sm:$0xff] %v2207
  %2228 = vst [vmem:[#allocation3 + $0x13] sm:$0xfc] %v2208
  %2229 = vst [vmem:[#allocation3 + $0x1b] sm:$0x3] %v2209
  %2230 = vst [vmem:[#allocation3 + $0x1b] sm:$0xf0] %v2209
  %2231 = vst [vmem:[#allocation3 + $0x23] sm:$0xf] %v2210
  %2232 = vst [vmem:[#allocation3 + $0x23] sm:$0xc0] %v2210
  %2233 = vst [vmem:[#allocation3 + $0x2b] sm:$0x3f] %v2211
  %2234 = vst [vmem:[#allocation3 + $0x33] sm:$0xff] %v2212
  %2235 = vst [vmem:[#allocation3 + $0x3b] sm:$0xfc] %v2213
  %2236 = vst [vmem:[#allocation3 + $0x43] sm:$0x3] %v2214
  %2237 = vst [vmem:[#allocation3 + $0x43] sm:$0xf0] %v2214
  %2238 = vst [vmem:[#allocation3 + $0x4b] sm:$0xf] %v2215
  %2239 = vst [vmem:[#allocation3 + $0x4b] sm:$0xc0] %v2215
  %2240 = vst [vmem:[#allocation3 + $0x53] sm:$0x3f] %v2216
  %2241 = vst [vmem:[#allocation3 + $0x6f] sm:$0xff] %v2217
  %2242 = vst [vmem:[#allocation3 + $0x77] sm:$0xfc] %v2218
  %2243 = vst [vmem:[#allocation3 + $0x7f] sm:$0x3] %v2219
  %2244 = vst [vmem:[#allocation3 + $0x7f] sm:$0xf0] %v2219
  %2245 = vst [vmem:[#allocation3 + $0x87] sm:$0xf] %v2220
  %2246 = vst [vmem:[#allocation3 + $0x87] sm:$0xc0] %v2220
  %2247 = vst [vmem:[#allocation3 + $0x8f] sm:$0x3f] %v2221
  %2248 = vst [vmem:[#allocation3 + $0x97] sm:$0xff] %v2222
  %2249 = vst [vmem:[#allocation3 + $0x9f] sm:$0xfc] %v2223
  %2250 = vst [vmem:[#allocation3 + $0xa7] sm:$0x3] %v2224
  %2251 = vst [vmem:[#allocation3 + $0xa7] sm:$0xf0] %v2224
  %2252 = vst [vmem:[#allocation3 + $0xaf] sm:$0xf] %v2225
  %2253 = vst [vmem:[#allocation3 + $0xaf] sm:$0xc0] %v2225
  %2254 = vst [vmem:[#allocation3 + $0xb7] sm:$0x3f] %v2226
  %v2255 = vld [vmem:[#allocation3] sm:$0xff]
  %v2256 = vld [vmem:[#allocation3 + $0x8] sm:$0xff]
  %v2257 = vld [vmem:[#allocation3 + $0x10] sm:$0xff]
  %v2258 = vld [vmem:[#allocation3 + $0x18] sm:$0xff]
  %v2259 = vld [vmem:[#allocation3 + $0x20] sm:$0xff]
  %v2260 = vld [vmem:[#allocation3 + $0x28] sm:$0xff]
  %v2261 = vld [vmem:[#allocation3 + $0x30] sm:$0xff]
  %v2262 = vld [vmem:[#allocation3 + $0x38] sm:$0xff]
  %v2263 = vld [vmem:[#allocation3 + $0x40] sm:$0xff]
  %v2264 = vld [vmem:[#allocation3 + $0x48] sm:$0x3f]
  %v2265 = vpack.c.bf16 %v2256, %v2255
  %v2266 = vpack.c.bf16 %v2258, %v2257
  %v2267 = vpack.c.bf16 %v2260, %v2259
  %v2268 = vpack.c.bf16 %v2262, %v2261
  %v2269 = vpack.c.bf16 %v2264, %v2263
  %2270 = vst [vmem:[#allocation6] sm:$0xff] %v2265
  %2271 = vst [vmem:[#allocation6 + $0x48] sm:$0xff] %v2266
  %2272 = vst [vmem:[#allocation6 + $0x90] sm:$0xff] %v2267
  %2273 = vst [vmem:[#allocation6 + $0xd8] sm:$0xff] %v2268
  %2274 = vst [vmem:[#allocation6 + $0x120] sm:$0x7f] %v2269
  %v2275 = vld [vmem:[#allocation3 + $0x1] sm:$0xff]
  %v2276 = vld [vmem:[#allocation3 + $0x9] sm:$0xff]
  %v2277 = vld [vmem:[#allocation3 + $0x11] sm:$0xff]
  %v2278 = vld [vmem:[#allocation3 + $0x19] sm:$0xff]
  %v2279 = vld [vmem:[#allocation3 + $0x21] sm:$0xff]
  %v2280 = vld [vmem:[#allocation3 + $0x29] sm:$0xff]
  %v2281 = vld [vmem:[#allocation3 + $0x31] sm:$0xff]
  %v2282 = vld [vmem:[#allocation3 + $0x39] sm:$0xff]
  %v2283 = vld [vmem:[#allocation3 + $0x41] sm:$0xff]
  %v2284 = vld [vmem:[#allocation3 + $0x49] sm:$0x3f]
  %v2285 = vpack.c.bf16 %v2276, %v2275
  %v2286 = vpack.c.bf16 %v2278, %v2277
  %v2287 = vpack.c.bf16 %v2280, %v2279
  %v2288 = vpack.c.bf16 %v2282, %v2281
  %v2289 = vpack.c.bf16 %v2284, %v2283
  %2290 = vst [vmem:[#allocation6 + $0x8] sm:$0xff] %v2285
  %2291 = vst [vmem:[#allocation6 + $0x50] sm:$0xff] %v2286
  %2292 = vst [vmem:[#allocation6 + $0x98] sm:$0xff] %v2287
  %2293 = vst [vmem:[#allocation6 + $0xe0] sm:$0xff] %v2288
  %2294 = vst [vmem:[#allocation6 + $0x128] sm:$0x7f] %v2289
  %v2295 = vld [vmem:[#allocation3 + $0x2] sm:$0xff]
  %v2296 = vld [vmem:[#allocation3 + $0xa] sm:$0xff]
  %v2297 = vld [vmem:[#allocation3 + $0x12] sm:$0xff]
  %v2298 = vld [vmem:[#allocation3 + $0x1a] sm:$0xff]
  %v2299 = vld [vmem:[#allocation3 + $0x22] sm:$0xff]
  %v2300 = vld [vmem:[#allocation3 + $0x2a] sm:$0xff]
  %v2301 = vld [vmem:[#allocation3 + $0x32] sm:$0xff]
  %v2302 = vld [vmem:[#allocation3 + $0x3a] sm:$0xff]
  %v2303 = vld [vmem:[#allocation3 + $0x42] sm:$0xff]
  %v2304 = vld [vmem:[#allocation3 + $0x4a] sm:$0x3f]
  %v2305 = vpack.c.bf16 %v2296, %v2295
  %v2306 = vpack.c.bf16 %v2298, %v2297
  %v2307 = vpack.c.bf16 %v2300, %v2299
  %v2308 = vpack.c.bf16 %v2302, %v2301
  %v2309 = vpack.c.bf16 %v2304, %v2303
  %2310 = vst [vmem:[#allocation6 + $0x10] sm:$0xff] %v2305
  %2311 = vst [vmem:[#allocation6 + $0x58] sm:$0xff] %v2306
  %2312 = vst [vmem:[#allocation6 + $0xa0] sm:$0xff] %v2307
  %2313 = vst [vmem:[#allocation6 + $0xe8] sm:$0xff] %v2308
  %2314 = vst [vmem:[#allocation6 + $0x130] sm:$0x7f] %v2309
  %v2315 = vld [vmem:[#allocation3 + $0xa] sm:$0xff]
  %v2316 = vld [vmem:[#allocation3 + $0x12] sm:$0xff]
  %v2317 = vld [vmem:[#allocation3 + $0x1a] sm:$0xff]
  %v2318 = vld [vmem:[#allocation3 + $0x22] sm:$0xff]
  %v2319 = vld [vmem:[#allocation3 + $0x2a] sm:$0xff]
  %v2320 = vld [vmem:[#allocation3 + $0x32] sm:$0xff]
  %v2321 = vld [vmem:[#allocation3 + $0x3a] sm:$0xff]
  %v2322 = vld [vmem:[#allocation3 + $0x42] sm:$0xff]
  %v2323 = vld [vmem:[#allocation3 + $0x4a] sm:$0xff]
  %v2324 = vld [vmem:[#allocation3 + $0x52] sm:$0x3f]
  %v2325 = vpack.c.bf16 %v2316, %v2315
  %v2326 = vpack.c.bf16 %v2318, %v2317
  %v2327 = vpack.c.bf16 %v2320, %v2319
  %v2328 = vpack.c.bf16 %v2322, %v2321
  %v2329 = vpack.c.bf16 %v2324, %v2323
  %2330 = vst [vmem:[#allocation6 + $0x18] sm:$0xff] %v2325
  %2331 = vst [vmem:[#allocation6 + $0x60] sm:$0xff] %v2326
  %2332 = vst [vmem:[#allocation6 + $0xa8] sm:$0xff] %v2327
  %2333 = vst [vmem:[#allocation6 + $0xf0] sm:$0xff] %v2328
  %2334 = vst [vmem:[#allocation6 + $0x138] sm:$0x7f] %v2329
  %v2335 = vld [vmem:[#allocation3 + $0xb] sm:$0xff]
  %v2336 = vld [vmem:[#allocation3 + $0x13] sm:$0xff]
  %v2337 = vld [vmem:[#allocation3 + $0x1b] sm:$0xff]
  %v2338 = vld [vmem:[#allocation3 + $0x23] sm:$0xff]
  %v2339 = vld [vmem:[#allocation3 + $0x2b] sm:$0xff]
  %v2340 = vld [vmem:[#allocation3 + $0x33] sm:$0xff]
  %v2341 = vld [vmem:[#allocation3 + $0x3b] sm:$0xff]
  %v2342 = vld [vmem:[#allocation3 + $0x43] sm:$0xff]
  %v2343 = vld [vmem:[#allocation3 + $0x4b] sm:$0xff]
  %v2344 = vld [vmem:[#allocation3 + $0x53] sm:$0x3f]
  %v2345 = vpack.c.bf16 %v2336, %v2335
  %v2346 = vpack.c.bf16 %v2338, %v2337
  %v2347 = vpack.c.bf16 %v2340, %v2339
  %v2348 = vpack.c.bf16 %v2342, %v2341
  %v2349 = vpack.c.bf16 %v2344, %v2343
  %2350 = vst [vmem:[#allocation6 + $0x20] sm:$0xff] %v2345
  %2351 = vst [vmem:[#allocation6 + $0x68] sm:$0xff] %v2346
  %2352 = vst [vmem:[#allocation6 + $0xb0] sm:$0xff] %v2347
  %2353 = vst [vmem:[#allocation6 + $0xf8] sm:$0xff] %v2348
  %2354 = vst [vmem:[#allocation6 + $0x140] sm:$0x7f] %v2349
  %v2355 = vld [vmem:[#allocation3 + $0xc] sm:$0xff]
  %v2356 = vld [vmem:[#allocation3 + $0x14] sm:$0xff]
  %v2357 = vld [vmem:[#allocation3 + $0x1c] sm:$0xff]
  %v2358 = vld [vmem:[#allocation3 + $0x24] sm:$0xff]
  %v2359 = vld [vmem:[#allocation3 + $0x2c] sm:$0xff]
  %v2360 = vld [vmem:[#allocation3 + $0x34] sm:$0xff]
  %v2361 = vld [vmem:[#allocation3 + $0x3c] sm:$0xff]
  %v2362 = vld [vmem:[#allocation3 + $0x44] sm:$0xff]
  %v2363 = vld [vmem:[#allocation3 + $0x4c] sm:$0xff]
  %v2364 = vld [vmem:[#allocation3 + $0x54] sm:$0x3f]
  %v2365 = vpack.c.bf16 %v2356, %v2355
  %v2366 = vpack.c.bf16 %v2358, %v2357
  %v2367 = vpack.c.bf16 %v2360, %v2359
  %v2368 = vpack.c.bf16 %v2362, %v2361
  %v2369 = vpack.c.bf16 %v2364, %v2363
  %2370 = vst [vmem:[#allocation6 + $0x28] sm:$0xff] %v2365
  %2371 = vst [vmem:[#allocation6 + $0x70] sm:$0xff] %v2366
  %2372 = vst [vmem:[#allocation6 + $0xb8] sm:$0xff] %v2367
  %2373 = vst [vmem:[#allocation6 + $0x100] sm:$0xff] %v2368
  %2374 = vst [vmem:[#allocation6 + $0x148] sm:$0x7f] %v2369
  %v2375 = vld [vmem:[#allocation3 + $0x14] sm:$0xff]
  %v2376 = vld [vmem:[#allocation3 + $0x1c] sm:$0xff]
  %v2377 = vld [vmem:[#allocation3 + $0x24] sm:$0xff]
  %v2378 = vld [vmem:[#allocation3 + $0x2c] sm:$0xff]
  %v2379 = vld [vmem:[#allocation3 + $0x34] sm:$0xff]
  %v2380 = vld [vmem:[#allocation3 + $0x3c] sm:$0xff]
  %v2381 = vld [vmem:[#allocation3 + $0x44] sm:$0xff]
  %v2382 = vld [vmem:[#allocation3 + $0x4c] sm:$0xff]
  %v2383 = vld [vmem:[#allocation3 + $0x54] sm:$0xff]
  %v2384 = vld [vmem:[#allocation3 + $0x5c] sm:$0x3f]
  %v2385 = vpack.c.bf16 %v2376, %v2375
  %v2386 = vpack.c.bf16 %v2378, %v2377
  %v2387 = vpack.c.bf16 %v2380, %v2379
  %v2388 = vpack.c.bf16 %v2382, %v2381
  %v2389 = vpack.c.bf16 %v2384, %v2383
  %2390 = vst [vmem:[#allocation6 + $0x30] sm:$0xff] %v2385
  %2391 = vst [vmem:[#allocation6 + $0x78] sm:$0xff] %v2386
  %2392 = vst [vmem:[#allocation6 + $0xc0] sm:$0xff] %v2387
  %2393 = vst [vmem:[#allocation6 + $0x108] sm:$0xff] %v2388
  %2394 = vst [vmem:[#allocation6 + $0x150] sm:$0x7f] %v2389
  %v2395 = vld [vmem:[#allocation3 + $0x15] sm:$0xff]
  %v2396 = vld [vmem:[#allocation3 + $0x1d] sm:$0xff]
  %v2397 = vld [vmem:[#allocation3 + $0x25] sm:$0xff]
  %v2398 = vld [vmem:[#allocation3 + $0x2d] sm:$0xff]
  %v2399 = vld [vmem:[#allocation3 + $0x35] sm:$0xff]
  %v2400 = vld [vmem:[#allocation3 + $0x3d] sm:$0xff]
  %v2401 = vld [vmem:[#allocation3 + $0x45] sm:$0xff]
  %v2402 = vld [vmem:[#allocation3 + $0x4d] sm:$0xff]
  %v2403 = vld [vmem:[#allocation3 + $0x55] sm:$0xff]
  %v2404 = vld [vmem:[#allocation3 + $0x5d] sm:$0x3f]
  %v2405 = vpack.c.bf16 %v2396, %v2395
  %v2406 = vpack.c.bf16 %v2398, %v2397
  %v2407 = vpack.c.bf16 %v2400, %v2399
  %v2408 = vpack.c.bf16 %v2402, %v2401
  %v2409 = vpack.c.bf16 %v2404, %v2403
  %2410 = vst [vmem:[#allocation6 + $0x38] sm:$0xff] %v2405
  %2411 = vst [vmem:[#allocation6 + $0x80] sm:$0xff] %v2406
  %2412 = vst [vmem:[#allocation6 + $0xc8] sm:$0xff] %v2407
  %2413 = vst [vmem:[#allocation6 + $0x110] sm:$0xff] %v2408
  %2414 = vst [vmem:[#allocation6 + $0x158] sm:$0x7f] %v2409
  %v2415 = vld [vmem:[#allocation3 + $0x16] sm:$0xff]
  %v2416 = vld [vmem:[#allocation3 + $0x1e] sm:$0xff]
  %v2417 = vld [vmem:[#allocation3 + $0x26] sm:$0xff]
  %v2418 = vld [vmem:[#allocation3 + $0x2e] sm:$0xff]
  %v2419 = vld [vmem:[#allocation3 + $0x36] sm:$0xff]
  %v2420 = vld [vmem:[#allocation3 + $0x3e] sm:$0xff]
  %v2421 = vld [vmem:[#allocation3 + $0x46] sm:$0xff]
  %v2422 = vld [vmem:[#allocation3 + $0x4e] sm:$0xff]
  %v2423 = vld [vmem:[#allocation3 + $0x56] sm:$0xff]
  %v2424 = vld [vmem:[#allocation3 + $0x5e] sm:$0x3f]
  %v2425 = vpack.c.bf16 %v2416, %v2415
  %v2426 = vpack.c.bf16 %v2418, %v2417
  %v2427 = vpack.c.bf16 %v2420, %v2419
  %v2428 = vpack.c.bf16 %v2422, %v2421
  %v2429 = vpack.c.bf16 %v2424, %v2423
  %2430 = vst [vmem:[#allocation6 + $0x40] sm:$0xff] %v2425
  %2431 = vst [vmem:[#allocation6 + $0x88] sm:$0xff] %v2426
  %2432 = vst [vmem:[#allocation6 + $0xd0] sm:$0xff] %v2427
  %2433 = vst [vmem:[#allocation6 + $0x118] sm:$0xff] %v2428
  %2434 = vst [vmem:[#allocation6 + $0x160] sm:$0x7f] %v2429
  %v2435 = vld [vmem:[#allocation3 + $0x64] sm:$0xff]
  %v2436 = vld [vmem:[#allocation3 + $0x6c] sm:$0xff]
  %v2437 = vld [vmem:[#allocation3 + $0x74] sm:$0xff]
  %v2438 = vld [vmem:[#allocation3 + $0x7c] sm:$0xff]
  %v2439 = vld [vmem:[#allocation3 + $0x84] sm:$0xff]
  %v2440 = vld [vmem:[#allocation3 + $0x8c] sm:$0xff]
  %v2441 = vld [vmem:[#allocation3 + $0x94] sm:$0xff]
  %v2442 = vld [vmem:[#allocation3 + $0x9c] sm:$0xff]
  %v2443 = vld [vmem:[#allocation3 + $0xa4] sm:$0xff]
  %v2444 = vld [vmem:[#allocation3 + $0xac] sm:$0x3f]
  %v2445 = vpack.c.bf16 %v2436, %v2435
  %v2446 = vpack.c.bf16 %v2438, %v2437
  %v2447 = vpack.c.bf16 %v2440, %v2439
  %v2448 = vpack.c.bf16 %v2442, %v2441
  %v2449 = vpack.c.bf16 %v2444, %v2443
  %2450 = vst [vmem:[#allocation6 + $0x168] sm:$0xff] %v2445
  %2451 = vst [vmem:[#allocation6 + $0x1b0] sm:$0xff] %v2446
  %2452 = vst [vmem:[#allocation6 + $0x1f8] sm:$0xff] %v2447
  %2453 = vst [vmem:[#allocation6 + $0x240] sm:$0xff] %v2448
  %2454 = vst [vmem:[#allocation6 + $0x288] sm:$0x7f] %v2449
  %v2455 = vld [vmem:[#allocation3 + $0x65] sm:$0xff]
  %v2456 = vld [vmem:[#allocation3 + $0x6d] sm:$0xff]
  %v2457 = vld [vmem:[#allocation3 + $0x75] sm:$0xff]
  %v2458 = vld [vmem:[#allocation3 + $0x7d] sm:$0xff]
  %v2459 = vld [vmem:[#allocation3 + $0x85] sm:$0xff]
  %v2460 = vld [vmem:[#allocation3 + $0x8d] sm:$0xff]
  %v2461 = vld [vmem:[#allocation3 + $0x95] sm:$0xff]
  %v2462 = vld [vmem:[#allocation3 + $0x9d] sm:$0xff]
  %v2463 = vld [vmem:[#allocation3 + $0xa5] sm:$0xff]
  %v2464 = vld [vmem:[#allocation3 + $0xad] sm:$0x3f]
  %v2465 = vpack.c.bf16 %v2456, %v2455
  %v2466 = vpack.c.bf16 %v2458, %v2457
  %v2467 = vpack.c.bf16 %v2460, %v2459
  %v2468 = vpack.c.bf16 %v2462, %v2461
  %v2469 = vpack.c.bf16 %v2464, %v2463
  %2470 = vst [vmem:[#allocation6 + $0x170] sm:$0xff] %v2465
  %2471 = vst [vmem:[#allocation6 + $0x1b8] sm:$0xff] %v2466
  %2472 = vst [vmem:[#allocation6 + $0x200] sm:$0xff] %v2467
  %2473 = vst [vmem:[#allocation6 + $0x248] sm:$0xff] %v2468
  %2474 = vst [vmem:[#allocation6 + $0x290] sm:$0x7f] %v2469
  %v2475 = vld [vmem:[#allocation3 + $0x66] sm:$0xff]
  %v2476 = vld [vmem:[#allocation3 + $0x6e] sm:$0xff]
  %v2477 = vld [vmem:[#allocation3 + $0x76] sm:$0xff]
  %v2478 = vld [vmem:[#allocation3 + $0x7e] sm:$0xff]
  %v2479 = vld [vmem:[#allocation3 + $0x86] sm:$0xff]
  %v2480 = vld [vmem:[#allocation3 + $0x8e] sm:$0xff]
  %v2481 = vld [vmem:[#allocation3 + $0x96] sm:$0xff]
  %v2482 = vld [vmem:[#allocation3 + $0x9e] sm:$0xff]
  %v2483 = vld [vmem:[#allocation3 + $0xa6] sm:$0xff]
  %v2484 = vld [vmem:[#allocation3 + $0xae] sm:$0x3f]
  %v2485 = vpack.c.bf16 %v2476, %v2475
  %v2486 = vpack.c.bf16 %v2478, %v2477
  %v2487 = vpack.c.bf16 %v2480, %v2479
  %v2488 = vpack.c.bf16 %v2482, %v2481
  %v2489 = vpack.c.bf16 %v2484, %v2483
  %2490 = vst [vmem:[#allocation6 + $0x178] sm:$0xff] %v2485
  %2491 = vst [vmem:[#allocation6 + $0x1c0] sm:$0xff] %v2486
  %2492 = vst [vmem:[#allocation6 + $0x208] sm:$0xff] %v2487
  %2493 = vst [vmem:[#allocation6 + $0x250] sm:$0xff] %v2488
  %2494 = vst [vmem:[#allocation6 + $0x298] sm:$0x7f] %v2489
  %v2495 = vld [vmem:[#allocation3 + $0x6e] sm:$0xff]
  %v2496 = vld [vmem:[#allocation3 + $0x76] sm:$0xff]
  %v2497 = vld [vmem:[#allocation3 + $0x7e] sm:$0xff]
  %v2498 = vld [vmem:[#allocation3 + $0x86] sm:$0xff]
  %v2499 = vld [vmem:[#allocation3 + $0x8e] sm:$0xff]
  %v2500 = vld [vmem:[#allocation3 + $0x96] sm:$0xff]
  %v2501 = vld [vmem:[#allocation3 + $0x9e] sm:$0xff]
  %v2502 = vld [vmem:[#allocation3 + $0xa6] sm:$0xff]
  %v2503 = vld [vmem:[#allocation3 + $0xae] sm:$0xff]
  %v2504 = vld [vmem:[#allocation3 + $0xb6] sm:$0x3f]
  %v2505 = vpack.c.bf16 %v2496, %v2495
  %v2506 = vpack.c.bf16 %v2498, %v2497
  %v2507 = vpack.c.bf16 %v2500, %v2499
  %v2508 = vpack.c.bf16 %v2502, %v2501
  %v2509 = vpack.c.bf16 %v2504, %v2503
  %2510 = vst [vmem:[#allocation6 + $0x180] sm:$0xff] %v2505
  %2511 = vst [vmem:[#allocation6 + $0x1c8] sm:$0xff] %v2506
  %2512 = vst [vmem:[#allocation6 + $0x210] sm:$0xff] %v2507
  %2513 = vst [vmem:[#allocation6 + $0x258] sm:$0xff] %v2508
  %2514 = vst [vmem:[#allocation6 + $0x2a0] sm:$0x7f] %v2509
  %v2515 = vld [vmem:[#allocation3 + $0x6f] sm:$0xff]
  %v2516 = vld [vmem:[#allocation3 + $0x77] sm:$0xff]
  %v2517 = vld [vmem:[#allocation3 + $0x7f] sm:$0xff]
  %v2518 = vld [vmem:[#allocation3 + $0x87] sm:$0xff]
  %v2519 = vld [vmem:[#allocation3 + $0x8f] sm:$0xff]
  %v2520 = vld [vmem:[#allocation3 + $0x97] sm:$0xff]
  %v2521 = vld [vmem:[#allocation3 + $0x9f] sm:$0xff]
  %v2522 = vld [vmem:[#allocation3 + $0xa7] sm:$0xff]
  %v2523 = vld [vmem:[#allocation3 + $0xaf] sm:$0xff]
  %v2524 = vld [vmem:[#allocation3 + $0xb7] sm:$0x3f]
  %v2525 = vpack.c.bf16 %v2516, %v2515
  %v2526 = vpack.c.bf16 %v2518, %v2517
  %v2527 = vpack.c.bf16 %v2520, %v2519
  %v2528 = vpack.c.bf16 %v2522, %v2521
  %v2529 = vpack.c.bf16 %v2524, %v2523
  %2530 = vst [vmem:[#allocation6 + $0x188] sm:$0xff] %v2525
  %2531 = vst [vmem:[#allocation6 + $0x1d0] sm:$0xff] %v2526
  %2532 = vst [vmem:[#allocation6 + $0x218] sm:$0xff] %v2527
  %2533 = vst [vmem:[#allocation6 + $0x260] sm:$0xff] %v2528
  %2534 = vst [vmem:[#allocation6 + $0x2a8] sm:$0x7f] %v2529
  %v2535 = vld [vmem:[#allocation3 + $0x70] sm:$0xff]
  %v2536 = vld [vmem:[#allocation3 + $0x78] sm:$0xff]
  %v2537 = vld [vmem:[#allocation3 + $0x80] sm:$0xff]
  %v2538 = vld [vmem:[#allocation3 + $0x88] sm:$0xff]
  %v2539 = vld [vmem:[#allocation3 + $0x90] sm:$0xff]
  %v2540 = vld [vmem:[#allocation3 + $0x98] sm:$0xff]
  %v2541 = vld [vmem:[#allocation3 + $0xa0] sm:$0xff]
  %v2542 = vld [vmem:[#allocation3 + $0xa8] sm:$0xff]
  %v2543 = vld [vmem:[#allocation3 + $0xb0] sm:$0xff]
  %v2544 = vld [vmem:[#allocation3 + $0xb8] sm:$0x3f]
  %v2545 = vpack.c.bf16 %v2536, %v2535
  %v2546 = vpack.c.bf16 %v2538, %v2537
  %v2547 = vpack.c.bf16 %v2540, %v2539
  %v2548 = vpack.c.bf16 %v2542, %v2541
  %v2549 = vpack.c.bf16 %v2544, %v2543
  %2550 = vst [vmem:[#allocation6 + $0x190] sm:$0xff] %v2545
  %2551 = vst [vmem:[#allocation6 + $0x1d8] sm:$0xff] %v2546
  %2552 = vst [vmem:[#allocation6 + $0x220] sm:$0xff] %v2547
  %2553 = vst [vmem:[#allocation6 + $0x268] sm:$0xff] %v2548
  %2554 = vst [vmem:[#allocation6 + $0x2b0] sm:$0x7f] %v2549
  %v2555 = vld [vmem:[#allocation3 + $0x78] sm:$0xff]
  %v2556 = vld [vmem:[#allocation3 + $0x80] sm:$0xff]
  %v2557 = vld [vmem:[#allocation3 + $0x88] sm:$0xff]
  %v2558 = vld [vmem:[#allocation3 + $0x90] sm:$0xff]
  %v2559 = vld [vmem:[#allocation3 + $0x98] sm:$0xff]
  %v2560 = vld [vmem:[#allocation3 + $0xa0] sm:$0xff]
  %v2561 = vld [vmem:[#allocation3 + $0xa8] sm:$0xff]
  %v2562 = vld [vmem:[#allocation3 + $0xb0] sm:$0xff]
  %v2563 = vld [vmem:[#allocation3 + $0xb8] sm:$0xff]
  %v2564 = vld [vmem:[#allocation3 + $0xc0] sm:$0x3f]
  %v2565 = vpack.c.bf16 %v2556, %v2555
  %v2566 = vpack.c.bf16 %v2558, %v2557
  %v2567 = vpack.c.bf16 %v2560, %v2559
  %v2568 = vpack.c.bf16 %v2562, %v2561
  %v2569 = vpack.c.bf16 %v2564, %v2563
  %2570 = vst [vmem:[#allocation6 + $0x198] sm:$0xff] %v2565
  %2571 = vst [vmem:[#allocation6 + $0x1e0] sm:$0xff] %v2566
  %2572 = vst [vmem:[#allocation6 + $0x228] sm:$0xff] %v2567
  %2573 = vst [vmem:[#allocation6 + $0x270] sm:$0xff] %v2568
  %2574 = vst [vmem:[#allocation6 + $0x2b8] sm:$0x7f] %v2569
  %v2575 = vld [vmem:[#allocation3 + $0x79] sm:$0xff]
  %v2576 = vld [vmem:[#allocation3 + $0x81] sm:$0xff]
  %v2577 = vld [vmem:[#allocation3 + $0x89] sm:$0xff]
  %v2578 = vld [vmem:[#allocation3 + $0x91] sm:$0xff]
  %v2579 = vld [vmem:[#allocation3 + $0x99] sm:$0xff]
  %v2580 = vld [vmem:[#allocation3 + $0xa1] sm:$0xff]
  %v2581 = vld [vmem:[#allocation3 + $0xa9] sm:$0xff]
  %v2582 = vld [vmem:[#allocation3 + $0xb1] sm:$0xff]
  %v2583 = vld [vmem:[#allocation3 + $0xb9] sm:$0xff]
  %v2584 = vld [vmem:[#allocation3 + $0xc1] sm:$0x3f]
  %v2585 = vpack.c.bf16 %v2576, %v2575
  %v2586 = vpack.c.bf16 %v2578, %v2577
  %v2587 = vpack.c.bf16 %v2580, %v2579
  %v2588 = vpack.c.bf16 %v2582, %v2581
  %v2589 = vpack.c.bf16 %v2584, %v2583
  %2590 = vst [vmem:[#allocation6 + $0x1a0] sm:$0xff] %v2585
  %2591 = vst [vmem:[#allocation6 + $0x1e8] sm:$0xff] %v2586
  %2592 = vst [vmem:[#allocation6 + $0x230] sm:$0xff] %v2587
  %2593 = vst [vmem:[#allocation6 + $0x278] sm:$0xff] %v2588
  %2594 = vst [vmem:[#allocation6 + $0x2c0] sm:$0x7f] %v2589
  %v2595 = vld [vmem:[#allocation3 + $0x7a] sm:$0xff]
  %v2596 = vld [vmem:[#allocation3 + $0x82] sm:$0xff]
  %v2597 = vld [vmem:[#allocation3 + $0x8a] sm:$0xff]
  %v2598 = vld [vmem:[#allocation3 + $0x92] sm:$0xff]
  %v2599 = vld [vmem:[#allocation3 + $0x9a] sm:$0xff]
  %v2600 = vld [vmem:[#allocation3 + $0xa2] sm:$0xff]
  %v2601 = vld [vmem:[#allocation3 + $0xaa] sm:$0xff]
  %v2602 = vld [vmem:[#allocation3 + $0xb2] sm:$0xff]
  %v2603 = vld [vmem:[#allocation3 + $0xba] sm:$0xff]
  %v2604 = vld [vmem:[#allocation3 + $0xc2] sm:$0x3f]
  %v2605 = vpack.c.bf16 %v2596, %v2595
  %v2606 = vpack.c.bf16 %v2598, %v2597
  %v2607 = vpack.c.bf16 %v2600, %v2599
  %v2608 = vpack.c.bf16 %v2602, %v2601
  %v2609 = vpack.c.bf16 %v2604, %v2603
  %2610 = vst [vmem:[#allocation6 + $0x1a8] sm:$0xff] %v2605
  %2611 = vst [vmem:[#allocation6 + $0x1f0] sm:$0xff] %v2606
  %2612 = vst [vmem:[#allocation6 + $0x238] sm:$0xff] %v2607
  %2613 = vst [vmem:[#allocation6 + $0x280] sm:$0xff] %v2608
  %2614 = vst [vmem:[#allocation6 + $0x2c8] sm:$0x7f] %v2609
  %v2615 = vld [vmem:[#allocation6] sm:$0xff]
  %v2616 = vld [vmem:[#allocation6 + $0x8] sm:$0xff]
  %v2617 = vld [vmem:[#allocation6 + $0x10] sm:$0xff]
  %v2618 = vld [vmem:[#allocation6 + $0x18] sm:$0xff]
  %v2619 = vld [vmem:[#allocation6 + $0x20] sm:$0xff]
  %v2620 = vld [vmem:[#allocation6 + $0x28] sm:$0xff]
  %v2621 = vld [vmem:[#allocation6 + $0x30] sm:$0xff]
  %v2622 = vld [vmem:[#allocation6 + $0x38] sm:$0xff]
  %v2623 = vld [vmem:[#allocation6 + $0x40] sm:$0xff]
  %v2624 = vld [vmem:[#allocation6 + $0x48] sm:$0xff]
  %v2625 = vld [vmem:[#allocation6 + $0x50] sm:$0xff]
  %v2626 = vld [vmem:[#allocation6 + $0x58] sm:$0xff]
  %v2627 = vld [vmem:[#allocation6 + $0x60] sm:$0xff]
  %v2628 = vld [vmem:[#allocation6 + $0x68] sm:$0xff]
  %v2629 = vld [vmem:[#allocation6 + $0x70] sm:$0xff]
  %v2630 = vld [vmem:[#allocation6 + $0x78] sm:$0xff]
  %v2631 = vld [vmem:[#allocation6 + $0x80] sm:$0xff]
  %v2632 = vld [vmem:[#allocation6 + $0x88] sm:$0xff]
  %v2633 = vld [vmem:[#allocation6 + $0x90] sm:$0xff]
  %v2634 = vld [vmem:[#allocation6 + $0x98] sm:$0xff]
  %v2635 = vld [vmem:[#allocation6 + $0xa0] sm:$0xff]
  %v2636 = vld [vmem:[#allocation6 + $0xa8] sm:$0xff]
  %v2637 = vld [vmem:[#allocation6 + $0xb0] sm:$0xff]
  %v2638 = vld [vmem:[#allocation6 + $0xb8] sm:$0xff]
  %v2639 = vld [vmem:[#allocation6 + $0xc0] sm:$0xff]
  %v2640 = vld [vmem:[#allocation6 + $0xc8] sm:$0xff]
  %v2641 = vld [vmem:[#allocation6 + $0xd0] sm:$0xff]
  %v2642 = vld [vmem:[#allocation6 + $0xd8] sm:$0xff]
  %v2643 = vld [vmem:[#allocation6 + $0xe0] sm:$0xff]
  %v2644 = vld [vmem:[#allocation6 + $0xe8] sm:$0xff]
  %v2645 = vld [vmem:[#allocation6 + $0xf0] sm:$0xff]
  %v2646 = vld [vmem:[#allocation6 + $0xf8] sm:$0xff]
  %v2647 = vld [vmem:[#allocation6 + $0x100] sm:$0xff]
  %v2648 = vld [vmem:[#allocation6 + $0x108] sm:$0xff]
  %v2649 = vld [vmem:[#allocation6 + $0x110] sm:$0xff]
  %v2650 = vld [vmem:[#allocation6 + $0x118] sm:$0xff]
  %v2651 = vld [vmem:[#allocation6 + $0x120] sm:$0xff]
  %v2652 = vld [vmem:[#allocation6 + $0x128] sm:$0xff]
  %v2653 = vld [vmem:[#allocation6 + $0x130] sm:$0xff]
  %v2654 = vld [vmem:[#allocation6 + $0x138] sm:$0xff]
  %v2655 = vld [vmem:[#allocation6 + $0x140] sm:$0xff]
  %v2656 = vld [vmem:[#allocation6 + $0x148] sm:$0xff]
  %v2657 = vld [vmem:[#allocation6 + $0x150] sm:$0xff]
  %v2658 = vld [vmem:[#allocation6 + $0x158] sm:$0xff]
  %v2659 = vld [vmem:[#allocation6 + $0x160] sm:$0xff]
  %v2660 = vld [vmem:[#allocation6 + $0x168] sm:$0xff]
  %v2661 = vld [vmem:[#allocation6 + $0x170] sm:$0xff]
  %v2662 = vld [vmem:[#allocation6 + $0x178] sm:$0xff]
  %v2663 = vld [vmem:[#allocation6 + $0x180] sm:$0xff]
  %v2664 = vld [vmem:[#allocation6 + $0x188] sm:$0xff]
  %v2665 = vld [vmem:[#allocation6 + $0x190] sm:$0xff]
  %v2666 = vld [vmem:[#allocation6 + $0x198] sm:$0xff]
  %v2667 = vld [vmem:[#allocation6 + $0x1a0] sm:$0xff]
  %v2668 = vld [vmem:[#allocation6 + $0x1a8] sm:$0xff]
  %v2669 = vld [vmem:[#allocation6 + $0x1b0] sm:$0xff]
  %v2670 = vld [vmem:[#allocation6 + $0x1b8] sm:$0xff]
  %v2671 = vld [vmem:[#allocation6 + $0x1c0] sm:$0xff]
  %v2672 = vld [vmem:[#allocation6 + $0x1c8] sm:$0xff]
  %v2673 = vld [vmem:[#allocation6 + $0x1d0] sm:$0xff]
  %v2674 = vld [vmem:[#allocation6 + $0x1d8] sm:$0xff]
  %v2675 = vld [vmem:[#allocation6 + $0x1e0] sm:$0xff]
  %v2676 = vld [vmem:[#allocation6 + $0x1e8] sm:$0xff]
  %v2677 = vld [vmem:[#allocation6 + $0x1f0] sm:$0xff]
  %v2678 = vld [vmem:[#allocation6 + $0x1f8] sm:$0xff]
  %v2679 = vld [vmem:[#allocation6 + $0x200] sm:$0xff]
  %v2680 = vld [vmem:[#allocation6 + $0x208] sm:$0xff]
  %v2681 = vld [vmem:[#allocation6 + $0x210] sm:$0xff]
  %v2682 = vld [vmem:[#allocation6 + $0x218] sm:$0xff]
  %v2683 = vld [vmem:[#allocation6 + $0x220] sm:$0xff]
  %v2684 = vld [vmem:[#allocation6 + $0x228] sm:$0xff]
  %v2685 = vld [vmem:[#allocation6 + $0x230] sm:$0xff]
  %v2686 = vld [vmem:[#allocation6 + $0x238] sm:$0xff]
  %v2687 = vld [vmem:[#allocation6 + $0x240] sm:$0xff]
  %v2688 = vld [vmem:[#allocation6 + $0x248] sm:$0xff]
  %v2689 = vld [vmem:[#allocation6 + $0x250] sm:$0xff]
  %v2690 = vld [vmem:[#allocation6 + $0x258] sm:$0xff]
  %v2691 = vld [vmem:[#allocation6 + $0x260] sm:$0xff]
  %v2692 = vld [vmem:[#allocation6 + $0x268] sm:$0xff]
  %v2693 = vld [vmem:[#allocation6 + $0x270] sm:$0xff]
  %v2694 = vld [vmem:[#allocation6 + $0x278] sm:$0xff]
  %v2695 = vld [vmem:[#allocation6 + $0x280] sm:$0xff]
  %v2696 = vld [vmem:[#allocation6 + $0x288] sm:$0xff]
  %v2697 = vld [vmem:[#allocation6 + $0x290] sm:$0xff]
  %v2698 = vld [vmem:[#allocation6 + $0x298] sm:$0xff]
  %v2699 = vld [vmem:[#allocation6 + $0x2a0] sm:$0xff]
  %v2700 = vld [vmem:[#allocation6 + $0x2a8] sm:$0xff]
  %v2701 = vld [vmem:[#allocation6 + $0x2b0] sm:$0xff]
  %v2702 = vld [vmem:[#allocation6 + $0x2b8] sm:$0xff]
  %v2703 = vld [vmem:[#allocation6 + $0x2c0] sm:$0xff]
  %v2704 = vld [vmem:[#allocation6 + $0x2c8] sm:$0xff]
  %v2705 = vld [vmem:[%s3] sm:$0xf]
  %v2706 = vld [vmem:[%s3 + $0x4] sm:$0xf]
  %v2707 = vld [vmem:[%s3 + $0x8] sm:$0xf]
  %v2708 = vld [vmem:[%s3 + $0xc] sm:$0xf]
  %v2709 = vld [vmem:[%s3 + $0x10] sm:$0xf]
  %v2710 = vld [vmem:[%s3 + $0x14] sm:$0xf]
  %v2711 = vld [vmem:[%s3 + $0x18] sm:$0xf]
  %v2712 = vld [vmem:[%s3 + $0x1c] sm:$0xf]
  %v2713 = vld [vmem:[%s3 + $0x20] sm:$0xf]
  %v2714 = vld [vmem:[%s3 + $0x24] sm:$0xf]
  %v2715 = vld [vmem:[%s3 + $0x28] sm:$0xf]
  %v2716 = vld [vmem:[%s3 + $0x2c] sm:$0xf]
  %v2717 = vld [vmem:[%s3 + $0x30] sm:$0xf]
  %v2718 = vld [vmem:[%s3 + $0x34] sm:$0xf]
  %v2719 = vld [vmem:[%s3 + $0x38] sm:$0xf]
  %v2720 = vld [vmem:[%s3 + $0x3c] sm:$0xf]
  %v2721 = vld [vmem:[%s3 + $0x40] sm:$0xf]
  %v2722 = vld [vmem:[%s3 + $0x44] sm:$0xf]
  %v2723 = vld [vmem:[%s3 + $0x48] sm:$0xf]
  %v2724 = vld [vmem:[%s3 + $0x4c] sm:$0xf]
  %v2725 = vld [vmem:[%s3 + $0x50] sm:$0xf]
  %v2726 = vld [vmem:[%s3 + $0x54] sm:$0xf]
  %v2727 = vld [vmem:[%s3 + $0x58] sm:$0xf]
  %v2728 = vld [vmem:[%s3 + $0x5c] sm:$0xf]
  %v2729 = vld [vmem:[%s3 + $0x60] sm:$0xf]
  %v2730 = vld [vmem:[%s3 + $0x64] sm:$0xf]
  %v2731 = vld [vmem:[%s3 + $0x68] sm:$0xf]
  %v2732 = vld [vmem:[%s3 + $0x6c] sm:$0xf]
  %v2733 = vld [vmem:[%s3 + $0x70] sm:$0xf]
  %v2734 = vld [vmem:[%s3 + $0x74] sm:$0xf]
  %v2735 = vld [vmem:[%s3 + $0x78] sm:$0xf]
  %v2736 = vld [vmem:[%s3 + $0x7c] sm:$0xf]
  %v2737 = vld [vmem:[%s3 + $0x80] sm:$0xf]
  %v2738 = vld [vmem:[%s3 + $0x84] sm:$0xf]
  %v2739 = vld [vmem:[%s3 + $0x88] sm:$0xf]
  %v2740 = vld [vmem:[%s3 + $0x8c] sm:$0xf]
  %v2741 = vld [vmem:[%s3 + $0x90] sm:$0xf]
  %v2742 = vld [vmem:[%s3 + $0x94] sm:$0xf]
  %v2743 = vld [vmem:[%s3 + $0x98] sm:$0xf]
  %v2744 = vld [vmem:[%s3 + $0x9c] sm:$0xf]
  %v2745 = vld [vmem:[%s3 + $0xa0] sm:$0xf]
  %v2746 = vld [vmem:[%s3 + $0xa4] sm:$0xf]
  %v2747 = vld [vmem:[%s3 + $0xa8] sm:$0xf]
  %v2748 = vld [vmem:[%s3 + $0xac] sm:$0xf]
  %v2749 = vld [vmem:[%s3 + $0xb0] sm:$0xf]
  %v2750 = vld [vmem:[%s3 + $0xb4] sm:$0xf]
  %v2751 = vld [vmem:[%s3 + $0xb8] sm:$0xf]
  %v2752 = vld [vmem:[%s3 + $0xbc] sm:$0xf]
  %v2753 = vld [vmem:[%s3 + $0xc0] sm:$0xf]
  %v2754 = vld [vmem:[%s3 + $0xc4] sm:$0xf]
  %v2755 = vld [vmem:[%s3 + $0xc8] sm:$0xf]
  %v2756 = vld [vmem:[%s3 + $0xcc] sm:$0xf]
  %v2757 = vld [vmem:[%s3 + $0xd0] sm:$0xf]
  %v2758 = vld [vmem:[%s3 + $0xd4] sm:$0xf]
  %v2759 = vld [vmem:[%s3 + $0xd8] sm:$0xf]
  %v2760 = vld [vmem:[%s3 + $0xdc] sm:$0xf]
  %v2761 = vld [vmem:[%s3 + $0xe0] sm:$0xf]
  %v2762 = vld [vmem:[%s3 + $0xe4] sm:$0xf]
  %v2763 = vld [vmem:[%s3 + $0xe8] sm:$0xf]
  %v2764 = vld [vmem:[%s3 + $0xec] sm:$0xf]
  %v2765 = vld [vmem:[%s3 + $0xf0] sm:$0xf]
  %v2766 = vld [vmem:[%s3 + $0xf4] sm:$0xf]
  %v2767 = vld [vmem:[%s3 + $0xf8] sm:$0xf]
  %v2768 = vld [vmem:[%s3 + $0xfc] sm:$0xf]
  %v2769 = vld [vmem:[%s3 + $0x100] sm:$0xf]
  %v2770 = vld [vmem:[%s3 + $0x104] sm:$0xf]
  %v2771 = vld [vmem:[%s3 + $0x108] sm:$0xf]
  %v2772 = vld [vmem:[%s3 + $0x10c] sm:$0xf]
  %v2773 = vld [vmem:[%s3 + $0x110] sm:$0xf]
  %v2774 = vld [vmem:[%s3 + $0x114] sm:$0xf]
  %v2775 = vld [vmem:[%s3 + $0x118] sm:$0xf]
  %v2776 = vld [vmem:[%s3 + $0x11c] sm:$0xf]
  %v2777 = vld [vmem:[%s3 + $0x120] sm:$0xf]
  %v2778 = vld [vmem:[%s3 + $0x124] sm:$0xf]
  %v2779 = vld [vmem:[%s3 + $0x128] sm:$0xf]
  %v2780 = vld [vmem:[%s3 + $0x12c] sm:$0xf]
  %v2781 = vld [vmem:[%s3 + $0x130] sm:$0xf]
  %v2782 = vld [vmem:[%s3 + $0x134] sm:$0xf]
  %v2783 = vld [vmem:[%s3 + $0x138] sm:$0xf]
  %v2784 = vld [vmem:[%s3 + $0x13c] sm:$0xf]
  %v2785 = vld [vmem:[%s3 + $0x140] sm:$0xf]
  %v2786 = vld [vmem:[%s3 + $0x144] sm:$0xf]
  %v2787 = vld [vmem:[%s3 + $0x148] sm:$0xf]
  %v2788 = vld [vmem:[%s3 + $0x14c] sm:$0xf]
  %v2789 = vld [vmem:[%s3 + $0x150] sm:$0xf]
  %v2790 = vld [vmem:[%s3 + $0x154] sm:$0xf]
  %v2791 = vld [vmem:[%s3 + $0x158] sm:$0xf]
  %v2792 = vld [vmem:[%s3 + $0x15c] sm:$0xf]
  %v2793 = vld [vmem:[%s3 + $0x160] sm:$0xf]
  %v2794 = vld [vmem:[%s3 + $0x164] sm:$0xf]
  %v2795 = vld [vmem:[%s3 + $0x168] sm:$0xf]
  %v2796 = vld [vmem:[%s3 + $0x16c] sm:$0xf]
  %v2797 = vld [vmem:[%s3 + $0x170] sm:$0xf]
  %v2798 = vld [vmem:[%s3 + $0x174] sm:$0xf]
  %v2799 = vld [vmem:[%s3 + $0x178] sm:$0xf]
  %v2800 = vld [vmem:[%s3 + $0x17c] sm:$0xf]
  %v2801 = vld [vmem:[%s3 + $0x180] sm:$0xf]
  %v2802 = vld [vmem:[%s3 + $0x184] sm:$0xf]
  %v2803 = vld [vmem:[%s3 + $0x188] sm:$0xf]
  %v2804 = vld [vmem:[%s3 + $0x18c] sm:$0xf]
  %v2805 = vld [vmem:[%s3 + $0x190] sm:$0xf]
  %v2806 = vld [vmem:[%s3 + $0x194] sm:$0xf]
  %v2807 = vld [vmem:[%s3 + $0x198] sm:$0xf]
  %v2808 = vld [vmem:[%s3 + $0x19c] sm:$0xf]
  %v2809 = vld [vmem:[%s3 + $0x1a0] sm:$0xf]
  %v2810 = vld [vmem:[%s3 + $0x1a4] sm:$0xf]
  %v2811 = vld [vmem:[%s3 + $0x1a8] sm:$0xf]
  %v2812 = vld [vmem:[%s3 + $0x1ac] sm:$0xf]
  %v2813 = vld [vmem:[%s3 + $0x1b0] sm:$0xf]
  %v2814 = vld [vmem:[%s3 + $0x1b4] sm:$0xf]
  %v2815 = vld [vmem:[%s3 + $0x1b8] sm:$0xf]
  %v2816 = vld [vmem:[%s3 + $0x1bc] sm:$0xf]
  %v2817 = vld [vmem:[%s3 + $0x1c0] sm:$0xf]
  %v2818 = vld [vmem:[%s3 + $0x1c4] sm:$0xf]
  %v2819 = vld [vmem:[%s3 + $0x1c8] sm:$0xf]
  %v2820 = vld [vmem:[%s3 + $0x1cc] sm:$0xf]
  %v2821 = vld [vmem:[%s3 + $0x1d0] sm:$0xf]
  %v2822 = vld [vmem:[%s3 + $0x1d4] sm:$0xf]
  %v2823 = vld [vmem:[%s3 + $0x1d8] sm:$0xf]
  %v2824 = vld [vmem:[%s3 + $0x1dc] sm:$0xf]
  %v2825 = vld [vmem:[%s3 + $0x1e0] sm:$0xf]
  %v2826 = vld [vmem:[%s3 + $0x1e4] sm:$0xf]
  %v2827 = vld [vmem:[%s3 + $0x1e8] sm:$0xf]
  %v2828 = vld [vmem:[%s3 + $0x1ec] sm:$0xf]
  %v2829 = vld [vmem:[%s3 + $0x1f0] sm:$0xf]
  %v2830 = vld [vmem:[%s3 + $0x1f4] sm:$0xf]
  %v2831 = vld [vmem:[%s3 + $0x1f8] sm:$0xf]
  %v2832 = vld [vmem:[%s3 + $0x1fc] sm:$0xf]
  %v2833 = vld [vmem:[%s3 + $0x200] sm:$0xf]
  %v2834 = vld [vmem:[%s3 + $0x204] sm:$0xf]
  %v2835 = vld [vmem:[%s3 + $0x208] sm:$0xf]
  %v2836 = vld [vmem:[%s3 + $0x20c] sm:$0xf]
  %v2837 = vld [vmem:[%s3 + $0x210] sm:$0xf]
  %v2838 = vld [vmem:[%s3 + $0x214] sm:$0xf]
  %v2839 = vld [vmem:[%s3 + $0x218] sm:$0xf]
  %v2840 = vld [vmem:[%s3 + $0x21c] sm:$0xf]
  %v2841 = vld [vmem:[%s3 + $0x220] sm:$0xf]
  %v2842 = vld [vmem:[%s3 + $0x224] sm:$0xf]
  %v2843 = vld [vmem:[%s3 + $0x228] sm:$0xf]
  %v2844 = vld [vmem:[%s3 + $0x22c] sm:$0xf]
  %v2845 = vld [vmem:[%s3 + $0x230] sm:$0xf]
  %v2846 = vld [vmem:[%s3 + $0x234] sm:$0xf]
  %v2847 = vld [vmem:[%s3 + $0x238] sm:$0xf]
  %v2848 = vld [vmem:[%s3 + $0x23c] sm:$0xf]
  %v2993 = vunpack.c.l.b16 %v2705
  %v2994 = vunpack.c.l.b16 %v2706
  %v2995 = vunpack.c.l.b16 %v2707
  %v2996 = vunpack.c.l.b16 %v2708
  %v2997 = vunpack.c.l.b16 %v2709
  %v2998 = vunpack.c.l.b16 %v2710
  %v2999 = vunpack.c.l.b16 %v2711
  %v3000 = vunpack.c.l.b16 %v2712
  %v3001 = vunpack.c.l.b16 %v2713
  %v3002 = vunpack.c.l.b16 %v2714
  %v3003 = vunpack.c.l.b16 %v2715
  %v3004 = vunpack.c.l.b16 %v2716
  %v3005 = vunpack.c.l.b16 %v2717
  %v3006 = vunpack.c.l.b16 %v2718
  %v3007 = vunpack.c.l.b16 %v2719
  %v3008 = vunpack.c.l.b16 %v2720
  %v3009 = vunpack.c.l.b16 %v2721
  %v3010 = vunpack.c.l.b16 %v2722
  %v3011 = vunpack.c.l.b16 %v2723
  %v3012 = vunpack.c.l.b16 %v2724
  %v3013 = vunpack.c.l.b16 %v2725
  %v3014 = vunpack.c.l.b16 %v2726
  %v3015 = vunpack.c.l.b16 %v2727
  %v3016 = vunpack.c.l.b16 %v2728
  %v3017 = vunpack.c.l.b16 %v2729
  %v3018 = vunpack.c.l.b16 %v2730
  %v3019 = vunpack.c.l.b16 %v2731
  %v3020 = vunpack.c.l.b16 %v2732
  %v3021 = vunpack.c.l.b16 %v2733
  %v3022 = vunpack.c.l.b16 %v2734
  %v3023 = vunpack.c.l.b16 %v2735
  %v3024 = vunpack.c.l.b16 %v2736
  %v3025 = vunpack.c.l.b16 %v2737
  %v3026 = vunpack.c.l.b16 %v2738
  %v3027 = vunpack.c.l.b16 %v2739
  %v3028 = vunpack.c.l.b16 %v2740
  %v3029 = vunpack.c.l.b16 %v2741
  %v3030 = vunpack.c.l.b16 %v2742
  %v3031 = vunpack.c.l.b16 %v2743
  %v3032 = vunpack.c.l.b16 %v2744
  %v3033 = vunpack.c.l.b16 %v2745
  %v3034 = vunpack.c.l.b16 %v2746
  %v3035 = vunpack.c.l.b16 %v2747
  %v3036 = vunpack.c.l.b16 %v2748
  %v3037 = vunpack.c.l.b16 %v2749
  %v3038 = vunpack.c.l.b16 %v2750
  %v3039 = vunpack.c.l.b16 %v2751
  %v3040 = vunpack.c.l.b16 %v2752
  %v3041 = vunpack.c.l.b16 %v2753
  %v3042 = vunpack.c.l.b16 %v2754
  %v3043 = vunpack.c.l.b16 %v2755
  %v3044 = vunpack.c.l.b16 %v2756
  %v3045 = vunpack.c.l.b16 %v2757
  %v3046 = vunpack.c.l.b16 %v2758
  %v3047 = vunpack.c.l.b16 %v2759
  %v3048 = vunpack.c.l.b16 %v2760
  %v3049 = vunpack.c.l.b16 %v2761
  %v3050 = vunpack.c.l.b16 %v2762
  %v3051 = vunpack.c.l.b16 %v2763
  %v3052 = vunpack.c.l.b16 %v2764
  %v3053 = vunpack.c.l.b16 %v2765
  %v3054 = vunpack.c.l.b16 %v2766
  %v3055 = vunpack.c.l.b16 %v2767
  %v3056 = vunpack.c.l.b16 %v2768
  %v3057 = vunpack.c.l.b16 %v2769
  %v3058 = vunpack.c.l.b16 %v2770
  %v3059 = vunpack.c.l.b16 %v2771
  %v3060 = vunpack.c.l.b16 %v2772
  %v3061 = vunpack.c.l.b16 %v2773
  %v3062 = vunpack.c.l.b16 %v2774
  %v3063 = vunpack.c.l.b16 %v2775
  %v3064 = vunpack.c.l.b16 %v2776
  %v3065 = vunpack.c.l.b16 %v2777
  %v3066 = vunpack.c.l.b16 %v2778
  %v3067 = vunpack.c.l.b16 %v2779
  %v3068 = vunpack.c.l.b16 %v2780
  %v3069 = vunpack.c.l.b16 %v2781
  %v3070 = vunpack.c.l.b16 %v2782
  %v3071 = vunpack.c.l.b16 %v2783
  %v3072 = vunpack.c.l.b16 %v2784
  %v3073 = vunpack.c.l.b16 %v2785
  %v3074 = vunpack.c.l.b16 %v2786
  %v3075 = vunpack.c.l.b16 %v2787
  %v3076 = vunpack.c.l.b16 %v2788
  %v3077 = vunpack.c.l.b16 %v2789
  %v3078 = vunpack.c.l.b16 %v2790
  %v3079 = vunpack.c.l.b16 %v2791
  %v3080 = vunpack.c.l.b16 %v2792
  %v3081 = vunpack.c.l.b16 %v2793
  %v3082 = vunpack.c.l.b16 %v2794
  %v3083 = vunpack.c.l.b16 %v2795
  %v3084 = vunpack.c.l.b16 %v2796
  %v3085 = vunpack.c.l.b16 %v2797
  %v3086 = vunpack.c.l.b16 %v2798
  %v3087 = vunpack.c.l.b16 %v2799
  %v3088 = vunpack.c.l.b16 %v2800
  %v3089 = vunpack.c.l.b16 %v2801
  %v3090 = vunpack.c.l.b16 %v2802
  %v3091 = vunpack.c.l.b16 %v2803
  %v3092 = vunpack.c.l.b16 %v2804
  %v3093 = vunpack.c.l.b16 %v2805
  %v3094 = vunpack.c.l.b16 %v2806
  %v3095 = vunpack.c.l.b16 %v2807
  %v3096 = vunpack.c.l.b16 %v2808
  %v3097 = vunpack.c.l.b16 %v2809
  %v3098 = vunpack.c.l.b16 %v2810
  %v3099 = vunpack.c.l.b16 %v2811
  %v3100 = vunpack.c.l.b16 %v2812
  %v3101 = vunpack.c.l.b16 %v2813
  %v3102 = vunpack.c.l.b16 %v2814
  %v3103 = vunpack.c.l.b16 %v2815
  %v3104 = vunpack.c.l.b16 %v2816
  %v3105 = vunpack.c.l.b16 %v2817
  %v3106 = vunpack.c.l.b16 %v2818
  %v3107 = vunpack.c.l.b16 %v2819
  %v3108 = vunpack.c.l.b16 %v2820
  %v3109 = vunpack.c.l.b16 %v2821
  %v3110 = vunpack.c.l.b16 %v2822
  %v3111 = vunpack.c.l.b16 %v2823
  %v3112 = vunpack.c.l.b16 %v2824
  %v3113 = vunpack.c.l.b16 %v2825
  %v3114 = vunpack.c.l.b16 %v2826
  %v3115 = vunpack.c.l.b16 %v2827
  %v3116 = vunpack.c.l.b16 %v2828
  %v3117 = vunpack.c.l.b16 %v2829
  %v3118 = vunpack.c.l.b16 %v2830
  %v3119 = vunpack.c.l.b16 %v2831
  %v3120 = vunpack.c.l.b16 %v2832
  %v3121 = vunpack.c.l.b16 %v2833
  %v3122 = vunpack.c.l.b16 %v2834
  %v3123 = vunpack.c.l.b16 %v2835
  %v3124 = vunpack.c.l.b16 %v2836
  %v3125 = vunpack.c.l.b16 %v2837
  %v3126 = vunpack.c.l.b16 %v2838
  %v3127 = vunpack.c.l.b16 %v2839
  %v3128 = vunpack.c.l.b16 %v2840
  %v3129 = vunpack.c.l.b16 %v2841
  %v3130 = vunpack.c.l.b16 %v2842
  %v3131 = vunpack.c.l.b16 %v2843
  %v3132 = vunpack.c.l.b16 %v2844
  %v3133 = vunpack.c.l.b16 %v2845
  %v3134 = vunpack.c.l.b16 %v2846
  %v3135 = vunpack.c.l.b16 %v2847
  %v3136 = vunpack.c.l.b16 %v2848
  %v3137 = vpack.c.b16 %v2994, %v2993
  %v3138 = vpack.c.b16 %v2996, %v2995
  %v3139 = vpack.c.b16 %v2998, %v2997
  %v3140 = vpack.c.b16 %v3000, %v2999
  %v3141 = vpack.c.b16 %v3002, %v3001
  %v3142 = vpack.c.b16 %v3004, %v3003
  %v3143 = vpack.c.b16 %v3006, %v3005
  %v3144 = vpack.c.b16 %v3008, %v3007
  %v3145 = vpack.c.b16 %v3010, %v3009
  %v3146 = vpack.c.b16 %v3012, %v3011
  %v3147 = vpack.c.b16 %v3014, %v3013
  %v3148 = vpack.c.b16 %v3016, %v3015
  %v3149 = vpack.c.b16 %v3018, %v3017
  %v3150 = vpack.c.b16 %v3020, %v3019
  %v3151 = vpack.c.b16 %v3022, %v3021
  %v3152 = vpack.c.b16 %v3024, %v3023
  %v3153 = vpack.c.b16 %v3026, %v3025
  %v3154 = vpack.c.b16 %v3028, %v3027
  %v3155 = vpack.c.b16 %v3030, %v3029
  %v3156 = vpack.c.b16 %v3032, %v3031
  %v3157 = vpack.c.b16 %v3034, %v3033
  %v3158 = vpack.c.b16 %v3036, %v3035
  %v3159 = vpack.c.b16 %v3038, %v3037
  %v3160 = vpack.c.b16 %v3040, %v3039
  %v3161 = vpack.c.b16 %v3042, %v3041
  %v3162 = vpack.c.b16 %v3044, %v3043
  %v3163 = vpack.c.b16 %v3046, %v3045
  %v3164 = vpack.c.b16 %v3048, %v3047
  %v3165 = vpack.c.b16 %v3050, %v3049
  %v3166 = vpack.c.b16 %v3052, %v3051
  %v3167 = vpack.c.b16 %v3054, %v3053
  %v3168 = vpack.c.b16 %v3056, %v3055
  %v3169 = vpack.c.b16 %v3058, %v3057
  %v3170 = vpack.c.b16 %v3060, %v3059
  %v3171 = vpack.c.b16 %v3062, %v3061
  %v3172 = vpack.c.b16 %v3064, %v3063
  %v3173 = vpack.c.b16 %v3066, %v3065
  %v3174 = vpack.c.b16 %v3068, %v3067
  %v3175 = vpack.c.b16 %v3070, %v3069
  %v3176 = vpack.c.b16 %v3072, %v3071
  %v3177 = vpack.c.b16 %v3074, %v3073
  %v3178 = vpack.c.b16 %v3076, %v3075
  %v3179 = vpack.c.b16 %v3078, %v3077
  %v3180 = vpack.c.b16 %v3080, %v3079
  %v3181 = vpack.c.b16 %v3082, %v3081
  %v3182 = vpack.c.b16 %v3084, %v3083
  %v3183 = vpack.c.b16 %v3086, %v3085
  %v3184 = vpack.c.b16 %v3088, %v3087
  %v3185 = vpack.c.b16 %v3090, %v3089
  %v3186 = vpack.c.b16 %v3092, %v3091
  %v3187 = vpack.c.b16 %v3094, %v3093
  %v3188 = vpack.c.b16 %v3096, %v3095
  %v3189 = vpack.c.b16 %v3098, %v3097
  %v3190 = vpack.c.b16 %v3100, %v3099
  %v3191 = vpack.c.b16 %v3102, %v3101
  %v3192 = vpack.c.b16 %v3104, %v3103
  %v3193 = vpack.c.b16 %v3106, %v3105
  %v3194 = vpack.c.b16 %v3108, %v3107
  %v3195 = vpack.c.b16 %v3110, %v3109
  %v3196 = vpack.c.b16 %v3112, %v3111
  %v3197 = vpack.c.b16 %v3114, %v3113
  %v3198 = vpack.c.b16 %v3116, %v3115
  %v3199 = vpack.c.b16 %v3118, %v3117
  %v3200 = vpack.c.b16 %v3120, %v3119
  %v3201 = vpack.c.b16 %v3122, %v3121
  %v3202 = vpack.c.b16 %v3124, %v3123
  %v3203 = vpack.c.b16 %v3126, %v3125
  %v3204 = vpack.c.b16 %v3128, %v3127
  %v3205 = vpack.c.b16 %v3130, %v3129
  %v3206 = vpack.c.b16 %v3132, %v3131
  %v3207 = vpack.c.b16 %v3134, %v3133
  %v3208 = vpack.c.b16 %v3136, %v3135
  %3281 = vmatprep.subr.bf16.mxu0 0
  %3282 = vmatpush1.bf16.msra.mxu0 %v3137
  %3283 = vmatprep.subr.bf16.mxu0 0
  %3284 = vmatpush1.bf16.msra.mxu0 %v3138
  %3285 = vmatprep.subr.bf16.mxu0 0
  %3286 = vmatpush1.bf16.msra.mxu0 %v3139
  %3287 = vmatprep.subr.bf16.mxu0 0
  %3288 = vmatpush1.bf16.msra.mxu0 %v3140
  %3289 = vmatprep.subr.bf16.mxu0 0
  %3290 = vmatpush1.bf16.msra.mxu0 %v3141
  %3291 = vmatprep.subr.bf16.mxu0 0
  %3292 = vmatpush1.bf16.msra.mxu0 %v3142
  %3293 = vmatprep.subr.bf16.mxu0 0
  %3294 = vmatpush1.bf16.msra.mxu0 %v3143
  %3295 = vmatprep.subr.bf16.mxu0 0
  %3296 = vmatpush1.bf16.msra.mxu0 %v3144
  %3297 = vmatprep.subr.bf16.mxu0 0
  %3298 = vmatpush1.bf16.msra.mxu0 %v3145
  %3299 = vmatprep.subr.bf16.mxu0 0
  %3300 = vmatpush1.bf16.msra.mxu0 %v3146
  %3301 = vmatprep.subr.bf16.mxu0 0
  %3302 = vmatpush1.bf16.msra.mxu0 %v3147
  %3303 = vmatprep.subr.bf16.mxu0 0
  %3304 = vmatpush1.bf16.msra.mxu0 %v3148
  %3305 = vmatprep.subr.bf16.mxu0 0
  %3306 = vmatpush1.bf16.msra.mxu0 %v3149
  %3307 = vmatprep.subr.bf16.mxu0 0
  %3308 = vmatpush1.bf16.msra.mxu0 %v3150
  %3309 = vmatprep.subr.bf16.mxu0 0
  %3310 = vmatpush1.bf16.msra.mxu0 %v3151
  %3311 = vmatprep.subr.bf16.mxu0 0
  %3312 = vmatpush1.bf16.msra.mxu0 %v3152
  %3313 = vmatprep.mubr.bf16.mxu0 %v2616
  %3314 = vmatmul.mubr.bf16.gmra.mrb[0].mxu0 %v2615
  %v3315 = vpop.f32.mrb[0].mxu0
  %v3316 = vadd.f32 0.0, %v3315
  %v3317 = vpop.f32.mrb[0].mxu0
  %v3318 = vpop.f32.mrb[0].mxu0
  %v3319 = vadd.f32 0.0, %v3318
  %v3320 = vpop.f32.mrb[0].mxu0
  %3321 = vmatprep.mubr.bf16.mxu0 %v2625
  %3322 = vmatmul.mubr.bf16.gmra.mrb[0].mxu0 %v2624
  %v3323 = vpop.f32.mrb[0].mxu0
  %v3324 = vadd.f32 0.0, %v3323
  %v3325 = vpop.f32.mrb[0].mxu0
  %v3326 = vpop.f32.mrb[0].mxu0
  %v3327 = vadd.f32 0.0, %v3326
  %v3328 = vpop.f32.mrb[0].mxu0
  %3329 = vmatprep.mubr.bf16.mxu0 %v2634
  %3330 = vmatmul.mubr.bf16.gmra.mrb[0].mxu0 %v2633
  %v3331 = vpop.f32.mrb[0].mxu0
  %v3332 = vadd.f32 0.0, %v3331
  %v3333 = vpop.f32.mrb[0].mxu0
  %v3334 = vpop.f32.mrb[0].mxu0
  %v3335 = vadd.f32 0.0, %v3334
  %v3336 = vpop.f32.mrb[0].mxu0
  %3337 = vmatprep.mubr.bf16.mxu0 %v2643
  %3338 = vmatmul.mubr.bf16.gmra.mrb[0].mxu0 %v2642
  %v3339 = vpop.f32.mrb[0].mxu0
  %v3340 = vadd.f32 0.0, %v3339
  %v3341 = vpop.f32.mrb[0].mxu0
  %v3342 = vpop.f32.mrb[0].mxu0
  %v3343 = vadd.f32 0.0, %v3342
  %v3344 = vpop.f32.mrb[0].mxu0
  %3345 = vmatprep.mubr.bf16.mxu0 %v2652
  %3346 = vmatmul.mubr.bf16.gmra.mrb[0].mxu0 %v2651
  %v3347 = vpop.f32.mrb[0].mxu0
  %v3348 = vadd.f32 0.0, %v3347
  %v3349 = vpop.f32.mrb[0].mxu0
  %v3350 = vpop.f32.mrb[0].mxu0
  %v3351 = vadd.f32 0.0, %v3350
  %v3352 = vpop.f32.mrb[0].mxu0
  %3353 = vmatprep.mubr.bf16.mxu0 %v2661
  %3354 = vmatmul.mubr.bf16.gmra.mrb[0].mxu0 %v2660
  %v3355 = vpop.f32.mrb[0].mxu0
  %v3356 = vadd.f32 0.0, %v3355
  %v3357 = vpop.f32.mrb[0].mxu0
  %v3358 = vpop.f32.mrb[0].mxu0
  %v3359 = vadd.f32 0.0, %v3358
  %v3360 = vpop.f32.mrb[0].mxu0
  %3361 = vmatprep.mubr.bf16.mxu0 %v2670
  %3362 = vmatmul.mubr.bf16.gmra.mrb[0].mxu0 %v2669
  %v3363 = vpop.f32.mrb[0].mxu0
  %v3364 = vadd.f32 0.0, %v3363
  %v3365 = vpop.f32.mrb[0].mxu0
  %v3366 = vpop.f32.mrb[0].mxu0
  %v3367 = vadd.f32 0.0, %v3366
  %v3368 = vpop.f32.mrb[0].mxu0
  %3369 = vmatprep.mubr.bf16.mxu0 %v2679
  %3370 = vmatmul.mubr.bf16.gmra.mrb[0].mxu0 %v2678
  %v3371 = vpop.f32.mrb[0].mxu0
  %v3372 = vadd.f32 0.0, %v3371
  %v3373 = vpop.f32.mrb[0].mxu0
  %v3374 = vpop.f32.mrb[0].mxu0
  %v3375 = vadd.f32 0.0, %v3374
  %v3376 = vpop.f32.mrb[0].mxu0
  %3377 = vmatprep.mubr.bf16.mxu0 %v2688
  %3378 = vmatmul.mubr.bf16.gmra.mrb[0].mxu0 %v2687
  %v3379 = vpop.f32.mrb[0].mxu0
  %v3380 = vadd.f32 0.0, %v3379
  %v3381 = vpop.f32.mrb[0].mxu0
  %v3382 = vpop.f32.mrb[0].mxu0
  %v3383 = vadd.f32 0.0, %v3382
  %v3384 = vpop.f32.mrb[0].mxu0
  %3385 = vmatprep.mubr.bf16.mxu0 %v2697
  %3386 = vmatmul.mubr.bf16.gmra.mrb[0].mxu0 %v2696
  %v3387 = vpop.f32.mrb[0].mxu0
  %v3388 = vadd.f32 0.0, %v3387
  %v3389 = vpop.f32.mrb[0].mxu0
  %v3390 = vpop.f32.mrb[0].mxu0
  %v3391 = vadd.f32 0.0, %v3390
  %v3392 = vpop.f32.mrb[0].mxu0
  %3393 = vdwg.mxu0
  %3394 = vmatprep.subr.bf16.mxu0 0
  %3395 = vmatpush1.bf16.msra.mxu0 %v3153
  %3396 = vmatprep.subr.bf16.mxu0 0
  %3397 = vmatpush1.bf16.msra.mxu0 %v3154
  %3398 = vmatprep.subr.bf16.mxu0 0
  %3399 = vmatpush1.bf16.msra.mxu0 %v3155
  %3400 = vmatprep.subr.bf16.mxu0 0
  %3401 = vmatpush1.bf16.msra.mxu0 %v3156
  %3402 = vmatprep.subr.bf16.mxu0 0
  %3403 = vmatpush1.bf16.msra.mxu0 %v3157
  %3404 = vmatprep.subr.bf16.mxu0 0
  %3405 = vmatpush1.bf16.msra.mxu0 %v3158
  %3406 = vmatprep.subr.bf16.mxu0 0
  %3407 = vmatpush1.bf16.msra.mxu0 %v3159
  %3408 = vmatprep.subr.bf16.mxu0 0
  %3409 = vmatpush1.bf16.msra.mxu0 %v3160
  %3410 = vmatprep.subr.bf16.mxu0 0
  %3411 = vmatpush1.bf16.msra.mxu0 %v3161
  %3412 = vmatprep.subr.bf16.mxu0 0
  %3413 = vmatpush1.bf16.msra.mxu0 %v3162
  %3414 = vmatprep.subr.bf16.mxu0 0
  %3415 = vmatpush1.bf16.msra.mxu0 %v3163
  %3416 = vmatprep.subr.bf16.mxu0 0
  %3417 = vmatpush1.bf16.msra.mxu0 %v3164
  %3418 = vmatprep.subr.bf16.mxu0 0
  %3419 = vmatpush1.bf16.msra.mxu0 %v3165
  %3420 = vmatprep.subr.bf16.mxu0 0
  %3421 = vmatpush1.bf16.msra.mxu0 %v3166
  %3422 = vmatprep.subr.bf16.mxu0 0
  %3423 = vmatpush1.bf16.msra.mxu0 %v3167
  %3424 = vmatprep.subr.bf16.mxu0 0
  %3425 = vmatpush1.bf16.msra.mxu0 %v3168
  %3426 = vmatprep.mubr.bf16.mxu0 %v2618
  %3427 = vmatmul.mubr.bf16.gmra.mrb[0].mxu0 %v2617
  %v3428 = vpop.f32.mrb[0].mxu0
  %v3429 = vadd.f32 %v3316, %v3428
  %v3430 = vpop.f32.mrb[0].mxu0
  %v3431 = vpop.f32.mrb[0].mxu0
  %v3432 = vadd.f32 %v3319, %v3431
  %v3433 = vpop.f32.mrb[0].mxu0
  %3434 = vmatprep.mubr.bf16.mxu0 %v2627
  %3435 = vmatmul.mubr.bf16.gmra.mrb[0].mxu0 %v2626
  %v3436 = vpop.f32.mrb[0].mxu0
  %v3437 = vadd.f32 %v3324, %v3436
  %v3438 = vpop.f32.mrb[0].mxu0
  %v3439 = vpop.f32.mrb[0].mxu0
  %v3440 = vadd.f32 %v3327, %v3439
  %v3441 = vpop.f32.mrb[0].mxu0
  %3442 = vmatprep.mubr.bf16.mxu0 %v2636
  %3443 = vmatmul.mubr.bf16.gmra.mrb[0].mxu0 %v2635
  %v3444 = vpop.f32.mrb[0].mxu0
  %v3445 = vadd.f32 %v3332, %v3444
  %v3446 = vpop.f32.mrb[0].mxu0
  %v3447 = vpop.f32.mrb[0].mxu0
  %v3448 = vadd.f32 %v3335, %v3447
  %v3449 = vpop.f32.mrb[0].mxu0
  %3450 = vmatprep.mubr.bf16.mxu0 %v2645
  %3451 = vmatmul.mubr.bf16.gmra.mrb[0].mxu0 %v2644
  %v3452 = vpop.f32.mrb[0].mxu0
  %v3453 = vadd.f32 %v3340, %v3452
  %v3454 = vpop.f32.mrb[0].mxu0
  %v3455 = vpop.f32.mrb[0].mxu0
  %v3456 = vadd.f32 %v3343, %v3455
  %v3457 = vpop.f32.mrb[0].mxu0
  %3458 = vmatprep.mubr.bf16.mxu0 %v2654
  %3459 = vmatmul.mubr.bf16.gmra.mrb[0].mxu0 %v2653
  %v3460 = vpop.f32.mrb[0].mxu0
  %v3461 = vadd.f32 %v3348, %v3460
  %v3462 = vpop.f32.mrb[0].mxu0
  %v3463 = vpop.f32.mrb[0].mxu0
  %v3464 = vadd.f32 %v3351, %v3463
  %v3465 = vpop.f32.mrb[0].mxu0
  %3466 = vmatprep.mubr.bf16.mxu0 %v2663
  %3467 = vmatmul.mubr.bf16.gmra.mrb[0].mxu0 %v2662
  %v3468 = vpop.f32.mrb[0].mxu0
  %v3469 = vadd.f32 %v3356, %v3468
  %v3470 = vpop.f32.mrb[0].mxu0
  %v3471 = vpop.f32.mrb[0].mxu0
  %v3472 = vadd.f32 %v3359, %v3471
  %v3473 = vpop.f32.mrb[0].mxu0
  %3474 = vmatprep.mubr.bf16.mxu0 %v2672
  %3475 = vmatmul.mubr.bf16.gmra.mrb[0].mxu0 %v2671
  %v3476 = vpop.f32.mrb[0].mxu0
  %v3477 = vadd.f32 %v3364, %v3476
  %v3478 = vpop.f32.mrb[0].mxu0
  %v3479 = vpop.f32.mrb[0].mxu0
  %v3480 = vadd.f32 %v3367, %v3479
  %v3481 = vpop.f32.mrb[0].mxu0
  %3482 = vmatprep.mubr.bf16.mxu0 %v2681
  %3483 = vmatmul.mubr.bf16.gmra.mrb[0].mxu0 %v2680
  %v3484 = vpop.f32.mrb[0].mxu0
  %v3485 = vadd.f32 %v3372, %v3484
  %v3486 = vpop.f32.mrb[0].mxu0
  %v3487 = vpop.f32.mrb[0].mxu0
  %v3488 = vadd.f32 %v3375, %v3487
  %v3489 = vpop.f32.mrb[0].mxu0
  %3490 = vmatprep.mubr.bf16.mxu0 %v2690
  %3491 = vmatmul.mubr.bf16.gmra.mrb[0].mxu0 %v2689
  %v3492 = vpop.f32.mrb[0].mxu0
  %v3493 = vadd.f32 %v3380, %v3492
  %v3494 = vpop.f32.mrb[0].mxu0
  %v3495 = vpop.f32.mrb[0].mxu0
  %v3496 = vadd.f32 %v3383, %v3495
  %v3497 = vpop.f32.mrb[0].mxu0
  %3498 = vmatprep.mubr.bf16.mxu0 %v2699
  %3499 = vmatmul.mubr.bf16.gmra.mrb[0].mxu0 %v2698
  %v3500 = vpop.f32.mrb[0].mxu0
  %v3501 = vadd.f32 %v3388, %v3500
  %v3502 = vpop.f32.mrb[0].mxu0
  %v3503 = vpop.f32.mrb[0].mxu0
  %v3504 = vadd.f32 %v3391, %v3503
  %v3505 = vpop.f32.mrb[0].mxu0
  %3506 = vdwg.mxu0
  %3507 = vmatprep.subr.bf16.mxu0 0
  %3508 = vmatpush1.bf16.msra.mxu0 %v3169
  %3509 = vmatprep.subr.bf16.mxu0 0
  %3510 = vmatpush1.bf16.msra.mxu0 %v3170
  %3511 = vmatprep.subr.bf16.mxu0 0
  %3512 = vmatpush1.bf16.msra.mxu0 %v3171
  %3513 = vmatprep.subr.bf16.mxu0 0
  %3514 = vmatpush1.bf16.msra.mxu0 %v3172
  %3515 = vmatprep.subr.bf16.mxu0 0
  %3516 = vmatpush1.bf16.msra.mxu0 %v3173
  %3517 = vmatprep.subr.bf16.mxu0 0
  %3518 = vmatpush1.bf16.msra.mxu0 %v3174
  %3519 = vmatprep.subr.bf16.mxu0 0
  %3520 = vmatpush1.bf16.msra.mxu0 %v3175
  %3521 = vmatprep.subr.bf16.mxu0 0
  %3522 = vmatpush1.bf16.msra.mxu0 %v3176
  %3523 = vmatprep.subr.bf16.mxu0 0
  %3524 = vmatpush1.bf16.msra.mxu0 %v3177
  %3525 = vmatprep.subr.bf16.mxu0 0
  %3526 = vmatpush1.bf16.msra.mxu0 %v3178
  %3527 = vmatprep.subr.bf16.mxu0 0
  %3528 = vmatpush1.bf16.msra.mxu0 %v3179
  %3529 = vmatprep.subr.bf16.mxu0 0
  %3530 = vmatpush1.bf16.msra.mxu0 %v3180
  %3531 = vmatprep.subr.bf16.mxu0 0
  %3532 = vmatpush1.bf16.msra.mxu0 %v3181
  %3533 = vmatprep.subr.bf16.mxu0 0
  %3534 = vmatpush1.bf16.msra.mxu0 %v3182
  %3535 = vmatprep.subr.bf16.mxu0 0
  %3536 = vmatpush1.bf16.msra.mxu0 %v3183
  %3537 = vmatprep.subr.bf16.mxu0 0
  %3538 = vmatpush1.bf16.msra.mxu0 %v3184
  %3539 = vmatprep.mubr.bf16.mxu0 %v2620
  %3540 = vmatmul.mubr.bf16.gmra.mrb[0].mxu0 %v2619
  %v3541 = vpop.f32.mrb[0].mxu0
  %v3542 = vadd.f32 %v3429, %v3541
  %v3543 = vpop.f32.mrb[0].mxu0
  %v3544 = vpop.f32.mrb[0].mxu0
  %v3545 = vadd.f32 %v3432, %v3544
  %v3546 = vpop.f32.mrb[0].mxu0
  %3547 = vmatprep.mubr.bf16.mxu0 %v2629
  %3548 = vmatmul.mubr.bf16.gmra.mrb[0].mxu0 %v2628
  %v3549 = vpop.f32.mrb[0].mxu0
  %v3550 = vadd.f32 %v3437, %v3549
  %v3551 = vpop.f32.mrb[0].mxu0
  %v3552 = vpop.f32.mrb[0].mxu0
  %v3553 = vadd.f32 %v3440, %v3552
  %v3554 = vpop.f32.mrb[0].mxu0
  %3555 = vmatprep.mubr.bf16.mxu0 %v2638
  %3556 = vmatmul.mubr.bf16.gmra.mrb[0].mxu0 %v2637
  %v3557 = vpop.f32.mrb[0].mxu0
  %v3558 = vadd.f32 %v3445, %v3557
  %v3559 = vpop.f32.mrb[0].mxu0
  %v3560 = vpop.f32.mrb[0].mxu0
  %v3561 = vadd.f32 %v3448, %v3560
  %v3562 = vpop.f32.mrb[0].mxu0
  %3563 = vmatprep.mubr.bf16.mxu0 %v2647
  %3564 = vmatmul.mubr.bf16.gmra.mrb[0].mxu0 %v2646
  %v3565 = vpop.f32.mrb[0].mxu0
  %v3566 = vadd.f32 %v3453, %v3565
  %v3567 = vpop.f32.mrb[0].mxu0
  %v3568 = vpop.f32.mrb[0].mxu0
  %v3569 = vadd.f32 %v3456, %v3568
  %v3570 = vpop.f32.mrb[0].mxu0
  %3571 = vmatprep.mubr.bf16.mxu0 %v2656
  %3572 = vmatmul.mubr.bf16.gmra.mrb[0].mxu0 %v2655
  %v3573 = vpop.f32.mrb[0].mxu0
  %v3574 = vadd.f32 %v3461, %v3573
  %v3575 = vpop.f32.mrb[0].mxu0
  %v3576 = vpop.f32.mrb[0].mxu0
  %v3577 = vadd.f32 %v3464, %v3576
  %v3578 = vpop.f32.mrb[0].mxu0
  %3579 = vmatprep.mubr.bf16.mxu0 %v2665
  %3580 = vmatmul.mubr.bf16.gmra.mrb[0].mxu0 %v2664
  %v3581 = vpop.f32.mrb[0].mxu0
  %v3582 = vadd.f32 %v3469, %v3581
  %v3583 = vpop.f32.mrb[0].mxu0
  %v3584 = vpop.f32.mrb[0].mxu0
  %v3585 = vadd.f32 %v3472, %v3584
  %v3586 = vpop.f32.mrb[0].mxu0
  %3587 = vmatprep.mubr.bf16.mxu0 %v2674
  %3588 = vmatmul.mubr.bf16.gmra.mrb[0].mxu0 %v2673
  %v3589 = vpop.f32.mrb[0].mxu0
  %v3590 = vadd.f32 %v3477, %v3589
  %v3591 = vpop.f32.mrb[0].mxu0
  %v3592 = vpop.f32.mrb[0].mxu0
  %v3593 = vadd.f32 %v3480, %v3592
  %v3594 = vpop.f32.mrb[0].mxu0
  %3595 = vmatprep.mubr.bf16.mxu0 %v2683
  %3596 = vmatmul.mubr.bf16.gmra.mrb[0].mxu0 %v2682
  %v3597 = vpop.f32.mrb[0].mxu0
  %v3598 = vadd.f32 %v3485, %v3597
  %v3599 = vpop.f32.mrb[0].mxu0
  %v3600 = vpop.f32.mrb[0].mxu0
  %v3601 = vadd.f32 %v3488, %v3600
  %v3602 = vpop.f32.mrb[0].mxu0
  %3603 = vmatprep.mubr.bf16.mxu0 %v2692
  %3604 = vmatmul.mubr.bf16.gmra.mrb[0].mxu0 %v2691
  %v3605 = vpop.f32.mrb[0].mxu0
  %v3606 = vadd.f32 %v3493, %v3605
  %v3607 = vpop.f32.mrb[0].mxu0
  %v3608 = vpop.f32.mrb[0].mxu0
  %v3609 = vadd.f32 %v3496, %v3608
  %v3610 = vpop.f32.mrb[0].mxu0
  %3611 = vmatprep.mubr.bf16.mxu0 %v2701
  %3612 = vmatmul.mubr.bf16.gmra.mrb[0].mxu0 %v2700
  %v3613 = vpop.f32.mrb[0].mxu0
  %v3614 = vadd.f32 %v3501, %v3613
  %v3615 = vpop.f32.mrb[0].mxu0
  %v3616 = vpop.f32.mrb[0].mxu0
  %v3617 = vadd.f32 %v3504, %v3616
  %v3618 = vpop.f32.mrb[0].mxu0
  %3619 = vdwg.mxu0
  %3620 = vmatprep.subr.bf16.mxu0 0
  %3621 = vmatpush1.bf16.msra.mxu0 %v3185
  %3622 = vmatprep.subr.bf16.mxu0 0
  %3623 = vmatpush1.bf16.msra.mxu0 %v3186
  %3624 = vmatprep.subr.bf16.mxu0 0
  %3625 = vmatpush1.bf16.msra.mxu0 %v3187
  %3626 = vmatprep.subr.bf16.mxu0 0
  %3627 = vmatpush1.bf16.msra.mxu0 %v3188
  %3628 = vmatprep.subr.bf16.mxu0 0
  %3629 = vmatpush1.bf16.msra.mxu0 %v3189
  %3630 = vmatprep.subr.bf16.mxu0 0
  %3631 = vmatpush1.bf16.msra.mxu0 %v3190
  %3632 = vmatprep.subr.bf16.mxu0 0
  %3633 = vmatpush1.bf16.msra.mxu0 %v3191
  %3634 = vmatprep.subr.bf16.mxu0 0
  %3635 = vmatpush1.bf16.msra.mxu0 %v3192
  %3636 = vmatprep.subr.bf16.mxu0 0
  %3637 = vmatpush1.bf16.msra.mxu0 %v3193
  %3638 = vmatprep.subr.bf16.mxu0 0
  %3639 = vmatpush1.bf16.msra.mxu0 %v3194
  %3640 = vmatprep.subr.bf16.mxu0 0
  %3641 = vmatpush1.bf16.msra.mxu0 %v3195
  %3642 = vmatprep.subr.bf16.mxu0 0
  %3643 = vmatpush1.bf16.msra.mxu0 %v3196
  %3644 = vmatprep.subr.bf16.mxu0 0
  %3645 = vmatpush1.bf16.msra.mxu0 %v3197
  %3646 = vmatprep.subr.bf16.mxu0 0
  %3647 = vmatpush1.bf16.msra.mxu0 %v3198
  %3648 = vmatprep.subr.bf16.mxu0 0
  %3649 = vmatpush1.bf16.msra.mxu0 %v3199
  %3650 = vmatprep.subr.bf16.mxu0 0
  %3651 = vmatpush1.bf16.msra.mxu0 %v3200
  %3652 = vmatprep.mubr.bf16.mxu0 %v2622
  %3653 = vmatmul.mubr.bf16.gmra.mrb[0].mxu0 %v2621
  %v3654 = vpop.f32.mrb[0].mxu0
  %v3655 = vadd.f32 %v3542, %v3654
  %v3656 = vpop.f32.mrb[0].mxu0
  %v3657 = vpop.f32.mrb[0].mxu0
  %v3658 = vadd.f32 %v3545, %v3657
  %v3659 = vpop.f32.mrb[0].mxu0
  %3660 = vmatprep.mubr.bf16.mxu0 %v2631
  %3661 = vmatmul.mubr.bf16.gmra.mrb[0].mxu0 %v2630
  %v3662 = vpop.f32.mrb[0].mxu0
  %v3663 = vadd.f32 %v3550, %v3662
  %v3664 = vpop.f32.mrb[0].mxu0
  %v3665 = vpop.f32.mrb[0].mxu0
  %v3666 = vadd.f32 %v3553, %v3665
  %v3667 = vpop.f32.mrb[0].mxu0
  %3668 = vmatprep.mubr.bf16.mxu0 %v2640
  %3669 = vmatmul.mubr.bf16.gmra.mrb[0].mxu0 %v2639
  %v3670 = vpop.f32.mrb[0].mxu0
  %v3671 = vadd.f32 %v3558, %v3670
  %v3672 = vpop.f32.mrb[0].mxu0
  %v3673 = vpop.f32.mrb[0].mxu0
  %v3674 = vadd.f32 %v3561, %v3673
  %v3675 = vpop.f32.mrb[0].mxu0
  %3676 = vmatprep.mubr.bf16.mxu0 %v2649
  %3677 = vmatmul.mubr.bf16.gmra.mrb[0].mxu0 %v2648
  %v3678 = vpop.f32.mrb[0].mxu0
  %v3679 = vadd.f32 %v3566, %v3678
  %v3680 = vpop.f32.mrb[0].mxu0
  %v3681 = vpop.f32.mrb[0].mxu0
  %v3682 = vadd.f32 %v3569, %v3681
  %v3683 = vpop.f32.mrb[0].mxu0
  %3684 = vmatprep.mubr.bf16.mxu0 %v2658
  %3685 = vmatmul.mubr.bf16.gmra.mrb[0].mxu0 %v2657
  %v3686 = vpop.f32.mrb[0].mxu0
  %v3687 = vadd.f32 %v3574, %v3686
  %v3688 = vpop.f32.mrb[0].mxu0
  %v3689 = vpop.f32.mrb[0].mxu0
  %v3690 = vadd.f32 %v3577, %v3689
  %v3691 = vpop.f32.mrb[0].mxu0
  %3692 = vmatprep.mubr.bf16.mxu0 %v2667
  %3693 = vmatmul.mubr.bf16.gmra.mrb[0].mxu0 %v2666
  %v3694 = vpop.f32.mrb[0].mxu0
  %v3695 = vadd.f32 %v3582, %v3694
  %v3696 = vpop.f32.mrb[0].mxu0
  %v3697 = vpop.f32.mrb[0].mxu0
  %v3698 = vadd.f32 %v3585, %v3697
  %v3699 = vpop.f32.mrb[0].mxu0
  %3700 = vmatprep.mubr.bf16.mxu0 %v2676
  %3701 = vmatmul.mubr.bf16.gmra.mrb[0].mxu0 %v2675
  %v3702 = vpop.f32.mrb[0].mxu0
  %v3703 = vadd.f32 %v3590, %v3702
  %v3704 = vpop.f32.mrb[0].mxu0
  %v3705 = vpop.f32.mrb[0].mxu0
  %v3706 = vadd.f32 %v3593, %v3705
  %v3707 = vpop.f32.mrb[0].mxu0
  %3708 = vmatprep.mubr.bf16.mxu0 %v2685
  %3709 = vmatmul.mubr.bf16.gmra.mrb[0].mxu0 %v2684
  %v3710 = vpop.f32.mrb[0].mxu0
  %v3711 = vadd.f32 %v3598, %v3710
  %v3712 = vpop.f32.mrb[0].mxu0
  %v3713 = vpop.f32.mrb[0].mxu0
  %v3714 = vadd.f32 %v3601, %v3713
  %v3715 = vpop.f32.mrb[0].mxu0
  %3716 = vmatprep.mubr.bf16.mxu0 %v2694
  %3717 = vmatmul.mubr.bf16.gmra.mrb[0].mxu0 %v2693
  %v3718 = vpop.f32.mrb[0].mxu0
  %v3719 = vadd.f32 %v3606, %v3718
  %v3720 = vpop.f32.mrb[0].mxu0
  %v3721 = vpop.f32.mrb[0].mxu0
  %v3722 = vadd.f32 %v3609, %v3721
  %v3723 = vpop.f32.mrb[0].mxu0
  %3724 = vmatprep.mubr.bf16.mxu0 %v2703
  %3725 = vmatmul.mubr.bf16.gmra.mrb[0].mxu0 %v2702
  %v3726 = vpop.f32.mrb[0].mxu0
  %v3727 = vadd.f32 %v3614, %v3726
  %v3728 = vpop.f32.mrb[0].mxu0
  %v3729 = vpop.f32.mrb[0].mxu0
  %v3730 = vadd.f32 %v3617, %v3729
  %v3731 = vpop.f32.mrb[0].mxu0
  %3732 = vdwg.mxu0
  %3733 = vmatprep.subr.bf16.mxu0 0
  %3734 = vmatpush1.bf16.msra.mxu0 %v3201
  %3735 = vmatprep.subr.bf16.mxu0 0
  %3736 = vmatpush1.bf16.msra.mxu0 %v3202
  %3737 = vmatprep.subr.bf16.mxu0 0
  %3738 = vmatpush1.bf16.msra.mxu0 %v3203
  %3739 = vmatprep.subr.bf16.mxu0 0
  %3740 = vmatpush1.bf16.msra.mxu0 %v3204
  %3741 = vmatprep.subr.bf16.mxu0 0
  %3742 = vmatpush1.bf16.msra.mxu0 %v3205
  %3743 = vmatprep.subr.bf16.mxu0 0
  %3744 = vmatpush1.bf16.msra.mxu0 %v3206
  %3745 = vmatprep.subr.bf16.mxu0 0
  %3746 = vmatpush1.bf16.msra.mxu0 %v3207
  %3747 = vmatprep.subr.bf16.mxu0 0
  %3748 = vmatpush1.bf16.msra.mxu0 %v3208
  %3749 = vmatprep.subr.bf16.mxu0 0
  %3750 = vmatpush1.bf16.msra.mxu0 0
  %3751 = vmatprep.subr.bf16.mxu0 0
  %3752 = vmatpush1.bf16.msra.mxu0 0
  %3753 = vmatprep.subr.bf16.mxu0 0
  %3754 = vmatpush1.bf16.msra.mxu0 0
  %3755 = vmatprep.subr.bf16.mxu0 0
  %3756 = vmatpush1.bf16.msra.mxu0 0
  %3757 = vmatprep.subr.bf16.mxu0 0
  %3758 = vmatpush1.bf16.msra.mxu0 0
  %3759 = vmatprep.subr.bf16.mxu0 0
  %3760 = vmatpush1.bf16.msra.mxu0 0
  %3761 = vmatprep.subr.bf16.mxu0 0
  %3762 = vmatpush1.bf16.msra.mxu0 0
  %3763 = vmatprep.subr.bf16.mxu0 0
  %3764 = vmatpush1.bf16.msra.mxu0 0
  %3765 = vmatprep.mubr.bf16.mxu0 0
  %3766 = vmatmul.mubr.bf16.gmra.mrb[0].mxu0 %v2623
  %v3767 = vpop.f32.mrb[0].mxu0
  %v3768 = vadd.f32 %v3655, %v3767
  %v3769 = vpop.f32.mrb[0].mxu0
  %v3770 = vpop.f32.mrb[0].mxu0
  %v3771 = vadd.f32 %v3658, %v3770
  %v3772 = vpop.f32.mrb[0].mxu0
  %3773 = vmatprep.mubr.bf16.mxu0 0
  %3774 = vmatmul.mubr.bf16.gmra.mrb[0].mxu0 %v2632
  %v3775 = vpop.f32.mrb[0].mxu0
  %v3776 = vadd.f32 %v3663, %v3775
  %v3777 = vpop.f32.mrb[0].mxu0
  %v3778 = vpop.f32.mrb[0].mxu0
  %v3779 = vadd.f32 %v3666, %v3778
  %v3780 = vpop.f32.mrb[0].mxu0
  %3781 = vmatprep.mubr.bf16.mxu0 0
  %3782 = vmatmul.mubr.bf16.gmra.mrb[0].mxu0 %v2641
  %v3783 = vpop.f32.mrb[0].mxu0
  %v3784 = vadd.f32 %v3671, %v3783
  %v3785 = vpop.f32.mrb[0].mxu0
  %v3786 = vpop.f32.mrb[0].mxu0
  %v3787 = vadd.f32 %v3674, %v3786
  %v3788 = vpop.f32.mrb[0].mxu0
  %3789 = vmatprep.mubr.bf16.mxu0 0
  %3790 = vmatmul.mubr.bf16.gmra.mrb[0].mxu0 %v2650
  %v3791 = vpop.f32.mrb[0].mxu0
  %v3792 = vadd.f32 %v3679, %v3791
  %v3793 = vpop.f32.mrb[0].mxu0
  %v3794 = vpop.f32.mrb[0].mxu0
  %v3795 = vadd.f32 %v3682, %v3794
  %v3796 = vpop.f32.mrb[0].mxu0
  %3797 = vmatprep.mubr.bf16.mxu0 0
  %3798 = vmatmul.mubr.bf16.gmra.mrb[0].mxu0 %v2659
  %v3799 = vpop.f32.mrb[0].mxu0
  %v3800 = vadd.f32 %v3687, %v3799
  %v3801 = vpop.f32.mrb[0].mxu0
  %v3802 = vpop.f32.mrb[0].mxu0
  %v3803 = vadd.f32 %v3690, %v3802
  %v3804 = vpop.f32.mrb[0].mxu0
  %3805 = vmatprep.mubr.bf16.mxu0 0
  %3806 = vmatmul.mubr.bf16.gmra.mrb[0].mxu0 %v2668
  %v3807 = vpop.f32.mrb[0].mxu0
  %v3808 = vadd.f32 %v3695, %v3807
  %v3809 = vpop.f32.mrb[0].mxu0
  %v3810 = vpop.f32.mrb[0].mxu0
  %v3811 = vadd.f32 %v3698, %v3810
  %v3812 = vpop.f32.mrb[0].mxu0
  %3813 = vmatprep.mubr.bf16.mxu0 0
  %3814 = vmatmul.mubr.bf16.gmra.mrb[0].mxu0 %v2677
  %v3815 = vpop.f32.mrb[0].mxu0
  %v3816 = vadd.f32 %v3703, %v3815
  %v3817 = vpop.f32.mrb[0].mxu0
  %v3818 = vpop.f32.mrb[0].mxu0
  %v3819 = vadd.f32 %v3706, %v3818
  %v3820 = vpop.f32.mrb[0].mxu0
  %3821 = vmatprep.mubr.bf16.mxu0 0
  %3822 = vmatmul.mubr.bf16.gmra.mrb[0].mxu0 %v2686
  %v3823 = vpop.f32.mrb[0].mxu0
  %v3824 = vadd.f32 %v3711, %v3823
  %v3825 = vpop.f32.mrb[0].mxu0
  %v3826 = vpop.f32.mrb[0].mxu0
  %v3827 = vadd.f32 %v3714, %v3826
  %v3828 = vpop.f32.mrb[0].mxu0
  %3829 = vmatprep.mubr.bf16.mxu0 0
  %3830 = vmatmul.mubr.bf16.gmra.mrb[0].mxu0 %v2695
  %v3831 = vpop.f32.mrb[0].mxu0
  %v3832 = vadd.f32 %v3719, %v3831
  %v3833 = vpop.f32.mrb[0].mxu0
  %v3834 = vpop.f32.mrb[0].mxu0
  %v3835 = vadd.f32 %v3722, %v3834
  %v3836 = vpop.f32.mrb[0].mxu0
  %3837 = vmatprep.mubr.bf16.mxu0 0
  %3838 = vmatmul.mubr.bf16.gmra.mrb[0].mxu0 %v2704
  %v3839 = vpop.f32.mrb[0].mxu0
  %v3840 = vadd.f32 %v3727, %v3839
  %v3841 = vpop.f32.mrb[0].mxu0
  %v3842 = vpop.f32.mrb[0].mxu0
  %v3843 = vadd.f32 %v3730, %v3842
  %v3844 = vpop.f32.mrb[0].mxu0
  %3845 = vdwg.mxu0
  %v3846 = vld [vmem:[%s6 + $0x4] sm:$0x1]
  %v3847 = vlaneseq
  %v3848 = vshrl.u32 %v3847, 7
  %v3849 = vsub.s32 0, %v3848
  %v3850 = vrot.slane %v3846, %v3849
  %v3851 = vmul.f32 %v3768, %v3850
  %v3852 = vmul.f32 %v3771, %v3850
  %v3853 = vmul.f32 %v3776, %v3850
  %v3854 = vmul.f32 %v3779, %v3850
  %v3855 = vmul.f32 %v3784, %v3850
  %v3856 = vmul.f32 %v3787, %v3850
  %v3857 = vmul.f32 %v3792, %v3850
  %v3858 = vmul.f32 %v3795, %v3850
  %v3859 = vmul.f32 %v3800, %v3850
  %v3860 = vmul.f32 %v3803, %v3850
  %v3861 = vmul.f32 %v3808, %v3850
  %v3862 = vmul.f32 %v3811, %v3850
  %v3863 = vmul.f32 %v3816, %v3850
  %v3864 = vmul.f32 %v3819, %v3850
  %v3865 = vmul.f32 %v3824, %v3850
  %v3866 = vmul.f32 %v3827, %v3850
  %v3867 = vmul.f32 %v3832, %v3850
  %v3868 = vmul.f32 %v3835, %v3850
  %v3869 = vmul.f32 %v3840, %v3850
  %v3870 = vmul.f32 %v3843, %v3850
  %v3871 = vld [vmem:[%s6 + $0x5] sm:$0x1]
  %v3872 = vlaneseq
  %v3873 = vshrl.u32 %v3872, 7
  %v3874 = vsub.s32 0, %v3873
  %v3875 = vrot.slane %v3871, %v3874
  %v3876 = vadd.f32 %v3851, %v3875
  %v3877 = vadd.f32 %v3852, %v3875
  %v3878 = vadd.f32 %v3853, %v3875
  %v3879 = vadd.f32 %v3854, %v3875
  %v3880 = vadd.f32 %v3855, %v3875
  %v3881 = vadd.f32 %v3856, %v3875
  %v3882 = vadd.f32 %v3857, %v3875
  %v3883 = vadd.f32 %v3858, %v3875
  %v3884 = vadd.f32 %v3859, %v3875
  %v3885 = vadd.f32 %v3860, %v3875
  %v3886 = vadd.f32 %v3861, %v3875
  %v3887 = vadd.f32 %v3862, %v3875
  %v3888 = vadd.f32 %v3863, %v3875
  %v3889 = vadd.f32 %v3864, %v3875
  %v3890 = vadd.f32 %v3865, %v3875
  %v3891 = vadd.f32 %v3866, %v3875
  %v3892 = vadd.f32 %v3867, %v3875
  %v3893 = vadd.f32 %v3868, %v3875
  %v3894 = vadd.f32 %v3869, %v3875
  %v3895 = vadd.f32 %v3870, %v3875
  %vm3896 = vcmp.ge.f32.partialorder %v3876, 0.0
  %vm3897 = vcmp.ge.f32.partialorder %v3877, 0.0
  %vm3898 = vcmp.ge.f32.partialorder %v3878, 0.0
  %vm3899 = vcmp.ge.f32.partialorder %v3879, 0.0
  %vm3900 = vcmp.ge.f32.partialorder %v3880, 0.0
  %vm3901 = vcmp.ge.f32.partialorder %v3881, 0.0
  %vm3902 = vcmp.ge.f32.partialorder %v3882, 0.0
  %vm3903 = vcmp.ge.f32.partialorder %v3883, 0.0
  %vm3904 = vcmp.ge.f32.partialorder %v3884, 0.0
  %vm3905 = vcmp.ge.f32.partialorder %v3885, 0.0
  %vm3906 = vcmp.ge.f32.partialorder %v3886, 0.0
  %vm3907 = vcmp.ge.f32.partialorder %v3887, 0.0
  %vm3908 = vcmp.ge.f32.partialorder %v3888, 0.0
  %vm3909 = vcmp.ge.f32.partialorder %v3889, 0.0
  %vm3910 = vcmp.ge.f32.partialorder %v3890, 0.0
  %vm3911 = vcmp.ge.f32.partialorder %v3891, 0.0
  %vm3912 = vcmp.ge.f32.partialorder %v3892, 0.0
  %vm3913 = vcmp.ge.f32.partialorder %v3893, 0.0
  %vm3914 = vcmp.ge.f32.partialorder %v3894, 0.0
  %vm3915 = vcmp.ge.f32.partialorder %v3895, 0.0
  %v3916 = vmul.f32 %v3876, 0.2
  %v3917 = vmul.f32 %v3877, 0.2
  %v3918 = vmul.f32 %v3878, 0.2
  %v3919 = vmul.f32 %v3879, 0.2
  %v3920 = vmul.f32 %v3880, 0.2
  %v3921 = vmul.f32 %v3881, 0.2
  %v3922 = vmul.f32 %v3882, 0.2
  %v3923 = vmul.f32 %v3883, 0.2
  %v3924 = vmul.f32 %v3884, 0.2
  %v3925 = vmul.f32 %v3885, 0.2
  %v3926 = vmul.f32 %v3886, 0.2
  %v3927 = vmul.f32 %v3887, 0.2
  %v3928 = vmul.f32 %v3888, 0.2
  %v3929 = vmul.f32 %v3889, 0.2
  %v3930 = vmul.f32 %v3890, 0.2
  %v3931 = vmul.f32 %v3891, 0.2
  %v3932 = vmul.f32 %v3892, 0.2
  %v3933 = vmul.f32 %v3893, 0.2
  %v3934 = vmul.f32 %v3894, 0.2
  %v3935 = vmul.f32 %v3895, 0.2
  %v3936 = vsel %vm3896, %v3876, %v3916
  %v3937 = vsel %vm3897, %v3877, %v3917
  %v3938 = vsel %vm3898, %v3878, %v3918
  %v3939 = vsel %vm3899, %v3879, %v3919
  %v3940 = vsel %vm3900, %v3880, %v3920
  %v3941 = vsel %vm3901, %v3881, %v3921
  %v3942 = vsel %vm3902, %v3882, %v3922
  %v3943 = vsel %vm3903, %v3883, %v3923
  %v3944 = vsel %vm3904, %v3884, %v3924
  %v3945 = vsel %vm3905, %v3885, %v3925
  %v3946 = vsel %vm3906, %v3886, %v3926
  %v3947 = vsel %vm3907, %v3887, %v3927
  %v3948 = vsel %vm3908, %v3888, %v3928
  %v3949 = vsel %vm3909, %v3889, %v3929
  %v3950 = vsel %vm3910, %v3890, %v3930
  %v3951 = vsel %vm3911, %v3891, %v3931
  %v3952 = vsel %vm3912, %v3892, %v3932
  %v3953 = vsel %vm3913, %v3893, %v3933
  %v3954 = vsel %vm3914, %v3894, %v3934
  %v3955 = vsel %vm3915, %v3895, %v3935
  %3956 = vst [vmem:[#allocation4 + $0xb] sm:$0xff] %v3936
  %3957 = vst [vmem:[#allocation4 + $0x13] sm:$0xfc] %v3937
  %3958 = vst [vmem:[#allocation4 + $0x1b] sm:$0x3] %v3938
  %3959 = vst [vmem:[#allocation4 + $0x1b] sm:$0xf0] %v3938
  %3960 = vst [vmem:[#allocation4 + $0x23] sm:$0xf] %v3939
  %3961 = vst [vmem:[#allocation4 + $0x23] sm:$0xc0] %v3939
  %3962 = vst [vmem:[#allocation4 + $0x2b] sm:$0x3f] %v3940
  %3963 = vst [vmem:[#allocation4 + $0x33] sm:$0xff] %v3941
  %3964 = vst [vmem:[#allocation4 + $0x3b] sm:$0xfc] %v3942
  %3965 = vst [vmem:[#allocation4 + $0x43] sm:$0x3] %v3943
  %3966 = vst [vmem:[#allocation4 + $0x43] sm:$0xf0] %v3943
  %3967 = vst [vmem:[#allocation4 + $0x4b] sm:$0xf] %v3944
  %3968 = vst [vmem:[#allocation4 + $0x4b] sm:$0xc0] %v3944
  %3969 = vst [vmem:[#allocation4 + $0x53] sm:$0x3f] %v3945
  %3970 = vst [vmem:[#allocation4 + $0x6f] sm:$0xff] %v3946
  %3971 = vst [vmem:[#allocation4 + $0x77] sm:$0xfc] %v3947
  %3972 = vst [vmem:[#allocation4 + $0x7f] sm:$0x3] %v3948
  %3973 = vst [vmem:[#allocation4 + $0x7f] sm:$0xf0] %v3948
  %3974 = vst [vmem:[#allocation4 + $0x87] sm:$0xf] %v3949
  %3975 = vst [vmem:[#allocation4 + $0x87] sm:$0xc0] %v3949
  %3976 = vst [vmem:[#allocation4 + $0x8f] sm:$0x3f] %v3950
  %3977 = vst [vmem:[#allocation4 + $0x97] sm:$0xff] %v3951
  %3978 = vst [vmem:[#allocation4 + $0x9f] sm:$0xfc] %v3952
  %3979 = vst [vmem:[#allocation4 + $0xa7] sm:$0x3] %v3953
  %3980 = vst [vmem:[#allocation4 + $0xa7] sm:$0xf0] %v3953
  %3981 = vst [vmem:[#allocation4 + $0xaf] sm:$0xf] %v3954
  %3982 = vst [vmem:[#allocation4 + $0xaf] sm:$0xc0] %v3954
  %3983 = vst [vmem:[#allocation4 + $0xb7] sm:$0x3f] %v3955
  %v3984 = vld [vmem:[#allocation4] sm:$0xff]
  %v3985 = vld [vmem:[#allocation4 + $0x8] sm:$0x1]
  %v3987 = vrot.slane %v3984, 1
  %v3989 = vrot.slane %v3984, 2
  %v3991 = vrot.slane %v3984, 3
  %vm3993 = vcmask 1040384
  %v3994 = vsel %vm3993, %v3984, %v3987
  %vm3995 = vcmask 1041408
  %v3996 = vsel %vm3995, %v3994, %v3989
  %vm3997 = vcmask 1042432
  %v3998 = vsel %vm3997, %v3996, %v3991
  %v3999 = vpack.c.bf16 %v3998, %v3998
  %4000 = vst [vmem:[#allocation6] sm:$0x3] %v3999
  %v4001 = vrot.slane %v3984, 4
  %v4003 = vsel %vm3993, %v3987, %v3989
  %v4004 = vsel %vm3995, %v4003, %v3991
  %v4005 = vsel %vm3997, %v4004, %v4001
  %v4006 = vpack.c.bf16 %v4005, %v4005
  %4007 = vst [vmem:[#allocation6 + $0x8] sm:$0x3] %v4006
  %v4009 = vrot.slane %v3985, 5
  %v4011 = vsel %vm3993, %v3989, %v3991
  %v4012 = vsel %vm3995, %v4011, %v4001
  %v4013 = vsel %vm3997, %v4012, %v4009
  %v4014 = vpack.c.bf16 %v4013, %v4013
  %4015 = vst [vmem:[#allocation6 + $0x10] sm:$0x3] %v4014
  %v4016 = vld [vmem:[#allocation4 + $0xa] sm:$0xff]
  %v4017 = vld [vmem:[#allocation4 + $0x12] sm:$0x1]
  %v4019 = vrot.slane %v4016, 1
  %v4021 = vrot.slane %v4016, 2
  %v4023 = vrot.slane %v4016, 3
  %v4025 = vsel %vm3993, %v4016, %v4019
  %v4026 = vsel %vm3995, %v4025, %v4021
  %v4027 = vsel %vm3997, %v4026, %v4023
  %v4028 = vpack.c.bf16 %v4027, %v4027
  %4029 = vst [vmem:[#allocation6 + $0x18] sm:$0x3] %v4028
  %v4030 = vrot.slane %v4016, 4
  %v4032 = vsel %vm3993, %v4019, %v4021
  %v4033 = vsel %vm3995, %v4032, %v4023
  %v4034 = vsel %vm3997, %v4033, %v4030
  %v4035 = vpack.c.bf16 %v4034, %v4034
  %4036 = vst [vmem:[#allocation6 + $0x20] sm:$0x3] %v4035
  %v4038 = vrot.slane %v4017, 5
  %v4040 = vsel %vm3993, %v4021, %v4023
  %v4041 = vsel %vm3995, %v4040, %v4030
  %v4042 = vsel %vm3997, %v4041, %v4038
  %v4043 = vpack.c.bf16 %v4042, %v4042
  %4044 = vst [vmem:[#allocation6 + $0x28] sm:$0x3] %v4043
  %v4045 = vld [vmem:[#allocation4 + $0x14] sm:$0xff]
  %v4046 = vld [vmem:[#allocation4 + $0x1c] sm:$0x1]
  %v4048 = vrot.slane %v4045, 1
  %v4050 = vrot.slane %v4045, 2
  %v4052 = vrot.slane %v4045, 3
  %v4054 = vsel %vm3993, %v4045, %v4048
  %v4055 = vsel %vm3995, %v4054, %v4050
  %v4056 = vsel %vm3997, %v4055, %v4052
  %v4057 = vpack.c.bf16 %v4056, %v4056
  %4058 = vst [vmem:[#allocation6 + $0x30] sm:$0x3] %v4057
  %v4059 = vrot.slane %v4045, 4
  %v4061 = vsel %vm3993, %v4048, %v4050
  %v4062 = vsel %vm3995, %v4061, %v4052
  %v4063 = vsel %vm3997, %v4062, %v4059
  %v4064 = vpack.c.bf16 %v4063, %v4063
  %4065 = vst [vmem:[#allocation6 + $0x38] sm:$0x3] %v4064
  %v4067 = vrot.slane %v4046, 5
  %v4069 = vsel %vm3993, %v4050, %v4052
  %v4070 = vsel %vm3995, %v4069, %v4059
  %v4071 = vsel %vm3997, %v4070, %v4067
  %v4072 = vpack.c.bf16 %v4071, %v4071
  %4073 = vst [vmem:[#allocation6 + $0x40] sm:$0x3] %v4072
  %v4074 = vld [vmem:[#allocation4 + $0x14] sm:$0xff]
  %v4075 = vld [vmem:[#allocation4 + $0x1c] sm:$0x1]
  %v4077 = vrot.slane %v4074, 1
  %v4079 = vrot.slane %v4074, 2
  %v4081 = vrot.slane %v4074, 3
  %v4083 = vsel %vm3993, %v4074, %v4077
  %v4084 = vsel %vm3995, %v4083, %v4079
  %v4085 = vsel %vm3997, %v4084, %v4081
  %v4086 = vpack.c.bf16 %v4085, %v4085
  %v4088 = vrot.slane %v4086, 6
  %4090 = vst [vmem:[#allocation6] sm:$0xc] %v4088
  %v4091 = vrot.slane %v4074, 4
  %v4093 = vsel %vm3993, %v4077, %v4079
  %v4094 = vsel %vm3995, %v4093, %v4081
  %v4095 = vsel %vm3997, %v4094, %v4091
  %v4096 = vpack.c.bf16 %v4095, %v4095
  %v4098 = vrot.slane %v4096, 6
  %4100 = vst [vmem:[#allocation6 + $0x8] sm:$0xc] %v4098
  %v4102 = vrot.slane %v4075, 5
  %v4104 = vsel %vm3993, %v4079, %v4081
  %v4105 = vsel %vm3995, %v4104, %v4091
  %v4106 = vsel %vm3997, %v4105, %v4102
  %v4107 = vpack.c.bf16 %v4106, %v4106
  %v4109 = vrot.slane %v4107, 6
  %4111 = vst [vmem:[#allocation6 + $0x10] sm:$0xc] %v4109
  %v4112 = vld [vmem:[#allocation4 + $0x1e] sm:$0xff]
  %v4113 = vld [vmem:[#allocation4 + $0x26] sm:$0x1]
  %v4115 = vrot.slane %v4112, 1
  %v4117 = vrot.slane %v4112, 2
  %v4119 = vrot.slane %v4112, 3
  %v4121 = vsel %vm3993, %v4112, %v4115
  %v4122 = vsel %vm3995, %v4121, %v4117
  %v4123 = vsel %vm3997, %v4122, %v4119
  %v4124 = vpack.c.bf16 %v4123, %v4123
  %v4126 = vrot.slane %v4124, 6
  %4128 = vst [vmem:[#allocation6 + $0x18] sm:$0xc] %v4126
  %v4129 = vrot.slane %v4112, 4
  %v4131 = vsel %vm3993, %v4115, %v4117
  %v4132 = vsel %vm3995, %v4131, %v4119
  %v4133 = vsel %vm3997, %v4132, %v4129
  %v4134 = vpack.c.bf16 %v4133, %v4133
  %v4136 = vrot.slane %v4134, 6
  %4138 = vst [vmem:[#allocation6 + $0x20] sm:$0xc] %v4136
  %v4140 = vrot.slane %v4113, 5
  %v4142 = vsel %vm3993, %v4117, %v4119
  %v4143 = vsel %vm3995, %v4142, %v4129
  %v4144 = vsel %vm3997, %v4143, %v4140
  %v4145 = vpack.c.bf16 %v4144, %v4144
  %v4147 = vrot.slane %v4145, 6
  %4149 = vst [vmem:[#allocation6 + $0x28] sm:$0xc] %v4147
  %v4150 = vld [vmem:[#allocation4 + $0x28] sm:$0xff]
  %v4151 = vld [vmem:[#allocation4 + $0x30] sm:$0x1]
  %v4153 = vrot.slane %v4150, 1
  %v4155 = vrot.slane %v4150, 2
  %v4157 = vrot.slane %v4150, 3
  %v4159 = vsel %vm3993, %v4150, %v4153
  %v4160 = vsel %vm3995, %v4159, %v4155
  %v4161 = vsel %vm3997, %v4160, %v4157
  %v4162 = vpack.c.bf16 %v4161, %v4161
  %v4164 = vrot.slane %v4162, 6
  %4166 = vst [vmem:[#allocation6 + $0x30] sm:$0xc] %v4164
  %v4167 = vrot.slane %v4150, 4
  %v4169 = vsel %vm3993, %v4153, %v4155
  %v4170 = vsel %vm3995, %v4169, %v4157
  %v4171 = vsel %vm3997, %v4170, %v4167
  %v4172 = vpack.c.bf16 %v4171, %v4171
  %v4174 = vrot.slane %v4172, 6
  %4176 = vst [vmem:[#allocation6 + $0x38] sm:$0xc] %v4174
  %v4178 = vrot.slane %v4151, 5
  %v4180 = vsel %vm3993, %v4155, %v4157
  %v4181 = vsel %vm3995, %v4180, %v4167
  %v4182 = vsel %vm3997, %v4181, %v4178
  %v4183 = vpack.c.bf16 %v4182, %v4182
  %v4185 = vrot.slane %v4183, 6
  %4187 = vst [vmem:[#allocation6 + $0x40] sm:$0xc] %v4185
  %v4188 = vld [vmem:[#allocation4 + $0x28] sm:$0xff]
  %v4189 = vld [vmem:[#allocation4 + $0x30] sm:$0x1]
  %v4191 = vrot.slane %v4188, 1
  %v4193 = vrot.slane %v4188, 2
  %v4195 = vrot.slane %v4188, 3
  %v4197 = vsel %vm3993, %v4188, %v4191
  %v4198 = vsel %vm3995, %v4197, %v4193
  %v4199 = vsel %vm3997, %v4198, %v4195
  %v4200 = vpack.c.bf16 %v4199, %v4199
  %v4202 = vrot.slane %v4200, 4
  %4204 = vst [vmem:[#allocation6] sm:$0x30] %v4202
  %v4205 = vrot.slane %v4188, 4
  %v4207 = vsel %vm3993, %v4191, %v4193
  %v4208 = vsel %vm3995, %v4207, %v4195
  %v4209 = vsel %vm3997, %v4208, %v4205
  %v4210 = vpack.c.bf16 %v4209, %v4209
  %v4212 = vrot.slane %v4210, 4
  %4214 = vst [vmem:[#allocation6 + $0x8] sm:$0x30] %v4212
  %v4216 = vrot.slane %v4189, 5
  %v4218 = vsel %vm3993, %v4193, %v4195
  %v4219 = vsel %vm3995, %v4218, %v4205
  %v4220 = vsel %vm3997, %v4219, %v4216
  %v4221 = vpack.c.bf16 %v4220, %v4220
  %v4223 = vrot.slane %v4221, 4
  %4225 = vst [vmem:[#allocation6 + $0x10] sm:$0x30] %v4223
  %v4226 = vld [vmem:[#allocation4 + $0x32] sm:$0xff]
  %v4227 = vld [vmem:[#allocation4 + $0x3a] sm:$0x1]
  %v4229 = vrot.slane %v4226, 1
  %v4231 = vrot.slane %v4226, 2
  %v4233 = vrot.slane %v4226, 3
  %v4235 = vsel %vm3993, %v4226, %v4229
  %v4236 = vsel %vm3995, %v4235, %v4231
  %v4237 = vsel %vm3997, %v4236, %v4233
  %v4238 = vpack.c.bf16 %v4237, %v4237
  %v4240 = vrot.slane %v4238, 4
  %4242 = vst [vmem:[#allocation6 + $0x18] sm:$0x30] %v4240
  %v4243 = vrot.slane %v4226, 4
  %v4245 = vsel %vm3993, %v4229, %v4231
  %v4246 = vsel %vm3995, %v4245, %v4233
  %v4247 = vsel %vm3997, %v4246, %v4243
  %v4248 = vpack.c.bf16 %v4247, %v4247
  %v4250 = vrot.slane %v4248, 4
  %4252 = vst [vmem:[#allocation6 + $0x20] sm:$0x30] %v4250
  %v4254 = vrot.slane %v4227, 5
  %v4256 = vsel %vm3993, %v4231, %v4233
  %v4257 = vsel %vm3995, %v4256, %v4243
  %v4258 = vsel %vm3997, %v4257, %v4254
  %v4259 = vpack.c.bf16 %v4258, %v4258
  %v4261 = vrot.slane %v4259, 4
  %4263 = vst [vmem:[#allocation6 + $0x28] sm:$0x30] %v4261
  %v4264 = vld [vmem:[#allocation4 + $0x3c] sm:$0xff]
  %v4265 = vld [vmem:[#allocation4 + $0x44] sm:$0x1]
  %v4267 = vrot.slane %v4264, 1
  %v4269 = vrot.slane %v4264, 2
  %v4271 = vrot.slane %v4264, 3
  %v4273 = vsel %vm3993, %v4264, %v4267
  %v4274 = vsel %vm3995, %v4273, %v4269
  %v4275 = vsel %vm3997, %v4274, %v4271
  %v4276 = vpack.c.bf16 %v4275, %v4275
  %v4278 = vrot.slane %v4276, 4
  %4280 = vst [vmem:[#allocation6 + $0x30] sm:$0x30] %v4278
  %v4281 = vrot.slane %v4264, 4
  %v4283 = vsel %vm3993, %v4267, %v4269
  %v4284 = vsel %vm3995, %v4283, %v4271
  %v4285 = vsel %vm3997, %v4284, %v4281
  %v4286 = vpack.c.bf16 %v4285, %v4285
  %v4288 = vrot.slane %v4286, 4
  %4290 = vst [vmem:[#allocation6 + $0x38] sm:$0x30] %v4288
  %v4292 = vrot.slane %v4265, 5
  %v4294 = vsel %vm3993, %v4269, %v4271
  %v4295 = vsel %vm3995, %v4294, %v4281
  %v4296 = vsel %vm3997, %v4295, %v4292
  %v4297 = vpack.c.bf16 %v4296, %v4296
  %v4299 = vrot.slane %v4297, 4
  %4301 = vst [vmem:[#allocation6 + $0x40] sm:$0x30] %v4299
  %v4302 = vld [vmem:[#allocation4 + $0x3c] sm:$0xff]
  %v4303 = vld [vmem:[#allocation4 + $0x44] sm:$0x1]
  %v4305 = vrot.slane %v4302, 1
  %v4307 = vrot.slane %v4302, 2
  %v4309 = vrot.slane %v4302, 3
  %v4311 = vsel %vm3993, %v4302, %v4305
  %v4312 = vsel %vm3995, %v4311, %v4307
  %v4313 = vsel %vm3997, %v4312, %v4309
  %v4314 = vpack.c.bf16 %v4313, %v4313
  %v4316 = vrot.slane %v4314, 2
  %4318 = vst [vmem:[#allocation6] sm:$0xc0] %v4316
  %v4319 = vrot.slane %v4302, 4
  %v4321 = vsel %vm3993, %v4305, %v4307
  %v4322 = vsel %vm3995, %v4321, %v4309
  %v4323 = vsel %vm3997, %v4322, %v4319
  %v4324 = vpack.c.bf16 %v4323, %v4323
  %v4326 = vrot.slane %v4324, 2
  %4328 = vst [vmem:[#allocation6 + $0x8] sm:$0xc0] %v4326
  %v4330 = vrot.slane %v4303, 5
  %v4332 = vsel %vm3993, %v4307, %v4309
  %v4333 = vsel %vm3995, %v4332, %v4319
  %v4334 = vsel %vm3997, %v4333, %v4330
  %v4335 = vpack.c.bf16 %v4334, %v4334
  %v4337 = vrot.slane %v4335, 2
  %4339 = vst [vmem:[#allocation6 + $0x10] sm:$0xc0] %v4337
  %v4340 = vld [vmem:[#allocation4 + $0x46] sm:$0xff]
  %v4341 = vld [vmem:[#allocation4 + $0x4e] sm:$0x1]
  %v4343 = vrot.slane %v4340, 1
  %v4345 = vrot.slane %v4340, 2
  %v4347 = vrot.slane %v4340, 3
  %v4349 = vsel %vm3993, %v4340, %v4343
  %v4350 = vsel %vm3995, %v4349, %v4345
  %v4351 = vsel %vm3997, %v4350, %v4347
  %v4352 = vpack.c.bf16 %v4351, %v4351
  %v4354 = vrot.slane %v4352, 2
  %4356 = vst [vmem:[#allocation6 + $0x18] sm:$0xc0] %v4354
  %v4357 = vrot.slane %v4340, 4
  %v4359 = vsel %vm3993, %v4343, %v4345
  %v4360 = vsel %vm3995, %v4359, %v4347
  %v4361 = vsel %vm3997, %v4360, %v4357
  %v4362 = vpack.c.bf16 %v4361, %v4361
  %v4364 = vrot.slane %v4362, 2
  %4366 = vst [vmem:[#allocation6 + $0x20] sm:$0xc0] %v4364
  %v4368 = vrot.slane %v4341, 5
  %v4370 = vsel %vm3993, %v4345, %v4347
  %v4371 = vsel %vm3995, %v4370, %v4357
  %v4372 = vsel %vm3997, %v4371, %v4368
  %v4373 = vpack.c.bf16 %v4372, %v4372
  %v4375 = vrot.slane %v4373, 2
  %4377 = vst [vmem:[#allocation6 + $0x28] sm:$0xc0] %v4375
  %v4378 = vld [vmem:[#allocation4 + $0x50] sm:$0xff]
  %v4379 = vld [vmem:[#allocation4 + $0x58] sm:$0x1]
  %v4381 = vrot.slane %v4378, 1
  %v4383 = vrot.slane %v4378, 2
  %v4385 = vrot.slane %v4378, 3
  %v4387 = vsel %vm3993, %v4378, %v4381
  %v4388 = vsel %vm3995, %v4387, %v4383
  %v4389 = vsel %vm3997, %v4388, %v4385
  %v4390 = vpack.c.bf16 %v4389, %v4389
  %v4392 = vrot.slane %v4390, 2
  %4394 = vst [vmem:[#allocation6 + $0x30] sm:$0xc0] %v4392
  %v4395 = vrot.slane %v4378, 4
  %v4397 = vsel %vm3993, %v4381, %v4383
  %v4398 = vsel %vm3995, %v4397, %v4385
  %v4399 = vsel %vm3997, %v4398, %v4395
  %v4400 = vpack.c.bf16 %v4399, %v4399
  %v4402 = vrot.slane %v4400, 2
  %4404 = vst [vmem:[#allocation6 + $0x38] sm:$0xc0] %v4402
  %v4406 = vrot.slane %v4379, 5
  %v4408 = vsel %vm3993, %v4383, %v4385
  %v4409 = vsel %vm3995, %v4408, %v4395
  %v4410 = vsel %vm3997, %v4409, %v4406
  %v4411 = vpack.c.bf16 %v4410, %v4410
  %v4413 = vrot.slane %v4411, 2
  %4415 = vst [vmem:[#allocation6 + $0x40] sm:$0xc0] %v4413
  %v4416 = vld [vmem:[#allocation4 + $0x64] sm:$0xff]
  %v4417 = vld [vmem:[#allocation4 + $0x6c] sm:$0x1]
  %v4419 = vrot.slane %v4416, 1
  %v4421 = vrot.slane %v4416, 2
  %v4423 = vrot.slane %v4416, 3
  %v4425 = vsel %vm3993, %v4416, %v4419
  %v4426 = vsel %vm3995, %v4425, %v4421
  %v4427 = vsel %vm3997, %v4426, %v4423
  %v4428 = vpack.c.bf16 %v4427, %v4427
  %4429 = vst [vmem:[#allocation6 + $0x48] sm:$0x3] %v4428
  %v4430 = vrot.slane %v4416, 4
  %v4432 = vsel %vm3993, %v4419, %v4421
  %v4433 = vsel %vm3995, %v4432, %v4423
  %v4434 = vsel %vm3997, %v4433, %v4430
  %v4435 = vpack.c.bf16 %v4434, %v4434
  %4436 = vst [vmem:[#allocation6 + $0x50] sm:$0x3] %v4435
  %v4438 = vrot.slane %v4417, 5
  %v4440 = vsel %vm3993, %v4421, %v4423
  %v4441 = vsel %vm3995, %v4440, %v4430
  %v4442 = vsel %vm3997, %v4441, %v4438
  %v4443 = vpack.c.bf16 %v4442, %v4442
  %4444 = vst [vmem:[#allocation6 + $0x58] sm:$0x3] %v4443
  %v4445 = vld [vmem:[#allocation4 + $0x6e] sm:$0xff]
  %v4446 = vld [vmem:[#allocation4 + $0x76] sm:$0x1]
  %v4448 = vrot.slane %v4445, 1
  %v4450 = vrot.slane %v4445, 2
  %v4452 = vrot.slane %v4445, 3
  %v4454 = vsel %vm3993, %v4445, %v4448
  %v4455 = vsel %vm3995, %v4454, %v4450
  %v4456 = vsel %vm3997, %v4455, %v4452
  %v4457 = vpack.c.bf16 %v4456, %v4456
  %4458 = vst [vmem:[#allocation6 + $0x60] sm:$0x3] %v4457
  %v4459 = vrot.slane %v4445, 4
  %v4461 = vsel %vm3993, %v4448, %v4450
  %v4462 = vsel %vm3995, %v4461, %v4452
  %v4463 = vsel %vm3997, %v4462, %v4459
  %v4464 = vpack.c.bf16 %v4463, %v4463
  %4465 = vst [vmem:[#allocation6 + $0x68] sm:$0x3] %v4464
  %v4467 = vrot.slane %v4446, 5
  %v4469 = vsel %vm3993, %v4450, %v4452
  %v4470 = vsel %vm3995, %v4469, %v4459
  %v4471 = vsel %vm3997, %v4470, %v4467
  %v4472 = vpack.c.bf16 %v4471, %v4471
  %4473 = vst [vmem:[#allocation6 + $0x70] sm:$0x3] %v4472
  %v4474 = vld [vmem:[#allocation4 + $0x78] sm:$0xff]
  %v4475 = vld [vmem:[#allocation4 + $0x80] sm:$0x1]
  %v4477 = vrot.slane %v4474, 1
  %v4479 = vrot.slane %v4474, 2
  %v4481 = vrot.slane %v4474, 3
  %v4483 = vsel %vm3993, %v4474, %v4477
  %v4484 = vsel %vm3995, %v4483, %v4479
  %v4485 = vsel %vm3997, %v4484, %v4481
  %v4486 = vpack.c.bf16 %v4485, %v4485
  %4487 = vst [vmem:[#allocation6 + $0x78] sm:$0x3] %v4486
  %v4488 = vrot.slane %v4474, 4
  %v4490 = vsel %vm3993, %v4477, %v4479
  %v4491 = vsel %vm3995, %v4490, %v4481
  %v4492 = vsel %vm3997, %v4491, %v4488
  %v4493 = vpack.c.bf16 %v4492, %v4492
  %4494 = vst [vmem:[#allocation6 + $0x80] sm:$0x3] %v4493
  %v4496 = vrot.slane %v4475, 5
  %v4498 = vsel %vm3993, %v4479, %v4481
  %v4499 = vsel %vm3995, %v4498, %v4488
  %v4500 = vsel %vm3997, %v4499, %v4496
  %v4501 = vpack.c.bf16 %v4500, %v4500
  %4502 = vst [vmem:[#allocation6 + $0x88] sm:$0x3] %v4501
  %v4503 = vld [vmem:[#allocation4 + $0x78] sm:$0xff]
  %v4504 = vld [vmem:[#allocation4 + $0x80] sm:$0x1]
  %v4506 = vrot.slane %v4503, 1
  %v4508 = vrot.slane %v4503, 2
  %v4510 = vrot.slane %v4503, 3
  %v4512 = vsel %vm3993, %v4503, %v4506
  %v4513 = vsel %vm3995, %v4512, %v4508
  %v4514 = vsel %vm3997, %v4513, %v4510
  %v4515 = vpack.c.bf16 %v4514, %v4514
  %v4517 = vrot.slane %v4515, 6
  %4519 = vst [vmem:[#allocation6 + $0x48] sm:$0xc] %v4517
  %v4520 = vrot.slane %v4503, 4
  %v4522 = vsel %vm3993, %v4506, %v4508
  %v4523 = vsel %vm3995, %v4522, %v4510
  %v4524 = vsel %vm3997, %v4523, %v4520
  %v4525 = vpack.c.bf16 %v4524, %v4524
  %v4527 = vrot.slane %v4525, 6
  %4529 = vst [vmem:[#allocation6 + $0x50] sm:$0xc] %v4527
  %v4531 = vrot.slane %v4504, 5
  %v4533 = vsel %vm3993, %v4508, %v4510
  %v4534 = vsel %vm3995, %v4533, %v4520
  %v4535 = vsel %vm3997, %v4534, %v4531
  %v4536 = vpack.c.bf16 %v4535, %v4535
  %v4538 = vrot.slane %v4536, 6
  %4540 = vst [vmem:[#allocation6 + $0x58] sm:$0xc] %v4538
  %v4541 = vld [vmem:[#allocation4 + $0x82] sm:$0xff]
  %v4542 = vld [vmem:[#allocation4 + $0x8a] sm:$0x1]
  %v4544 = vrot.slane %v4541, 1
  %v4546 = vrot.slane %v4541, 2
  %v4548 = vrot.slane %v4541, 3
  %v4550 = vsel %vm3993, %v4541, %v4544
  %v4551 = vsel %vm3995, %v4550, %v4546
  %v4552 = vsel %vm3997, %v4551, %v4548
  %v4553 = vpack.c.bf16 %v4552, %v4552
  %v4555 = vrot.slane %v4553, 6
  %4557 = vst [vmem:[#allocation6 + $0x60] sm:$0xc] %v4555
  %v4558 = vrot.slane %v4541, 4
  %v4560 = vsel %vm3993, %v4544, %v4546
  %v4561 = vsel %vm3995, %v4560, %v4548
  %v4562 = vsel %vm3997, %v4561, %v4558
  %v4563 = vpack.c.bf16 %v4562, %v4562
  %v4565 = vrot.slane %v4563, 6
  %4567 = vst [vmem:[#allocation6 + $0x68] sm:$0xc] %v4565
  %v4569 = vrot.slane %v4542, 5
  %v4571 = vsel %vm3993, %v4546, %v4548
  %v4572 = vsel %vm3995, %v4571, %v4558
  %v4573 = vsel %vm3997, %v4572, %v4569
  %v4574 = vpack.c.bf16 %v4573, %v4573
  %v4576 = vrot.slane %v4574, 6
  %4578 = vst [vmem:[#allocation6 + $0x70] sm:$0xc] %v4576
  %v4579 = vld [vmem:[#allocation4 + $0x8c] sm:$0xff]
  %v4580 = vld [vmem:[#allocation4 + $0x94] sm:$0x1]
  %v4582 = vrot.slane %v4579, 1
  %v4584 = vrot.slane %v4579, 2
  %v4586 = vrot.slane %v4579, 3
  %v4588 = vsel %vm3993, %v4579, %v4582
  %v4589 = vsel %vm3995, %v4588, %v4584
  %v4590 = vsel %vm3997, %v4589, %v4586
  %v4591 = vpack.c.bf16 %v4590, %v4590
  %v4593 = vrot.slane %v4591, 6
  %4595 = vst [vmem:[#allocation6 + $0x78] sm:$0xc] %v4593
  %v4596 = vrot.slane %v4579, 4
  %v4598 = vsel %vm3993, %v4582, %v4584
  %v4599 = vsel %vm3995, %v4598, %v4586
  %v4600 = vsel %vm3997, %v4599, %v4596
  %v4601 = vpack.c.bf16 %v4600, %v4600
  %v4603 = vrot.slane %v4601, 6
  %4605 = vst [vmem:[#allocation6 + $0x80] sm:$0xc] %v4603
  %v4607 = vrot.slane %v4580, 5
  %v4609 = vsel %vm3993, %v4584, %v4586
  %v4610 = vsel %vm3995, %v4609, %v4596
  %v4611 = vsel %vm3997, %v4610, %v4607
  %v4612 = vpack.c.bf16 %v4611, %v4611
  %v4614 = vrot.slane %v4612, 6
  %4616 = vst [vmem:[#allocation6 + $0x88] sm:$0xc] %v4614
  %v4617 = vld [vmem:[#allocation4 + $0x8c] sm:$0xff]
  %v4618 = vld [vmem:[#allocation4 + $0x94] sm:$0x1]
  %v4620 = vrot.slane %v4617, 1
  %v4622 = vrot.slane %v4617, 2
  %v4624 = vrot.slane %v4617, 3
  %v4626 = vsel %vm3993, %v4617, %v4620
  %v4627 = vsel %vm3995, %v4626, %v4622
  %v4628 = vsel %vm3997, %v4627, %v4624
  %v4629 = vpack.c.bf16 %v4628, %v4628
  %v4631 = vrot.slane %v4629, 4
  %4633 = vst [vmem:[#allocation6 + $0x48] sm:$0x30] %v4631
  %v4634 = vrot.slane %v4617, 4
  %v4636 = vsel %vm3993, %v4620, %v4622
  %v4637 = vsel %vm3995, %v4636, %v4624
  %v4638 = vsel %vm3997, %v4637, %v4634
  %v4639 = vpack.c.bf16 %v4638, %v4638
  %v4641 = vrot.slane %v4639, 4
  %4643 = vst [vmem:[#allocation6 + $0x50] sm:$0x30] %v4641
  %v4645 = vrot.slane %v4618, 5
  %v4647 = vsel %vm3993, %v4622, %v4624
  %v4648 = vsel %vm3995, %v4647, %v4634
  %v4649 = vsel %vm3997, %v4648, %v4645
  %v4650 = vpack.c.bf16 %v4649, %v4649
  %v4652 = vrot.slane %v4650, 4
  %4654 = vst [vmem:[#allocation6 + $0x58] sm:$0x30] %v4652
  %v4655 = vld [vmem:[#allocation4 + $0x96] sm:$0xff]
  %v4656 = vld [vmem:[#allocation4 + $0x9e] sm:$0x1]
  %v4658 = vrot.slane %v4655, 1
  %v4660 = vrot.slane %v4655, 2
  %v4662 = vrot.slane %v4655, 3
  %v4664 = vsel %vm3993, %v4655, %v4658
  %v4665 = vsel %vm3995, %v4664, %v4660
  %v4666 = vsel %vm3997, %v4665, %v4662
  %v4667 = vpack.c.bf16 %v4666, %v4666
  %v4669 = vrot.slane %v4667, 4
  %4671 = vst [vmem:[#allocation6 + $0x60] sm:$0x30] %v4669
  %v4672 = vrot.slane %v4655, 4
  %v4674 = vsel %vm3993, %v4658, %v4660
  %v4675 = vsel %vm3995, %v4674, %v4662
  %v4676 = vsel %vm3997, %v4675, %v4672
  %v4677 = vpack.c.bf16 %v4676, %v4676
  %v4679 = vrot.slane %v4677, 4
  %4681 = vst [vmem:[#allocation6 + $0x68] sm:$0x30] %v4679
  %v4683 = vrot.slane %v4656, 5
  %v4685 = vsel %vm3993, %v4660, %v4662
  %v4686 = vsel %vm3995, %v4685, %v4672
  %v4687 = vsel %vm3997, %v4686, %v4683
  %v4688 = vpack.c.bf16 %v4687, %v4687
  %v4690 = vrot.slane %v4688, 4
  %4692 = vst [vmem:[#allocation6 + $0x70] sm:$0x30] %v4690
  %v4693 = vld [vmem:[#allocation4 + $0xa0] sm:$0xff]
  %v4694 = vld [vmem:[#allocation4 + $0xa8] sm:$0x1]
  %v4696 = vrot.slane %v4693, 1
  %v4698 = vrot.slane %v4693, 2
  %v4700 = vrot.slane %v4693, 3
  %v4702 = vsel %vm3993, %v4693, %v4696
  %v4703 = vsel %vm3995, %v4702, %v4698
  %v4704 = vsel %vm3997, %v4703, %v4700
  %v4705 = vpack.c.bf16 %v4704, %v4704
  %v4707 = vrot.slane %v4705, 4
  %4709 = vst [vmem:[#allocation6 + $0x78] sm:$0x30] %v4707
  %v4710 = vrot.slane %v4693, 4
  %v4712 = vsel %vm3993, %v4696, %v4698
  %v4713 = vsel %vm3995, %v4712, %v4700
  %v4714 = vsel %vm3997, %v4713, %v4710
  %v4715 = vpack.c.bf16 %v4714, %v4714
  %v4717 = vrot.slane %v4715, 4
  %4719 = vst [vmem:[#allocation6 + $0x80] sm:$0x30] %v4717
  %v4721 = vrot.slane %v4694, 5
  %v4723 = vsel %vm3993, %v4698, %v4700
  %v4724 = vsel %vm3995, %v4723, %v4710
  %v4725 = vsel %vm3997, %v4724, %v4721
  %v4726 = vpack.c.bf16 %v4725, %v4725
  %v4728 = vrot.slane %v4726, 4
  %4730 = vst [vmem:[#allocation6 + $0x88] sm:$0x30] %v4728
  %v4731 = vld [vmem:[#allocation4 + $0xa0] sm:$0xff]
  %v4732 = vld [vmem:[#allocation4 + $0xa8] sm:$0x1]
  %v4734 = vrot.slane %v4731, 1
  %v4736 = vrot.slane %v4731, 2
  %v4738 = vrot.slane %v4731, 3
  %v4740 = vsel %vm3993, %v4731, %v4734
  %v4741 = vsel %vm3995, %v4740, %v4736
  %v4742 = vsel %vm3997, %v4741, %v4738
  %v4743 = vpack.c.bf16 %v4742, %v4742
  %v4745 = vrot.slane %v4743, 2
  %4747 = vst [vmem:[#allocation6 + $0x48] sm:$0xc0] %v4745
  %v4748 = vrot.slane %v4731, 4
  %v4750 = vsel %vm3993, %v4734, %v4736
  %v4751 = vsel %vm3995, %v4750, %v4738
  %v4752 = vsel %vm3997, %v4751, %v4748
  %v4753 = vpack.c.bf16 %v4752, %v4752
  %v4755 = vrot.slane %v4753, 2
  %4757 = vst [vmem:[#allocation6 + $0x50] sm:$0xc0] %v4755
  %v4759 = vrot.slane %v4732, 5
  %v4761 = vsel %vm3993, %v4736, %v4738
  %v4762 = vsel %vm3995, %v4761, %v4748
  %v4763 = vsel %vm3997, %v4762, %v4759
  %v4764 = vpack.c.bf16 %v4763, %v4763
  %v4766 = vrot.slane %v4764, 2
  %4768 = vst [vmem:[#allocation6 + $0x58] sm:$0xc0] %v4766
  %v4769 = vld [vmem:[#allocation4 + $0xaa] sm:$0xff]
  %v4770 = vld [vmem:[#allocation4 + $0xb2] sm:$0x1]
  %v4772 = vrot.slane %v4769, 1
  %v4774 = vrot.slane %v4769, 2
  %v4776 = vrot.slane %v4769, 3
  %v4778 = vsel %vm3993, %v4769, %v4772
  %v4779 = vsel %vm3995, %v4778, %v4774
  %v4780 = vsel %vm3997, %v4779, %v4776
  %v4781 = vpack.c.bf16 %v4780, %v4780
  %v4783 = vrot.slane %v4781, 2
  %4785 = vst [vmem:[#allocation6 + $0x60] sm:$0xc0] %v4783
  %v4786 = vrot.slane %v4769, 4
  %v4788 = vsel %vm3993, %v4772, %v4774
  %v4789 = vsel %vm3995, %v4788, %v4776
  %v4790 = vsel %vm3997, %v4789, %v4786
  %v4791 = vpack.c.bf16 %v4790, %v4790
  %v4793 = vrot.slane %v4791, 2
  %4795 = vst [vmem:[#allocation6 + $0x68] sm:$0xc0] %v4793
  %v4797 = vrot.slane %v4770, 5
  %v4799 = vsel %vm3993, %v4774, %v4776
  %v4800 = vsel %vm3995, %v4799, %v4786
  %v4801 = vsel %vm3997, %v4800, %v4797
  %v4802 = vpack.c.bf16 %v4801, %v4801
  %v4804 = vrot.slane %v4802, 2
  %4806 = vst [vmem:[#allocation6 + $0x70] sm:$0xc0] %v4804
  %v4807 = vld [vmem:[#allocation4 + $0xb4] sm:$0xff]
  %v4808 = vld [vmem:[#allocation4 + $0xbc] sm:$0x1]
  %v4810 = vrot.slane %v4807, 1
  %v4812 = vrot.slane %v4807, 2
  %v4814 = vrot.slane %v4807, 3
  %v4816 = vsel %vm3993, %v4807, %v4810
  %v4817 = vsel %vm3995, %v4816, %v4812
  %v4818 = vsel %vm3997, %v4817, %v4814
  %v4819 = vpack.c.bf16 %v4818, %v4818
  %v4821 = vrot.slane %v4819, 2
  %4823 = vst [vmem:[#allocation6 + $0x78] sm:$0xc0] %v4821
  %v4824 = vrot.slane %v4807, 4
  %v4826 = vsel %vm3993, %v4810, %v4812
  %v4827 = vsel %vm3995, %v4826, %v4814
  %v4828 = vsel %vm3997, %v4827, %v4824
  %v4829 = vpack.c.bf16 %v4828, %v4828
  %v4831 = vrot.slane %v4829, 2
  %4833 = vst [vmem:[#allocation6 + $0x80] sm:$0xc0] %v4831
  %v4835 = vrot.slane %v4808, 5
  %v4837 = vsel %vm3993, %v4812, %v4814
  %v4838 = vsel %vm3995, %v4837, %v4824
  %v4839 = vsel %vm3997, %v4838, %v4835
  %v4840 = vpack.c.bf16 %v4839, %v4839
  %v4842 = vrot.slane %v4840, 2
  %4844 = vst [vmem:[#allocation6 + $0x88] sm:$0xc0] %v4842
  %v4845 = vld [vmem:[#allocation6] sm:$0xff]
  %v4846 = vld [vmem:[#allocation6 + $0x8] sm:$0xff]
  %v4847 = vld [vmem:[#allocation6 + $0x10] sm:$0xff]
  %v4848 = vld [vmem:[#allocation6 + $0x18] sm:$0xff]
  %v4849 = vld [vmem:[#allocation6 + $0x20] sm:$0xff]
  %v4850 = vld [vmem:[#allocation6 + $0x28] sm:$0xff]
  %v4851 = vld [vmem:[#allocation6 + $0x30] sm:$0xff]
  %v4852 = vld [vmem:[#allocation6 + $0x38] sm:$0xff]
  %v4853 = vld [vmem:[#allocation6 + $0x40] sm:$0xff]
  %v4854 = vld [vmem:[#allocation6 + $0x48] sm:$0xff]
  %v4855 = vld [vmem:[#allocation6 + $0x50] sm:$0xff]
  %v4856 = vld [vmem:[#allocation6 + $0x58] sm:$0xff]
  %v4857 = vld [vmem:[#allocation6 + $0x60] sm:$0xff]
  %v4858 = vld [vmem:[#allocation6 + $0x68] sm:$0xff]
  %v4859 = vld [vmem:[#allocation6 + $0x70] sm:$0xff]
  %v4860 = vld [vmem:[#allocation6 + $0x78] sm:$0xff]
  %v4861 = vld [vmem:[#allocation6 + $0x80] sm:$0xff]
  %v4862 = vld [vmem:[#allocation6 + $0x88] sm:$0xff]
  %v4863 = vld [vmem:[%s4] sm:$0xf]
  %v4864 = vld [vmem:[%s4 + $0x4] sm:$0xf]
  %v4865 = vld [vmem:[%s4 + $0x8] sm:$0xf]
  %v4866 = vld [vmem:[%s4 + $0xc] sm:$0xf]
  %v4867 = vld [vmem:[%s4 + $0x10] sm:$0xf]
  %v4868 = vld [vmem:[%s4 + $0x14] sm:$0xf]
  %v4869 = vld [vmem:[%s4 + $0x18] sm:$0xf]
  %v4870 = vld [vmem:[%s4 + $0x1c] sm:$0xf]
  %v4871 = vld [vmem:[%s4 + $0x20] sm:$0xf]
  %v4872 = vld [vmem:[%s4 + $0x24] sm:$0xf]
  %v4873 = vld [vmem:[%s4 + $0x28] sm:$0xf]
  %v4874 = vld [vmem:[%s4 + $0x2c] sm:$0xf]
  %v4875 = vld [vmem:[%s4 + $0x30] sm:$0xf]
  %v4876 = vld [vmem:[%s4 + $0x34] sm:$0xf]
  %v4877 = vld [vmem:[%s4 + $0x38] sm:$0xf]
  %v4878 = vld [vmem:[%s4 + $0x3c] sm:$0xf]
  %v4879 = vld [vmem:[%s4 + $0x40] sm:$0xf]
  %v4880 = vld [vmem:[%s4 + $0x44] sm:$0xf]
  %v4881 = vld [vmem:[%s4 + $0x48] sm:$0xf]
  %v4882 = vld [vmem:[%s4 + $0x4c] sm:$0xf]
  %v4883 = vld [vmem:[%s4 + $0x50] sm:$0xf]
  %v4884 = vld [vmem:[%s4 + $0x54] sm:$0xf]
  %v4885 = vld [vmem:[%s4 + $0x58] sm:$0xf]
  %v4886 = vld [vmem:[%s4 + $0x5c] sm:$0xf]
  %v4887 = vld [vmem:[%s4 + $0x60] sm:$0xf]
  %v4888 = vld [vmem:[%s4 + $0x64] sm:$0xf]
  %v4889 = vld [vmem:[%s4 + $0x68] sm:$0xf]
  %v4890 = vld [vmem:[%s4 + $0x6c] sm:$0xf]
  %v4891 = vld [vmem:[%s4 + $0x70] sm:$0xf]
  %v4892 = vld [vmem:[%s4 + $0x74] sm:$0xf]
  %v4893 = vld [vmem:[%s4 + $0x78] sm:$0xf]
  %v4894 = vld [vmem:[%s4 + $0x7c] sm:$0xf]
  %v4895 = vld [vmem:[%s4 + $0x80] sm:$0xf]
  %v4896 = vld [vmem:[%s4 + $0x84] sm:$0xf]
  %v4897 = vld [vmem:[%s4 + $0x88] sm:$0xf]
  %v4898 = vld [vmem:[%s4 + $0x8c] sm:$0xf]
  %v4899 = vld [vmem:[%s4 + $0x90] sm:$0xf]
  %v4900 = vld [vmem:[%s4 + $0x94] sm:$0xf]
  %v4901 = vld [vmem:[%s4 + $0x98] sm:$0xf]
  %v4902 = vld [vmem:[%s4 + $0x9c] sm:$0xf]
  %v4903 = vld [vmem:[%s4 + $0xa0] sm:$0xf]
  %v4904 = vld [vmem:[%s4 + $0xa4] sm:$0xf]
  %v4905 = vld [vmem:[%s4 + $0xa8] sm:$0xf]
  %v4906 = vld [vmem:[%s4 + $0xac] sm:$0xf]
  %v4907 = vld [vmem:[%s4 + $0xb0] sm:$0xf]
  %v4908 = vld [vmem:[%s4 + $0xb4] sm:$0xf]
  %v4909 = vld [vmem:[%s4 + $0xb8] sm:$0xf]
  %v4910 = vld [vmem:[%s4 + $0xbc] sm:$0xf]
  %v4911 = vld [vmem:[%s4 + $0xc0] sm:$0xf]
  %v4912 = vld [vmem:[%s4 + $0xc4] sm:$0xf]
  %v4913 = vld [vmem:[%s4 + $0xc8] sm:$0xf]
  %v4914 = vld [vmem:[%s4 + $0xcc] sm:$0xf]
  %v4915 = vld [vmem:[%s4 + $0xd0] sm:$0xf]
  %v4916 = vld [vmem:[%s4 + $0xd4] sm:$0xf]
  %v4917 = vld [vmem:[%s4 + $0xd8] sm:$0xf]
  %v4918 = vld [vmem:[%s4 + $0xdc] sm:$0xf]
  %v4919 = vld [vmem:[%s4 + $0xe0] sm:$0xf]
  %v4920 = vld [vmem:[%s4 + $0xe4] sm:$0xf]
  %v4921 = vld [vmem:[%s4 + $0xe8] sm:$0xf]
  %v4922 = vld [vmem:[%s4 + $0xec] sm:$0xf]
  %v4923 = vld [vmem:[%s4 + $0xf0] sm:$0xf]
  %v4924 = vld [vmem:[%s4 + $0xf4] sm:$0xf]
  %v4925 = vld [vmem:[%s4 + $0xf8] sm:$0xf]
  %v4926 = vld [vmem:[%s4 + $0xfc] sm:$0xf]
  %v4927 = vld [vmem:[%s4 + $0x100] sm:$0xf]
  %v4928 = vld [vmem:[%s4 + $0x104] sm:$0xf]
  %v4929 = vld [vmem:[%s4 + $0x108] sm:$0xf]
  %v4930 = vld [vmem:[%s4 + $0x10c] sm:$0xf]
  %v4931 = vld [vmem:[%s4 + $0x110] sm:$0xf]
  %v4932 = vld [vmem:[%s4 + $0x114] sm:$0xf]
  %v4933 = vld [vmem:[%s4 + $0x118] sm:$0xf]
  %v4934 = vld [vmem:[%s4 + $0x11c] sm:$0xf]
  %v4935 = vld [vmem:[%s4 + $0x120] sm:$0xf]
  %v4936 = vld [vmem:[%s4 + $0x124] sm:$0xf]
  %v4937 = vld [vmem:[%s4 + $0x128] sm:$0xf]
  %v4938 = vld [vmem:[%s4 + $0x12c] sm:$0xf]
  %v4939 = vld [vmem:[%s4 + $0x130] sm:$0xf]
  %v4940 = vld [vmem:[%s4 + $0x134] sm:$0xf]
  %v4941 = vld [vmem:[%s4 + $0x138] sm:$0xf]
  %v4942 = vld [vmem:[%s4 + $0x13c] sm:$0xf]
  %v4943 = vld [vmem:[%s4 + $0x140] sm:$0xf]
  %v4944 = vld [vmem:[%s4 + $0x144] sm:$0xf]
  %v4945 = vld [vmem:[%s4 + $0x148] sm:$0xf]
  %v4946 = vld [vmem:[%s4 + $0x14c] sm:$0xf]
  %v4947 = vld [vmem:[%s4 + $0x150] sm:$0xf]
  %v4948 = vld [vmem:[%s4 + $0x154] sm:$0xf]
  %v4949 = vld [vmem:[%s4 + $0x158] sm:$0xf]
  %v4950 = vld [vmem:[%s4 + $0x15c] sm:$0xf]
  %v4951 = vld [vmem:[%s4 + $0x160] sm:$0xf]
  %v4952 = vld [vmem:[%s4 + $0x164] sm:$0xf]
  %v4953 = vld [vmem:[%s4 + $0x168] sm:$0xf]
  %v4954 = vld [vmem:[%s4 + $0x16c] sm:$0xf]
  %v4955 = vld [vmem:[%s4 + $0x170] sm:$0xf]
  %v4956 = vld [vmem:[%s4 + $0x174] sm:$0xf]
  %v4957 = vld [vmem:[%s4 + $0x178] sm:$0xf]
  %v4958 = vld [vmem:[%s4 + $0x17c] sm:$0xf]
  %v4959 = vld [vmem:[%s4 + $0x180] sm:$0xf]
  %v4960 = vld [vmem:[%s4 + $0x184] sm:$0xf]
  %v4961 = vld [vmem:[%s4 + $0x188] sm:$0xf]
  %v4962 = vld [vmem:[%s4 + $0x18c] sm:$0xf]
  %v4963 = vld [vmem:[%s4 + $0x190] sm:$0xf]
  %v4964 = vld [vmem:[%s4 + $0x194] sm:$0xf]
  %v4965 = vld [vmem:[%s4 + $0x198] sm:$0xf]
  %v4966 = vld [vmem:[%s4 + $0x19c] sm:$0xf]
  %v4967 = vld [vmem:[%s4 + $0x1a0] sm:$0xf]
  %v4968 = vld [vmem:[%s4 + $0x1a4] sm:$0xf]
  %v4969 = vld [vmem:[%s4 + $0x1a8] sm:$0xf]
  %v4970 = vld [vmem:[%s4 + $0x1ac] sm:$0xf]
  %v4971 = vld [vmem:[%s4 + $0x1b0] sm:$0xf]
  %v4972 = vld [vmem:[%s4 + $0x1b4] sm:$0xf]
  %v4973 = vld [vmem:[%s4 + $0x1b8] sm:$0xf]
  %v4974 = vld [vmem:[%s4 + $0x1bc] sm:$0xf]
  %v4975 = vld [vmem:[%s4 + $0x1c0] sm:$0xf]
  %v4976 = vld [vmem:[%s4 + $0x1c4] sm:$0xf]
  %v4977 = vld [vmem:[%s4 + $0x1c8] sm:$0xf]
  %v4978 = vld [vmem:[%s4 + $0x1cc] sm:$0xf]
  %v4979 = vld [vmem:[%s4 + $0x1d0] sm:$0xf]
  %v4980 = vld [vmem:[%s4 + $0x1d4] sm:$0xf]
  %v4981 = vld [vmem:[%s4 + $0x1d8] sm:$0xf]
  %v4982 = vld [vmem:[%s4 + $0x1dc] sm:$0xf]
  %v4983 = vld [vmem:[%s4 + $0x1e0] sm:$0xf]
  %v4984 = vld [vmem:[%s4 + $0x1e4] sm:$0xf]
  %v4985 = vld [vmem:[%s4 + $0x1e8] sm:$0xf]
  %v4986 = vld [vmem:[%s4 + $0x1ec] sm:$0xf]
  %v4987 = vld [vmem:[%s4 + $0x1f0] sm:$0xf]
  %v4988 = vld [vmem:[%s4 + $0x1f4] sm:$0xf]
  %v4989 = vld [vmem:[%s4 + $0x1f8] sm:$0xf]
  %v4990 = vld [vmem:[%s4 + $0x1fc] sm:$0xf]
  %v4991 = vld [vmem:[%s4 + $0x200] sm:$0xf]
  %v4992 = vld [vmem:[%s4 + $0x204] sm:$0xf]
  %v4993 = vld [vmem:[%s4 + $0x208] sm:$0xf]
  %v4994 = vld [vmem:[%s4 + $0x20c] sm:$0xf]
  %v4995 = vld [vmem:[%s4 + $0x210] sm:$0xf]
  %v4996 = vld [vmem:[%s4 + $0x214] sm:$0xf]
  %v4997 = vld [vmem:[%s4 + $0x218] sm:$0xf]
  %v4998 = vld [vmem:[%s4 + $0x21c] sm:$0xf]
  %v4999 = vld [vmem:[%s4 + $0x220] sm:$0xf]
  %v5000 = vld [vmem:[%s4 + $0x224] sm:$0xf]
  %v5001 = vld [vmem:[%s4 + $0x228] sm:$0xf]
  %v5002 = vld [vmem:[%s4 + $0x22c] sm:$0xf]
  %v5003 = vld [vmem:[%s4 + $0x230] sm:$0xf]
  %v5004 = vld [vmem:[%s4 + $0x234] sm:$0xf]
  %v5005 = vld [vmem:[%s4 + $0x238] sm:$0xf]
  %v5006 = vld [vmem:[%s4 + $0x23c] sm:$0xf]
  %v5151 = vunpack.c.l.b16 %v4863
  %v5152 = vunpack.c.l.b16 %v4864
  %v5153 = vunpack.c.l.b16 %v4865
  %v5154 = vunpack.c.l.b16 %v4866
  %v5155 = vunpack.c.l.b16 %v4867
  %v5156 = vunpack.c.l.b16 %v4868
  %v5157 = vunpack.c.l.b16 %v4869
  %v5158 = vunpack.c.l.b16 %v4870
  %v5159 = vunpack.c.l.b16 %v4871
  %v5160 = vunpack.c.l.b16 %v4872
  %v5161 = vunpack.c.l.b16 %v4873
  %v5162 = vunpack.c.l.b16 %v4874
  %v5163 = vunpack.c.l.b16 %v4875
  %v5164 = vunpack.c.l.b16 %v4876
  %v5165 = vunpack.c.l.b16 %v4877
  %v5166 = vunpack.c.l.b16 %v4878
  %v5167 = vunpack.c.l.b16 %v4879
  %v5168 = vunpack.c.l.b16 %v4880
  %v5169 = vunpack.c.l.b16 %v4881
  %v5170 = vunpack.c.l.b16 %v4882
  %v5171 = vunpack.c.l.b16 %v4883
  %v5172 = vunpack.c.l.b16 %v4884
  %v5173 = vunpack.c.l.b16 %v4885
  %v5174 = vunpack.c.l.b16 %v4886
  %v5175 = vunpack.c.l.b16 %v4887
  %v5176 = vunpack.c.l.b16 %v4888
  %v5177 = vunpack.c.l.b16 %v4889
  %v5178 = vunpack.c.l.b16 %v4890
  %v5179 = vunpack.c.l.b16 %v4891
  %v5180 = vunpack.c.l.b16 %v4892
  %v5181 = vunpack.c.l.b16 %v4893
  %v5182 = vunpack.c.l.b16 %v4894
  %v5183 = vunpack.c.l.b16 %v4895
  %v5184 = vunpack.c.l.b16 %v4896
  %v5185 = vunpack.c.l.b16 %v4897
  %v5186 = vunpack.c.l.b16 %v4898
  %v5187 = vunpack.c.l.b16 %v4899
  %v5188 = vunpack.c.l.b16 %v4900
  %v5189 = vunpack.c.l.b16 %v4901
  %v5190 = vunpack.c.l.b16 %v4902
  %v5191 = vunpack.c.l.b16 %v4903
  %v5192 = vunpack.c.l.b16 %v4904
  %v5193 = vunpack.c.l.b16 %v4905
  %v5194 = vunpack.c.l.b16 %v4906
  %v5195 = vunpack.c.l.b16 %v4907
  %v5196 = vunpack.c.l.b16 %v4908
  %v5197 = vunpack.c.l.b16 %v4909
  %v5198 = vunpack.c.l.b16 %v4910
  %v5199 = vunpack.c.l.b16 %v4911
  %v5200 = vunpack.c.l.b16 %v4912
  %v5201 = vunpack.c.l.b16 %v4913
  %v5202 = vunpack.c.l.b16 %v4914
  %v5203 = vunpack.c.l.b16 %v4915
  %v5204 = vunpack.c.l.b16 %v4916
  %v5205 = vunpack.c.l.b16 %v4917
  %v5206 = vunpack.c.l.b16 %v4918
  %v5207 = vunpack.c.l.b16 %v4919
  %v5208 = vunpack.c.l.b16 %v4920
  %v5209 = vunpack.c.l.b16 %v4921
  %v5210 = vunpack.c.l.b16 %v4922
  %v5211 = vunpack.c.l.b16 %v4923
  %v5212 = vunpack.c.l.b16 %v4924
  %v5213 = vunpack.c.l.b16 %v4925
  %v5214 = vunpack.c.l.b16 %v4926
  %v5215 = vunpack.c.l.b16 %v4927
  %v5216 = vunpack.c.l.b16 %v4928
  %v5217 = vunpack.c.l.b16 %v4929
  %v5218 = vunpack.c.l.b16 %v4930
  %v5219 = vunpack.c.l.b16 %v4931
  %v5220 = vunpack.c.l.b16 %v4932
  %v5221 = vunpack.c.l.b16 %v4933
  %v5222 = vunpack.c.l.b16 %v4934
  %v5223 = vunpack.c.l.b16 %v4935
  %v5224 = vunpack.c.l.b16 %v4936
  %v5225 = vunpack.c.l.b16 %v4937
  %v5226 = vunpack.c.l.b16 %v4938
  %v5227 = vunpack.c.l.b16 %v4939
  %v5228 = vunpack.c.l.b16 %v4940
  %v5229 = vunpack.c.l.b16 %v4941
  %v5230 = vunpack.c.l.b16 %v4942
  %v5231 = vunpack.c.l.b16 %v4943
  %v5232 = vunpack.c.l.b16 %v4944
  %v5233 = vunpack.c.l.b16 %v4945
  %v5234 = vunpack.c.l.b16 %v4946
  %v5235 = vunpack.c.l.b16 %v4947
  %v5236 = vunpack.c.l.b16 %v4948
  %v5237 = vunpack.c.l.b16 %v4949
  %v5238 = vunpack.c.l.b16 %v4950
  %v5239 = vunpack.c.l.b16 %v4951
  %v5240 = vunpack.c.l.b16 %v4952
  %v5241 = vunpack.c.l.b16 %v4953
  %v5242 = vunpack.c.l.b16 %v4954
  %v5243 = vunpack.c.l.b16 %v4955
  %v5244 = vunpack.c.l.b16 %v4956
  %v5245 = vunpack.c.l.b16 %v4957
  %v5246 = vunpack.c.l.b16 %v4958
  %v5247 = vunpack.c.l.b16 %v4959
  %v5248 = vunpack.c.l.b16 %v4960
  %v5249 = vunpack.c.l.b16 %v4961
  %v5250 = vunpack.c.l.b16 %v4962
  %v5251 = vunpack.c.l.b16 %v4963
  %v5252 = vunpack.c.l.b16 %v4964
  %v5253 = vunpack.c.l.b16 %v4965
  %v5254 = vunpack.c.l.b16 %v4966
  %v5255 = vunpack.c.l.b16 %v4967
  %v5256 = vunpack.c.l.b16 %v4968
  %v5257 = vunpack.c.l.b16 %v4969
  %v5258 = vunpack.c.l.b16 %v4970
  %v5259 = vunpack.c.l.b16 %v4971
  %v5260 = vunpack.c.l.b16 %v4972
  %v5261 = vunpack.c.l.b16 %v4973
  %v5262 = vunpack.c.l.b16 %v4974
  %v5263 = vunpack.c.l.b16 %v4975
  %v5264 = vunpack.c.l.b16 %v4976
  %v5265 = vunpack.c.l.b16 %v4977
  %v5266 = vunpack.c.l.b16 %v4978
  %v5267 = vunpack.c.l.b16 %v4979
  %v5268 = vunpack.c.l.b16 %v4980
  %v5269 = vunpack.c.l.b16 %v4981
  %v5270 = vunpack.c.l.b16 %v4982
  %v5271 = vunpack.c.l.b16 %v4983
  %v5272 = vunpack.c.l.b16 %v4984
  %v5273 = vunpack.c.l.b16 %v4985
  %v5274 = vunpack.c.l.b16 %v4986
  %v5275 = vunpack.c.l.b16 %v4987
  %v5276 = vunpack.c.l.b16 %v4988
  %v5277 = vunpack.c.l.b16 %v4989
  %v5278 = vunpack.c.l.b16 %v4990
  %v5279 = vunpack.c.l.b16 %v4991
  %v5280 = vunpack.c.l.b16 %v4992
  %v5281 = vunpack.c.l.b16 %v4993
  %v5282 = vunpack.c.l.b16 %v4994
  %v5283 = vunpack.c.l.b16 %v4995
  %v5284 = vunpack.c.l.b16 %v4996
  %v5285 = vunpack.c.l.b16 %v4997
  %v5286 = vunpack.c.l.b16 %v4998
  %v5287 = vunpack.c.l.b16 %v4999
  %v5288 = vunpack.c.l.b16 %v5000
  %v5289 = vunpack.c.l.b16 %v5001
  %v5290 = vunpack.c.l.b16 %v5002
  %v5291 = vunpack.c.l.b16 %v5003
  %v5292 = vunpack.c.l.b16 %v5004
  %v5293 = vunpack.c.l.b16 %v5005
  %v5294 = vunpack.c.l.b16 %v5006
  %v5295 = vpack.c.b16 %v5152, %v5151
  %v5296 = vpack.c.b16 %v5154, %v5153
  %v5297 = vpack.c.b16 %v5156, %v5155
  %v5298 = vpack.c.b16 %v5158, %v5157
  %v5299 = vpack.c.b16 %v5160, %v5159
  %v5300 = vpack.c.b16 %v5162, %v5161
  %v5301 = vpack.c.b16 %v5164, %v5163
  %v5302 = vpack.c.b16 %v5166, %v5165
  %v5303 = vpack.c.b16 %v5168, %v5167
  %v5304 = vpack.c.b16 %v5170, %v5169
  %v5305 = vpack.c.b16 %v5172, %v5171
  %v5306 = vpack.c.b16 %v5174, %v5173
  %v5307 = vpack.c.b16 %v5176, %v5175
  %v5308 = vpack.c.b16 %v5178, %v5177
  %v5309 = vpack.c.b16 %v5180, %v5179
  %v5310 = vpack.c.b16 %v5182, %v5181
  %v5311 = vpack.c.b16 %v5184, %v5183
  %v5312 = vpack.c.b16 %v5186, %v5185
  %v5313 = vpack.c.b16 %v5188, %v5187
  %v5314 = vpack.c.b16 %v5190, %v5189
  %v5315 = vpack.c.b16 %v5192, %v5191
  %v5316 = vpack.c.b16 %v5194, %v5193
  %v5317 = vpack.c.b16 %v5196, %v5195
  %v5318 = vpack.c.b16 %v5198, %v5197
  %v5319 = vpack.c.b16 %v5200, %v5199
  %v5320 = vpack.c.b16 %v5202, %v5201
  %v5321 = vpack.c.b16 %v5204, %v5203
  %v5322 = vpack.c.b16 %v5206, %v5205
  %v5323 = vpack.c.b16 %v5208, %v5207
  %v5324 = vpack.c.b16 %v5210, %v5209
  %v5325 = vpack.c.b16 %v5212, %v5211
  %v5326 = vpack.c.b16 %v5214, %v5213
  %v5327 = vpack.c.b16 %v5216, %v5215
  %v5328 = vpack.c.b16 %v5218, %v5217
  %v5329 = vpack.c.b16 %v5220, %v5219
  %v5330 = vpack.c.b16 %v5222, %v5221
  %v5331 = vpack.c.b16 %v5224, %v5223
  %v5332 = vpack.c.b16 %v5226, %v5225
  %v5333 = vpack.c.b16 %v5228, %v5227
  %v5334 = vpack.c.b16 %v5230, %v5229
  %v5335 = vpack.c.b16 %v5232, %v5231
  %v5336 = vpack.c.b16 %v5234, %v5233
  %v5337 = vpack.c.b16 %v5236, %v5235
  %v5338 = vpack.c.b16 %v5238, %v5237
  %v5339 = vpack.c.b16 %v5240, %v5239
  %v5340 = vpack.c.b16 %v5242, %v5241
  %v5341 = vpack.c.b16 %v5244, %v5243
  %v5342 = vpack.c.b16 %v5246, %v5245
  %v5343 = vpack.c.b16 %v5248, %v5247
  %v5344 = vpack.c.b16 %v5250, %v5249
  %v5345 = vpack.c.b16 %v5252, %v5251
  %v5346 = vpack.c.b16 %v5254, %v5253
  %v5347 = vpack.c.b16 %v5256, %v5255
  %v5348 = vpack.c.b16 %v5258, %v5257
  %v5349 = vpack.c.b16 %v5260, %v5259
  %v5350 = vpack.c.b16 %v5262, %v5261
  %v5351 = vpack.c.b16 %v5264, %v5263
  %v5352 = vpack.c.b16 %v5266, %v5265
  %v5353 = vpack.c.b16 %v5268, %v5267
  %v5354 = vpack.c.b16 %v5270, %v5269
  %v5355 = vpack.c.b16 %v5272, %v5271
  %v5356 = vpack.c.b16 %v5274, %v5273
  %v5357 = vpack.c.b16 %v5276, %v5275
  %v5358 = vpack.c.b16 %v5278, %v5277
  %v5359 = vpack.c.b16 %v5280, %v5279
  %v5360 = vpack.c.b16 %v5282, %v5281
  %v5361 = vpack.c.b16 %v5284, %v5283
  %v5362 = vpack.c.b16 %v5286, %v5285
  %v5363 = vpack.c.b16 %v5288, %v5287
  %v5364 = vpack.c.b16 %v5290, %v5289
  %v5365 = vpack.c.b16 %v5292, %v5291
  %v5366 = vpack.c.b16 %v5294, %v5293
  %5439 = vmatprep.subr.bf16.mxu0 0
  %5440 = vmatpush1.bf16.msra.mxu0 %v5295
  %5441 = vmatprep.subr.bf16.mxu0 0
  %5442 = vmatpush1.bf16.msra.mxu0 %v5296
  %5443 = vmatprep.subr.bf16.mxu0 0
  %5444 = vmatpush1.bf16.msra.mxu0 %v5297
  %5445 = vmatprep.subr.bf16.mxu0 0
  %5446 = vmatpush1.bf16.msra.mxu0 %v5298
  %5447 = vmatprep.subr.bf16.mxu0 0
  %5448 = vmatpush1.bf16.msra.mxu0 %v5299
  %5449 = vmatprep.subr.bf16.mxu0 0
  %5450 = vmatpush1.bf16.msra.mxu0 %v5300
  %5451 = vmatprep.subr.bf16.mxu0 0
  %5452 = vmatpush1.bf16.msra.mxu0 %v5301
  %5453 = vmatprep.subr.bf16.mxu0 0
  %5454 = vmatpush1.bf16.msra.mxu0 %v5302
  %5455 = vmatprep.subr.bf16.mxu0 0
  %5456 = vmatpush1.bf16.msra.mxu0 %v5303
  %5457 = vmatprep.subr.bf16.mxu0 0
  %5458 = vmatpush1.bf16.msra.mxu0 %v5304
  %5459 = vmatprep.subr.bf16.mxu0 0
  %5460 = vmatpush1.bf16.msra.mxu0 %v5305
  %5461 = vmatprep.subr.bf16.mxu0 0
  %5462 = vmatpush1.bf16.msra.mxu0 %v5306
  %5463 = vmatprep.subr.bf16.mxu0 0
  %5464 = vmatpush1.bf16.msra.mxu0 %v5307
  %5465 = vmatprep.subr.bf16.mxu0 0
  %5466 = vmatpush1.bf16.msra.mxu0 %v5308
  %5467 = vmatprep.subr.bf16.mxu0 0
  %5468 = vmatpush1.bf16.msra.mxu0 %v5309
  %5469 = vmatprep.subr.bf16.mxu0 0
  %5470 = vmatpush1.bf16.msra.mxu0 %v5310
  %5471 = vmatprep.mubr.bf16.mxu0 %v4846
  %5472 = vmatmul.mubr.bf16.gmra.mrb[0].mxu0 %v4845
  %v5473 = vpop.f32.mrb[0].mxu0
  %v5474 = vadd.f32 0.0, %v5473
  %v5475 = vpop.f32.mrb[0].mxu0
  %v5476 = vpop.f32.mrb[0].mxu0
  %v5477 = vadd.f32 0.0, %v5476
  %v5478 = vpop.f32.mrb[0].mxu0
  %5479 = vmatprep.mubr.bf16.mxu0 %v4855
  %5480 = vmatmul.mubr.bf16.gmra.mrb[0].mxu0 %v4854
  %v5481 = vpop.f32.mrb[0].mxu0
  %v5482 = vadd.f32 0.0, %v5481
  %v5483 = vpop.f32.mrb[0].mxu0
  %v5484 = vpop.f32.mrb[0].mxu0
  %v5485 = vadd.f32 0.0, %v5484
  %v5486 = vpop.f32.mrb[0].mxu0
  %5487 = vdwg.mxu0
  %5488 = vmatprep.subr.bf16.mxu0 0
  %5489 = vmatpush1.bf16.msra.mxu0 %v5311
  %5490 = vmatprep.subr.bf16.mxu0 0
  %5491 = vmatpush1.bf16.msra.mxu0 %v5312
  %5492 = vmatprep.subr.bf16.mxu0 0
  %5493 = vmatpush1.bf16.msra.mxu0 %v5313
  %5494 = vmatprep.subr.bf16.mxu0 0
  %5495 = vmatpush1.bf16.msra.mxu0 %v5314
  %5496 = vmatprep.subr.bf16.mxu0 0
  %5497 = vmatpush1.bf16.msra.mxu0 %v5315
  %5498 = vmatprep.subr.bf16.mxu0 0
  %5499 = vmatpush1.bf16.msra.mxu0 %v5316
  %5500 = vmatprep.subr.bf16.mxu0 0
  %5501 = vmatpush1.bf16.msra.mxu0 %v5317
  %5502 = vmatprep.subr.bf16.mxu0 0
  %5503 = vmatpush1.bf16.msra.mxu0 %v5318
  %5504 = vmatprep.subr.bf16.mxu0 0
  %5505 = vmatpush1.bf16.msra.mxu0 %v5319
  %5506 = vmatprep.subr.bf16.mxu0 0
  %5507 = vmatpush1.bf16.msra.mxu0 %v5320
  %5508 = vmatprep.subr.bf16.mxu0 0
  %5509 = vmatpush1.bf16.msra.mxu0 %v5321
  %5510 = vmatprep.subr.bf16.mxu0 0
  %5511 = vmatpush1.bf16.msra.mxu0 %v5322
  %5512 = vmatprep.subr.bf16.mxu0 0
  %5513 = vmatpush1.bf16.msra.mxu0 %v5323
  %5514 = vmatprep.subr.bf16.mxu0 0
  %5515 = vmatpush1.bf16.msra.mxu0 %v5324
  %5516 = vmatprep.subr.bf16.mxu0 0
  %5517 = vmatpush1.bf16.msra.mxu0 %v5325
  %5518 = vmatprep.subr.bf16.mxu0 0
  %5519 = vmatpush1.bf16.msra.mxu0 %v5326
  %5520 = vmatprep.mubr.bf16.mxu0 %v4848
  %5521 = vmatmul.mubr.bf16.gmra.mrb[0].mxu0 %v4847
  %v5522 = vpop.f32.mrb[0].mxu0
  %v5523 = vadd.f32 %v5474, %v5522
  %v5524 = vpop.f32.mrb[0].mxu0
  %v5525 = vpop.f32.mrb[0].mxu0
  %v5526 = vadd.f32 %v5477, %v5525
  %v5527 = vpop.f32.mrb[0].mxu0
  %5528 = vmatprep.mubr.bf16.mxu0 %v4857
  %5529 = vmatmul.mubr.bf16.gmra.mrb[0].mxu0 %v4856
  %v5530 = vpop.f32.mrb[0].mxu0
  %v5531 = vadd.f32 %v5482, %v5530
  %v5532 = vpop.f32.mrb[0].mxu0
  %v5533 = vpop.f32.mrb[0].mxu0
  %v5534 = vadd.f32 %v5485, %v5533
  %v5535 = vpop.f32.mrb[0].mxu0
  %5536 = vdwg.mxu0
  %5537 = vmatprep.subr.bf16.mxu0 0
  %5538 = vmatpush1.bf16.msra.mxu0 %v5327
  %5539 = vmatprep.subr.bf16.mxu0 0
  %5540 = vmatpush1.bf16.msra.mxu0 %v5328
  %5541 = vmatprep.subr.bf16.mxu0 0
  %5542 = vmatpush1.bf16.msra.mxu0 %v5329
  %5543 = vmatprep.subr.bf16.mxu0 0
  %5544 = vmatpush1.bf16.msra.mxu0 %v5330
  %5545 = vmatprep.subr.bf16.mxu0 0
  %5546 = vmatpush1.bf16.msra.mxu0 %v5331
  %5547 = vmatprep.subr.bf16.mxu0 0
  %5548 = vmatpush1.bf16.msra.mxu0 %v5332
  %5549 = vmatprep.subr.bf16.mxu0 0
  %5550 = vmatpush1.bf16.msra.mxu0 %v5333
  %5551 = vmatprep.subr.bf16.mxu0 0
  %5552 = vmatpush1.bf16.msra.mxu0 %v5334
  %5553 = vmatprep.subr.bf16.mxu0 0
  %5554 = vmatpush1.bf16.msra.mxu0 %v5335
  %5555 = vmatprep.subr.bf16.mxu0 0
  %5556 = vmatpush1.bf16.msra.mxu0 %v5336
  %5557 = vmatprep.subr.bf16.mxu0 0
  %5558 = vmatpush1.bf16.msra.mxu0 %v5337
  %5559 = vmatprep.subr.bf16.mxu0 0
  %5560 = vmatpush1.bf16.msra.mxu0 %v5338
  %5561 = vmatprep.subr.bf16.mxu0 0
  %5562 = vmatpush1.bf16.msra.mxu0 %v5339
  %5563 = vmatprep.subr.bf16.mxu0 0
  %5564 = vmatpush1.bf16.msra.mxu0 %v5340
  %5565 = vmatprep.subr.bf16.mxu0 0
  %5566 = vmatpush1.bf16.msra.mxu0 %v5341
  %5567 = vmatprep.subr.bf16.mxu0 0
  %5568 = vmatpush1.bf16.msra.mxu0 %v5342
  %5569 = vmatprep.mubr.bf16.mxu0 %v4850
  %5570 = vmatmul.mubr.bf16.gmra.mrb[0].mxu0 %v4849
  %v5571 = vpop.f32.mrb[0].mxu0
  %v5572 = vadd.f32 %v5523, %v5571
  %v5573 = vpop.f32.mrb[0].mxu0
  %v5574 = vpop.f32.mrb[0].mxu0
  %v5575 = vadd.f32 %v5526, %v5574
  %v5576 = vpop.f32.mrb[0].mxu0
  %5577 = vmatprep.mubr.bf16.mxu0 %v4859
  %5578 = vmatmul.mubr.bf16.gmra.mrb[0].mxu0 %v4858
  %v5579 = vpop.f32.mrb[0].mxu0
  %v5580 = vadd.f32 %v5531, %v5579
  %v5581 = vpop.f32.mrb[0].mxu0
  %v5582 = vpop.f32.mrb[0].mxu0
  %v5583 = vadd.f32 %v5534, %v5582
  %v5584 = vpop.f32.mrb[0].mxu0
  %5585 = vdwg.mxu0
  %5586 = vmatprep.subr.bf16.mxu0 0
  %5587 = vmatpush1.bf16.msra.mxu0 %v5343
  %5588 = vmatprep.subr.bf16.mxu0 0
  %5589 = vmatpush1.bf16.msra.mxu0 %v5344
  %5590 = vmatprep.subr.bf16.mxu0 0
  %5591 = vmatpush1.bf16.msra.mxu0 %v5345
  %5592 = vmatprep.subr.bf16.mxu0 0
  %5593 = vmatpush1.bf16.msra.mxu0 %v5346
  %5594 = vmatprep.subr.bf16.mxu0 0
  %5595 = vmatpush1.bf16.msra.mxu0 %v5347
  %5596 = vmatprep.subr.bf16.mxu0 0
  %5597 = vmatpush1.bf16.msra.mxu0 %v5348
  %5598 = vmatprep.subr.bf16.mxu0 0
  %5599 = vmatpush1.bf16.msra.mxu0 %v5349
  %5600 = vmatprep.subr.bf16.mxu0 0
  %5601 = vmatpush1.bf16.msra.mxu0 %v5350
  %5602 = vmatprep.subr.bf16.mxu0 0
  %5603 = vmatpush1.bf16.msra.mxu0 %v5351
  %5604 = vmatprep.subr.bf16.mxu0 0
  %5605 = vmatpush1.bf16.msra.mxu0 %v5352
  %5606 = vmatprep.subr.bf16.mxu0 0
  %5607 = vmatpush1.bf16.msra.mxu0 %v5353
  %5608 = vmatprep.subr.bf16.mxu0 0
  %5609 = vmatpush1.bf16.msra.mxu0 %v5354
  %5610 = vmatprep.subr.bf16.mxu0 0
  %5611 = vmatpush1.bf16.msra.mxu0 %v5355
  %5612 = vmatprep.subr.bf16.mxu0 0
  %5613 = vmatpush1.bf16.msra.mxu0 %v5356
  %5614 = vmatprep.subr.bf16.mxu0 0
  %5615 = vmatpush1.bf16.msra.mxu0 %v5357
  %5616 = vmatprep.subr.bf16.mxu0 0
  %5617 = vmatpush1.bf16.msra.mxu0 %v5358
  %5618 = vmatprep.mubr.bf16.mxu0 %v4852
  %5619 = vmatmul.mubr.bf16.gmra.mrb[0].mxu0 %v4851
  %v5620 = vpop.f32.mrb[0].mxu0
  %v5621 = vadd.f32 %v5572, %v5620
  %v5622 = vpop.f32.mrb[0].mxu0
  %v5623 = vpop.f32.mrb[0].mxu0
  %v5624 = vadd.f32 %v5575, %v5623
  %v5625 = vpop.f32.mrb[0].mxu0
  %5626 = vmatprep.mubr.bf16.mxu0 %v4861
  %5627 = vmatmul.mubr.bf16.gmra.mrb[0].mxu0 %v4860
  %v5628 = vpop.f32.mrb[0].mxu0
  %v5629 = vadd.f32 %v5580, %v5628
  %v5630 = vpop.f32.mrb[0].mxu0
  %v5631 = vpop.f32.mrb[0].mxu0
  %v5632 = vadd.f32 %v5583, %v5631
  %v5633 = vpop.f32.mrb[0].mxu0
  %5634 = vdwg.mxu0
  %5635 = vmatprep.subr.bf16.mxu0 0
  %5636 = vmatpush1.bf16.msra.mxu0 %v5359
  %5637 = vmatprep.subr.bf16.mxu0 0
  %5638 = vmatpush1.bf16.msra.mxu0 %v5360
  %5639 = vmatprep.subr.bf16.mxu0 0
  %5640 = vmatpush1.bf16.msra.mxu0 %v5361
  %5641 = vmatprep.subr.bf16.mxu0 0
  %5642 = vmatpush1.bf16.msra.mxu0 %v5362
  %5643 = vmatprep.subr.bf16.mxu0 0
  %5644 = vmatpush1.bf16.msra.mxu0 %v5363
  %5645 = vmatprep.subr.bf16.mxu0 0
  %5646 = vmatpush1.bf16.msra.mxu0 %v5364
  %5647 = vmatprep.subr.bf16.mxu0 0
  %5648 = vmatpush1.bf16.msra.mxu0 %v5365
  %5649 = vmatprep.subr.bf16.mxu0 0
  %5650 = vmatpush1.bf16.msra.mxu0 %v5366
  %5651 = vmatprep.subr.bf16.mxu0 0
  %5652 = vmatpush1.bf16.msra.mxu0 0
  %5653 = vmatprep.subr.bf16.mxu0 0
  %5654 = vmatpush1.bf16.msra.mxu0 0
  %5655 = vmatprep.subr.bf16.mxu0 0
  %5656 = vmatpush1.bf16.msra.mxu0 0
  %5657 = vmatprep.subr.bf16.mxu0 0
  %5658 = vmatpush1.bf16.msra.mxu0 0
  %5659 = vmatprep.subr.bf16.mxu0 0
  %5660 = vmatpush1.bf16.msra.mxu0 0
  %5661 = vmatprep.subr.bf16.mxu0 0
  %5662 = vmatpush1.bf16.msra.mxu0 0
  %5663 = vmatprep.subr.bf16.mxu0 0
  %5664 = vmatpush1.bf16.msra.mxu0 0
  %5665 = vmatprep.subr.bf16.mxu0 0
  %5666 = vmatpush1.bf16.msra.mxu0 0
  %5667 = vmatprep.mubr.bf16.mxu0 0
  %5668 = vmatmul.mubr.bf16.gmra.mrb[0].mxu0 %v4853
  %v5669 = vpop.f32.mrb[0].mxu0
  %v5670 = vadd.f32 %v5621, %v5669
  %v5671 = vpop.f32.mrb[0].mxu0
  %v5672 = vpop.f32.mrb[0].mxu0
  %v5673 = vadd.f32 %v5624, %v5672
  %v5674 = vpop.f32.mrb[0].mxu0
  %5675 = vmatprep.mubr.bf16.mxu0 0
  %5676 = vmatmul.mubr.bf16.gmra.mrb[0].mxu0 %v4862
  %v5677 = vpop.f32.mrb[0].mxu0
  %v5678 = vadd.f32 %v5629, %v5677
  %v5679 = vpop.f32.mrb[0].mxu0
  %v5680 = vpop.f32.mrb[0].mxu0
  %v5681 = vadd.f32 %v5632, %v5680
  %v5682 = vpop.f32.mrb[0].mxu0
  %5683 = vdwg.mxu0
  %v5684 = vld [vmem:[%s6 + $0x6] sm:$0x1]
  %v5685 = vlaneseq
  %v5686 = vshrl.u32 %v5685, 7
  %v5687 = vsub.s32 0, %v5686
  %v5688 = vrot.slane %v5684, %v5687
  %v5689 = vmul.f32 %v5670, %v5688
  %v5690 = vmul.f32 %v5673, %v5688
  %v5691 = vmul.f32 %v5678, %v5688
  %v5692 = vmul.f32 %v5681, %v5688
  %v5693 = vld [vmem:[%s6 + $0x7] sm:$0x1]
  %v5694 = vlaneseq
  %v5695 = vshrl.u32 %v5694, 7
  %v5696 = vsub.s32 0, %v5695
  %v5697 = vrot.slane %v5693, %v5696
  %v5698 = vadd.f32 %v5689, %v5697
  %v5699 = vadd.f32 %v5690, %v5697
  %v5700 = vadd.f32 %v5691, %v5697
  %v5701 = vadd.f32 %v5692, %v5697
  %vm5702 = vcmp.ge.f32.partialorder %v5698, 0.0
  %vm5703 = vcmp.ge.f32.partialorder %v5699, 0.0
  %vm5704 = vcmp.ge.f32.partialorder %v5700, 0.0
  %vm5705 = vcmp.ge.f32.partialorder %v5701, 0.0
  %v5706 = vmul.f32 %v5698, 0.2
  %v5707 = vmul.f32 %v5699, 0.2
  %v5708 = vmul.f32 %v5700, 0.2
  %v5709 = vmul.f32 %v5701, 0.2
  %v5710 = vsel %vm5702, %v5698, %v5706
  %v5711 = vsel %vm5703, %v5699, %v5707
  %v5712 = vsel %vm5704, %v5700, %v5708
  %v5713 = vsel %vm5705, %v5701, %v5709
  %5714 = vst [vmem:[#allocation5] sm:$0xff] %v5710
  %5715 = vst [vmem:[#allocation5 + $0x8] sm:$0xff] %v5711
  %5716 = vst [vmem:[#allocation5 + $0x10] sm:$0xff] %v5712
  %5717 = vst [vmem:[#allocation5 + $0x18] sm:$0xff] %v5713
  %v5718 = vld [vmem:[#allocation5] sm:$0x3]
  %v5719 = vpack.c.bf16 %v5718, %v5718
  %5720 = vst [vmem:[#allocation6] sm:$0x1] %v5719
  %v5721 = vld [vmem:[#allocation5 + $0x1] sm:$0x3]
  %v5722 = vpack.c.bf16 %v5721, %v5721
  %5723 = vst [vmem:[#allocation6 + $0x8] sm:$0x1] %v5722
  %v5724 = vld [vmem:[#allocation5 + $0x2] sm:$0x3]
  %v5725 = vpack.c.bf16 %v5724, %v5724
  %5726 = vst [vmem:[#allocation6 + $0x10] sm:$0x1] %v5725
  %v5727 = vld [vmem:[#allocation5 + $0x4] sm:$0x3]
  %v5728 = vpack.c.bf16 %v5727, %v5727
  %5729 = vst [vmem:[#allocation6 + $0x18] sm:$0x1] %v5728
  %v5730 = vld [vmem:[#allocation5 + $0x5] sm:$0x3]
  %v5731 = vpack.c.bf16 %v5730, %v5730
  %5732 = vst [vmem:[#allocation6 + $0x20] sm:$0x1] %v5731
  %v5733 = vld [vmem:[#allocation5 + $0x6] sm:$0x3]
  %v5734 = vpack.c.bf16 %v5733, %v5733
  %5735 = vst [vmem:[#allocation6 + $0x28] sm:$0x1] %v5734
  %v5736 = vld [vmem:[#allocation5 + $0x8] sm:$0x3]
  %v5737 = vpack.c.bf16 %v5736, %v5736
  %5738 = vst [vmem:[#allocation6 + $0x30] sm:$0x1] %v5737
  %v5739 = vld [vmem:[#allocation5 + $0x9] sm:$0x3]
  %v5740 = vpack.c.bf16 %v5739, %v5739
  %5741 = vst [vmem:[#allocation6 + $0x38] sm:$0x1] %v5740
  %v5742 = vld [vmem:[#allocation5 + $0xa] sm:$0x3]
  %v5743 = vpack.c.bf16 %v5742, %v5742
  %5744 = vst [vmem:[#allocation6 + $0x40] sm:$0x1] %v5743
  %v5745 = vld [vmem:[#allocation5 + $0x4] sm:$0x3]
  %v5746 = vpack.c.bf16 %v5745, %v5745
  %v5748 = vrot.slane %v5746, 7
  %5750 = vst [vmem:[#allocation6] sm:$0x2] %v5748
  %v5751 = vld [vmem:[#allocation5 + $0x5] sm:$0x3]
  %v5752 = vpack.c.bf16 %v5751, %v5751
  %v5754 = vrot.slane %v5752, 7
  %5756 = vst [vmem:[#allocation6 + $0x8] sm:$0x2] %v5754
  %v5757 = vld [vmem:[#allocation5 + $0x6] sm:$0x3]
  %v5758 = vpack.c.bf16 %v5757, %v5757
  %v5760 = vrot.slane %v5758, 7
  %5762 = vst [vmem:[#allocation6 + $0x10] sm:$0x2] %v5760
  %v5763 = vld [vmem:[#allocation5 + $0x8] sm:$0x3]
  %v5764 = vpack.c.bf16 %v5763, %v5763
  %v5766 = vrot.slane %v5764, 7
  %5768 = vst [vmem:[#allocation6 + $0x18] sm:$0x2] %v5766
  %v5769 = vld [vmem:[#allocation5 + $0x9] sm:$0x3]
  %v5770 = vpack.c.bf16 %v5769, %v5769
  %v5772 = vrot.slane %v5770, 7
  %5774 = vst [vmem:[#allocation6 + $0x20] sm:$0x2] %v5772
  %v5775 = vld [vmem:[#allocation5 + $0xa] sm:$0x3]
  %v5776 = vpack.c.bf16 %v5775, %v5775
  %v5778 = vrot.slane %v5776, 7
  %5780 = vst [vmem:[#allocation6 + $0x28] sm:$0x2] %v5778
  %v5781 = vld [vmem:[#allocation5 + $0xc] sm:$0x3]
  %v5782 = vpack.c.bf16 %v5781, %v5781
  %v5784 = vrot.slane %v5782, 7
  %5786 = vst [vmem:[#allocation6 + $0x30] sm:$0x2] %v5784
  %v5787 = vld [vmem:[#allocation5 + $0xd] sm:$0x3]
  %v5788 = vpack.c.bf16 %v5787, %v5787
  %v5790 = vrot.slane %v5788, 7
  %5792 = vst [vmem:[#allocation6 + $0x38] sm:$0x2] %v5790
  %v5793 = vld [vmem:[#allocation5 + $0xe] sm:$0x3]
  %v5794 = vpack.c.bf16 %v5793, %v5793
  %v5796 = vrot.slane %v5794, 7
  %5798 = vst [vmem:[#allocation6 + $0x40] sm:$0x2] %v5796
  %v5799 = vld [vmem:[#allocation5 + $0x10] sm:$0x3]
  %v5800 = vpack.c.bf16 %v5799, %v5799
  %v5802 = vrot.slane %v5800, 6
  %5804 = vst [vmem:[#allocation6] sm:$0x4] %v5802
  %v5805 = vld [vmem:[#allocation5 + $0x11] sm:$0x3]
  %v5806 = vpack.c.bf16 %v5805, %v5805
  %v5808 = vrot.slane %v5806, 6
  %5810 = vst [vmem:[#allocation6 + $0x8] sm:$0x4] %v5808
  %v5811 = vld [vmem:[#allocation5 + $0x12] sm:$0x3]
  %v5812 = vpack.c.bf16 %v5811, %v5811
  %v5814 = vrot.slane %v5812, 6
  %5816 = vst [vmem:[#allocation6 + $0x10] sm:$0x4] %v5814
  %v5817 = vld [vmem:[#allocation5 + $0x14] sm:$0x3]
  %v5818 = vpack.c.bf16 %v5817, %v5817
  %v5820 = vrot.slane %v5818, 6
  %5822 = vst [vmem:[#allocation6 + $0x18] sm:$0x4] %v5820
  %v5823 = vld [vmem:[#allocation5 + $0x15] sm:$0x3]
  %v5824 = vpack.c.bf16 %v5823, %v5823
  %v5826 = vrot.slane %v5824, 6
  %5828 = vst [vmem:[#allocation6 + $0x20] sm:$0x4] %v5826
  %v5829 = vld [vmem:[#allocation5 + $0x16] sm:$0x3]
  %v5830 = vpack.c.bf16 %v5829, %v5829
  %v5832 = vrot.slane %v5830, 6
  %5834 = vst [vmem:[#allocation6 + $0x28] sm:$0x4] %v5832
  %v5835 = vld [vmem:[#allocation5 + $0x18] sm:$0x3]
  %v5836 = vpack.c.bf16 %v5835, %v5835
  %v5838 = vrot.slane %v5836, 6
  %5840 = vst [vmem:[#allocation6 + $0x30] sm:$0x4] %v5838
  %v5841 = vld [vmem:[#allocation5 + $0x19] sm:$0x3]
  %v5842 = vpack.c.bf16 %v5841, %v5841
  %v5844 = vrot.slane %v5842, 6
  %5846 = vst [vmem:[#allocation6 + $0x38] sm:$0x4] %v5844
  %v5847 = vld [vmem:[#allocation5 + $0x1a] sm:$0x3]
  %v5848 = vpack.c.bf16 %v5847, %v5847
  %v5850 = vrot.slane %v5848, 6
  %5852 = vst [vmem:[#allocation6 + $0x40] sm:$0x4] %v5850
  %v5853 = vld [vmem:[#allocation5 + $0x14] sm:$0x3]
  %v5854 = vpack.c.bf16 %v5853, %v5853
  %v5856 = vrot.slane %v5854, 5
  %5858 = vst [vmem:[#allocation6] sm:$0x8] %v5856
  %v5859 = vld [vmem:[#allocation5 + $0x15] sm:$0x3]
  %v5860 = vpack.c.bf16 %v5859, %v5859
  %v5862 = vrot.slane %v5860, 5
  %5864 = vst [vmem:[#allocation6 + $0x8] sm:$0x8] %v5862
  %v5865 = vld [vmem:[#allocation5 + $0x16] sm:$0x3]
  %v5866 = vpack.c.bf16 %v5865, %v5865
  %v5868 = vrot.slane %v5866, 5
  %5870 = vst [vmem:[#allocation6 + $0x10] sm:$0x8] %v5868
  %v5871 = vld [vmem:[#allocation5 + $0x18] sm:$0x3]
  %v5872 = vpack.c.bf16 %v5871, %v5871
  %v5874 = vrot.slane %v5872, 5
  %5876 = vst [vmem:[#allocation6 + $0x18] sm:$0x8] %v5874
  %v5877 = vld [vmem:[#allocation5 + $0x19] sm:$0x3]
  %v5878 = vpack.c.bf16 %v5877, %v5877
  %v5880 = vrot.slane %v5878, 5
  %5882 = vst [vmem:[#allocation6 + $0x20] sm:$0x8] %v5880
  %v5883 = vld [vmem:[#allocation5 + $0x1a] sm:$0x3]
  %v5884 = vpack.c.bf16 %v5883, %v5883
  %v5886 = vrot.slane %v5884, 5
  %5888 = vst [vmem:[#allocation6 + $0x28] sm:$0x8] %v5886
  %v5889 = vld [vmem:[#allocation5 + $0x1c] sm:$0x3]
  %v5890 = vpack.c.bf16 %v5889, %v5889
  %v5892 = vrot.slane %v5890, 5
  %5894 = vst [vmem:[#allocation6 + $0x30] sm:$0x8] %v5892
  %v5895 = vld [vmem:[#allocation5 + $0x1d] sm:$0x3]
  %v5896 = vpack.c.bf16 %v5895, %v5895
  %v5898 = vrot.slane %v5896, 5
  %5900 = vst [vmem:[#allocation6 + $0x38] sm:$0x8] %v5898
  %v5901 = vld [vmem:[#allocation5 + $0x1e] sm:$0x3]
  %v5902 = vpack.c.bf16 %v5901, %v5901
  %v5904 = vrot.slane %v5902, 5
  %5906 = vst [vmem:[#allocation6 + $0x40] sm:$0x8] %v5904
  %v5907 = vld [vmem:[#allocation6] sm:$0xf]
  %v5908 = vld [vmem:[#allocation6 + $0x8] sm:$0xf]
  %v5909 = vld [vmem:[#allocation6 + $0x10] sm:$0xf]
  %v5910 = vld [vmem:[#allocation6 + $0x18] sm:$0xf]
  %v5911 = vld [vmem:[#allocation6 + $0x20] sm:$0xf]
  %v5912 = vld [vmem:[#allocation6 + $0x28] sm:$0xf]
  %v5913 = vld [vmem:[#allocation6 + $0x30] sm:$0xf]
  %v5914 = vld [vmem:[#allocation6 + $0x38] sm:$0xf]
  %v5915 = vld [vmem:[#allocation6 + $0x40] sm:$0xf]
  %v5916 = vld [vmem:[%s5] sm:$0xf]
  %v5917 = vld [vmem:[%s5 + $0x4] sm:$0xf]
  %v5918 = vld [vmem:[%s5 + $0x8] sm:$0xf]
  %v5919 = vld [vmem:[%s5 + $0xc] sm:$0xf]
  %v5920 = vld [vmem:[%s5 + $0x10] sm:$0xf]
  %v5921 = vld [vmem:[%s5 + $0x14] sm:$0xf]
  %v5922 = vld [vmem:[%s5 + $0x18] sm:$0xf]
  %v5923 = vld [vmem:[%s5 + $0x1c] sm:$0xf]
  %v5924 = vld [vmem:[%s5 + $0x20] sm:$0xf]
  %v5925 = vld [vmem:[%s5 + $0x24] sm:$0xf]
  %v5926 = vld [vmem:[%s5 + $0x28] sm:$0xf]
  %v5927 = vld [vmem:[%s5 + $0x2c] sm:$0xf]
  %v5928 = vld [vmem:[%s5 + $0x30] sm:$0xf]
  %v5929 = vld [vmem:[%s5 + $0x34] sm:$0xf]
  %v5930 = vld [vmem:[%s5 + $0x38] sm:$0xf]
  %v5931 = vld [vmem:[%s5 + $0x3c] sm:$0xf]
  %v5932 = vld [vmem:[%s5 + $0x40] sm:$0xf]
  %v5933 = vld [vmem:[%s5 + $0x44] sm:$0xf]
  %v5934 = vld [vmem:[%s5 + $0x48] sm:$0xf]
  %v5935 = vld [vmem:[%s5 + $0x4c] sm:$0xf]
  %v5936 = vld [vmem:[%s5 + $0x50] sm:$0xf]
  %v5937 = vld [vmem:[%s5 + $0x54] sm:$0xf]
  %v5938 = vld [vmem:[%s5 + $0x58] sm:$0xf]
  %v5939 = vld [vmem:[%s5 + $0x5c] sm:$0xf]
  %v5940 = vld [vmem:[%s5 + $0x60] sm:$0xf]
  %v5941 = vld [vmem:[%s5 + $0x64] sm:$0xf]
  %v5942 = vld [vmem:[%s5 + $0x68] sm:$0xf]
  %v5943 = vld [vmem:[%s5 + $0x6c] sm:$0xf]
  %v5944 = vld [vmem:[%s5 + $0x70] sm:$0xf]
  %v5945 = vld [vmem:[%s5 + $0x74] sm:$0xf]
  %v5946 = vld [vmem:[%s5 + $0x78] sm:$0xf]
  %v5947 = vld [vmem:[%s5 + $0x7c] sm:$0xf]
  %v5948 = vld [vmem:[%s5 + $0x80] sm:$0xf]
  %v5949 = vld [vmem:[%s5 + $0x84] sm:$0xf]
  %v5950 = vld [vmem:[%s5 + $0x88] sm:$0xf]
  %v5951 = vld [vmem:[%s5 + $0x8c] sm:$0xf]
  %v5952 = vld [vmem:[%s5 + $0x90] sm:$0xf]
  %v5953 = vld [vmem:[%s5 + $0x94] sm:$0xf]
  %v5954 = vld [vmem:[%s5 + $0x98] sm:$0xf]
  %v5955 = vld [vmem:[%s5 + $0x9c] sm:$0xf]
  %v5956 = vld [vmem:[%s5 + $0xa0] sm:$0xf]
  %v5957 = vld [vmem:[%s5 + $0xa4] sm:$0xf]
  %v5958 = vld [vmem:[%s5 + $0xa8] sm:$0xf]
  %v5959 = vld [vmem:[%s5 + $0xac] sm:$0xf]
  %v5960 = vld [vmem:[%s5 + $0xb0] sm:$0xf]
  %v5961 = vld [vmem:[%s5 + $0xb4] sm:$0xf]
  %v5962 = vld [vmem:[%s5 + $0xb8] sm:$0xf]
  %v5963 = vld [vmem:[%s5 + $0xbc] sm:$0xf]
  %v5964 = vld [vmem:[%s5 + $0xc0] sm:$0xf]
  %v5965 = vld [vmem:[%s5 + $0xc4] sm:$0xf]
  %v5966 = vld [vmem:[%s5 + $0xc8] sm:$0xf]
  %v5967 = vld [vmem:[%s5 + $0xcc] sm:$0xf]
  %v5968 = vld [vmem:[%s5 + $0xd0] sm:$0xf]
  %v5969 = vld [vmem:[%s5 + $0xd4] sm:$0xf]
  %v5970 = vld [vmem:[%s5 + $0xd8] sm:$0xf]
  %v5971 = vld [vmem:[%s5 + $0xdc] sm:$0xf]
  %v5972 = vld [vmem:[%s5 + $0xe0] sm:$0xf]
  %v5973 = vld [vmem:[%s5 + $0xe4] sm:$0xf]
  %v5974 = vld [vmem:[%s5 + $0xe8] sm:$0xf]
  %v5975 = vld [vmem:[%s5 + $0xec] sm:$0xf]
  %v5976 = vld [vmem:[%s5 + $0xf0] sm:$0xf]
  %v5977 = vld [vmem:[%s5 + $0xf4] sm:$0xf]
  %v5978 = vld [vmem:[%s5 + $0xf8] sm:$0xf]
  %v5979 = vld [vmem:[%s5 + $0xfc] sm:$0xf]
  %v5980 = vld [vmem:[%s5 + $0x100] sm:$0xf]
  %v5981 = vld [vmem:[%s5 + $0x104] sm:$0xf]
  %v5982 = vld [vmem:[%s5 + $0x108] sm:$0xf]
  %v5983 = vld [vmem:[%s5 + $0x10c] sm:$0xf]
  %v5984 = vld [vmem:[%s5 + $0x110] sm:$0xf]
  %v5985 = vld [vmem:[%s5 + $0x114] sm:$0xf]
  %v5986 = vld [vmem:[%s5 + $0x118] sm:$0xf]
  %v5987 = vld [vmem:[%s5 + $0x11c] sm:$0xf]
  %v5988 = vld [vmem:[%s5 + $0x120] sm:$0xf]
  %v5989 = vld [vmem:[%s5 + $0x124] sm:$0xf]
  %v5990 = vld [vmem:[%s5 + $0x128] sm:$0xf]
  %v5991 = vld [vmem:[%s5 + $0x12c] sm:$0xf]
  %v5992 = vld [vmem:[%s5 + $0x130] sm:$0xf]
  %v5993 = vld [vmem:[%s5 + $0x134] sm:$0xf]
  %v5994 = vld [vmem:[%s5 + $0x138] sm:$0xf]
  %v5995 = vld [vmem:[%s5 + $0x13c] sm:$0xf]
  %v5996 = vld [vmem:[%s5 + $0x140] sm:$0xf]
  %v5997 = vld [vmem:[%s5 + $0x144] sm:$0xf]
  %v5998 = vld [vmem:[%s5 + $0x148] sm:$0xf]
  %v5999 = vld [vmem:[%s5 + $0x14c] sm:$0xf]
  %v6000 = vld [vmem:[%s5 + $0x150] sm:$0xf]
  %v6001 = vld [vmem:[%s5 + $0x154] sm:$0xf]
  %v6002 = vld [vmem:[%s5 + $0x158] sm:$0xf]
  %v6003 = vld [vmem:[%s5 + $0x15c] sm:$0xf]
  %v6004 = vld [vmem:[%s5 + $0x160] sm:$0xf]
  %v6005 = vld [vmem:[%s5 + $0x164] sm:$0xf]
  %v6006 = vld [vmem:[%s5 + $0x168] sm:$0xf]
  %v6007 = vld [vmem:[%s5 + $0x16c] sm:$0xf]
  %v6008 = vld [vmem:[%s5 + $0x170] sm:$0xf]
  %v6009 = vld [vmem:[%s5 + $0x174] sm:$0xf]
  %v6010 = vld [vmem:[%s5 + $0x178] sm:$0xf]
  %v6011 = vld [vmem:[%s5 + $0x17c] sm:$0xf]
  %v6012 = vld [vmem:[%s5 + $0x180] sm:$0xf]
  %v6013 = vld [vmem:[%s5 + $0x184] sm:$0xf]
  %v6014 = vld [vmem:[%s5 + $0x188] sm:$0xf]
  %v6015 = vld [vmem:[%s5 + $0x18c] sm:$0xf]
  %v6016 = vld [vmem:[%s5 + $0x190] sm:$0xf]
  %v6017 = vld [vmem:[%s5 + $0x194] sm:$0xf]
  %v6018 = vld [vmem:[%s5 + $0x198] sm:$0xf]
  %v6019 = vld [vmem:[%s5 + $0x19c] sm:$0xf]
  %v6020 = vld [vmem:[%s5 + $0x1a0] sm:$0xf]
  %v6021 = vld [vmem:[%s5 + $0x1a4] sm:$0xf]
  %v6022 = vld [vmem:[%s5 + $0x1a8] sm:$0xf]
  %v6023 = vld [vmem:[%s5 + $0x1ac] sm:$0xf]
  %v6024 = vld [vmem:[%s5 + $0x1b0] sm:$0xf]
  %v6025 = vld [vmem:[%s5 + $0x1b4] sm:$0xf]
  %v6026 = vld [vmem:[%s5 + $0x1b8] sm:$0xf]
  %v6027 = vld [vmem:[%s5 + $0x1bc] sm:$0xf]
  %v6028 = vld [vmem:[%s5 + $0x1c0] sm:$0xf]
  %v6029 = vld [vmem:[%s5 + $0x1c4] sm:$0xf]
  %v6030 = vld [vmem:[%s5 + $0x1c8] sm:$0xf]
  %v6031 = vld [vmem:[%s5 + $0x1cc] sm:$0xf]
  %v6032 = vld [vmem:[%s5 + $0x1d0] sm:$0xf]
  %v6033 = vld [vmem:[%s5 + $0x1d4] sm:$0xf]
  %v6034 = vld [vmem:[%s5 + $0x1d8] sm:$0xf]
  %v6035 = vld [vmem:[%s5 + $0x1dc] sm:$0xf]
  %v6036 = vld [vmem:[%s5 + $0x1e0] sm:$0xf]
  %v6037 = vld [vmem:[%s5 + $0x1e4] sm:$0xf]
  %v6038 = vld [vmem:[%s5 + $0x1e8] sm:$0xf]
  %v6039 = vld [vmem:[%s5 + $0x1ec] sm:$0xf]
  %v6040 = vld [vmem:[%s5 + $0x1f0] sm:$0xf]
  %v6041 = vld [vmem:[%s5 + $0x1f4] sm:$0xf]
  %v6042 = vld [vmem:[%s5 + $0x1f8] sm:$0xf]
  %v6043 = vld [vmem:[%s5 + $0x1fc] sm:$0xf]
  %v6044 = vld [vmem:[%s5 + $0x200] sm:$0xf]
  %v6045 = vld [vmem:[%s5 + $0x204] sm:$0xf]
  %v6046 = vld [vmem:[%s5 + $0x208] sm:$0xf]
  %v6047 = vld [vmem:[%s5 + $0x20c] sm:$0xf]
  %v6048 = vld [vmem:[%s5 + $0x210] sm:$0xf]
  %v6049 = vld [vmem:[%s5 + $0x214] sm:$0xf]
  %v6050 = vld [vmem:[%s5 + $0x218] sm:$0xf]
  %v6051 = vld [vmem:[%s5 + $0x21c] sm:$0xf]
  %v6052 = vld [vmem:[%s5 + $0x220] sm:$0xf]
  %v6053 = vld [vmem:[%s5 + $0x224] sm:$0xf]
  %v6054 = vld [vmem:[%s5 + $0x228] sm:$0xf]
  %v6055 = vld [vmem:[%s5 + $0x22c] sm:$0xf]
  %v6056 = vld [vmem:[%s5 + $0x230] sm:$0xf]
  %v6057 = vld [vmem:[%s5 + $0x234] sm:$0xf]
  %v6058 = vld [vmem:[%s5 + $0x238] sm:$0xf]
  %v6059 = vld [vmem:[%s5 + $0x23c] sm:$0xf]
  %v6204 = vunpack.c.l.b16 %v5916
  %v6205 = vunpack.c.l.b16 %v5917
  %v6206 = vunpack.c.l.b16 %v5918
  %v6207 = vunpack.c.l.b16 %v5919
  %v6208 = vunpack.c.l.b16 %v5920
  %v6209 = vunpack.c.l.b16 %v5921
  %v6210 = vunpack.c.l.b16 %v5922
  %v6211 = vunpack.c.l.b16 %v5923
  %v6212 = vunpack.c.l.b16 %v5924
  %v6213 = vunpack.c.l.b16 %v5925
  %v6214 = vunpack.c.l.b16 %v5926
  %v6215 = vunpack.c.l.b16 %v5927
  %v6216 = vunpack.c.l.b16 %v5928
  %v6217 = vunpack.c.l.b16 %v5929
  %v6218 = vunpack.c.l.b16 %v5930
  %v6219 = vunpack.c.l.b16 %v5931
  %v6220 = vunpack.c.l.b16 %v5932
  %v6221 = vunpack.c.l.b16 %v5933
  %v6222 = vunpack.c.l.b16 %v5934
  %v6223 = vunpack.c.l.b16 %v5935
  %v6224 = vunpack.c.l.b16 %v5936
  %v6225 = vunpack.c.l.b16 %v5937
  %v6226 = vunpack.c.l.b16 %v5938
  %v6227 = vunpack.c.l.b16 %v5939
  %v6228 = vunpack.c.l.b16 %v5940
  %v6229 = vunpack.c.l.b16 %v5941
  %v6230 = vunpack.c.l.b16 %v5942
  %v6231 = vunpack.c.l.b16 %v5943
  %v6232 = vunpack.c.l.b16 %v5944
  %v6233 = vunpack.c.l.b16 %v5945
  %v6234 = vunpack.c.l.b16 %v5946
  %v6235 = vunpack.c.l.b16 %v5947
  %v6236 = vunpack.c.l.b16 %v5948
  %v6237 = vunpack.c.l.b16 %v5949
  %v6238 = vunpack.c.l.b16 %v5950
  %v6239 = vunpack.c.l.b16 %v5951
  %v6240 = vunpack.c.l.b16 %v5952
  %v6241 = vunpack.c.l.b16 %v5953
  %v6242 = vunpack.c.l.b16 %v5954
  %v6243 = vunpack.c.l.b16 %v5955
  %v6244 = vunpack.c.l.b16 %v5956
  %v6245 = vunpack.c.l.b16 %v5957
  %v6246 = vunpack.c.l.b16 %v5958
  %v6247 = vunpack.c.l.b16 %v5959
  %v6248 = vunpack.c.l.b16 %v5960
  %v6249 = vunpack.c.l.b16 %v5961
  %v6250 = vunpack.c.l.b16 %v5962
  %v6251 = vunpack.c.l.b16 %v5963
  %v6252 = vunpack.c.l.b16 %v5964
  %v6253 = vunpack.c.l.b16 %v5965
  %v6254 = vunpack.c.l.b16 %v5966
  %v6255 = vunpack.c.l.b16 %v5967
  %v6256 = vunpack.c.l.b16 %v5968
  %v6257 = vunpack.c.l.b16 %v5969
  %v6258 = vunpack.c.l.b16 %v5970
  %v6259 = vunpack.c.l.b16 %v5971
  %v6260 = vunpack.c.l.b16 %v5972
  %v6261 = vunpack.c.l.b16 %v5973
  %v6262 = vunpack.c.l.b16 %v5974
  %v6263 = vunpack.c.l.b16 %v5975
  %v6264 = vunpack.c.l.b16 %v5976
  %v6265 = vunpack.c.l.b16 %v5977
  %v6266 = vunpack.c.l.b16 %v5978
  %v6267 = vunpack.c.l.b16 %v5979
  %v6268 = vunpack.c.l.b16 %v5980
  %v6269 = vunpack.c.l.b16 %v5981
  %v6270 = vunpack.c.l.b16 %v5982
  %v6271 = vunpack.c.l.b16 %v5983
  %v6272 = vunpack.c.l.b16 %v5984
  %v6273 = vunpack.c.l.b16 %v5985
  %v6274 = vunpack.c.l.b16 %v5986
  %v6275 = vunpack.c.l.b16 %v5987
  %v6276 = vunpack.c.l.b16 %v5988
  %v6277 = vunpack.c.l.b16 %v5989
  %v6278 = vunpack.c.l.b16 %v5990
  %v6279 = vunpack.c.l.b16 %v5991
  %v6280 = vunpack.c.l.b16 %v5992
  %v6281 = vunpack.c.l.b16 %v5993
  %v6282 = vunpack.c.l.b16 %v5994
  %v6283 = vunpack.c.l.b16 %v5995
  %v6284 = vunpack.c.l.b16 %v5996
  %v6285 = vunpack.c.l.b16 %v5997
  %v6286 = vunpack.c.l.b16 %v5998
  %v6287 = vunpack.c.l.b16 %v5999
  %v6288 = vunpack.c.l.b16 %v6000
  %v6289 = vunpack.c.l.b16 %v6001
  %v6290 = vunpack.c.l.b16 %v6002
  %v6291 = vunpack.c.l.b16 %v6003
  %v6292 = vunpack.c.l.b16 %v6004
  %v6293 = vunpack.c.l.b16 %v6005
  %v6294 = vunpack.c.l.b16 %v6006
  %v6295 = vunpack.c.l.b16 %v6007
  %v6296 = vunpack.c.l.b16 %v6008
  %v6297 = vunpack.c.l.b16 %v6009
  %v6298 = vunpack.c.l.b16 %v6010
  %v6299 = vunpack.c.l.b16 %v6011
  %v6300 = vunpack.c.l.b16 %v6012
  %v6301 = vunpack.c.l.b16 %v6013
  %v6302 = vunpack.c.l.b16 %v6014
  %v6303 = vunpack.c.l.b16 %v6015
  %v6304 = vunpack.c.l.b16 %v6016
  %v6305 = vunpack.c.l.b16 %v6017
  %v6306 = vunpack.c.l.b16 %v6018
  %v6307 = vunpack.c.l.b16 %v6019
  %v6308 = vunpack.c.l.b16 %v6020
  %v6309 = vunpack.c.l.b16 %v6021
  %v6310 = vunpack.c.l.b16 %v6022
  %v6311 = vunpack.c.l.b16 %v6023
  %v6312 = vunpack.c.l.b16 %v6024
  %v6313 = vunpack.c.l.b16 %v6025
  %v6314 = vunpack.c.l.b16 %v6026
  %v6315 = vunpack.c.l.b16 %v6027
  %v6316 = vunpack.c.l.b16 %v6028
  %v6317 = vunpack.c.l.b16 %v6029
  %v6318 = vunpack.c.l.b16 %v6030
  %v6319 = vunpack.c.l.b16 %v6031
  %v6320 = vunpack.c.l.b16 %v6032
  %v6321 = vunpack.c.l.b16 %v6033
  %v6322 = vunpack.c.l.b16 %v6034
  %v6323 = vunpack.c.l.b16 %v6035
  %v6324 = vunpack.c.l.b16 %v6036
  %v6325 = vunpack.c.l.b16 %v6037
  %v6326 = vunpack.c.l.b16 %v6038
  %v6327 = vunpack.c.l.b16 %v6039
  %v6328 = vunpack.c.l.b16 %v6040
  %v6329 = vunpack.c.l.b16 %v6041
  %v6330 = vunpack.c.l.b16 %v6042
  %v6331 = vunpack.c.l.b16 %v6043
  %v6332 = vunpack.c.l.b16 %v6044
  %v6333 = vunpack.c.l.b16 %v6045
  %v6334 = vunpack.c.l.b16 %v6046
  %v6335 = vunpack.c.l.b16 %v6047
  %v6336 = vunpack.c.l.b16 %v6048
  %v6337 = vunpack.c.l.b16 %v6049
  %v6338 = vunpack.c.l.b16 %v6050
  %v6339 = vunpack.c.l.b16 %v6051
  %v6340 = vunpack.c.l.b16 %v6052
  %v6341 = vunpack.c.l.b16 %v6053
  %v6342 = vunpack.c.l.b16 %v6054
  %v6343 = vunpack.c.l.b16 %v6055
  %v6344 = vunpack.c.l.b16 %v6056
  %v6345 = vunpack.c.l.b16 %v6057
  %v6346 = vunpack.c.l.b16 %v6058
  %v6347 = vunpack.c.l.b16 %v6059
  %v6348 = vpack.c.b16 %v6205, %v6204
  %v6349 = vpack.c.b16 %v6207, %v6206
  %v6350 = vpack.c.b16 %v6209, %v6208
  %v6351 = vpack.c.b16 %v6211, %v6210
  %v6352 = vpack.c.b16 %v6213, %v6212
  %v6353 = vpack.c.b16 %v6215, %v6214
  %v6354 = vpack.c.b16 %v6217, %v6216
  %v6355 = vpack.c.b16 %v6219, %v6218
  %v6356 = vpack.c.b16 %v6221, %v6220
  %v6357 = vpack.c.b16 %v6223, %v6222
  %v6358 = vpack.c.b16 %v6225, %v6224
  %v6359 = vpack.c.b16 %v6227, %v6226
  %v6360 = vpack.c.b16 %v6229, %v6228
  %v6361 = vpack.c.b16 %v6231, %v6230
  %v6362 = vpack.c.b16 %v6233, %v6232
  %v6363 = vpack.c.b16 %v6235, %v6234
  %v6364 = vpack.c.b16 %v6237, %v6236
  %v6365 = vpack.c.b16 %v6239, %v6238
  %v6366 = vpack.c.b16 %v6241, %v6240
  %v6367 = vpack.c.b16 %v6243, %v6242
  %v6368 = vpack.c.b16 %v6245, %v6244
  %v6369 = vpack.c.b16 %v6247, %v6246
  %v6370 = vpack.c.b16 %v6249, %v6248
  %v6371 = vpack.c.b16 %v6251, %v6250
  %v6372 = vpack.c.b16 %v6253, %v6252
  %v6373 = vpack.c.b16 %v6255, %v6254
  %v6374 = vpack.c.b16 %v6257, %v6256
  %v6375 = vpack.c.b16 %v6259, %v6258
  %v6376 = vpack.c.b16 %v6261, %v6260
  %v6377 = vpack.c.b16 %v6263, %v6262
  %v6378 = vpack.c.b16 %v6265, %v6264
  %v6379 = vpack.c.b16 %v6267, %v6266
  %v6380 = vpack.c.b16 %v6269, %v6268
  %v6381 = vpack.c.b16 %v6271, %v6270
  %v6382 = vpack.c.b16 %v6273, %v6272
  %v6383 = vpack.c.b16 %v6275, %v6274
  %v6384 = vpack.c.b16 %v6277, %v6276
  %v6385 = vpack.c.b16 %v6279, %v6278
  %v6386 = vpack.c.b16 %v6281, %v6280
  %v6387 = vpack.c.b16 %v6283, %v6282
  %v6388 = vpack.c.b16 %v6285, %v6284
  %v6389 = vpack.c.b16 %v6287, %v6286
  %v6390 = vpack.c.b16 %v6289, %v6288
  %v6391 = vpack.c.b16 %v6291, %v6290
  %v6392 = vpack.c.b16 %v6293, %v6292
  %v6393 = vpack.c.b16 %v6295, %v6294
  %v6394 = vpack.c.b16 %v6297, %v6296
  %v6395 = vpack.c.b16 %v6299, %v6298
  %v6396 = vpack.c.b16 %v6301, %v6300
  %v6397 = vpack.c.b16 %v6303, %v6302
  %v6398 = vpack.c.b16 %v6305, %v6304
  %v6399 = vpack.c.b16 %v6307, %v6306
  %v6400 = vpack.c.b16 %v6309, %v6308
  %v6401 = vpack.c.b16 %v6311, %v6310
  %v6402 = vpack.c.b16 %v6313, %v6312
  %v6403 = vpack.c.b16 %v6315, %v6314
  %v6404 = vpack.c.b16 %v6317, %v6316
  %v6405 = vpack.c.b16 %v6319, %v6318
  %v6406 = vpack.c.b16 %v6321, %v6320
  %v6407 = vpack.c.b16 %v6323, %v6322
  %v6408 = vpack.c.b16 %v6325, %v6324
  %v6409 = vpack.c.b16 %v6327, %v6326
  %v6410 = vpack.c.b16 %v6329, %v6328
  %v6411 = vpack.c.b16 %v6331, %v6330
  %v6412 = vpack.c.b16 %v6333, %v6332
  %v6413 = vpack.c.b16 %v6335, %v6334
  %v6414 = vpack.c.b16 %v6337, %v6336
  %v6415 = vpack.c.b16 %v6339, %v6338
  %v6416 = vpack.c.b16 %v6341, %v6340
  %v6417 = vpack.c.b16 %v6343, %v6342
  %v6418 = vpack.c.b16 %v6345, %v6344
  %v6419 = vpack.c.b16 %v6347, %v6346
  %6492 = vmatprep.subr.bf16.mxu0 0
  %6493 = vmatpush1.bf16.msra.mxu0 %v6348
  %6494 = vmatprep.subr.bf16.mxu0 0
  %6495 = vmatpush1.bf16.msra.mxu0 %v6349
  %6496 = vmatprep.subr.bf16.mxu0 0
  %6497 = vmatpush1.bf16.msra.mxu0 %v6350
  %6498 = vmatprep.subr.bf16.mxu0 0
  %6499 = vmatpush1.bf16.msra.mxu0 %v6351
  %6500 = vmatprep.subr.bf16.mxu0 0
  %6501 = vmatpush1.bf16.msra.mxu0 %v6352
  %6502 = vmatprep.subr.bf16.mxu0 0
  %6503 = vmatpush1.bf16.msra.mxu0 %v6353
  %6504 = vmatprep.subr.bf16.mxu0 0
  %6505 = vmatpush1.bf16.msra.mxu0 %v6354
  %6506 = vmatprep.subr.bf16.mxu0 0
  %6507 = vmatpush1.bf16.msra.mxu0 %v6355
  %6508 = vmatprep.subr.bf16.mxu0 0
  %6509 = vmatpush1.bf16.msra.mxu0 %v6356
  %6510 = vmatprep.subr.bf16.mxu0 0
  %6511 = vmatpush1.bf16.msra.mxu0 %v6357
  %6512 = vmatprep.subr.bf16.mxu0 0
  %6513 = vmatpush1.bf16.msra.mxu0 %v6358
  %6514 = vmatprep.subr.bf16.mxu0 0
  %6515 = vmatpush1.bf16.msra.mxu0 %v6359
  %6516 = vmatprep.subr.bf16.mxu0 0
  %6517 = vmatpush1.bf16.msra.mxu0 %v6360
  %6518 = vmatprep.subr.bf16.mxu0 0
  %6519 = vmatpush1.bf16.msra.mxu0 %v6361
  %6520 = vmatprep.subr.bf16.mxu0 0
  %6521 = vmatpush1.bf16.msra.mxu0 %v6362
  %6522 = vmatprep.subr.bf16.mxu0 0
  %6523 = vmatpush1.bf16.msra.mxu0 %v6363
  %6524 = vmatprep.mubr.bf16.mxu0 %v5908
  %6525 = vmatmul.mubr.bf16.gmra.mrb[0].mxu0 %v5907
  %v6526 = vpop.f32.mrb[0].mxu0
  %v6527 = vadd.f32 0.0, %v6526
  %v6528 = vpop.f32.mrb[0].mxu0
  %v6529 = vpop.f32.mrb[0].mxu0
  %v6530 = vpop.f32.mrb[0].mxu0
  %6531 = vdwg.mxu0
  %6532 = vmatprep.subr.bf16.mxu0 0
  %6533 = vmatpush1.bf16.msra.mxu0 %v6364
  %6534 = vmatprep.subr.bf16.mxu0 0
  %6535 = vmatpush1.bf16.msra.mxu0 %v6365
  %6536 = vmatprep.subr.bf16.mxu0 0
  %6537 = vmatpush1.bf16.msra.mxu0 %v6366
  %6538 = vmatprep.subr.bf16.mxu0 0
  %6539 = vmatpush1.bf16.msra.mxu0 %v6367
  %6540 = vmatprep.subr.bf16.mxu0 0
  %6541 = vmatpush1.bf16.msra.mxu0 %v6368
  %6542 = vmatprep.subr.bf16.mxu0 0
  %6543 = vmatpush1.bf16.msra.mxu0 %v6369
  %6544 = vmatprep.subr.bf16.mxu0 0
  %6545 = vmatpush1.bf16.msra.mxu0 %v6370
  %6546 = vmatprep.subr.bf16.mxu0 0
  %6547 = vmatpush1.bf16.msra.mxu0 %v6371
  %6548 = vmatprep.subr.bf16.mxu0 0
  %6549 = vmatpush1.bf16.msra.mxu0 %v6372
  %6550 = vmatprep.subr.bf16.mxu0 0
  %6551 = vmatpush1.bf16.msra.mxu0 %v6373
  %6552 = vmatprep.subr.bf16.mxu0 0
  %6553 = vmatpush1.bf16.msra.mxu0 %v6374
  %6554 = vmatprep.subr.bf16.mxu0 0
  %6555 = vmatpush1.bf16.msra.mxu0 %v6375
  %6556 = vmatprep.subr.bf16.mxu0 0
  %6557 = vmatpush1.bf16.msra.mxu0 %v6376
  %6558 = vmatprep.subr.bf16.mxu0 0
  %6559 = vmatpush1.bf16.msra.mxu0 %v6377
  %6560 = vmatprep.subr.bf16.mxu0 0
  %6561 = vmatpush1.bf16.msra.mxu0 %v6378
  %6562 = vmatprep.subr.bf16.mxu0 0
  %6563 = vmatpush1.bf16.msra.mxu0 %v6379
  %6564 = vmatprep.mubr.bf16.mxu0 %v5910
  %6565 = vmatmul.mubr.bf16.gmra.mrb[0].mxu0 %v5909
  %v6566 = vpop.f32.mrb[0].mxu0
  %v6567 = vadd.f32 %v6527, %v6566
  %v6568 = vpop.f32.mrb[0].mxu0
  %v6569 = vpop.f32.mrb[0].mxu0
  %v6570 = vpop.f32.mrb[0].mxu0
  %6571 = vdwg.mxu0
  %6572 = vmatprep.subr.bf16.mxu0 0
  %6573 = vmatpush1.bf16.msra.mxu0 %v6380
  %6574 = vmatprep.subr.bf16.mxu0 0
  %6575 = vmatpush1.bf16.msra.mxu0 %v6381
  %6576 = vmatprep.subr.bf16.mxu0 0
  %6577 = vmatpush1.bf16.msra.mxu0 %v6382
  %6578 = vmatprep.subr.bf16.mxu0 0
  %6579 = vmatpush1.bf16.msra.mxu0 %v6383
  %6580 = vmatprep.subr.bf16.mxu0 0
  %6581 = vmatpush1.bf16.msra.mxu0 %v6384
  %6582 = vmatprep.subr.bf16.mxu0 0
  %6583 = vmatpush1.bf16.msra.mxu0 %v6385
  %6584 = vmatprep.subr.bf16.mxu0 0
  %6585 = vmatpush1.bf16.msra.mxu0 %v6386
  %6586 = vmatprep.subr.bf16.mxu0 0
  %6587 = vmatpush1.bf16.msra.mxu0 %v6387
  %6588 = vmatprep.subr.bf16.mxu0 0
  %6589 = vmatpush1.bf16.msra.mxu0 %v6388
  %6590 = vmatprep.subr.bf16.mxu0 0
  %6591 = vmatpush1.bf16.msra.mxu0 %v6389
  %6592 = vmatprep.subr.bf16.mxu0 0
  %6593 = vmatpush1.bf16.msra.mxu0 %v6390
  %6594 = vmatprep.subr.bf16.mxu0 0
  %6595 = vmatpush1.bf16.msra.mxu0 %v6391
  %6596 = vmatprep.subr.bf16.mxu0 0
  %6597 = vmatpush1.bf16.msra.mxu0 %v6392
  %6598 = vmatprep.subr.bf16.mxu0 0
  %6599 = vmatpush1.bf16.msra.mxu0 %v6393
  %6600 = vmatprep.subr.bf16.mxu0 0
  %6601 = vmatpush1.bf16.msra.mxu0 %v6394
  %6602 = vmatprep.subr.bf16.mxu0 0
  %6603 = vmatpush1.bf16.msra.mxu0 %v6395
  %6604 = vmatprep.mubr.bf16.mxu0 %v5912
  %6605 = vmatmul.mubr.bf16.gmra.mrb[0].mxu0 %v5911
  %v6606 = vpop.f32.mrb[0].mxu0
  %v6607 = vadd.f32 %v6567, %v6606
  %v6608 = vpop.f32.mrb[0].mxu0
  %v6609 = vpop.f32.mrb[0].mxu0
  %v6610 = vpop.f32.mrb[0].mxu0
  %6611 = vdwg.mxu0
  %6612 = vmatprep.subr.bf16.mxu0 0
  %6613 = vmatpush1.bf16.msra.mxu0 %v6396
  %6614 = vmatprep.subr.bf16.mxu0 0
  %6615 = vmatpush1.bf16.msra.mxu0 %v6397
  %6616 = vmatprep.subr.bf16.mxu0 0
  %6617 = vmatpush1.bf16.msra.mxu0 %v6398
  %6618 = vmatprep.subr.bf16.mxu0 0
  %6619 = vmatpush1.bf16.msra.mxu0 %v6399
  %6620 = vmatprep.subr.bf16.mxu0 0
  %6621 = vmatpush1.bf16.msra.mxu0 %v6400
  %6622 = vmatprep.subr.bf16.mxu0 0
  %6623 = vmatpush1.bf16.msra.mxu0 %v6401
  %6624 = vmatprep.subr.bf16.mxu0 0
  %6625 = vmatpush1.bf16.msra.mxu0 %v6402
  %6626 = vmatprep.subr.bf16.mxu0 0
  %6627 = vmatpush1.bf16.msra.mxu0 %v6403
  %6628 = vmatprep.subr.bf16.mxu0 0
  %6629 = vmatpush1.bf16.msra.mxu0 %v6404
  %6630 = vmatprep.subr.bf16.mxu0 0
  %6631 = vmatpush1.bf16.msra.mxu0 %v6405
  %6632 = vmatprep.subr.bf16.mxu0 0
  %6633 = vmatpush1.bf16.msra.mxu0 %v6406
  %6634 = vmatprep.subr.bf16.mxu0 0
  %6635 = vmatpush1.bf16.msra.mxu0 %v6407
  %6636 = vmatprep.subr.bf16.mxu0 0
  %6637 = vmatpush1.bf16.msra.mxu0 %v6408
  %6638 = vmatprep.subr.bf16.mxu0 0
  %6639 = vmatpush1.bf16.msra.mxu0 %v6409
  %6640 = vmatprep.subr.bf16.mxu0 0
  %6641 = vmatpush1.bf16.msra.mxu0 %v6410
  %6642 = vmatprep.subr.bf16.mxu0 0
  %6643 = vmatpush1.bf16.msra.mxu0 %v6411
  %6644 = vmatprep.mubr.bf16.mxu0 %v5914
  %6645 = vmatmul.mubr.bf16.gmra.mrb[0].mxu0 %v5913
  %v6646 = vpop.f32.mrb[0].mxu0
  %v6647 = vadd.f32 %v6607, %v6646
  %v6648 = vpop.f32.mrb[0].mxu0
  %v6649 = vpop.f32.mrb[0].mxu0
  %v6650 = vpop.f32.mrb[0].mxu0
  %6651 = vdwg.mxu0
  %6652 = vmatprep.subr.bf16.mxu0 0
  %6653 = vmatpush1.bf16.msra.mxu0 %v6412
  %6654 = vmatprep.subr.bf16.mxu0 0
  %6655 = vmatpush1.bf16.msra.mxu0 %v6413
  %6656 = vmatprep.subr.bf16.mxu0 0
  %6657 = vmatpush1.bf16.msra.mxu0 %v6414
  %6658 = vmatprep.subr.bf16.mxu0 0
  %6659 = vmatpush1.bf16.msra.mxu0 %v6415
  %6660 = vmatprep.subr.bf16.mxu0 0
  %6661 = vmatpush1.bf16.msra.mxu0 %v6416
  %6662 = vmatprep.subr.bf16.mxu0 0
  %6663 = vmatpush1.bf16.msra.mxu0 %v6417
  %6664 = vmatprep.subr.bf16.mxu0 0
  %6665 = vmatpush1.bf16.msra.mxu0 %v6418
  %6666 = vmatprep.subr.bf16.mxu0 0
  %6667 = vmatpush1.bf16.msra.mxu0 %v6419
  %6668 = vmatprep.subr.bf16.mxu0 0
  %6669 = vmatpush1.bf16.msra.mxu0 0
  %6670 = vmatprep.subr.bf16.mxu0 0
  %6671 = vmatpush1.bf16.msra.mxu0 0
  %6672 = vmatprep.subr.bf16.mxu0 0
  %6673 = vmatpush1.bf16.msra.mxu0 0
  %6674 = vmatprep.subr.bf16.mxu0 0
  %6675 = vmatpush1.bf16.msra.mxu0 0
  %6676 = vmatprep.subr.bf16.mxu0 0
  %6677 = vmatpush1.bf16.msra.mxu0 0
  %6678 = vmatprep.subr.bf16.mxu0 0
  %6679 = vmatpush1.bf16.msra.mxu0 0
  %6680 = vmatprep.subr.bf16.mxu0 0
  %6681 = vmatpush1.bf16.msra.mxu0 0
  %6682 = vmatprep.subr.bf16.mxu0 0
  %6683 = vmatpush1.bf16.msra.mxu0 0
  %6684 = vmatprep.mubr.bf16.mxu0 0
  %6685 = vmatmul.mubr.bf16.gmra.mrb[0].mxu0 %v5915
  %v6686 = vpop.f32.mrb[0].mxu0
  %v6687 = vadd.f32 %v6647, %v6686
  %v6688 = vpop.f32.mrb[0].mxu0
  %v6689 = vpop.f32.mrb[0].mxu0
  %v6690 = vpop.f32.mrb[0].mxu0
  %6691 = vdwg.mxu0
  %v6692 = vld [vmem:[%s7] sm:$0xff]
  %v6693 = vmul.f32 %v6687, %v6692
  %vm6694 = vcmask 1043456
  %v6695 = vsel %vm6694, %v6693, 0.0
  %v6696 = vrot.slane %v6695, 4
  %v6697 = vadd.f32 %v6695, %v6696
  %v6698 = vrot.slane %v6697, 2
  %v6699 = vadd.f32 %v6697, %v6698
  %v6700 = vrot.slane %v6699, 1
  %v6701 = vadd.f32 %v6699, %v6700
  %6702 = vadd.xlane.f32.xlu0 %v6701
  %v6703 = vpop.xlane.xlu0 %6702
  %v6704 = vld [vmem:[%s6 + $0xa] sm:$0x1]
  %v6705 = vadd.f32 %v6703, %v6704
  %v6706 = vxor.u32 %v6705, 2147483648
  %v6707 = vmul.f32 %v6706, 1.442695
  %v6708 = vpow.pop %v6707
  %v6709 = vadd.f32 %v6708, 1.0
  %v6710 = vrcp.pop %v6709
  %v6711 = vmul.f32 1.0, %v6710
  %6712 = vst [vmem:[%s8] sm:$0x1] %v6711
  %v6714 = vrot.slane %v6693, 4
  %v6716 = vsel %vm6694, %v6714, 0.0
  %v6717 = vrot.slane %v6716, 4
  %v6718 = vadd.f32 %v6716, %v6717
  %v6719 = vrot.slane %v6718, 2
  %v6720 = vadd.f32 %v6718, %v6719
  %v6721 = vrot.slane %v6720, 1
  %v6722 = vadd.f32 %v6720, %v6721
  %6723 = vadd.xlane.f32.xlu0 %v6722
  %v6724 = vpop.xlane.xlu0 %6723
  %v6725 = vld [vmem:[%s6 + $0xa] sm:$0x1]
  %v6726 = vadd.f32 %v6724, %v6725
  %v6727 = vxor.u32 %v6726, 2147483648
  %v6728 = vmul.f32 %v6727, 1.442695
  %v6729 = vpow.pop %v6728
  %v6730 = vadd.f32 %v6729, 1.0
  %v6731 = vrcp.pop %v6730
  %v6732 = vmul.f32 1.0, %v6731
  %6733 = vst [vmem:[%s8 + $0x1] sm:$0x1] %v6732
  // Predicated region
  $region34: #{discriminator_forward.1} parent=0 // pred_check
    _
  $region35: #{discriminator_forward.1} parent=0 // pred_check_branch
    %6735 = sbr.rel (0) target = $region37
  $region36: #{discriminator_forward.1} parent=0 // pred_region
    _
  $region37: #{discriminator_forward.1} parent=0 // pred_fallthru
    _
  // Predicated region
  $region38: #{discriminator_forward.1} parent=0 // pred_check
    _
  $region39: #{discriminator_forward.1} parent=0 // pred_check_branch
    %6737 = sbr.rel (0) target = $region41
  $region40: #{discriminator_forward.1} parent=0 // pred_region
    _
  $region41: #{discriminator_forward.1} parent=0 // pred_fallthru
    _

</llo_original>
